<compile_context>
chip_gen: v7x
topology: tpu7x:2x2x1
jax: 0.10.0
libtpu: 0.0.40
codegen_flags: <defaults>
</compile_context>

<pallas_src>
import functools

import jax
import jax.numpy as jnp
from jax.experimental import pallas as pl
from jax.experimental.pallas import tpu as pltpu


# ----------------------------------------------------------------------------
# In-kernel helpers
# ----------------------------------------------------------------------------

def _layernorm(v, g, b, eps):
    mu = jnp.mean(v, axis=-1, keepdims=True)
    vc = v - mu
    var = jnp.mean(vc * vc, axis=-1, keepdims=True)
    return vc * jax.lax.rsqrt(var + eps) * g + b


def _gelu_exact(v):
    # exact (erf) GELU, matching torch.nn.functional.gelu default
    return 0.5 * v * (1.0 + jax.lax.erf(v * 0.7071067811865475))


# ----------------------------------------------------------------------------
# The fused CCT kernel (one grid step == one batch element)
# ----------------------------------------------------------------------------

def _cct_kernel(patches_ref, pos_ref, convw_ref,
                pre_g_ref, pre_b_ref, qkv_w_ref, proj_w_ref, proj_b_ref,
                n1_g_ref, n1_b_ref, l1_w_ref, l1_b_ref, l2_w_ref, l2_b_ref,
                norm_g_ref, norm_b_ref, pool_w_ref, pool_b_ref,
                fc_w_ref, fc_b_ref, out_ref,
                *, num_heads, num_layers, ln_eps):
    S, D = pos_ref.shape[1], pos_ref.shape[2]
    dh = D // num_heads
    scale = dh ** -0.5

    # ---- Tokenizer: conv3x3 + ReLU + MaxPool2d(3, s2, p1), fused -------------
    # patches_ref[0, p] holds, for pool-window position p (of 9), the 3x3 conv
    # im2col patch (9*Cin) of every pooled output cell.  Conv positions that
    # fall in the pool padding were zeroed host-side -> conv=0 -> ReLU=0, which
    # is neutral under the max since all valid ReLU outputs are >= 0.
    w_conv = convw_ref[...]                                      # (9*Cin, D)
    tok = None
    for p in range(9):
        c = jnp.dot(patches_ref[0, p], w_conv,
                    preferred_element_type=jnp.float32)          # (S, D)
        c = jnp.maximum(c, 0.0)                                  # ReLU
        tok = c if tok is None else jnp.maximum(tok, c)          # maxpool

    # ---- sinusoidal positional embedding ----
    x = tok + pos_ref[0]                                         # (S, D)

    # ---- Transformer encoder stack ----
    for l in range(num_layers):
        # attention sublayer:  src = src + self_attn(pre_norm(src))
        y = _layernorm(x, pre_g_ref[l], pre_b_ref[l], ln_eps)
        qkv = jnp.dot(y, qkv_w_ref[l],
                      preferred_element_type=jnp.float32)        # (S, 3D)
        attn = jnp.zeros((S, D), jnp.float32)
        for h in range(num_heads):
            q = qkv[:, h * dh:(h + 1) * dh]
            k = qkv[:, D + h * dh:D + (h + 1) * dh]
            v = qkv[:, 2 * D + h * dh:2 * D + (h + 1) * dh]
            s = jax.lax.dot_general(q, k, (((1,), (1,)), ((), ())),
                                    preferred_element_type=jnp.float32) * scale
            m = jnp.max(s, axis=-1, keepdims=True)
            e = jnp.exp(s - m)
            p_attn = e * pl.reciprocal(jnp.sum(e, axis=-1, keepdims=True),
                                       approx=True)
            o = jnp.dot(p_attn, v, preferred_element_type=jnp.float32)  # (S, dh)
            # head-concat + out-projection fused:
            #   concat_h(o_h) @ W  ==  sum_h o_h @ W[h*dh:(h+1)*dh, :]
            attn = attn + jnp.dot(o, proj_w_ref[l, h * dh:(h + 1) * dh, :],
                                  preferred_element_type=jnp.float32)
        x = x + attn + proj_b_ref[l]                             # residual

        # MLP sublayer (matches SHI-Labs CCT: src = norm1(src); src = src + MLP(src))
        xn = _layernorm(x, n1_g_ref[l], n1_b_ref[l], ln_eps)
        h1 = jnp.dot(xn, l1_w_ref[l],
                     preferred_element_type=jnp.float32) + l1_b_ref[l]
        h1 = _gelu_exact(h1)
        h2 = jnp.dot(h1, l2_w_ref[l],
                     preferred_element_type=jnp.float32) + l2_b_ref[l]
        x = xn + h2

    # ---- final LayerNorm + fused sequence pooling + classifier head ----------
    xn = _layernorm(x, norm_g_ref[...], norm_b_ref[...], ln_eps)
    logits = jnp.dot(xn, pool_w_ref[...],
                     preferred_element_type=jnp.float32) + pool_b_ref[...]   # (S, 1)
    m = jnp.max(logits, axis=0, keepdims=True)
    e = jnp.exp(logits - m)
    a = e * pl.reciprocal(jnp.sum(e, axis=0, keepdims=True), approx=True)    # (S, 1)
    pooled = jnp.sum(a * xn, axis=0, keepdims=True)                          # (1, D)
    out_ref[0] = jnp.dot(pooled, fc_w_ref[...],
                         preferred_element_type=jnp.float32) + fc_b_ref[...]


# ----------------------------------------------------------------------------
# Host-side patch extraction for the fused conv + maxpool (tiny, stays in XLA)
# ----------------------------------------------------------------------------

def _build_fused_conv_pool_patches(x_nhwc):
    """Returns (B, 9, Ho*Wo, 9*Cin): for each of the 9 positions inside a
    3x3/stride-2/pad-1 pool window, the 3x3/stride-1/pad-1 conv im2col patch of
    every pooled output cell.  Conv positions lying in the pool padding are
    zeroed (neutral under max since ReLU(conv) >= 0)."""
    B, H, W, Cin = x_nhwc.shape
    Ho, Wo = (H + 2 - 3) // 2 + 1, (W + 2 - 3) // 2 + 1
    xp = jnp.pad(x_nhwc, ((0, 0), (2, 2), (2, 2), (0, 0)))
    # conv patches over the extended conv-position range r, c in [-1, H-1]
    cols = [xp[:, kh:kh + H + 1, kw:kw + W + 1, :]
            for kh in range(3) for kw in range(3)]
    im2col = jnp.concatenate(cols, axis=-1)                  # (B, H+1, W+1, 9*Cin)
    im2col = im2col.at[:, 0, :, :].set(0.0)                  # conv row -1 -> pool pad
    im2col = im2col.at[:, :, 0, :].set(0.0)                  # conv col -1 -> pool pad
    pats = [im2col[:, ph:ph + 2 * Ho - 1:2, pw:pw + 2 * Wo - 1:2, :]
            for ph in range(3) for pw in range(3)]           # 9 x (B, Ho, Wo, 9*Cin)
    pats = jnp.stack(pats, axis=1)                           # (B, 9, Ho, Wo, 9*Cin)
    return pats.reshape(B, 9, Ho * Wo, 9 * Cin)


# ----------------------------------------------------------------------------
# Parameter init (deterministic, synthetic) + sinusoidal positional embedding
# ----------------------------------------------------------------------------

def sinusoidal_embedding(n, dim):
    p = jnp.arange(n, dtype=jnp.float32)[:, None]
    i = jnp.arange(dim, dtype=jnp.float32)[None, :]
    angle = p / jnp.power(10000.0, 2.0 * jnp.floor(i / 2.0) / dim)
    pe = jnp.where((jnp.arange(dim) % 2)[None, :] == 0, jnp.sin(angle), jnp.cos(angle))
    return pe[None]  # (1, n, dim)


def init_params(key, *, cin, embed, layers, mlp_ratio, num_classes, seq_len):
    keys = jax.random.split(key, 7)
    ff = embed * mlp_ratio

    def nrm(k, shape, std):
        return jax.random.normal(k, shape, jnp.float32) * std

    return {
        # Conv2d weight in torch layout (Cout, Cin, 3, 3), kaiming-normal-like std
        "conv_w": nrm(keys[0], (embed, cin, 3, 3), (2.0 / (cin * 9)) ** 0.5),
        "pos_emb": sinusoidal_embedding(seq_len, embed),
        # stacked per-layer weights (leading dim = num_layers)
        "pre_g": jnp.ones((layers, 1, embed), jnp.float32),
        "pre_b": jnp.zeros((layers, 1, embed), jnp.float32),
        "qkv_w": nrm(keys[1], (layers, embed, 3 * embed), 0.02),   # qkv Linear, no bias
        "proj_w": nrm(keys[2], (layers, embed, embed), 0.02),
        "proj_b": jnp.zeros((layers, 1, embed), jnp.float32),
        "n1_g": jnp.ones((layers, 1, embed), jnp.float32),
        "n1_b": jnp.zeros((layers, 1, embed), jnp.float32),
        "l1_w": nrm(keys[3], (layers, embed, ff), 0.02),
        "l1_b": jnp.zeros((layers, 1, ff), jnp.float32),
        "l2_w": nrm(keys[4], (layers, ff, embed), 0.02),
        "l2_b": jnp.zeros((layers, 1, embed), jnp.float32),
        # final norm / seq-pool / classifier
        "norm_g": jnp.ones((1, embed), jnp.float32),
        "norm_b": jnp.zeros((1, embed), jnp.float32),
        "pool_w": nrm(keys[5], (embed, 1), 0.02),
        "pool_b": jnp.zeros((1, 1), jnp.float32),
        "fc_w": nrm(keys[6], (embed, num_classes), 0.02),
        "fc_b": jnp.zeros((1, num_classes), jnp.float32),
    }


# ----------------------------------------------------------------------------
# CCT forward pass: one pallas_call for the whole model
# ----------------------------------------------------------------------------

def cct_forward(x_nchw, params, *, num_heads):
    B, Cin, H, W = x_nchw.shape
    x = jnp.transpose(x_nchw, (0, 2, 3, 1)).astype(jnp.float32)        # NHWC
    patches = _build_fused_conv_pool_patches(x)                        # (B, 9, S, 9*Cin)
    w_conv = jnp.transpose(params["conv_w"], (2, 3, 1, 0)).reshape(9 * Cin, -1)

    S = patches.shape[2]
    D = w_conv.shape[1]
    L, _, FF = params["l1_w"].shape
    C = params["fc_w"].shape[1]

    bc2 = lambda b: (0, 0)
    bc3 = lambda b: (0, 0, 0)

    kern = functools.partial(_cct_kernel, num_heads=num_heads,
                             num_layers=L, ln_eps=1e-5)

    out = pl.pallas_call(
        kern,
        out_shape=jax.ShapeDtypeStruct((B, 1, C), jnp.float32),
        grid=(B,),
        in_specs=[
            pl.BlockSpec((1, 9, S, 9 * Cin), lambda b: (b, 0, 0, 0)),  # patches
            pl.BlockSpec((1, S, D), bc3),                              # pos_emb
            pl.BlockSpec((9 * Cin, D), bc2),                           # conv weight
            pl.BlockSpec((L, 1, D), bc3),                              # pre_g
            pl.BlockSpec((L, 1, D), bc3),                              # pre_b
            pl.BlockSpec((L, D, 3 * D), bc3),                          # qkv_w
            pl.BlockSpec((L, D, D), bc3),                              # proj_w
            pl.BlockSpec((L, 1, D), bc3),                              # proj_b
            pl.BlockSpec((L, 1, D), bc3),                              # n1_g
            pl.BlockSpec((L, 1, D), bc3),                              # n1_b
            pl.BlockSpec((L, D, FF), bc3),                             # l1_w
            pl.BlockSpec((L, 1, FF), bc3),                             # l1_b
            pl.BlockSpec((L, FF, D), bc3),                             # l2_w
            pl.BlockSpec((L, 1, D), bc3),                              # l2_b
            pl.BlockSpec((1, D), bc2),                                 # norm_g
            pl.BlockSpec((1, D), bc2),                                 # norm_b
            pl.BlockSpec((D, 1), bc2),                                 # pool_w
            pl.BlockSpec((1, 1), bc2),                                 # pool_b
            pl.BlockSpec((D, C), bc2),                                 # fc_w
            pl.BlockSpec((1, C), bc2),                                 # fc_b
        ],
        out_specs=pl.BlockSpec((1, 1, C), lambda b: (b, 0, 0)),
        compiler_params=pltpu.CompilerParams(
            dimension_semantics=("parallel",),
            vmem_limit_bytes=32 * 1024 * 1024),
    )(patches, params["pos_emb"], w_conv,
      params["pre_g"], params["pre_b"], params["qkv_w"], params["proj_w"],
      params["proj_b"], params["n1_g"], params["n1_b"], params["l1_w"],
      params["l1_b"], params["l2_w"], params["l2_b"], params["norm_g"],
      params["norm_b"], params["pool_w"], params["pool_b"],
      params["fc_w"], params["fc_b"])
    return out.reshape(B, C)


# ----------------------------------------------------------------------------
# main
# ----------------------------------------------------------------------------

if __name__ == "__main__":
    # small shapes consistent with the module; embed=128 keeps lanes/MXU dense
    B, C_IN, IMG = 2, 3, 16
    EMBED, HEADS, LAYERS, MLP_RATIO, NUM_CLASSES = 128, 2, 2, 1, 10

    # tokenizer sequence length: conv(s1,p1) keeps 16x16, maxpool(3,s2,p1) -> 8x8
    SEQ = (((IMG + 2 - 3) // 2) + 1) ** 2

    key = jax.random.PRNGKey(0)
    k_param, k_x = jax.random.split(key)
    params = init_params(k_param, cin=C_IN, embed=EMBED, layers=LAYERS,
                         mlp_ratio=MLP_RATIO, num_classes=NUM_CLASSES, seq_len=SEQ)
    x = jax.random.normal(k_x, (B, C_IN, IMG, IMG), jnp.float32)

    fwd = jax.jit(functools.partial(cct_forward, num_heads=HEADS))
    out = jax.block_until_ready(fwd(x, params))
    assert out.shape == (B, NUM_CLASSES)
    assert bool(jnp.all(jnp.isfinite(out)))
    print("KERNEL_OK")
</pallas_src>

<mosaic_0001>
module attributes {stable_mosaic.version = 11 : i64} {
  func.func @_cct_kernel(%arg0: i32, %arg1: memref<1x9x64x27xf32, #tpu.memory_space<vmem>>, %arg2: memref<1x64x128xf32, #tpu.memory_space<vmem>>, %arg3: memref<27x128xf32, #tpu.memory_space<vmem>>, %arg4: memref<2x1x128xf32, #tpu.memory_space<vmem>>, %arg5: memref<2x1x128xf32, #tpu.memory_space<vmem>>, %arg6: memref<2x128x384xf32, #tpu.memory_space<vmem>>, %arg7: memref<2x128x128xf32, #tpu.memory_space<vmem>>, %arg8: memref<2x1x128xf32, #tpu.memory_space<vmem>>, %arg9: memref<2x1x128xf32, #tpu.memory_space<vmem>>, %arg10: memref<2x1x128xf32, #tpu.memory_space<vmem>>, %arg11: memref<2x128x128xf32, #tpu.memory_space<vmem>>, %arg12: memref<2x1x128xf32, #tpu.memory_space<vmem>>, %arg13: memref<2x128x128xf32, #tpu.memory_space<vmem>>, %arg14: memref<2x1x128xf32, #tpu.memory_space<vmem>>, %arg15: memref<1x128xf32, #tpu.memory_space<vmem>>, %arg16: memref<1x128xf32, #tpu.memory_space<vmem>>, %arg17: memref<128x1xf32, #tpu.memory_space<vmem>>, %arg18: memref<1x1xf32, #tpu.memory_space<vmem>>, %arg19: memref<128x10xf32, #tpu.memory_space<vmem>>, %arg20: memref<1x10xf32, #tpu.memory_space<vmem>>, %arg21: memref<1x1x10xf32, #tpu.memory_space<vmem>>) attributes {dimension_semantics = [#tpu.dimension_semantics<parallel>], iteration_bounds = array<i64: 2>, scalar_prefetch = 0 : i64, scratch_operands = 0 : i64, tpu.core_type = #tpu.core_type<tc>, window_params = [{transform_indices = @transform_0, window_bounds = array<i64: 1, 9, 64, 27>}, {pipeline_mode = #tpu.pipeline_mode<synchronous>, transform_indices = @transform_1, window_bounds = array<i64: 1, 64, 128>}, {pipeline_mode = #tpu.pipeline_mode<synchronous>, transform_indices = @transform_2, window_bounds = array<i64: 27, 128>}, {pipeline_mode = #tpu.pipeline_mode<synchronous>, transform_indices = @transform_3, window_bounds = array<i64: 2, 1, 128>}, {pipeline_mode = #tpu.pipeline_mode<synchronous>, transform_indices = @transform_4, window_bounds = array<i64: 2, 1, 128>}, {pipeline_mode = #tpu.pipeline_mode<synchronous>, transform_indices = @transform_5, window_bounds = array<i64: 2, 128, 384>}, {pipeline_mode = #tpu.pipeline_mode<synchronous>, transform_indices = @transform_6, window_bounds = array<i64: 2, 128, 128>}, {pipeline_mode = #tpu.pipeline_mode<synchronous>, transform_indices = @transform_7, window_bounds = array<i64: 2, 1, 128>}, {pipeline_mode = #tpu.pipeline_mode<synchronous>, transform_indices = @transform_8, window_bounds = array<i64: 2, 1, 128>}, {pipeline_mode = #tpu.pipeline_mode<synchronous>, transform_indices = @transform_9, window_bounds = array<i64: 2, 1, 128>}, {pipeline_mode = #tpu.pipeline_mode<synchronous>, transform_indices = @transform_10, window_bounds = array<i64: 2, 128, 128>}, {pipeline_mode = #tpu.pipeline_mode<synchronous>, transform_indices = @transform_11, window_bounds = array<i64: 2, 1, 128>}, {pipeline_mode = #tpu.pipeline_mode<synchronous>, transform_indices = @transform_12, window_bounds = array<i64: 2, 128, 128>}, {pipeline_mode = #tpu.pipeline_mode<synchronous>, transform_indices = @transform_13, window_bounds = array<i64: 2, 1, 128>}, {pipeline_mode = #tpu.pipeline_mode<synchronous>, transform_indices = @transform_14, window_bounds = array<i64: 1, 128>}, {pipeline_mode = #tpu.pipeline_mode<synchronous>, transform_indices = @transform_15, window_bounds = array<i64: 1, 128>}, {pipeline_mode = #tpu.pipeline_mode<synchronous>, transform_indices = @transform_16, window_bounds = array<i64: 128, 1>}, {pipeline_mode = #tpu.pipeline_mode<synchronous>, transform_indices = @transform_17, window_bounds = array<i64: 1, 1>}, {pipeline_mode = #tpu.pipeline_mode<synchronous>, transform_indices = @transform_18, window_bounds = array<i64: 128, 10>}, {pipeline_mode = #tpu.pipeline_mode<synchronous>, transform_indices = @transform_19, window_bounds = array<i64: 1, 10>}, {transform_indices = @transform_20, window_bounds = array<i64: 1, 1, 10>}]} {
    %c0 = arith.constant 0 : index
    %c0_0 = arith.constant 0 : index
    %0 = vector.load %arg3[%c0, %c0_0] : memref<27x128xf32, #tpu.memory_space<vmem>>, vector<27x128xf32>
    %c0_1 = arith.constant 0 : index
    %c0_2 = arith.constant 0 : index
    %c0_3 = arith.constant 0 : index
    %c0_4 = arith.constant 0 : index
    %1 = vector.load %arg1[%c0_1, %c0_2, %c0_3, %c0_4] : memref<1x9x64x27xf32, #tpu.memory_space<vmem>>, vector<1x1x64x27xf32>
    %2 = vector.shape_cast %1 : vector<1x1x64x27xf32> to vector<64x27xf32>
    %cst = arith.constant dense<0.000000e+00> : vector<64x128xf32>
    %3 = tpu.matmul %2, %0, %cst {dimension_numbers = #tpu.dot_dimension_numbers<[1], [0], [0], [1], [0, 0, 1, 1], [], []>} : vector<64x27xf32>, vector<27x128xf32>, vector<64x128xf32> -> vector<64x128xf32>
    %cst_5 = arith.constant 0.000000e+00 : f32
    %4 = vector.broadcast %cst_5 : f32 to vector<64x128xf32>
    %5 = arith.maximumf %3, %4 : vector<64x128xf32>
    %c0_6 = arith.constant 0 : index
    %c1 = arith.constant 1 : index
    %c0_7 = arith.constant 0 : index
    %c0_8 = arith.constant 0 : index
    %6 = vector.load %arg1[%c0_6, %c1, %c0_7, %c0_8] : memref<1x9x64x27xf32, #tpu.memory_space<vmem>>, vector<1x1x64x27xf32>
    %7 = vector.shape_cast %6 : vector<1x1x64x27xf32> to vector<64x27xf32>
    %cst_9 = arith.constant dense<0.000000e+00> : vector<64x128xf32>
    %8 = tpu.matmul %7, %0, %cst_9 {dimension_numbers = #tpu.dot_dimension_numbers<[1], [0], [0], [1], [0, 0, 1, 1], [], []>} : vector<64x27xf32>, vector<27x128xf32>, vector<64x128xf32> -> vector<64x128xf32>
    %cst_10 = arith.constant 0.000000e+00 : f32
    %9 = vector.broadcast %cst_10 : f32 to vector<64x128xf32>
    %10 = arith.maximumf %8, %9 : vector<64x128xf32>
    %11 = arith.maximumf %5, %10 : vector<64x128xf32>
    %c0_11 = arith.constant 0 : index
    %c2 = arith.constant 2 : index
    %c0_12 = arith.constant 0 : index
    %c0_13 = arith.constant 0 : index
    %12 = vector.load %arg1[%c0_11, %c2, %c0_12, %c0_13] : memref<1x9x64x27xf32, #tpu.memory_space<vmem>>, vector<1x1x64x27xf32>
    %13 = vector.shape_cast %12 : vector<1x1x64x27xf32> to vector<64x27xf32>
    %cst_14 = arith.constant dense<0.000000e+00> : vector<64x128xf32>
    %14 = tpu.matmul %13, %0, %cst_14 {dimension_numbers = #tpu.dot_dimension_numbers<[1], [0], [0], [1], [0, 0, 1, 1], [], []>} : vector<64x27xf32>, vector<27x128xf32>, vector<64x128xf32> -> vector<64x128xf32>
    %cst_15 = arith.constant 0.000000e+00 : f32
    %15 = vector.broadcast %cst_15 : f32 to vector<64x128xf32>
    %16 = arith.maximumf %14, %15 : vector<64x128xf32>
    %17 = arith.maximumf %11, %16 : vector<64x128xf32>
    %c0_16 = arith.constant 0 : index
    %c3 = arith.constant 3 : index
    %c0_17 = arith.constant 0 : index
    %c0_18 = arith.constant 0 : index
    %18 = vector.load %arg1[%c0_16, %c3, %c0_17, %c0_18] : memref<1x9x64x27xf32, #tpu.memory_space<vmem>>, vector<1x1x64x27xf32>
    %19 = vector.shape_cast %18 : vector<1x1x64x27xf32> to vector<64x27xf32>
    %cst_19 = arith.constant dense<0.000000e+00> : vector<64x128xf32>
    %20 = tpu.matmul %19, %0, %cst_19 {dimension_numbers = #tpu.dot_dimension_numbers<[1], [0], [0], [1], [0, 0, 1, 1], [], []>} : vector<64x27xf32>, vector<27x128xf32>, vector<64x128xf32> -> vector<64x128xf32>
    %cst_20 = arith.constant 0.000000e+00 : f32
    %21 = vector.broadcast %cst_20 : f32 to vector<64x128xf32>
    %22 = arith.maximumf %20, %21 : vector<64x128xf32>
    %23 = arith.maximumf %17, %22 : vector<64x128xf32>
    %c0_21 = arith.constant 0 : index
    %c4 = arith.constant 4 : index
    %c0_22 = arith.constant 0 : index
    %c0_23 = arith.constant 0 : index
    %24 = vector.load %arg1[%c0_21, %c4, %c0_22, %c0_23] : memref<1x9x64x27xf32, #tpu.memory_space<vmem>>, vector<1x1x64x27xf32>
    %25 = vector.shape_cast %24 : vector<1x1x64x27xf32> to vector<64x27xf32>
    %cst_24 = arith.constant dense<0.000000e+00> : vector<64x128xf32>
    %26 = tpu.matmul %25, %0, %cst_24 {dimension_numbers = #tpu.dot_dimension_numbers<[1], [0], [0], [1], [0, 0, 1, 1], [], []>} : vector<64x27xf32>, vector<27x128xf32>, vector<64x128xf32> -> vector<64x128xf32>
    %cst_25 = arith.constant 0.000000e+00 : f32
    %27 = vector.broadcast %cst_25 : f32 to vector<64x128xf32>
    %28 = arith.maximumf %26, %27 : vector<64x128xf32>
    %29 = arith.maximumf %23, %28 : vector<64x128xf32>
    %c0_26 = arith.constant 0 : index
    %c5 = arith.constant 5 : index
    %c0_27 = arith.constant 0 : index
    %c0_28 = arith.constant 0 : index
    %30 = vector.load %arg1[%c0_26, %c5, %c0_27, %c0_28] : memref<1x9x64x27xf32, #tpu.memory_space<vmem>>, vector<1x1x64x27xf32>
    %31 = vector.shape_cast %30 : vector<1x1x64x27xf32> to vector<64x27xf32>
    %cst_29 = arith.constant dense<0.000000e+00> : vector<64x128xf32>
    %32 = tpu.matmul %31, %0, %cst_29 {dimension_numbers = #tpu.dot_dimension_numbers<[1], [0], [0], [1], [0, 0, 1, 1], [], []>} : vector<64x27xf32>, vector<27x128xf32>, vector<64x128xf32> -> vector<64x128xf32>
    %cst_30 = arith.constant 0.000000e+00 : f32
    %33 = vector.broadcast %cst_30 : f32 to vector<64x128xf32>
    %34 = arith.maximumf %32, %33 : vector<64x128xf32>
    %35 = arith.maximumf %29, %34 : vector<64x128xf32>
    %c0_31 = arith.constant 0 : index
    %c6 = arith.constant 6 : index
    %c0_32 = arith.constant 0 : index
    %c0_33 = arith.constant 0 : index
    %36 = vector.load %arg1[%c0_31, %c6, %c0_32, %c0_33] : memref<1x9x64x27xf32, #tpu.memory_space<vmem>>, vector<1x1x64x27xf32>
    %37 = vector.shape_cast %36 : vector<1x1x64x27xf32> to vector<64x27xf32>
    %cst_34 = arith.constant dense<0.000000e+00> : vector<64x128xf32>
    %38 = tpu.matmul %37, %0, %cst_34 {dimension_numbers = #tpu.dot_dimension_numbers<[1], [0], [0], [1], [0, 0, 1, 1], [], []>} : vector<64x27xf32>, vector<27x128xf32>, vector<64x128xf32> -> vector<64x128xf32>
    %cst_35 = arith.constant 0.000000e+00 : f32
    %39 = vector.broadcast %cst_35 : f32 to vector<64x128xf32>
    %40 = arith.maximumf %38, %39 : vector<64x128xf32>
    %41 = arith.maximumf %35, %40 : vector<64x128xf32>
    %c0_36 = arith.constant 0 : index
    %c7 = arith.constant 7 : index
    %c0_37 = arith.constant 0 : index
    %c0_38 = arith.constant 0 : index
    %42 = vector.load %arg1[%c0_36, %c7, %c0_37, %c0_38] : memref<1x9x64x27xf32, #tpu.memory_space<vmem>>, vector<1x1x64x27xf32>
    %43 = vector.shape_cast %42 : vector<1x1x64x27xf32> to vector<64x27xf32>
    %cst_39 = arith.constant dense<0.000000e+00> : vector<64x128xf32>
    %44 = tpu.matmul %43, %0, %cst_39 {dimension_numbers = #tpu.dot_dimension_numbers<[1], [0], [0], [1], [0, 0, 1, 1], [], []>} : vector<64x27xf32>, vector<27x128xf32>, vector<64x128xf32> -> vector<64x128xf32>
    %cst_40 = arith.constant 0.000000e+00 : f32
    %45 = vector.broadcast %cst_40 : f32 to vector<64x128xf32>
    %46 = arith.maximumf %44, %45 : vector<64x128xf32>
    %47 = arith.maximumf %41, %46 : vector<64x128xf32>
    %c0_41 = arith.constant 0 : index
    %c8 = arith.constant 8 : index
    %c0_42 = arith.constant 0 : index
    %c0_43 = arith.constant 0 : index
    %48 = vector.load %arg1[%c0_41, %c8, %c0_42, %c0_43] : memref<1x9x64x27xf32, #tpu.memory_space<vmem>>, vector<1x1x64x27xf32>
    %49 = vector.shape_cast %48 : vector<1x1x64x27xf32> to vector<64x27xf32>
    %cst_44 = arith.constant dense<0.000000e+00> : vector<64x128xf32>
    %50 = tpu.matmul %49, %0, %cst_44 {dimension_numbers = #tpu.dot_dimension_numbers<[1], [0], [0], [1], [0, 0, 1, 1], [], []>} : vector<64x27xf32>, vector<27x128xf32>, vector<64x128xf32> -> vector<64x128xf32>
    %cst_45 = arith.constant 0.000000e+00 : f32
    %51 = vector.broadcast %cst_45 : f32 to vector<64x128xf32>
    %52 = arith.maximumf %50, %51 : vector<64x128xf32>
    %53 = arith.maximumf %47, %52 : vector<64x128xf32>
    %c0_46 = arith.constant 0 : index
    %c0_47 = arith.constant 0 : index
    %c0_48 = arith.constant 0 : index
    %54 = vector.load %arg2[%c0_46, %c0_47, %c0_48] : memref<1x64x128xf32, #tpu.memory_space<vmem>>, vector<1x64x128xf32>
    %55 = vector.shape_cast %54 : vector<1x64x128xf32> to vector<64x128xf32>
    %56 = arith.addf %53, %55 : vector<64x128xf32>
    %c0_49 = arith.constant 0 : index
    %c0_50 = arith.constant 0 : index
    %c0_51 = arith.constant 0 : index
    %57 = vector.load %arg4[%c0_49, %c0_50, %c0_51] : memref<2x1x128xf32, #tpu.memory_space<vmem>>, vector<1x1x128xf32>
    %58 = vector.shape_cast %57 : vector<1x1x128xf32> to vector<1x128xf32>
    %c0_52 = arith.constant 0 : index
    %c0_53 = arith.constant 0 : index
    %c0_54 = arith.constant 0 : index
    %59 = vector.load %arg5[%c0_52, %c0_53, %c0_54] : memref<2x1x128xf32, #tpu.memory_space<vmem>>, vector<1x1x128xf32>
    %60 = vector.shape_cast %59 : vector<1x1x128xf32> to vector<1x128xf32>
    %cst_55 = arith.constant dense<0.000000e+00> : vector<64xf32>
    %61 = vector.multi_reduction <add>, %56, %cst_55 [1] : vector<64x128xf32> to vector<64xf32>
    %62 = vector.shape_cast %61 : vector<64xf32> to vector<64x1xf32>
    %cst_56 = arith.constant 1.280000e+02 : f32
    %63 = vector.broadcast %cst_56 : f32 to vector<64x1xf32>
    %64 = arith.divf %62, %63 : vector<64x1xf32>
    %65 = vector.broadcast %64 : vector<64x1xf32> to vector<64x128xf32>
    %66 = arith.subf %56, %65 : vector<64x128xf32>
    %67 = arith.mulf %66, %66 : vector<64x128xf32>
    %cst_57 = arith.constant dense<0.000000e+00> : vector<64xf32>
    %68 = vector.multi_reduction <add>, %67, %cst_57 [1] : vector<64x128xf32> to vector<64xf32>
    %69 = vector.shape_cast %68 : vector<64xf32> to vector<64x1xf32>
    %cst_58 = arith.constant 1.280000e+02 : f32
    %70 = vector.broadcast %cst_58 : f32 to vector<64x1xf32>
    %71 = arith.divf %69, %70 : vector<64x1xf32>
    %cst_59 = arith.constant 9.99999974E-6 : f32
    %72 = vector.broadcast %cst_59 : f32 to vector<64x1xf32>
    %73 = arith.addf %71, %72 : vector<64x1xf32>
    %74 = math.rsqrt %73 : vector<64x1xf32>
    %75 = vector.broadcast %74 : vector<64x1xf32> to vector<64x128xf32>
    %76 = arith.mulf %66, %75 : vector<64x128xf32>
    %77 = vector.broadcast %58 : vector<1x128xf32> to vector<64x128xf32>
    %78 = arith.mulf %76, %77 : vector<64x128xf32>
    %79 = vector.broadcast %60 : vector<1x128xf32> to vector<64x128xf32>
    %80 = arith.addf %78, %79 : vector<64x128xf32>
    %c0_60 = arith.constant 0 : index
    %c0_61 = arith.constant 0 : index
    %c0_62 = arith.constant 0 : index
    %81 = vector.load %arg6[%c0_60, %c0_61, %c0_62] : memref<2x128x384xf32, #tpu.memory_space<vmem>>, vector<1x128x384xf32>
    %82 = vector.shape_cast %81 : vector<1x128x384xf32> to vector<128x384xf32>
    %cst_63 = arith.constant dense<0.000000e+00> : vector<64x384xf32>
    %83 = tpu.matmul %80, %82, %cst_63 {dimension_numbers = #tpu.dot_dimension_numbers<[1], [0], [0], [1], [0, 0, 1, 1], [], []>} : vector<64x128xf32>, vector<128x384xf32>, vector<64x384xf32> -> vector<64x384xf32>
    %cst_64 = arith.constant 0.000000e+00 : f32
    %84 = vector.broadcast %cst_64 : f32 to vector<64x128xf32>
    %85 = vector.extract_strided_slice %83 {offsets = [0, 0], sizes = [64, 64], strides = [1, 1]} : vector<64x384xf32> to vector<64x64xf32>
    %86 = vector.extract_strided_slice %83 {offsets = [0, 128], sizes = [64, 64], strides = [1, 1]} : vector<64x384xf32> to vector<64x64xf32>
    %87 = vector.extract_strided_slice %83 {offsets = [0, 256], sizes = [64, 64], strides = [1, 1]} : vector<64x384xf32> to vector<64x64xf32>
    %cst_65 = arith.constant dense<0.000000e+00> : vector<64x64xf32>
    %88 = tpu.matmul %85, %86, %cst_65 {dimension_numbers = #tpu.dot_dimension_numbers<[1], [1], [0], [0], [0, 0, 1, 0], [], []>} : vector<64x64xf32>, vector<64x64xf32>, vector<64x64xf32> -> vector<64x64xf32>
    %cst_66 = arith.constant 1.250000e-01 : f32
    %89 = vector.broadcast %cst_66 : f32 to vector<64x64xf32>
    %90 = arith.mulf %88, %89 : vector<64x64xf32>
    %cst_67 = arith.constant dense<0xFF800000> : vector<64xf32>
    %91 = vector.multi_reduction <maximumf>, %90, %cst_67 [1] : vector<64x64xf32> to vector<64xf32>
    %92 = vector.shape_cast %91 : vector<64xf32> to vector<64x1xf32>
    %93 = vector.broadcast %92 : vector<64x1xf32> to vector<64x64xf32>
    %94 = arith.subf %90, %93 : vector<64x64xf32>
    %95 = math.exp %94 : vector<64x64xf32>
    %cst_68 = arith.constant dense<0.000000e+00> : vector<64xf32>
    %96 = vector.multi_reduction <add>, %95, %cst_68 [1] : vector<64x64xf32> to vector<64xf32>
    %97 = vector.shape_cast %96 : vector<64xf32> to vector<64x1xf32>
    %98 = tpu.reciprocal %97 {approx = true} : vector<64x1xf32> -> vector<64x1xf32>
    %99 = vector.broadcast %98 : vector<64x1xf32> to vector<64x64xf32>
    %100 = arith.mulf %95, %99 : vector<64x64xf32>
    %cst_69 = arith.constant dense<0.000000e+00> : vector<64x64xf32>
    %101 = tpu.matmul %100, %87, %cst_69 {dimension_numbers = #tpu.dot_dimension_numbers<[1], [0], [0], [1], [0, 0, 1, 1], [], []>} : vector<64x64xf32>, vector<64x64xf32>, vector<64x64xf32> -> vector<64x64xf32>
    %c0_70 = arith.constant 0 : index
    %c0_71 = arith.constant 0 : index
    %c0_72 = arith.constant 0 : index
    %102 = vector.load %arg7[%c0_70, %c0_71, %c0_72] : memref<2x128x128xf32, #tpu.memory_space<vmem>>, vector<1x64x128xf32>
    %103 = vector.shape_cast %102 : vector<1x64x128xf32> to vector<64x128xf32>
    %cst_73 = arith.constant dense<0.000000e+00> : vector<64x128xf32>
    %104 = tpu.matmul %101, %103, %cst_73 {dimension_numbers = #tpu.dot_dimension_numbers<[1], [0], [0], [1], [0, 0, 1, 1], [], []>} : vector<64x64xf32>, vector<64x128xf32>, vector<64x128xf32> -> vector<64x128xf32>
    %105 = arith.addf %84, %104 : vector<64x128xf32>
    %106 = vector.extract_strided_slice %83 {offsets = [0, 64], sizes = [64, 64], strides = [1, 1]} : vector<64x384xf32> to vector<64x64xf32>
    %107 = vector.extract_strided_slice %83 {offsets = [0, 192], sizes = [64, 64], strides = [1, 1]} : vector<64x384xf32> to vector<64x64xf32>
    %108 = vector.extract_strided_slice %83 {offsets = [0, 320], sizes = [64, 64], strides = [1, 1]} : vector<64x384xf32> to vector<64x64xf32>
    %cst_74 = arith.constant dense<0.000000e+00> : vector<64x64xf32>
    %109 = tpu.matmul %106, %107, %cst_74 {dimension_numbers = #tpu.dot_dimension_numbers<[1], [1], [0], [0], [0, 0, 1, 0], [], []>} : vector<64x64xf32>, vector<64x64xf32>, vector<64x64xf32> -> vector<64x64xf32>
    %cst_75 = arith.constant 1.250000e-01 : f32
    %110 = vector.broadcast %cst_75 : f32 to vector<64x64xf32>
    %111 = arith.mulf %109, %110 : vector<64x64xf32>
    %cst_76 = arith.constant dense<0xFF800000> : vector<64xf32>
    %112 = vector.multi_reduction <maximumf>, %111, %cst_76 [1] : vector<64x64xf32> to vector<64xf32>
    %113 = vector.shape_cast %112 : vector<64xf32> to vector<64x1xf32>
    %114 = vector.broadcast %113 : vector<64x1xf32> to vector<64x64xf32>
    %115 = arith.subf %111, %114 : vector<64x64xf32>
    %116 = math.exp %115 : vector<64x64xf32>
    %cst_77 = arith.constant dense<0.000000e+00> : vector<64xf32>
    %117 = vector.multi_reduction <add>, %116, %cst_77 [1] : vector<64x64xf32> to vector<64xf32>
    %118 = vector.shape_cast %117 : vector<64xf32> to vector<64x1xf32>
    %119 = tpu.reciprocal %118 {approx = true} : vector<64x1xf32> -> vector<64x1xf32>
    %120 = vector.broadcast %119 : vector<64x1xf32> to vector<64x64xf32>
    %121 = arith.mulf %116, %120 : vector<64x64xf32>
    %cst_78 = arith.constant dense<0.000000e+00> : vector<64x64xf32>
    %122 = tpu.matmul %121, %108, %cst_78 {dimension_numbers = #tpu.dot_dimension_numbers<[1], [0], [0], [1], [0, 0, 1, 1], [], []>} : vector<64x64xf32>, vector<64x64xf32>, vector<64x64xf32> -> vector<64x64xf32>
    %c0_79 = arith.constant 0 : index
    %c64 = arith.constant 64 : index
    %c0_80 = arith.constant 0 : index
    %123 = vector.load %arg7[%c0_79, %c64, %c0_80] : memref<2x128x128xf32, #tpu.memory_space<vmem>>, vector<1x64x128xf32>
    %124 = vector.shape_cast %123 : vector<1x64x128xf32> to vector<64x128xf32>
    %cst_81 = arith.constant dense<0.000000e+00> : vector<64x128xf32>
    %125 = tpu.matmul %122, %124, %cst_81 {dimension_numbers = #tpu.dot_dimension_numbers<[1], [0], [0], [1], [0, 0, 1, 1], [], []>} : vector<64x64xf32>, vector<64x128xf32>, vector<64x128xf32> -> vector<64x128xf32>
    %126 = arith.addf %105, %125 : vector<64x128xf32>
    %127 = arith.addf %56, %126 : vector<64x128xf32>
    %c0_82 = arith.constant 0 : index
    %c0_83 = arith.constant 0 : index
    %c0_84 = arith.constant 0 : index
    %128 = vector.load %arg8[%c0_82, %c0_83, %c0_84] : memref<2x1x128xf32, #tpu.memory_space<vmem>>, vector<1x1x128xf32>
    %129 = vector.shape_cast %128 : vector<1x1x128xf32> to vector<1x128xf32>
    %130 = vector.broadcast %129 : vector<1x128xf32> to vector<64x128xf32>
    %131 = arith.addf %127, %130 : vector<64x128xf32>
    %c0_85 = arith.constant 0 : index
    %c0_86 = arith.constant 0 : index
    %c0_87 = arith.constant 0 : index
    %132 = vector.load %arg9[%c0_85, %c0_86, %c0_87] : memref<2x1x128xf32, #tpu.memory_space<vmem>>, vector<1x1x128xf32>
    %133 = vector.shape_cast %132 : vector<1x1x128xf32> to vector<1x128xf32>
    %c0_88 = arith.constant 0 : index
    %c0_89 = arith.constant 0 : index
    %c0_90 = arith.constant 0 : index
    %134 = vector.load %arg10[%c0_88, %c0_89, %c0_90] : memref<2x1x128xf32, #tpu.memory_space<vmem>>, vector<1x1x128xf32>
    %135 = vector.shape_cast %134 : vector<1x1x128xf32> to vector<1x128xf32>
    %cst_91 = arith.constant dense<0.000000e+00> : vector<64xf32>
    %136 = vector.multi_reduction <add>, %131, %cst_91 [1] : vector<64x128xf32> to vector<64xf32>
    %137 = vector.shape_cast %136 : vector<64xf32> to vector<64x1xf32>
    %cst_92 = arith.constant 1.280000e+02 : f32
    %138 = vector.broadcast %cst_92 : f32 to vector<64x1xf32>
    %139 = arith.divf %137, %138 : vector<64x1xf32>
    %140 = vector.broadcast %139 : vector<64x1xf32> to vector<64x128xf32>
    %141 = arith.subf %131, %140 : vector<64x128xf32>
    %142 = arith.mulf %141, %141 : vector<64x128xf32>
    %cst_93 = arith.constant dense<0.000000e+00> : vector<64xf32>
    %143 = vector.multi_reduction <add>, %142, %cst_93 [1] : vector<64x128xf32> to vector<64xf32>
    %144 = vector.shape_cast %143 : vector<64xf32> to vector<64x1xf32>
    %cst_94 = arith.constant 1.280000e+02 : f32
    %145 = vector.broadcast %cst_94 : f32 to vector<64x1xf32>
    %146 = arith.divf %144, %145 : vector<64x1xf32>
    %cst_95 = arith.constant 9.99999974E-6 : f32
    %147 = vector.broadcast %cst_95 : f32 to vector<64x1xf32>
    %148 = arith.addf %146, %147 : vector<64x1xf32>
    %149 = math.rsqrt %148 : vector<64x1xf32>
    %150 = vector.broadcast %149 : vector<64x1xf32> to vector<64x128xf32>
    %151 = arith.mulf %141, %150 : vector<64x128xf32>
    %152 = vector.broadcast %133 : vector<1x128xf32> to vector<64x128xf32>
    %153 = arith.mulf %151, %152 : vector<64x128xf32>
    %154 = vector.broadcast %135 : vector<1x128xf32> to vector<64x128xf32>
    %155 = arith.addf %153, %154 : vector<64x128xf32>
    %c0_96 = arith.constant 0 : index
    %c0_97 = arith.constant 0 : index
    %c0_98 = arith.constant 0 : index
    %156 = vector.load %arg11[%c0_96, %c0_97, %c0_98] : memref<2x128x128xf32, #tpu.memory_space<vmem>>, vector<1x128x128xf32>
    %157 = vector.shape_cast %156 : vector<1x128x128xf32> to vector<128x128xf32>
    %cst_99 = arith.constant dense<0.000000e+00> : vector<64x128xf32>
    %158 = tpu.matmul %155, %157, %cst_99 {dimension_numbers = #tpu.dot_dimension_numbers<[1], [0], [0], [1], [0, 0, 1, 1], [], []>} : vector<64x128xf32>, vector<128x128xf32>, vector<64x128xf32> -> vector<64x128xf32>
    %c0_100 = arith.constant 0 : index
    %c0_101 = arith.constant 0 : index
    %c0_102 = arith.constant 0 : index
    %159 = vector.load %arg12[%c0_100, %c0_101, %c0_102] : memref<2x1x128xf32, #tpu.memory_space<vmem>>, vector<1x1x128xf32>
    %160 = vector.shape_cast %159 : vector<1x1x128xf32> to vector<1x128xf32>
    %161 = vector.broadcast %160 : vector<1x128xf32> to vector<64x128xf32>
    %162 = arith.addf %158, %161 : vector<64x128xf32>
    %cst_103 = arith.constant 5.000000e-01 : f32
    %163 = vector.broadcast %cst_103 : f32 to vector<64x128xf32>
    %164 = arith.mulf %163, %162 : vector<64x128xf32>
    %cst_104 = arith.constant 0.707106769 : f32
    %165 = vector.broadcast %cst_104 : f32 to vector<64x128xf32>
    %166 = arith.mulf %162, %165 : vector<64x128xf32>
    %167 = math.erf %166 : vector<64x128xf32>
    %cst_105 = arith.constant 1.000000e+00 : f32
    %168 = vector.broadcast %cst_105 : f32 to vector<64x128xf32>
    %169 = arith.addf %168, %167 : vector<64x128xf32>
    %170 = arith.mulf %164, %169 : vector<64x128xf32>
    %c0_106 = arith.constant 0 : index
    %c0_107 = arith.constant 0 : index
    %c0_108 = arith.constant 0 : index
    %171 = vector.load %arg13[%c0_106, %c0_107, %c0_108] : memref<2x128x128xf32, #tpu.memory_space<vmem>>, vector<1x128x128xf32>
    %172 = vector.shape_cast %171 : vector<1x128x128xf32> to vector<128x128xf32>
    %cst_109 = arith.constant dense<0.000000e+00> : vector<64x128xf32>
    %173 = tpu.matmul %170, %172, %cst_109 {dimension_numbers = #tpu.dot_dimension_numbers<[1], [0], [0], [1], [0, 0, 1, 1], [], []>} : vector<64x128xf32>, vector<128x128xf32>, vector<64x128xf32> -> vector<64x128xf32>
    %c0_110 = arith.constant 0 : index
    %c0_111 = arith.constant 0 : index
    %c0_112 = arith.constant 0 : index
    %174 = vector.load %arg14[%c0_110, %c0_111, %c0_112] : memref<2x1x128xf32, #tpu.memory_space<vmem>>, vector<1x1x128xf32>
    %175 = vector.shape_cast %174 : vector<1x1x128xf32> to vector<1x128xf32>
    %176 = vector.broadcast %175 : vector<1x128xf32> to vector<64x128xf32>
    %177 = arith.addf %173, %176 : vector<64x128xf32>
    %178 = arith.addf %155, %177 : vector<64x128xf32>
    %c1_113 = arith.constant 1 : index
    %c0_114 = arith.constant 0 : index
    %c0_115 = arith.constant 0 : index
    %179 = vector.load %arg4[%c1_113, %c0_114, %c0_115] : memref<2x1x128xf32, #tpu.memory_space<vmem>>, vector<1x1x128xf32>
    %180 = vector.shape_cast %179 : vector<1x1x128xf32> to vector<1x128xf32>
    %c1_116 = arith.constant 1 : index
    %c0_117 = arith.constant 0 : index
    %c0_118 = arith.constant 0 : index
    %181 = vector.load %arg5[%c1_116, %c0_117, %c0_118] : memref<2x1x128xf32, #tpu.memory_space<vmem>>, vector<1x1x128xf32>
    %182 = vector.shape_cast %181 : vector<1x1x128xf32> to vector<1x128xf32>
    %cst_119 = arith.constant dense<0.000000e+00> : vector<64xf32>
    %183 = vector.multi_reduction <add>, %178, %cst_119 [1] : vector<64x128xf32> to vector<64xf32>
    %184 = vector.shape_cast %183 : vector<64xf32> to vector<64x1xf32>
    %cst_120 = arith.constant 1.280000e+02 : f32
    %185 = vector.broadcast %cst_120 : f32 to vector<64x1xf32>
    %186 = arith.divf %184, %185 : vector<64x1xf32>
    %187 = vector.broadcast %186 : vector<64x1xf32> to vector<64x128xf32>
    %188 = arith.subf %178, %187 : vector<64x128xf32>
    %189 = arith.mulf %188, %188 : vector<64x128xf32>
    %cst_121 = arith.constant dense<0.000000e+00> : vector<64xf32>
    %190 = vector.multi_reduction <add>, %189, %cst_121 [1] : vector<64x128xf32> to vector<64xf32>
    %191 = vector.shape_cast %190 : vector<64xf32> to vector<64x1xf32>
    %cst_122 = arith.constant 1.280000e+02 : f32
    %192 = vector.broadcast %cst_122 : f32 to vector<64x1xf32>
    %193 = arith.divf %191, %192 : vector<64x1xf32>
    %cst_123 = arith.constant 9.99999974E-6 : f32
    %194 = vector.broadcast %cst_123 : f32 to vector<64x1xf32>
    %195 = arith.addf %193, %194 : vector<64x1xf32>
    %196 = math.rsqrt %195 : vector<64x1xf32>
    %197 = vector.broadcast %196 : vector<64x1xf32> to vector<64x128xf32>
    %198 = arith.mulf %188, %197 : vector<64x128xf32>
    %199 = vector.broadcast %180 : vector<1x128xf32> to vector<64x128xf32>
    %200 = arith.mulf %198, %199 : vector<64x128xf32>
    %201 = vector.broadcast %182 : vector<1x128xf32> to vector<64x128xf32>
    %202 = arith.addf %200, %201 : vector<64x128xf32>
    %c1_124 = arith.constant 1 : index
    %c0_125 = arith.constant 0 : index
    %c0_126 = arith.constant 0 : index
    %203 = vector.load %arg6[%c1_124, %c0_125, %c0_126] : memref<2x128x384xf32, #tpu.memory_space<vmem>>, vector<1x128x384xf32>
    %204 = vector.shape_cast %203 : vector<1x128x384xf32> to vector<128x384xf32>
    %cst_127 = arith.constant dense<0.000000e+00> : vector<64x384xf32>
    %205 = tpu.matmul %202, %204, %cst_127 {dimension_numbers = #tpu.dot_dimension_numbers<[1], [0], [0], [1], [0, 0, 1, 1], [], []>} : vector<64x128xf32>, vector<128x384xf32>, vector<64x384xf32> -> vector<64x384xf32>
    %cst_128 = arith.constant 0.000000e+00 : f32
    %206 = vector.broadcast %cst_128 : f32 to vector<64x128xf32>
    %207 = vector.extract_strided_slice %205 {offsets = [0, 0], sizes = [64, 64], strides = [1, 1]} : vector<64x384xf32> to vector<64x64xf32>
    %208 = vector.extract_strided_slice %205 {offsets = [0, 128], sizes = [64, 64], strides = [1, 1]} : vector<64x384xf32> to vector<64x64xf32>
    %209 = vector.extract_strided_slice %205 {offsets = [0, 256], sizes = [64, 64], strides = [1, 1]} : vector<64x384xf32> to vector<64x64xf32>
    %cst_129 = arith.constant dense<0.000000e+00> : vector<64x64xf32>
    %210 = tpu.matmul %207, %208, %cst_129 {dimension_numbers = #tpu.dot_dimension_numbers<[1], [1], [0], [0], [0, 0, 1, 0], [], []>} : vector<64x64xf32>, vector<64x64xf32>, vector<64x64xf32> -> vector<64x64xf32>
    %cst_130 = arith.constant 1.250000e-01 : f32
    %211 = vector.broadcast %cst_130 : f32 to vector<64x64xf32>
    %212 = arith.mulf %210, %211 : vector<64x64xf32>
    %cst_131 = arith.constant dense<0xFF800000> : vector<64xf32>
    %213 = vector.multi_reduction <maximumf>, %212, %cst_131 [1] : vector<64x64xf32> to vector<64xf32>
    %214 = vector.shape_cast %213 : vector<64xf32> to vector<64x1xf32>
    %215 = vector.broadcast %214 : vector<64x1xf32> to vector<64x64xf32>
    %216 = arith.subf %212, %215 : vector<64x64xf32>
    %217 = math.exp %216 : vector<64x64xf32>
    %cst_132 = arith.constant dense<0.000000e+00> : vector<64xf32>
    %218 = vector.multi_reduction <add>, %217, %cst_132 [1] : vector<64x64xf32> to vector<64xf32>
    %219 = vector.shape_cast %218 : vector<64xf32> to vector<64x1xf32>
    %220 = tpu.reciprocal %219 {approx = true} : vector<64x1xf32> -> vector<64x1xf32>
    %221 = vector.broadcast %220 : vector<64x1xf32> to vector<64x64xf32>
    %222 = arith.mulf %217, %221 : vector<64x64xf32>
    %cst_133 = arith.constant dense<0.000000e+00> : vector<64x64xf32>
    %223 = tpu.matmul %222, %209, %cst_133 {dimension_numbers = #tpu.dot_dimension_numbers<[1], [0], [0], [1], [0, 0, 1, 1], [], []>} : vector<64x64xf32>, vector<64x64xf32>, vector<64x64xf32> -> vector<64x64xf32>
    %c1_134 = arith.constant 1 : index
    %c0_135 = arith.constant 0 : index
    %c0_136 = arith.constant 0 : index
    %224 = vector.load %arg7[%c1_134, %c0_135, %c0_136] : memref<2x128x128xf32, #tpu.memory_space<vmem>>, vector<1x64x128xf32>
    %225 = vector.shape_cast %224 : vector<1x64x128xf32> to vector<64x128xf32>
    %cst_137 = arith.constant dense<0.000000e+00> : vector<64x128xf32>
    %226 = tpu.matmul %223, %225, %cst_137 {dimension_numbers = #tpu.dot_dimension_numbers<[1], [0], [0], [1], [0, 0, 1, 1], [], []>} : vector<64x64xf32>, vector<64x128xf32>, vector<64x128xf32> -> vector<64x128xf32>
    %227 = arith.addf %206, %226 : vector<64x128xf32>
    %228 = vector.extract_strided_slice %205 {offsets = [0, 64], sizes = [64, 64], strides = [1, 1]} : vector<64x384xf32> to vector<64x64xf32>
    %229 = vector.extract_strided_slice %205 {offsets = [0, 192], sizes = [64, 64], strides = [1, 1]} : vector<64x384xf32> to vector<64x64xf32>
    %230 = vector.extract_strided_slice %205 {offsets = [0, 320], sizes = [64, 64], strides = [1, 1]} : vector<64x384xf32> to vector<64x64xf32>
    %cst_138 = arith.constant dense<0.000000e+00> : vector<64x64xf32>
    %231 = tpu.matmul %228, %229, %cst_138 {dimension_numbers = #tpu.dot_dimension_numbers<[1], [1], [0], [0], [0, 0, 1, 0], [], []>} : vector<64x64xf32>, vector<64x64xf32>, vector<64x64xf32> -> vector<64x64xf32>
    %cst_139 = arith.constant 1.250000e-01 : f32
    %232 = vector.broadcast %cst_139 : f32 to vector<64x64xf32>
    %233 = arith.mulf %231, %232 : vector<64x64xf32>
    %cst_140 = arith.constant dense<0xFF800000> : vector<64xf32>
    %234 = vector.multi_reduction <maximumf>, %233, %cst_140 [1] : vector<64x64xf32> to vector<64xf32>
    %235 = vector.shape_cast %234 : vector<64xf32> to vector<64x1xf32>
    %236 = vector.broadcast %235 : vector<64x1xf32> to vector<64x64xf32>
    %237 = arith.subf %233, %236 : vector<64x64xf32>
    %238 = math.exp %237 : vector<64x64xf32>
    %cst_141 = arith.constant dense<0.000000e+00> : vector<64xf32>
    %239 = vector.multi_reduction <add>, %238, %cst_141 [1] : vector<64x64xf32> to vector<64xf32>
    %240 = vector.shape_cast %239 : vector<64xf32> to vector<64x1xf32>
    %241 = tpu.reciprocal %240 {approx = true} : vector<64x1xf32> -> vector<64x1xf32>
    %242 = vector.broadcast %241 : vector<64x1xf32> to vector<64x64xf32>
    %243 = arith.mulf %238, %242 : vector<64x64xf32>
    %cst_142 = arith.constant dense<0.000000e+00> : vector<64x64xf32>
    %244 = tpu.matmul %243, %230, %cst_142 {dimension_numbers = #tpu.dot_dimension_numbers<[1], [0], [0], [1], [0, 0, 1, 1], [], []>} : vector<64x64xf32>, vector<64x64xf32>, vector<64x64xf32> -> vector<64x64xf32>
    %c1_143 = arith.constant 1 : index
    %c64_144 = arith.constant 64 : index
    %c0_145 = arith.constant 0 : index
    %245 = vector.load %arg7[%c1_143, %c64_144, %c0_145] : memref<2x128x128xf32, #tpu.memory_space<vmem>>, vector<1x64x128xf32>
    %246 = vector.shape_cast %245 : vector<1x64x128xf32> to vector<64x128xf32>
    %cst_146 = arith.constant dense<0.000000e+00> : vector<64x128xf32>
    %247 = tpu.matmul %244, %246, %cst_146 {dimension_numbers = #tpu.dot_dimension_numbers<[1], [0], [0], [1], [0, 0, 1, 1], [], []>} : vector<64x64xf32>, vector<64x128xf32>, vector<64x128xf32> -> vector<64x128xf32>
    %248 = arith.addf %227, %247 : vector<64x128xf32>
    %249 = arith.addf %178, %248 : vector<64x128xf32>
    %c1_147 = arith.constant 1 : index
    %c0_148 = arith.constant 0 : index
    %c0_149 = arith.constant 0 : index
    %250 = vector.load %arg8[%c1_147, %c0_148, %c0_149] : memref<2x1x128xf32, #tpu.memory_space<vmem>>, vector<1x1x128xf32>
    %251 = vector.shape_cast %250 : vector<1x1x128xf32> to vector<1x128xf32>
    %252 = vector.broadcast %251 : vector<1x128xf32> to vector<64x128xf32>
    %253 = arith.addf %249, %252 : vector<64x128xf32>
    %c1_150 = arith.constant 1 : index
    %c0_151 = arith.constant 0 : index
    %c0_152 = arith.constant 0 : index
    %254 = vector.load %arg9[%c1_150, %c0_151, %c0_152] : memref<2x1x128xf32, #tpu.memory_space<vmem>>, vector<1x1x128xf32>
    %255 = vector.shape_cast %254 : vector<1x1x128xf32> to vector<1x128xf32>
    %c1_153 = arith.constant 1 : index
    %c0_154 = arith.constant 0 : index
    %c0_155 = arith.constant 0 : index
    %256 = vector.load %arg10[%c1_153, %c0_154, %c0_155] : memref<2x1x128xf32, #tpu.memory_space<vmem>>, vector<1x1x128xf32>
    %257 = vector.shape_cast %256 : vector<1x1x128xf32> to vector<1x128xf32>
    %cst_156 = arith.constant dense<0.000000e+00> : vector<64xf32>
    %258 = vector.multi_reduction <add>, %253, %cst_156 [1] : vector<64x128xf32> to vector<64xf32>
    %259 = vector.shape_cast %258 : vector<64xf32> to vector<64x1xf32>
    %cst_157 = arith.constant 1.280000e+02 : f32
    %260 = vector.broadcast %cst_157 : f32 to vector<64x1xf32>
    %261 = arith.divf %259, %260 : vector<64x1xf32>
    %262 = vector.broadcast %261 : vector<64x1xf32> to vector<64x128xf32>
    %263 = arith.subf %253, %262 : vector<64x128xf32>
    %264 = arith.mulf %263, %263 : vector<64x128xf32>
    %cst_158 = arith.constant dense<0.000000e+00> : vector<64xf32>
    %265 = vector.multi_reduction <add>, %264, %cst_158 [1] : vector<64x128xf32> to vector<64xf32>
    %266 = vector.shape_cast %265 : vector<64xf32> to vector<64x1xf32>
    %cst_159 = arith.constant 1.280000e+02 : f32
    %267 = vector.broadcast %cst_159 : f32 to vector<64x1xf32>
    %268 = arith.divf %266, %267 : vector<64x1xf32>
    %cst_160 = arith.constant 9.99999974E-6 : f32
    %269 = vector.broadcast %cst_160 : f32 to vector<64x1xf32>
    %270 = arith.addf %268, %269 : vector<64x1xf32>
    %271 = math.rsqrt %270 : vector<64x1xf32>
    %272 = vector.broadcast %271 : vector<64x1xf32> to vector<64x128xf32>
    %273 = arith.mulf %263, %272 : vector<64x128xf32>
    %274 = vector.broadcast %255 : vector<1x128xf32> to vector<64x128xf32>
    %275 = arith.mulf %273, %274 : vector<64x128xf32>
    %276 = vector.broadcast %257 : vector<1x128xf32> to vector<64x128xf32>
    %277 = arith.addf %275, %276 : vector<64x128xf32>
    %c1_161 = arith.constant 1 : index
    %c0_162 = arith.constant 0 : index
    %c0_163 = arith.constant 0 : index
    %278 = vector.load %arg11[%c1_161, %c0_162, %c0_163] : memref<2x128x128xf32, #tpu.memory_space<vmem>>, vector<1x128x128xf32>
    %279 = vector.shape_cast %278 : vector<1x128x128xf32> to vector<128x128xf32>
    %cst_164 = arith.constant dense<0.000000e+00> : vector<64x128xf32>
    %280 = tpu.matmul %277, %279, %cst_164 {dimension_numbers = #tpu.dot_dimension_numbers<[1], [0], [0], [1], [0, 0, 1, 1], [], []>} : vector<64x128xf32>, vector<128x128xf32>, vector<64x128xf32> -> vector<64x128xf32>
    %c1_165 = arith.constant 1 : index
    %c0_166 = arith.constant 0 : index
    %c0_167 = arith.constant 0 : index
    %281 = vector.load %arg12[%c1_165, %c0_166, %c0_167] : memref<2x1x128xf32, #tpu.memory_space<vmem>>, vector<1x1x128xf32>
    %282 = vector.shape_cast %281 : vector<1x1x128xf32> to vector<1x128xf32>
    %283 = vector.broadcast %282 : vector<1x128xf32> to vector<64x128xf32>
    %284 = arith.addf %280, %283 : vector<64x128xf32>
    %cst_168 = arith.constant 5.000000e-01 : f32
    %285 = vector.broadcast %cst_168 : f32 to vector<64x128xf32>
    %286 = arith.mulf %285, %284 : vector<64x128xf32>
    %cst_169 = arith.constant 0.707106769 : f32
    %287 = vector.broadcast %cst_169 : f32 to vector<64x128xf32>
    %288 = arith.mulf %284, %287 : vector<64x128xf32>
    %289 = math.erf %288 : vector<64x128xf32>
    %cst_170 = arith.constant 1.000000e+00 : f32
    %290 = vector.broadcast %cst_170 : f32 to vector<64x128xf32>
    %291 = arith.addf %290, %289 : vector<64x128xf32>
    %292 = arith.mulf %286, %291 : vector<64x128xf32>
    %c1_171 = arith.constant 1 : index
    %c0_172 = arith.constant 0 : index
    %c0_173 = arith.constant 0 : index
    %293 = vector.load %arg13[%c1_171, %c0_172, %c0_173] : memref<2x128x128xf32, #tpu.memory_space<vmem>>, vector<1x128x128xf32>
    %294 = vector.shape_cast %293 : vector<1x128x128xf32> to vector<128x128xf32>
    %cst_174 = arith.constant dense<0.000000e+00> : vector<64x128xf32>
    %295 = tpu.matmul %292, %294, %cst_174 {dimension_numbers = #tpu.dot_dimension_numbers<[1], [0], [0], [1], [0, 0, 1, 1], [], []>} : vector<64x128xf32>, vector<128x128xf32>, vector<64x128xf32> -> vector<64x128xf32>
    %c1_175 = arith.constant 1 : index
    %c0_176 = arith.constant 0 : index
    %c0_177 = arith.constant 0 : index
    %296 = vector.load %arg14[%c1_175, %c0_176, %c0_177] : memref<2x1x128xf32, #tpu.memory_space<vmem>>, vector<1x1x128xf32>
    %297 = vector.shape_cast %296 : vector<1x1x128xf32> to vector<1x128xf32>
    %298 = vector.broadcast %297 : vector<1x128xf32> to vector<64x128xf32>
    %299 = arith.addf %295, %298 : vector<64x128xf32>
    %300 = arith.addf %277, %299 : vector<64x128xf32>
    %c0_178 = arith.constant 0 : index
    %c0_179 = arith.constant 0 : index
    %301 = vector.load %arg15[%c0_178, %c0_179] : memref<1x128xf32, #tpu.memory_space<vmem>>, vector<1x128xf32>
    %c0_180 = arith.constant 0 : index
    %c0_181 = arith.constant 0 : index
    %302 = vector.load %arg16[%c0_180, %c0_181] : memref<1x128xf32, #tpu.memory_space<vmem>>, vector<1x128xf32>
    %cst_182 = arith.constant dense<0.000000e+00> : vector<64xf32>
    %303 = vector.multi_reduction <add>, %300, %cst_182 [1] : vector<64x128xf32> to vector<64xf32>
    %304 = vector.shape_cast %303 : vector<64xf32> to vector<64x1xf32>
    %cst_183 = arith.constant 1.280000e+02 : f32
    %305 = vector.broadcast %cst_183 : f32 to vector<64x1xf32>
    %306 = arith.divf %304, %305 : vector<64x1xf32>
    %307 = vector.broadcast %306 : vector<64x1xf32> to vector<64x128xf32>
    %308 = arith.subf %300, %307 : vector<64x128xf32>
    %309 = arith.mulf %308, %308 : vector<64x128xf32>
    %cst_184 = arith.constant dense<0.000000e+00> : vector<64xf32>
    %310 = vector.multi_reduction <add>, %309, %cst_184 [1] : vector<64x128xf32> to vector<64xf32>
    %311 = vector.shape_cast %310 : vector<64xf32> to vector<64x1xf32>
    %cst_185 = arith.constant 1.280000e+02 : f32
    %312 = vector.broadcast %cst_185 : f32 to vector<64x1xf32>
    %313 = arith.divf %311, %312 : vector<64x1xf32>
    %cst_186 = arith.constant 9.99999974E-6 : f32
    %314 = vector.broadcast %cst_186 : f32 to vector<64x1xf32>
    %315 = arith.addf %313, %314 : vector<64x1xf32>
    %316 = math.rsqrt %315 : vector<64x1xf32>
    %317 = vector.broadcast %316 : vector<64x1xf32> to vector<64x128xf32>
    %318 = arith.mulf %308, %317 : vector<64x128xf32>
    %319 = vector.broadcast %301 : vector<1x128xf32> to vector<64x128xf32>
    %320 = arith.mulf %318, %319 : vector<64x128xf32>
    %321 = vector.broadcast %302 : vector<1x128xf32> to vector<64x128xf32>
    %322 = arith.addf %320, %321 : vector<64x128xf32>
    %c0_187 = arith.constant 0 : index
    %c0_188 = arith.constant 0 : index
    %323 = vector.load %arg17[%c0_187, %c0_188] : memref<128x1xf32, #tpu.memory_space<vmem>>, vector<128x1xf32>
    %cst_189 = arith.constant dense<0.000000e+00> : vector<64x1xf32>
    %324 = tpu.matmul %322, %323, %cst_189 {dimension_numbers = #tpu.dot_dimension_numbers<[1], [0], [0], [1], [0, 0, 1, 1], [], []>} : vector<64x128xf32>, vector<128x1xf32>, vector<64x1xf32> -> vector<64x1xf32>
    %c0_190 = arith.constant 0 : index
    %c0_191 = arith.constant 0 : index
    %325 = vector.load %arg18[%c0_190, %c0_191] : memref<1x1xf32, #tpu.memory_space<vmem>>, vector<1x1xf32>
    %326 = vector.broadcast %325 : vector<1x1xf32> to vector<64x1xf32>
    %327 = arith.addf %324, %326 : vector<64x1xf32>
    %cst_192 = arith.constant dense<0xFF800000> : vector<1xf32>
    %328 = vector.multi_reduction <maximumf>, %327, %cst_192 [0] : vector<64x1xf32> to vector<1xf32>
    %329 = vector.shape_cast %328 : vector<1xf32> to vector<1x1xf32>
    %330 = vector.broadcast %329 : vector<1x1xf32> to vector<64x1xf32>
    %331 = arith.subf %327, %330 : vector<64x1xf32>
    %332 = math.exp %331 : vector<64x1xf32>
    %cst_193 = arith.constant dense<0.000000e+00> : vector<1xf32>
    %333 = vector.multi_reduction <add>, %332, %cst_193 [0] : vector<64x1xf32> to vector<1xf32>
    %334 = vector.shape_cast %333 : vector<1xf32> to vector<1x1xf32>
    %335 = tpu.reciprocal %334 {approx = true} : vector<1x1xf32> -> vector<1x1xf32>
    %336 = vector.broadcast %335 : vector<1x1xf32> to vector<64x1xf32>
    %337 = arith.mulf %332, %336 : vector<64x1xf32>
    %338 = vector.broadcast %337 : vector<64x1xf32> to vector<64x128xf32>
    %339 = arith.mulf %338, %322 : vector<64x128xf32>
    %cst_194 = arith.constant dense<0.000000e+00> : vector<128xf32>
    %340 = vector.multi_reduction <add>, %339, %cst_194 [0] : vector<64x128xf32> to vector<128xf32>
    %341 = vector.shape_cast %340 : vector<128xf32> to vector<1x128xf32>
    %c0_195 = arith.constant 0 : index
    %c0_196 = arith.constant 0 : index
    %342 = vector.load %arg19[%c0_195, %c0_196] : memref<128x10xf32, #tpu.memory_space<vmem>>, vector<128x10xf32>
    %cst_197 = arith.constant dense<0.000000e+00> : vector<1x10xf32>
    %343 = tpu.matmul %341, %342, %cst_197 {dimension_numbers = #tpu.dot_dimension_numbers<[1], [0], [0], [1], [0, 0, 1, 1], [], []>} : vector<1x128xf32>, vector<128x10xf32>, vector<1x10xf32> -> vector<1x10xf32>
    %c0_198 = arith.constant 0 : index
    %c0_199 = arith.constant 0 : index
    %344 = vector.load %arg20[%c0_198, %c0_199] : memref<1x10xf32, #tpu.memory_space<vmem>>, vector<1x10xf32>
    %345 = arith.addf %343, %344 : vector<1x10xf32>
    %c0_200 = arith.constant 0 : index
    %c0_201 = arith.constant 0 : index
    %c0_202 = arith.constant 0 : index
    %346 = vector.load %arg21[%c0_200, %c0_201, %c0_202] : memref<1x1x10xf32, #tpu.memory_space<vmem>>, vector<1x1x10xf32>
    %347 = vector.shape_cast %346 : vector<1x1x10xf32> to vector<1x10xf32>
    %348 = vector.shape_cast %345 : vector<1x10xf32> to vector<1x1x10xf32>
    tpu.vector_store %arg21[%c0_200, %c0_201, %c0_202], %348 {strides = array<i32>} : memref<1x1x10xf32, #tpu.memory_space<vmem>>, vector<1x1x10xf32>,
    return
  }
  func.func @transform_0(%arg0: i32) -> (i32, i32, i32, i32) {
    %c0_i32 = arith.constant 0 : i32
    %c0_i32_0 = arith.constant 0 : i32
    %c0_i32_1 = arith.constant 0 : i32
    %c0_i32_2 = arith.constant 0 : i32
    return %arg0, %c0_i32, %c0_i32_0, %c0_i32_1 : i32, i32, i32, i32
  }
  func.func @transform_1(%arg0: i32) -> (i32, i32, i32) {
    %c0_i32 = arith.constant 0 : i32
    %c0_i32_0 = arith.constant 0 : i32
    %c0_i32_1 = arith.constant 0 : i32
    %c0_i32_2 = arith.constant 0 : i32
    return %c0_i32, %c0_i32_0, %c0_i32_1 : i32, i32, i32
  }
  func.func @transform_2(%arg0: i32) -> (i32, i32) {
    %c0_i32 = arith.constant 0 : i32
    %c0_i32_0 = arith.constant 0 : i32
    %c0_i32_1 = arith.constant 0 : i32
    return %c0_i32, %c0_i32_0 : i32, i32
  }
  func.func @transform_3(%arg0: i32) -> (i32, i32, i32) {
    %c0_i32 = arith.constant 0 : i32
    %c0_i32_0 = arith.constant 0 : i32
    %c0_i32_1 = arith.constant 0 : i32
    %c0_i32_2 = arith.constant 0 : i32
    return %c0_i32, %c0_i32_0, %c0_i32_1 : i32, i32, i32
  }
  func.func @transform_4(%arg0: i32) -> (i32, i32, i32) {
    %c0_i32 = arith.constant 0 : i32
    %c0_i32_0 = arith.constant 0 : i32
    %c0_i32_1 = arith.constant 0 : i32
    %c0_i32_2 = arith.constant 0 : i32
    return %c0_i32, %c0_i32_0, %c0_i32_1 : i32, i32, i32
  }
  func.func @transform_5(%arg0: i32) -> (i32, i32, i32) {
    %c0_i32 = arith.constant 0 : i32
    %c0_i32_0 = arith.constant 0 : i32
    %c0_i32_1 = arith.constant 0 : i32
    %c0_i32_2 = arith.constant 0 : i32
    return %c0_i32, %c0_i32_0, %c0_i32_1 : i32, i32, i32
  }
  func.func @transform_6(%arg0: i32) -> (i32, i32, i32) {
    %c0_i32 = arith.constant 0 : i32
    %c0_i32_0 = arith.constant 0 : i32
    %c0_i32_1 = arith.constant 0 : i32
    %c0_i32_2 = arith.constant 0 : i32
    return %c0_i32, %c0_i32_0, %c0_i32_1 : i32, i32, i32
  }
  func.func @transform_7(%arg0: i32) -> (i32, i32, i32) {
    %c0_i32 = arith.constant 0 : i32
    %c0_i32_0 = arith.constant 0 : i32
    %c0_i32_1 = arith.constant 0 : i32
    %c0_i32_2 = arith.constant 0 : i32
    return %c0_i32, %c0_i32_0, %c0_i32_1 : i32, i32, i32
  }
  func.func @transform_8(%arg0: i32) -> (i32, i32, i32) {
    %c0_i32 = arith.constant 0 : i32
    %c0_i32_0 = arith.constant 0 : i32
    %c0_i32_1 = arith.constant 0 : i32
    %c0_i32_2 = arith.constant 0 : i32
    return %c0_i32, %c0_i32_0, %c0_i32_1 : i32, i32, i32
  }
  func.func @transform_9(%arg0: i32) -> (i32, i32, i32) {
    %c0_i32 = arith.constant 0 : i32
    %c0_i32_0 = arith.constant 0 : i32
    %c0_i32_1 = arith.constant 0 : i32
    %c0_i32_2 = arith.constant 0 : i32
    return %c0_i32, %c0_i32_0, %c0_i32_1 : i32, i32, i32
  }
  func.func @transform_10(%arg0: i32) -> (i32, i32, i32) {
    %c0_i32 = arith.constant 0 : i32
    %c0_i32_0 = arith.constant 0 : i32
    %c0_i32_1 = arith.constant 0 : i32
    %c0_i32_2 = arith.constant 0 : i32
    return %c0_i32, %c0_i32_0, %c0_i32_1 : i32, i32, i32
  }
  func.func @transform_11(%arg0: i32) -> (i32, i32, i32) {
    %c0_i32 = arith.constant 0 : i32
    %c0_i32_0 = arith.constant 0 : i32
    %c0_i32_1 = arith.constant 0 : i32
    %c0_i32_2 = arith.constant 0 : i32
    return %c0_i32, %c0_i32_0, %c0_i32_1 : i32, i32, i32
  }
  func.func @transform_12(%arg0: i32) -> (i32, i32, i32) {
    %c0_i32 = arith.constant 0 : i32
    %c0_i32_0 = arith.constant 0 : i32
    %c0_i32_1 = arith.constant 0 : i32
    %c0_i32_2 = arith.constant 0 : i32
    return %c0_i32, %c0_i32_0, %c0_i32_1 : i32, i32, i32
  }
  func.func @transform_13(%arg0: i32) -> (i32, i32, i32) {
    %c0_i32 = arith.constant 0 : i32
    %c0_i32_0 = arith.constant 0 : i32
    %c0_i32_1 = arith.constant 0 : i32
    %c0_i32_2 = arith.constant 0 : i32
    return %c0_i32, %c0_i32_0, %c0_i32_1 : i32, i32, i32
  }
  func.func @transform_14(%arg0: i32) -> (i32, i32) {
    %c0_i32 = arith.constant 0 : i32
    %c0_i32_0 = arith.constant 0 : i32
    %c0_i32_1 = arith.constant 0 : i32
    return %c0_i32, %c0_i32_0 : i32, i32
  }
  func.func @transform_15(%arg0: i32) -> (i32, i32) {
    %c0_i32 = arith.constant 0 : i32
    %c0_i32_0 = arith.constant 0 : i32
    %c0_i32_1 = arith.constant 0 : i32
    return %c0_i32, %c0_i32_0 : i32, i32
  }
  func.func @transform_16(%arg0: i32) -> (i32, i32) {
    %c0_i32 = arith.constant 0 : i32
    %c0_i32_0 = arith.constant 0 : i32
    %c0_i32_1 = arith.constant 0 : i32
    return %c0_i32, %c0_i32_0 : i32, i32
  }
  func.func @transform_17(%arg0: i32) -> (i32, i32) {
    %c0_i32 = arith.constant 0 : i32
    %c0_i32_0 = arith.constant 0 : i32
    %c0_i32_1 = arith.constant 0 : i32
    return %c0_i32, %c0_i32_0 : i32, i32
  }
  func.func @transform_18(%arg0: i32) -> (i32, i32) {
    %c0_i32 = arith.constant 0 : i32
    %c0_i32_0 = arith.constant 0 : i32
    %c0_i32_1 = arith.constant 0 : i32
    return %c0_i32, %c0_i32_0 : i32, i32
  }
  func.func @transform_19(%arg0: i32) -> (i32, i32) {
    %c0_i32 = arith.constant 0 : i32
    %c0_i32_0 = arith.constant 0 : i32
    %c0_i32_1 = arith.constant 0 : i32
    return %c0_i32, %c0_i32_0 : i32, i32
  }
  func.func @transform_20(%arg0: i32) -> (i32, i32, i32) {
    %c0_i32 = arith.constant 0 : i32
    %c0_i32_0 = arith.constant 0 : i32
    %c0_i32_1 = arith.constant 0 : i32
    return %arg0, %c0_i32, %c0_i32_0 : i32, i32, i32
  }
}

</mosaic_0001>

<llo_original>
// kernel: cct_forward.1
$region0: #{cct_forward.1}
  #allocation0 [shape = 'u32[]', space=smem, size = 0x4, offset = 0x4, fixed_abs, tag = 'smem constant byte address 0x4 - core index']
  #allocation1 [shape = 'u32[144,128]{1,0:T(1,128)}', space=vmem, size = 0x12000, scoped, tag = 'internal scratch']
  #allocation2 [shape = 'f32[1,1]{1,0:T(1,128)S(1)}', space=vmem, size = 0x200, scoped, tag = 'scoped memory for cct_forward.1']
  %s0 = inlined_call_operand.vmem [shape: f32[2,9,64,27], index: 0, kind: input, shape index: {}]
  %s1 = inlined_call_operand.vmem [shape: f32[1,64,128], index: 1, kind: input, shape index: {}]
  %s2 = inlined_call_operand.vmem [shape: f32[27,128], index: 2, kind: input, shape index: {}]
  %s3 = inlined_call_operand.vmem [shape: f32[2,1,128], index: 3, kind: input, shape index: {}]
  %s4 = inlined_call_operand.vmem [shape: f32[2,1,128], index: 4, kind: input, shape index: {}]
  %s5 = inlined_call_operand.vmem [shape: f32[2,128,384], index: 5, kind: input, shape index: {}]
  %s6 = inlined_call_operand.vmem [shape: f32[2,128,128], index: 6, kind: input, shape index: {}]
  %s7 = inlined_call_operand.vmem [shape: f32[2,1,128], index: 7, kind: input, shape index: {}]
  %s8 = inlined_call_operand.vmem [shape: f32[2,1,128], index: 8, kind: input, shape index: {}]
  %s9 = inlined_call_operand.vmem [shape: f32[2,1,128], index: 9, kind: input, shape index: {}]
  %s10 = inlined_call_operand.vmem [shape: f32[2,128,128], index: 10, kind: input, shape index: {}]
  %s11 = inlined_call_operand.vmem [shape: f32[2,1,128], index: 11, kind: input, shape index: {}]
  %s12 = inlined_call_operand.vmem [shape: f32[2,128,128], index: 12, kind: input, shape index: {}]
  %s13 = inlined_call_operand.vmem [shape: f32[2,1,128], index: 13, kind: input, shape index: {}]
  %s14 = inlined_call_operand.vmem [shape: f32[1,128], index: 14, kind: input, shape index: {}]
  %s15 = inlined_call_operand.vmem [shape: f32[1,128], index: 15, kind: input, shape index: {}]
  %s16 = inlined_call_operand.vmem [shape: f32[128,1], index: 16, kind: input, shape index: {}]
  %s17 = inlined_call_operand.<no memory space> [shape: f32[1,1], index: 17, kind: input, shape index: {}]
  %s18 = inlined_call_operand.vmem [shape: f32[128,10], index: 18, kind: input, shape index: {}]
  %s19 = inlined_call_operand.vmem [shape: f32[1,10], index: 19, kind: input, shape index: {}]
  %s20 = inlined_call_operand.hbm [shape: f32[2,1,10], index: 20, kind: output, shape index: {}]
  %s21 = sld [smem:[#allocation0]]
  $region113: #{cct_forward.1} parent=0
    _
  %s23 = ssub.s32 1, %s21
  %s24 = scalar_select 0, %s23, %s21
  %v25 = vstv %s17
  %26 = vst [vmem:[#allocation2] sm:$0x1] %v25
  $region1: #{cct_forward.1} parent=0
    #allocation3 [shape = 'u8[1024]{0}', space=vmem, size = 0x400, scoped, tag = 'output window, operand 0']
    #allocation4 [shape = 's32[2]{0}', space=sflag, size = 0x8, scoped, tag = 'scoped memory for cct_forward.1']
    %27 = vsyncpa [#allocation4], 0
    %s28 = scalar_lea.sflag [#allocation4], 1
    %29 = vsyncpa %s28, 0
    loop: start=0, step=1, limit=4
    $region2: #{cct_forward.1} parent=1 // loop_pre_header
      _
    $region3: #{cct_forward.1} parent=1 // loop_header
      %s31 = sphi 0, %s35
      %p32 = scmp.ge.s32.totalorder %s31, 4
      %s41 = sphi 0, %s43
      %s44 = sphi 0, %s41
      %s45 = sphi 0, %s44
      %s61 = sphi 0, %s45
      %s65 = sphi 0, %s65
      %s67 = sphi 0, %s65
      %s68 = sphi 0, %s67
      %s82 = sphi 0, %s68
      %s86 = sphi 0, %s86
      %s88 = sphi 0, %s86
      %s89 = sphi 0, %s88
      %s103 = sphi 0, %s89
      %s107 = sphi 0, %s107
      %s109 = sphi 0, %s107
      %s110 = sphi 0, %s109
      %s124 = sphi 0, %s110
      %s128 = sphi 0, %s128
      %s130 = sphi 0, %s128
      %s131 = sphi 0, %s130
      %s145 = sphi 0, %s131
      %s149 = sphi 0, %s149
      %s151 = sphi 0, %s149
      %s152 = sphi 0, %s151
      %s166 = sphi 0, %s152
      %s170 = sphi 0, %s170
      %s172 = sphi 0, %s170
      %s173 = sphi 0, %s172
      %s187 = sphi 0, %s173
      %s191 = sphi 0, %s191
      %s193 = sphi 0, %s191
      %s194 = sphi 0, %s193
      %s208 = sphi 0, %s194
      %s212 = sphi 0, %s212
      %s214 = sphi 0, %s212
      %s215 = sphi 0, %s214
      %s229 = sphi 0, %s215
      %s233 = sphi 0, %s233
      %s235 = sphi 0, %s233
      %s236 = sphi 0, %s235
      %s250 = sphi 0, %s236
      %s254 = sphi 0, %s254
      %s256 = sphi 0, %s254
      %s257 = sphi 0, %s256
      %s271 = sphi 0, %s257
      %s275 = sphi 0, %s275
      %s277 = sphi 0, %s275
      %s278 = sphi 0, %s277
      %s292 = sphi 0, %s278
      %s296 = sphi 0, %s296
      %s298 = sphi 0, %s296
      %s299 = sphi 0, %s298
      %s313 = sphi 0, %s299
      %s317 = sphi 0, %s317
      %s319 = sphi 0, %s317
      %s320 = sphi 0, %s319
      %s334 = sphi 0, %s320
      %s338 = sphi 0, %s338
      %s340 = sphi 0, %s338
      %s341 = sphi 0, %s340
      %s355 = sphi 0, %s341
      %s359 = sphi 0, %s359
      %s361 = sphi 0, %s359
      %s362 = sphi 0, %s361
      %s376 = sphi 0, %s362
      %s380 = sphi 0, %s380
      %s382 = sphi 0, %s380
      %s383 = sphi 0, %s382
      %s397 = sphi 0, %s383
      %s401 = sphi 0, %s401
      %s403 = sphi 0, %s401
      %s404 = sphi 0, %s403
      %s418 = sphi 0, %s404
      %s422 = sphi 0, %s422
      %s424 = sphi 0, %s422
      %s425 = sphi 0, %s424
      %s439 = sphi 0, %s425
      %s443 = sphi 0, %s443
      %s445 = sphi 0, %s443
      %s446 = sphi 0, %s445
      %s460 = sphi 0, %s446
      %s466 = sphi 0, %s468
      %s469 = sphi 0, %s466
      %s470 = sphi 0, %s469
      %s486 = sphi 0, %s470
    $region4: #{cct_forward.1} parent=1 // loop_header_branch
      %34 = sbr.rel (%p32) target = $region8
    $region5: #{cct_forward.1} parent=1 // loop_body
      %s36 = ssub.s32 %s31, 1
      %s37 = ssub.s32 %s31, 2
      %s38 = sadd.s32 %s31, 1
      %s39 = ssub.s32 %s31, %s38
      %p40 = scmp.eq.s32.totalorder %s39, 0
      %s42 = sadd.s32 %s41, 1
      %s43 = scalar_select %p40, %s41, %s42
      %p46 = pneg %p40
      %p47 = scmp.eq.s32.totalorder %s31, 1
      %p48 = por %p46, %p47
      %p49 = scmp.ne.s32.totalorder %s41, %s44
      %p50 = scmp.eq.s32.totalorder %s31, 0
      %p51 = por %p49, %p50
      %p52 = scmp.ne.s32.totalorder %s41, %s44
      %p53 = scmp.eq.s32.totalorder %s36, 1
      %p54 = por %p52, %p53
      %p55 = scmp.ne.s32.totalorder %s44, %s45
      %p56 = scmp.eq.s32.totalorder %s36, 0
      %p57 = por %p55, %p56
      %p58 = scmp.ne.s32.totalorder %s44, %s45
      %p59 = scmp.eq.s32.totalorder %s37, 1
      %p60 = por %p58, %p59
      %p62 = scmp.ne.s32.totalorder %s45, %s61
      %p63 = scmp.eq.s32.totalorder %s37, 0
      %p64 = por %p62, %p63
      %s66 = sadd.s32 %s65, 1
      %p69 = scmp.eq.s32.totalorder %s31, 1
      %p70 = scmp.ne.s32.totalorder %s65, %s67
      %p71 = scmp.eq.s32.totalorder %s31, 0
      %p72 = por %p70, %p71
      %p73 = scmp.ne.s32.totalorder %s65, %s67
      %p74 = scmp.eq.s32.totalorder %s36, 1
      %p75 = por %p73, %p74
      %p76 = scmp.ne.s32.totalorder %s67, %s68
      %p77 = scmp.eq.s32.totalorder %s36, 0
      %p78 = por %p76, %p77
      %p79 = scmp.ne.s32.totalorder %s67, %s68
      %p80 = scmp.eq.s32.totalorder %s37, 1
      %p81 = por %p79, %p80
      %p83 = scmp.ne.s32.totalorder %s68, %s82
      %p84 = scmp.eq.s32.totalorder %s37, 0
      %p85 = por %p83, %p84
      %s87 = sadd.s32 %s86, 1
      %p90 = scmp.eq.s32.totalorder %s31, 1
      %p91 = scmp.ne.s32.totalorder %s86, %s88
      %p92 = scmp.eq.s32.totalorder %s31, 0
      %p93 = por %p91, %p92
      %p94 = scmp.ne.s32.totalorder %s86, %s88
      %p95 = scmp.eq.s32.totalorder %s36, 1
      %p96 = por %p94, %p95
      %p97 = scmp.ne.s32.totalorder %s88, %s89
      %p98 = scmp.eq.s32.totalorder %s36, 0
      %p99 = por %p97, %p98
      %p100 = scmp.ne.s32.totalorder %s88, %s89
      %p101 = scmp.eq.s32.totalorder %s37, 1
      %p102 = por %p100, %p101
      %p104 = scmp.ne.s32.totalorder %s89, %s103
      %p105 = scmp.eq.s32.totalorder %s37, 0
      %p106 = por %p104, %p105
      %s108 = sadd.s32 %s107, 1
      %p111 = scmp.eq.s32.totalorder %s31, 1
      %p112 = scmp.ne.s32.totalorder %s107, %s109
      %p113 = scmp.eq.s32.totalorder %s31, 0
      %p114 = por %p112, %p113
      %p115 = scmp.ne.s32.totalorder %s107, %s109
      %p116 = scmp.eq.s32.totalorder %s36, 1
      %p117 = por %p115, %p116
      %p118 = scmp.ne.s32.totalorder %s109, %s110
      %p119 = scmp.eq.s32.totalorder %s36, 0
      %p120 = por %p118, %p119
      %p121 = scmp.ne.s32.totalorder %s109, %s110
      %p122 = scmp.eq.s32.totalorder %s37, 1
      %p123 = por %p121, %p122
      %p125 = scmp.ne.s32.totalorder %s110, %s124
      %p126 = scmp.eq.s32.totalorder %s37, 0
      %p127 = por %p125, %p126
      %s129 = sadd.s32 %s128, 1
      %p132 = scmp.eq.s32.totalorder %s31, 1
      %p133 = scmp.ne.s32.totalorder %s128, %s130
      %p134 = scmp.eq.s32.totalorder %s31, 0
      %p135 = por %p133, %p134
      %p136 = scmp.ne.s32.totalorder %s128, %s130
      %p137 = scmp.eq.s32.totalorder %s36, 1
      %p138 = por %p136, %p137
      %p139 = scmp.ne.s32.totalorder %s130, %s131
      %p140 = scmp.eq.s32.totalorder %s36, 0
      %p141 = por %p139, %p140
      %p142 = scmp.ne.s32.totalorder %s130, %s131
      %p143 = scmp.eq.s32.totalorder %s37, 1
      %p144 = por %p142, %p143
      %p146 = scmp.ne.s32.totalorder %s131, %s145
      %p147 = scmp.eq.s32.totalorder %s37, 0
      %p148 = por %p146, %p147
      %s150 = sadd.s32 %s149, 1
      %p153 = scmp.eq.s32.totalorder %s31, 1
      %p154 = scmp.ne.s32.totalorder %s149, %s151
      %p155 = scmp.eq.s32.totalorder %s31, 0
      %p156 = por %p154, %p155
      %p157 = scmp.ne.s32.totalorder %s149, %s151
      %p158 = scmp.eq.s32.totalorder %s36, 1
      %p159 = por %p157, %p158
      %p160 = scmp.ne.s32.totalorder %s151, %s152
      %p161 = scmp.eq.s32.totalorder %s36, 0
      %p162 = por %p160, %p161
      %p163 = scmp.ne.s32.totalorder %s151, %s152
      %p164 = scmp.eq.s32.totalorder %s37, 1
      %p165 = por %p163, %p164
      %p167 = scmp.ne.s32.totalorder %s152, %s166
      %p168 = scmp.eq.s32.totalorder %s37, 0
      %p169 = por %p167, %p168
      %s171 = sadd.s32 %s170, 1
      %p174 = scmp.eq.s32.totalorder %s31, 1
      %p175 = scmp.ne.s32.totalorder %s170, %s172
      %p176 = scmp.eq.s32.totalorder %s31, 0
      %p177 = por %p175, %p176
      %p178 = scmp.ne.s32.totalorder %s170, %s172
      %p179 = scmp.eq.s32.totalorder %s36, 1
      %p180 = por %p178, %p179
      %p181 = scmp.ne.s32.totalorder %s172, %s173
      %p182 = scmp.eq.s32.totalorder %s36, 0
      %p183 = por %p181, %p182
      %p184 = scmp.ne.s32.totalorder %s172, %s173
      %p185 = scmp.eq.s32.totalorder %s37, 1
      %p186 = por %p184, %p185
      %p188 = scmp.ne.s32.totalorder %s173, %s187
      %p189 = scmp.eq.s32.totalorder %s37, 0
      %p190 = por %p188, %p189
      %s192 = sadd.s32 %s191, 1
      %p195 = scmp.eq.s32.totalorder %s31, 1
      %p196 = scmp.ne.s32.totalorder %s191, %s193
      %p197 = scmp.eq.s32.totalorder %s31, 0
      %p198 = por %p196, %p197
      %p199 = scmp.ne.s32.totalorder %s191, %s193
      %p200 = scmp.eq.s32.totalorder %s36, 1
      %p201 = por %p199, %p200
      %p202 = scmp.ne.s32.totalorder %s193, %s194
      %p203 = scmp.eq.s32.totalorder %s36, 0
      %p204 = por %p202, %p203
      %p205 = scmp.ne.s32.totalorder %s193, %s194
      %p206 = scmp.eq.s32.totalorder %s37, 1
      %p207 = por %p205, %p206
      %p209 = scmp.ne.s32.totalorder %s194, %s208
      %p210 = scmp.eq.s32.totalorder %s37, 0
      %p211 = por %p209, %p210
      %s213 = sadd.s32 %s212, 1
      %p216 = scmp.eq.s32.totalorder %s31, 1
      %p217 = scmp.ne.s32.totalorder %s212, %s214
      %p218 = scmp.eq.s32.totalorder %s31, 0
      %p219 = por %p217, %p218
      %p220 = scmp.ne.s32.totalorder %s212, %s214
      %p221 = scmp.eq.s32.totalorder %s36, 1
      %p222 = por %p220, %p221
      %p223 = scmp.ne.s32.totalorder %s214, %s215
      %p224 = scmp.eq.s32.totalorder %s36, 0
      %p225 = por %p223, %p224
      %p226 = scmp.ne.s32.totalorder %s214, %s215
      %p227 = scmp.eq.s32.totalorder %s37, 1
      %p228 = por %p226, %p227
      %p230 = scmp.ne.s32.totalorder %s215, %s229
      %p231 = scmp.eq.s32.totalorder %s37, 0
      %p232 = por %p230, %p231
      %s234 = sadd.s32 %s233, 1
      %p237 = scmp.eq.s32.totalorder %s31, 1
      %p238 = scmp.ne.s32.totalorder %s233, %s235
      %p239 = scmp.eq.s32.totalorder %s31, 0
      %p240 = por %p238, %p239
      %p241 = scmp.ne.s32.totalorder %s233, %s235
      %p242 = scmp.eq.s32.totalorder %s36, 1
      %p243 = por %p241, %p242
      %p244 = scmp.ne.s32.totalorder %s235, %s236
      %p245 = scmp.eq.s32.totalorder %s36, 0
      %p246 = por %p244, %p245
      %p247 = scmp.ne.s32.totalorder %s235, %s236
      %p248 = scmp.eq.s32.totalorder %s37, 1
      %p249 = por %p247, %p248
      %p251 = scmp.ne.s32.totalorder %s236, %s250
      %p252 = scmp.eq.s32.totalorder %s37, 0
      %p253 = por %p251, %p252
      %s255 = sadd.s32 %s254, 1
      %p258 = scmp.eq.s32.totalorder %s31, 1
      %p259 = scmp.ne.s32.totalorder %s254, %s256
      %p260 = scmp.eq.s32.totalorder %s31, 0
      %p261 = por %p259, %p260
      %p262 = scmp.ne.s32.totalorder %s254, %s256
      %p263 = scmp.eq.s32.totalorder %s36, 1
      %p264 = por %p262, %p263
      %p265 = scmp.ne.s32.totalorder %s256, %s257
      %p266 = scmp.eq.s32.totalorder %s36, 0
      %p267 = por %p265, %p266
      %p268 = scmp.ne.s32.totalorder %s256, %s257
      %p269 = scmp.eq.s32.totalorder %s37, 1
      %p270 = por %p268, %p269
      %p272 = scmp.ne.s32.totalorder %s257, %s271
      %p273 = scmp.eq.s32.totalorder %s37, 0
      %p274 = por %p272, %p273
      %s276 = sadd.s32 %s275, 1
      %p279 = scmp.eq.s32.totalorder %s31, 1
      %p280 = scmp.ne.s32.totalorder %s275, %s277
      %p281 = scmp.eq.s32.totalorder %s31, 0
      %p282 = por %p280, %p281
      %p283 = scmp.ne.s32.totalorder %s275, %s277
      %p284 = scmp.eq.s32.totalorder %s36, 1
      %p285 = por %p283, %p284
      %p286 = scmp.ne.s32.totalorder %s277, %s278
      %p287 = scmp.eq.s32.totalorder %s36, 0
      %p288 = por %p286, %p287
      %p289 = scmp.ne.s32.totalorder %s277, %s278
      %p290 = scmp.eq.s32.totalorder %s37, 1
      %p291 = por %p289, %p290
      %p293 = scmp.ne.s32.totalorder %s278, %s292
      %p294 = scmp.eq.s32.totalorder %s37, 0
      %p295 = por %p293, %p294
      %s297 = sadd.s32 %s296, 1
      %p300 = scmp.eq.s32.totalorder %s31, 1
      %p301 = scmp.ne.s32.totalorder %s296, %s298
      %p302 = scmp.eq.s32.totalorder %s31, 0
      %p303 = por %p301, %p302
      %p304 = scmp.ne.s32.totalorder %s296, %s298
      %p305 = scmp.eq.s32.totalorder %s36, 1
      %p306 = por %p304, %p305
      %p307 = scmp.ne.s32.totalorder %s298, %s299
      %p308 = scmp.eq.s32.totalorder %s36, 0
      %p309 = por %p307, %p308
      %p310 = scmp.ne.s32.totalorder %s298, %s299
      %p311 = scmp.eq.s32.totalorder %s37, 1
      %p312 = por %p310, %p311
      %p314 = scmp.ne.s32.totalorder %s299, %s313
      %p315 = scmp.eq.s32.totalorder %s37, 0
      %p316 = por %p314, %p315
      %s318 = sadd.s32 %s317, 1
      %p321 = scmp.eq.s32.totalorder %s31, 1
      %p322 = scmp.ne.s32.totalorder %s317, %s319
      %p323 = scmp.eq.s32.totalorder %s31, 0
      %p324 = por %p322, %p323
      %p325 = scmp.ne.s32.totalorder %s317, %s319
      %p326 = scmp.eq.s32.totalorder %s36, 1
      %p327 = por %p325, %p326
      %p328 = scmp.ne.s32.totalorder %s319, %s320
      %p329 = scmp.eq.s32.totalorder %s36, 0
      %p330 = por %p328, %p329
      %p331 = scmp.ne.s32.totalorder %s319, %s320
      %p332 = scmp.eq.s32.totalorder %s37, 1
      %p333 = por %p331, %p332
      %p335 = scmp.ne.s32.totalorder %s320, %s334
      %p336 = scmp.eq.s32.totalorder %s37, 0
      %p337 = por %p335, %p336
      %s339 = sadd.s32 %s338, 1
      %p342 = scmp.eq.s32.totalorder %s31, 1
      %p343 = scmp.ne.s32.totalorder %s338, %s340
      %p344 = scmp.eq.s32.totalorder %s31, 0
      %p345 = por %p343, %p344
      %p346 = scmp.ne.s32.totalorder %s338, %s340
      %p347 = scmp.eq.s32.totalorder %s36, 1
      %p348 = por %p346, %p347
      %p349 = scmp.ne.s32.totalorder %s340, %s341
      %p350 = scmp.eq.s32.totalorder %s36, 0
      %p351 = por %p349, %p350
      %p352 = scmp.ne.s32.totalorder %s340, %s341
      %p353 = scmp.eq.s32.totalorder %s37, 1
      %p354 = por %p352, %p353
      %p356 = scmp.ne.s32.totalorder %s341, %s355
      %p357 = scmp.eq.s32.totalorder %s37, 0
      %p358 = por %p356, %p357
      %s360 = sadd.s32 %s359, 1
      %p363 = scmp.eq.s32.totalorder %s31, 1
      %p364 = scmp.ne.s32.totalorder %s359, %s361
      %p365 = scmp.eq.s32.totalorder %s31, 0
      %p366 = por %p364, %p365
      %p367 = scmp.ne.s32.totalorder %s359, %s361
      %p368 = scmp.eq.s32.totalorder %s36, 1
      %p369 = por %p367, %p368
      %p370 = scmp.ne.s32.totalorder %s361, %s362
      %p371 = scmp.eq.s32.totalorder %s36, 0
      %p372 = por %p370, %p371
      %p373 = scmp.ne.s32.totalorder %s361, %s362
      %p374 = scmp.eq.s32.totalorder %s37, 1
      %p375 = por %p373, %p374
      %p377 = scmp.ne.s32.totalorder %s362, %s376
      %p378 = scmp.eq.s32.totalorder %s37, 0
      %p379 = por %p377, %p378
      %s381 = sadd.s32 %s380, 1
      %p384 = scmp.eq.s32.totalorder %s31, 1
      %p385 = scmp.ne.s32.totalorder %s380, %s382
      %p386 = scmp.eq.s32.totalorder %s31, 0
      %p387 = por %p385, %p386
      %p388 = scmp.ne.s32.totalorder %s380, %s382
      %p389 = scmp.eq.s32.totalorder %s36, 1
      %p390 = por %p388, %p389
      %p391 = scmp.ne.s32.totalorder %s382, %s383
      %p392 = scmp.eq.s32.totalorder %s36, 0
      %p393 = por %p391, %p392
      %p394 = scmp.ne.s32.totalorder %s382, %s383
      %p395 = scmp.eq.s32.totalorder %s37, 1
      %p396 = por %p394, %p395
      %p398 = scmp.ne.s32.totalorder %s383, %s397
      %p399 = scmp.eq.s32.totalorder %s37, 0
      %p400 = por %p398, %p399
      %s402 = sadd.s32 %s401, 1
      %p405 = scmp.eq.s32.totalorder %s31, 1
      %p406 = scmp.ne.s32.totalorder %s401, %s403
      %p407 = scmp.eq.s32.totalorder %s31, 0
      %p408 = por %p406, %p407
      %p409 = scmp.ne.s32.totalorder %s401, %s403
      %p410 = scmp.eq.s32.totalorder %s36, 1
      %p411 = por %p409, %p410
      %p412 = scmp.ne.s32.totalorder %s403, %s404
      %p413 = scmp.eq.s32.totalorder %s36, 0
      %p414 = por %p412, %p413
      %p415 = scmp.ne.s32.totalorder %s403, %s404
      %p416 = scmp.eq.s32.totalorder %s37, 1
      %p417 = por %p415, %p416
      %p419 = scmp.ne.s32.totalorder %s404, %s418
      %p420 = scmp.eq.s32.totalorder %s37, 0
      %p421 = por %p419, %p420
      %s423 = sadd.s32 %s422, 1
      %p426 = scmp.eq.s32.totalorder %s31, 1
      %p427 = scmp.ne.s32.totalorder %s422, %s424
      %p428 = scmp.eq.s32.totalorder %s31, 0
      %p429 = por %p427, %p428
      %p430 = scmp.ne.s32.totalorder %s422, %s424
      %p431 = scmp.eq.s32.totalorder %s36, 1
      %p432 = por %p430, %p431
      %p433 = scmp.ne.s32.totalorder %s424, %s425
      %p434 = scmp.eq.s32.totalorder %s36, 0
      %p435 = por %p433, %p434
      %p436 = scmp.ne.s32.totalorder %s424, %s425
      %p437 = scmp.eq.s32.totalorder %s37, 1
      %p438 = por %p436, %p437
      %p440 = scmp.ne.s32.totalorder %s425, %s439
      %p441 = scmp.eq.s32.totalorder %s37, 0
      %p442 = por %p440, %p441
      %s444 = sadd.s32 %s443, 1
      %p447 = scmp.eq.s32.totalorder %s31, 1
      %p448 = scmp.ne.s32.totalorder %s443, %s445
      %p449 = scmp.eq.s32.totalorder %s31, 0
      %p450 = por %p448, %p449
      %p451 = scmp.ne.s32.totalorder %s443, %s445
      %p452 = scmp.eq.s32.totalorder %s36, 1
      %p453 = por %p451, %p452
      %p454 = scmp.ne.s32.totalorder %s445, %s446
      %p455 = scmp.eq.s32.totalorder %s36, 0
      %p456 = por %p454, %p455
      %p457 = scmp.ne.s32.totalorder %s445, %s446
      %p458 = scmp.eq.s32.totalorder %s37, 1
      %p459 = por %p457, %p458
      %p461 = scmp.ne.s32.totalorder %s446, %s460
      %p462 = scmp.eq.s32.totalorder %s37, 0
      %p463 = por %p461, %p462
      %s464 = ssub.s32 %s31, %s38
      %p465 = scmp.eq.s32.totalorder %s464, 0
      %s467 = sadd.s32 %s466, 1
      %s468 = scalar_select %p465, %s466, %s467
      %p471 = pneg %p465
      %p472 = scmp.eq.s32.totalorder %s31, 1
      %p473 = por %p471, %p472
      %p474 = scmp.ne.s32.totalorder %s466, %s469
      %p475 = scmp.eq.s32.totalorder %s31, 0
      %p476 = por %p474, %p475
      %p477 = scmp.ne.s32.totalorder %s466, %s469
      %p478 = scmp.eq.s32.totalorder %s36, 1
      %p479 = por %p477, %p478
      %p480 = scmp.ne.s32.totalorder %s469, %s470
      %p481 = scmp.eq.s32.totalorder %s36, 0
      %p482 = por %p480, %p481
      %p483 = scmp.ne.s32.totalorder %s469, %s470
      %p484 = scmp.eq.s32.totalorder %s37, 1
      %p485 = por %p483, %p484
      %p487 = scmp.ne.s32.totalorder %s470, %s486
      %p488 = scmp.eq.s32.totalorder %s37, 0
      %p489 = por %p487, %p488
      %p490 = scmp.le.s32.totalorder 1, %s31
      %p491 = scmp.lt.s32.totalorder %s31, 3
      %p492 = pnand %p490, %p491
      %p493 = pneg %p492
      // Predicated region
      $region9: #{cct_forward.1} parent=5 // pred_check
        _
      $region10: #{cct_forward.1} parent=5 // pred_check_branch
        %495 = sbr.rel (%p492) target = $region12
      $region11: #{cct_forward.1} parent=5 // pred_region
        %s496 = ssub.s32 %s31, 1
        // Predicated region
        $region13: #{cct_forward.1} parent=11 // pred_check
          %p497 = pneg %p78
        $region14: #{cct_forward.1} parent=11 // pred_check_branch
          %499 = sbr.rel (%p497) target = $region16
        $region15: #{cct_forward.1} parent=11 // pred_region
          _
        $region16: #{cct_forward.1} parent=11 // pred_fallthru
          _
        // Predicated region
        $region17: #{cct_forward.1} parent=11 // pred_check
          %p500 = pneg %p99
        $region18: #{cct_forward.1} parent=11 // pred_check_branch
          %502 = sbr.rel (%p500) target = $region20
        $region19: #{cct_forward.1} parent=11 // pred_region
          _
        $region20: #{cct_forward.1} parent=11 // pred_fallthru
          _
        // Predicated region
        $region21: #{cct_forward.1} parent=11 // pred_check
          %p503 = pneg %p120
        $region22: #{cct_forward.1} parent=11 // pred_check_branch
          %505 = sbr.rel (%p503) target = $region24
        $region23: #{cct_forward.1} parent=11 // pred_region
          _
        $region24: #{cct_forward.1} parent=11 // pred_fallthru
          _
        // Predicated region
        $region25: #{cct_forward.1} parent=11 // pred_check
          %p506 = pneg %p141
        $region26: #{cct_forward.1} parent=11 // pred_check_branch
          %508 = sbr.rel (%p506) target = $region28
        $region27: #{cct_forward.1} parent=11 // pred_region
          _
        $region28: #{cct_forward.1} parent=11 // pred_fallthru
          _
        // Predicated region
        $region29: #{cct_forward.1} parent=11 // pred_check
          %p509 = pneg %p162
        $region30: #{cct_forward.1} parent=11 // pred_check_branch
          %511 = sbr.rel (%p509) target = $region32
        $region31: #{cct_forward.1} parent=11 // pred_region
          _
        $region32: #{cct_forward.1} parent=11 // pred_fallthru
          _
        // Predicated region
        $region33: #{cct_forward.1} parent=11 // pred_check
          %p512 = pneg %p183
        $region34: #{cct_forward.1} parent=11 // pred_check_branch
          %514 = sbr.rel (%p512) target = $region36
        $region35: #{cct_forward.1} parent=11 // pred_region
          _
        $region36: #{cct_forward.1} parent=11 // pred_fallthru
          _
        // Predicated region
        $region37: #{cct_forward.1} parent=11 // pred_check
          %p515 = pneg %p204
        $region38: #{cct_forward.1} parent=11 // pred_check_branch
          %517 = sbr.rel (%p515) target = $region40
        $region39: #{cct_forward.1} parent=11 // pred_region
          _
        $region40: #{cct_forward.1} parent=11 // pred_fallthru
          _
        // Predicated region
        $region41: #{cct_forward.1} parent=11 // pred_check
          %p518 = pneg %p225
        $region42: #{cct_forward.1} parent=11 // pred_check_branch
          %520 = sbr.rel (%p518) target = $region44
        $region43: #{cct_forward.1} parent=11 // pred_region
          _
        $region44: #{cct_forward.1} parent=11 // pred_fallthru
          _
        // Predicated region
        $region45: #{cct_forward.1} parent=11 // pred_check
          %p521 = pneg %p246
        $region46: #{cct_forward.1} parent=11 // pred_check_branch
          %523 = sbr.rel (%p521) target = $region48
        $region47: #{cct_forward.1} parent=11 // pred_region
          _
        $region48: #{cct_forward.1} parent=11 // pred_fallthru
          _
        // Predicated region
        $region49: #{cct_forward.1} parent=11 // pred_check
          %p524 = pneg %p267
        $region50: #{cct_forward.1} parent=11 // pred_check_branch
          %526 = sbr.rel (%p524) target = $region52
        $region51: #{cct_forward.1} parent=11 // pred_region
          _
        $region52: #{cct_forward.1} parent=11 // pred_fallthru
          _
        // Predicated region
        $region53: #{cct_forward.1} parent=11 // pred_check
          %p527 = pneg %p288
        $region54: #{cct_forward.1} parent=11 // pred_check_branch
          %529 = sbr.rel (%p527) target = $region56
        $region55: #{cct_forward.1} parent=11 // pred_region
          _
        $region56: #{cct_forward.1} parent=11 // pred_fallthru
          _
        // Predicated region
        $region57: #{cct_forward.1} parent=11 // pred_check
          %p530 = pneg %p309
        $region58: #{cct_forward.1} parent=11 // pred_check_branch
          %532 = sbr.rel (%p530) target = $region60
        $region59: #{cct_forward.1} parent=11 // pred_region
          _
        $region60: #{cct_forward.1} parent=11 // pred_fallthru
          _
        // Predicated region
        $region61: #{cct_forward.1} parent=11 // pred_check
          %p533 = pneg %p330
        $region62: #{cct_forward.1} parent=11 // pred_check_branch
          %535 = sbr.rel (%p533) target = $region64
        $region63: #{cct_forward.1} parent=11 // pred_region
          _
        $region64: #{cct_forward.1} parent=11 // pred_fallthru
          _
        // Predicated region
        $region65: #{cct_forward.1} parent=11 // pred_check
          %p536 = pneg %p351
        $region66: #{cct_forward.1} parent=11 // pred_check_branch
          %538 = sbr.rel (%p536) target = $region68
        $region67: #{cct_forward.1} parent=11 // pred_region
          _
        $region68: #{cct_forward.1} parent=11 // pred_fallthru
          _
        // Predicated region
        $region69: #{cct_forward.1} parent=11 // pred_check
          %p539 = pneg %p372
        $region70: #{cct_forward.1} parent=11 // pred_check_branch
          %541 = sbr.rel (%p539) target = $region72
        $region71: #{cct_forward.1} parent=11 // pred_region
          _
        $region72: #{cct_forward.1} parent=11 // pred_fallthru
          _
        // Predicated region
        $region73: #{cct_forward.1} parent=11 // pred_check
          %p542 = pneg %p393
        $region74: #{cct_forward.1} parent=11 // pred_check_branch
          %544 = sbr.rel (%p542) target = $region76
        $region75: #{cct_forward.1} parent=11 // pred_region
          _
        $region76: #{cct_forward.1} parent=11 // pred_fallthru
          _
        // Predicated region
        $region77: #{cct_forward.1} parent=11 // pred_check
          %p545 = pneg %p414
        $region78: #{cct_forward.1} parent=11 // pred_check_branch
          %547 = sbr.rel (%p545) target = $region80
        $region79: #{cct_forward.1} parent=11 // pred_region
          _
        $region80: #{cct_forward.1} parent=11 // pred_fallthru
          _
        // Predicated region
        $region81: #{cct_forward.1} parent=11 // pred_check
          %p548 = pneg %p435
        $region82: #{cct_forward.1} parent=11 // pred_check_branch
          %550 = sbr.rel (%p548) target = $region84
        $region83: #{cct_forward.1} parent=11 // pred_region
          _
        $region84: #{cct_forward.1} parent=11 // pred_fallthru
          _
        // Predicated region
        $region85: #{cct_forward.1} parent=11 // pred_check
          %p551 = pneg %p456
        $region86: #{cct_forward.1} parent=11 // pred_check_branch
          %553 = sbr.rel (%p551) target = $region88
        $region87: #{cct_forward.1} parent=11 // pred_region
          _
        $region88: #{cct_forward.1} parent=11 // pred_fallthru
          _
      $region12: #{cct_forward.1} parent=5 // pred_fallthru
        _
      %p554 = scmp.lt.s32.totalorder %s31, 2
      // Predicated region
      $region89: #{cct_forward.1} parent=5 // pred_check
        %p555 = pneg %p554
      $region90: #{cct_forward.1} parent=5 // pred_check_branch
        %557 = sbr.rel (%p555) target = $region92
      $region91: #{cct_forward.1} parent=5 // pred_region
        // Predicated region
        $region93: #{cct_forward.1} parent=91 // pred_check
          %p558 = pneg %p51
        $region94: #{cct_forward.1} parent=91 // pred_check_branch
          %560 = sbr.rel (%p558) target = $region96
        $region95: #{cct_forward.1} parent=91 // pred_region
          %p561 = scmp.lt.s32.totalorder %s31, 1
          %s562 = scalar_select %p561, %s31, 1
          %s563 = smul.addr %s562, 72
          %s564 = smul.addr %s563, 8
          %s565 = scalar_lea.vmem %s0, %s564
        $region96: #{cct_forward.1} parent=91 // pred_fallthru
          _
      $region92: #{cct_forward.1} parent=5 // pred_fallthru
        _
      %p566 = scmp.le.s32.totalorder 1, %s31
      %p567 = scmp.lt.s32.totalorder %s31, 3
      %p568 = pnand %p566, %p567
      %p569 = pneg %p568
      // Predicated region
      $region97: #{cct_forward.1} parent=5 // pred_check
        _
      $region98: #{cct_forward.1} parent=5 // pred_check_branch
        %571 = sbr.rel (%p568) target = $region100
      $region99: #{cct_forward.1} parent=5 // pred_region
        %s572 = ssub.s32 %s31, 1
        %p573 = scmp.lt.s32.totalorder %s36, 1
        %s574 = scalar_select %p573, %s36, 1
        %s575 = smul.addr %s574, 72
        %s576 = smul.addr %s575, 8
        %s577 = scalar_lea.vmem %s0, %s576
        %p578 = pneg %p57
        %p579 = pneg %p54
        %p580 = pneg %p78
        %p581 = pneg %p75
        %p582 = pneg %p99
        %p583 = pneg %p96
        %p584 = pneg %p120
        %p585 = pneg %p117
        %p586 = pneg %p141
        %p587 = pneg %p138
        %p588 = pneg %p162
        %p589 = pneg %p159
        %p590 = pneg %p183
        %p591 = pneg %p180
        %p592 = pneg %p204
        %p593 = pneg %p201
        %p594 = pneg %p225
        %p595 = pneg %p222
        %p596 = pneg %p246
        %p597 = pneg %p243
        %p598 = pneg %p267
        %p599 = pneg %p264
        %p600 = pneg %p288
        %p601 = pneg %p285
        %p602 = pneg %p309
        %p603 = pneg %p306
        %p604 = pneg %p330
        %p605 = pneg %p327
        %p606 = pneg %p351
        %p607 = pneg %p348
        %p608 = pneg %p372
        %p609 = pneg %p369
        %p610 = pneg %p393
        %p611 = pneg %p390
        %p612 = pneg %p414
        %p613 = pneg %p411
        %p614 = pneg %p435
        %p615 = pneg %p432
        %p616 = pneg %p456
        %p617 = pneg %p453
        %p618 = pneg %p482
        %p619 = pneg %p479
        %s620 = sand.u32 %s469, 1
        %s621 = scalar_lea.sflag [#allocation4], %s620
        %s622 = sand.u32 %s469, 1
        %s623 = scalar_lea.vmem [#allocation3], %s622
        %p624 = scmp.lt.s32.totalorder %s36, 1
        %s625 = scalar_select %p624, %s36, 1
        %s626 = smul.addr %s625, 72
        %s627 = smul.addr %s626, 8
        %s628 = scalar_lea.vmem %s0, %s627
        %v629 = vld [vmem:[%s2] sm:$0xff]
        %v630 = vld [vmem:[%s2 + $0x8] sm:$0xff]
        %v631 = vld [vmem:[%s2 + $0x10] sm:$0xff]
        %v632 = vld [vmem:[%s2 + $0x18] sm:$0x7]
        %v633 = vld [vmem:[%s628] sm:$0xff]
        %v634 = vld [vmem:[%s628 + $0x8] sm:$0xff]
        %v635 = vld [vmem:[%s628 + $0x10] sm:$0xff]
        %v636 = vld [vmem:[%s628 + $0x18] sm:$0xff]
        %v637 = vld [vmem:[%s628 + $0x20] sm:$0xff]
        %v638 = vld [vmem:[%s628 + $0x28] sm:$0xff]
        %v639 = vld [vmem:[%s628 + $0x30] sm:$0xff]
        %v640 = vld [vmem:[%s628 + $0x38] sm:$0xff]
        %vm641 = vcmask 220160
        %v643 = vsel %vm641, %v633, 0
        %v646 = vsel %vm641, %v634, 0
        %v649 = vsel %vm641, %v635, 0
        %v652 = vsel %vm641, %v636, 0
        %v655 = vsel %vm641, %v637, 0
        %v658 = vsel %vm641, %v638, 0
        %v661 = vsel %vm641, %v639, 0
        %v664 = vsel %vm641, %v640, 0
        %vm666 = vcmask 1042432
        %v668 = vsel %vm666, %v632, 0
        %670 = vmatprep.subr.mxu0 0.0
        %671 = vmatpush1.msra.mxu0 %v629
        %672 = vmatprep.subr.mxu0 0.0
        %673 = vmatpush1.msra.mxu0 %v630
        %674 = vmatprep.subr.mxu0 0.0
        %675 = vmatpush1.msra.mxu0 %v631
        %676 = vmatprep.subr.mxu0 0.0
        %677 = vmatpush1.msra.mxu0 %v668
        %678 = vmatprep.subr.mxu0 0.0
        %679 = vmatpush1.msra.mxu0 0.0
        %680 = vmatprep.subr.mxu0 0.0
        %681 = vmatpush1.msra.mxu0 0.0
        %682 = vmatprep.subr.mxu0 0.0
        %683 = vmatpush1.msra.mxu0 0.0
        %684 = vmatprep.subr.mxu0 0.0
        %685 = vmatpush1.msra.mxu0 0.0
        %686 = vmatprep.subr.mxu0 0.0
        %687 = vmatpush1.msra.mxu0 0.0
        %688 = vmatprep.subr.mxu0 0.0
        %689 = vmatpush1.msra.mxu0 0.0
        %690 = vmatprep.subr.mxu0 0.0
        %691 = vmatpush1.msra.mxu0 0.0
        %692 = vmatprep.subr.mxu0 0.0
        %693 = vmatpush1.msra.mxu0 0.0
        %694 = vmatprep.subr.mxu0 0.0
        %695 = vmatpush1.msra.mxu0 0.0
        %696 = vmatprep.subr.mxu0 0.0
        %697 = vmatpush1.msra.mxu0 0.0
        %698 = vmatprep.subr.mxu0 0.0
        %699 = vmatpush1.msra.mxu0 0.0
        %700 = vmatprep.subr.mxu0 0.0
        %701 = vmatpush1.msra.mxu0 0.0
        %702 = vmatprep.subr.mxu0 0.0
        %703 = vmatpush1.msra.mxu0 0.0
        %704 = vmatprep.subr.mxu0 0.0
        %705 = vmatpush1.msra.mxu0 0.0
        %706 = vmatprep.subr.mxu0 0.0
        %707 = vmatpush1.msra.mxu0 0.0
        %708 = vmatprep.subr.mxu0 0.0
        %709 = vmatpush1.msra.mxu0 0.0
        %710 = vmatprep.subr.mxu0 0.0
        %711 = vmatpush1.msra.mxu0 0.0
        %712 = vmatprep.subr.mxu0 0.0
        %713 = vmatpush1.msra.mxu0 0.0
        %714 = vmatprep.subr.mxu0 0.0
        %715 = vmatpush1.msra.mxu0 0.0
        %716 = vmatprep.subr.mxu0 0.0
        %717 = vmatpush1.msra.mxu0 0.0
        %718 = vmatprep.subr.mxu0 0.0
        %719 = vmatpush1.msra.mxu0 0.0
        %720 = vmatprep.subr.mxu0 0.0
        %721 = vmatpush1.msra.mxu0 0.0
        %722 = vmatprep.subr.mxu0 0.0
        %723 = vmatpush1.msra.mxu0 0.0
        %724 = vmatprep.subr.mxu0 0.0
        %725 = vmatpush1.msra.mxu0 0.0
        %726 = vmatprep.subr.mxu0 0.0
        %727 = vmatpush1.msra.mxu0 0.0
        %728 = vmatprep.subr.mxu0 0.0
        %729 = vmatpush1.msra.mxu0 0.0
        %730 = vmatprep.subr.mxu0 0.0
        %731 = vmatpush1.msra.mxu0 0.0
        %732 = vmatprep.subr.mxu0 0.0
        %733 = vmatpush1.msra.mxu0 0.0
        %734 = vmatprep.mubr.f32.mxu0 0.0
        %735 = vmatmul.mubr.f32.gmra.mrb[0].mxu0 %v643
        %v736 = vpop.f32.mrb[0].mxu0
        %v737 = vadd.f32 0.0, %v736
        %v738 = vpop.f32.mrb[0].mxu0
        %739 = vmatprep.mubr.f32.mxu0 0.0
        %740 = vmatmul.mubr.f32.gmra.mrb[0].mxu0 %v646
        %v741 = vpop.f32.mrb[0].mxu0
        %v742 = vadd.f32 0.0, %v741
        %v743 = vpop.f32.mrb[0].mxu0
        %744 = vmatprep.mubr.f32.mxu0 0.0
        %745 = vmatmul.mubr.f32.gmra.mrb[0].mxu0 %v649
        %v746 = vpop.f32.mrb[0].mxu0
        %v747 = vadd.f32 0.0, %v746
        %v748 = vpop.f32.mrb[0].mxu0
        %749 = vmatprep.mubr.f32.mxu0 0.0
        %750 = vmatmul.mubr.f32.gmra.mrb[0].mxu0 %v652
        %v751 = vpop.f32.mrb[0].mxu0
        %v752 = vadd.f32 0.0, %v751
        %v753 = vpop.f32.mrb[0].mxu0
        %754 = vmatprep.mubr.f32.mxu0 0.0
        %755 = vmatmul.mubr.f32.gmra.mrb[0].mxu0 %v655
        %v756 = vpop.f32.mrb[0].mxu0
        %v757 = vadd.f32 0.0, %v756
        %v758 = vpop.f32.mrb[0].mxu0
        %759 = vmatprep.mubr.f32.mxu0 0.0
        %760 = vmatmul.mubr.f32.gmra.mrb[0].mxu0 %v658
        %v761 = vpop.f32.mrb[0].mxu0
        %v762 = vadd.f32 0.0, %v761
        %v763 = vpop.f32.mrb[0].mxu0
        %764 = vmatprep.mubr.f32.mxu0 0.0
        %765 = vmatmul.mubr.f32.gmra.mrb[0].mxu0 %v661
        %v766 = vpop.f32.mrb[0].mxu0
        %v767 = vadd.f32 0.0, %v766
        %v768 = vpop.f32.mrb[0].mxu0
        %769 = vmatprep.mubr.f32.mxu0 0.0
        %770 = vmatmul.mubr.f32.gmra.mrb[0].mxu0 %v664
        %v771 = vpop.f32.mrb[0].mxu0
        %v772 = vadd.f32 0.0, %v771
        %v773 = vpop.f32.mrb[0].mxu0
        %774 = vdwg.mxu0
        %v775 = vmax.f32 %v737, 0.0
        %v776 = vmax.f32 %v742, 0.0
        %v777 = vmax.f32 %v747, 0.0
        %v778 = vmax.f32 %v752, 0.0
        %v779 = vmax.f32 %v757, 0.0
        %v780 = vmax.f32 %v762, 0.0
        %v781 = vmax.f32 %v767, 0.0
        %v782 = vmax.f32 %v772, 0.0
        %s783 = scalar_lea.vmem %s628, 64
        %v784 = vld [vmem:[%s783] sm:$0xff]
        %v785 = vld [vmem:[%s783 + $0x8] sm:$0xff]
        %v786 = vld [vmem:[%s783 + $0x10] sm:$0xff]
        %v787 = vld [vmem:[%s783 + $0x18] sm:$0xff]
        %v788 = vld [vmem:[%s783 + $0x20] sm:$0xff]
        %v789 = vld [vmem:[%s783 + $0x28] sm:$0xff]
        %v790 = vld [vmem:[%s783 + $0x30] sm:$0xff]
        %v791 = vld [vmem:[%s783 + $0x38] sm:$0xff]
        %v793 = vsel %vm641, %v784, 0
        %v796 = vsel %vm641, %v785, 0
        %v799 = vsel %vm641, %v786, 0
        %v802 = vsel %vm641, %v787, 0
        %v805 = vsel %vm641, %v788, 0
        %v808 = vsel %vm641, %v789, 0
        %v811 = vsel %vm641, %v790, 0
        %v814 = vsel %vm641, %v791, 0
        %816 = vmatprep.subr.mxu0 0.0
        %817 = vmatpush1.msra.mxu0 %v629
        %818 = vmatprep.subr.mxu0 0.0
        %819 = vmatpush1.msra.mxu0 %v630
        %820 = vmatprep.subr.mxu0 0.0
        %821 = vmatpush1.msra.mxu0 %v631
        %822 = vmatprep.subr.mxu0 0.0
        %823 = vmatpush1.msra.mxu0 %v668
        %824 = vmatprep.subr.mxu0 0.0
        %825 = vmatpush1.msra.mxu0 0.0
        %826 = vmatprep.subr.mxu0 0.0
        %827 = vmatpush1.msra.mxu0 0.0
        %828 = vmatprep.subr.mxu0 0.0
        %829 = vmatpush1.msra.mxu0 0.0
        %830 = vmatprep.subr.mxu0 0.0
        %831 = vmatpush1.msra.mxu0 0.0
        %832 = vmatprep.subr.mxu0 0.0
        %833 = vmatpush1.msra.mxu0 0.0
        %834 = vmatprep.subr.mxu0 0.0
        %835 = vmatpush1.msra.mxu0 0.0
        %836 = vmatprep.subr.mxu0 0.0
        %837 = vmatpush1.msra.mxu0 0.0
        %838 = vmatprep.subr.mxu0 0.0
        %839 = vmatpush1.msra.mxu0 0.0
        %840 = vmatprep.subr.mxu0 0.0
        %841 = vmatpush1.msra.mxu0 0.0
        %842 = vmatprep.subr.mxu0 0.0
        %843 = vmatpush1.msra.mxu0 0.0
        %844 = vmatprep.subr.mxu0 0.0
        %845 = vmatpush1.msra.mxu0 0.0
        %846 = vmatprep.subr.mxu0 0.0
        %847 = vmatpush1.msra.mxu0 0.0
        %848 = vmatprep.subr.mxu0 0.0
        %849 = vmatpush1.msra.mxu0 0.0
        %850 = vmatprep.subr.mxu0 0.0
        %851 = vmatpush1.msra.mxu0 0.0
        %852 = vmatprep.subr.mxu0 0.0
        %853 = vmatpush1.msra.mxu0 0.0
        %854 = vmatprep.subr.mxu0 0.0
        %855 = vmatpush1.msra.mxu0 0.0
        %856 = vmatprep.subr.mxu0 0.0
        %857 = vmatpush1.msra.mxu0 0.0
        %858 = vmatprep.subr.mxu0 0.0
        %859 = vmatpush1.msra.mxu0 0.0
        %860 = vmatprep.subr.mxu0 0.0
        %861 = vmatpush1.msra.mxu0 0.0
        %862 = vmatprep.subr.mxu0 0.0
        %863 = vmatpush1.msra.mxu0 0.0
        %864 = vmatprep.subr.mxu0 0.0
        %865 = vmatpush1.msra.mxu0 0.0
        %866 = vmatprep.subr.mxu0 0.0
        %867 = vmatpush1.msra.mxu0 0.0
        %868 = vmatprep.subr.mxu0 0.0
        %869 = vmatpush1.msra.mxu0 0.0
        %870 = vmatprep.subr.mxu0 0.0
        %871 = vmatpush1.msra.mxu0 0.0
        %872 = vmatprep.subr.mxu0 0.0
        %873 = vmatpush1.msra.mxu0 0.0
        %874 = vmatprep.subr.mxu0 0.0
        %875 = vmatpush1.msra.mxu0 0.0
        %876 = vmatprep.subr.mxu0 0.0
        %877 = vmatpush1.msra.mxu0 0.0
        %878 = vmatprep.subr.mxu0 0.0
        %879 = vmatpush1.msra.mxu0 0.0
        %880 = vmatprep.mubr.f32.mxu0 0.0
        %881 = vmatmul.mubr.f32.gmra.mrb[0].mxu0 %v793
        %v882 = vpop.f32.mrb[0].mxu0
        %v883 = vadd.f32 0.0, %v882
        %v884 = vpop.f32.mrb[0].mxu0
        %885 = vmatprep.mubr.f32.mxu0 0.0
        %886 = vmatmul.mubr.f32.gmra.mrb[0].mxu0 %v796
        %v887 = vpop.f32.mrb[0].mxu0
        %v888 = vadd.f32 0.0, %v887
        %v889 = vpop.f32.mrb[0].mxu0
        %890 = vmatprep.mubr.f32.mxu0 0.0
        %891 = vmatmul.mubr.f32.gmra.mrb[0].mxu0 %v799
        %v892 = vpop.f32.mrb[0].mxu0
        %v893 = vadd.f32 0.0, %v892
        %v894 = vpop.f32.mrb[0].mxu0
        %895 = vmatprep.mubr.f32.mxu0 0.0
        %896 = vmatmul.mubr.f32.gmra.mrb[0].mxu0 %v802
        %v897 = vpop.f32.mrb[0].mxu0
        %v898 = vadd.f32 0.0, %v897
        %v899 = vpop.f32.mrb[0].mxu0
        %900 = vmatprep.mubr.f32.mxu0 0.0
        %901 = vmatmul.mubr.f32.gmra.mrb[0].mxu0 %v805
        %v902 = vpop.f32.mrb[0].mxu0
        %v903 = vadd.f32 0.0, %v902
        %v904 = vpop.f32.mrb[0].mxu0
        %905 = vmatprep.mubr.f32.mxu0 0.0
        %906 = vmatmul.mubr.f32.gmra.mrb[0].mxu0 %v808
        %v907 = vpop.f32.mrb[0].mxu0
        %v908 = vadd.f32 0.0, %v907
        %v909 = vpop.f32.mrb[0].mxu0
        %910 = vmatprep.mubr.f32.mxu0 0.0
        %911 = vmatmul.mubr.f32.gmra.mrb[0].mxu0 %v811
        %v912 = vpop.f32.mrb[0].mxu0
        %v913 = vadd.f32 0.0, %v912
        %v914 = vpop.f32.mrb[0].mxu0
        %915 = vmatprep.mubr.f32.mxu0 0.0
        %916 = vmatmul.mubr.f32.gmra.mrb[0].mxu0 %v814
        %v917 = vpop.f32.mrb[0].mxu0
        %v918 = vadd.f32 0.0, %v917
        %v919 = vpop.f32.mrb[0].mxu0
        %920 = vdwg.mxu0
        %v921 = vmax.f32 %v883, 0.0
        %v922 = vmax.f32 %v888, 0.0
        %v923 = vmax.f32 %v893, 0.0
        %v924 = vmax.f32 %v898, 0.0
        %v925 = vmax.f32 %v903, 0.0
        %v926 = vmax.f32 %v908, 0.0
        %v927 = vmax.f32 %v913, 0.0
        %v928 = vmax.f32 %v918, 0.0
        %v929 = vmax.f32 %v775, %v921
        %v930 = vmax.f32 %v776, %v922
        %v931 = vmax.f32 %v777, %v923
        %v932 = vmax.f32 %v778, %v924
        %v933 = vmax.f32 %v779, %v925
        %v934 = vmax.f32 %v780, %v926
        %v935 = vmax.f32 %v781, %v927
        %v936 = vmax.f32 %v782, %v928
        %s937 = scalar_lea.vmem %s628, 128
        %v938 = vld [vmem:[%s937] sm:$0xff]
        %v939 = vld [vmem:[%s937 + $0x8] sm:$0xff]
        %v940 = vld [vmem:[%s937 + $0x10] sm:$0xff]
        %v941 = vld [vmem:[%s937 + $0x18] sm:$0xff]
        %v942 = vld [vmem:[%s937 + $0x20] sm:$0xff]
        %v943 = vld [vmem:[%s937 + $0x28] sm:$0xff]
        %v944 = vld [vmem:[%s937 + $0x30] sm:$0xff]
        %v945 = vld [vmem:[%s937 + $0x38] sm:$0xff]
        %v947 = vsel %vm641, %v938, 0
        %v950 = vsel %vm641, %v939, 0
        %v953 = vsel %vm641, %v940, 0
        %v956 = vsel %vm641, %v941, 0
        %v959 = vsel %vm641, %v942, 0
        %v962 = vsel %vm641, %v943, 0
        %v965 = vsel %vm641, %v944, 0
        %v968 = vsel %vm641, %v945, 0
        %970 = vmatprep.subr.mxu0 0.0
        %971 = vmatpush1.msra.mxu0 %v629
        %972 = vmatprep.subr.mxu0 0.0
        %973 = vmatpush1.msra.mxu0 %v630
        %974 = vmatprep.subr.mxu0 0.0
        %975 = vmatpush1.msra.mxu0 %v631
        %976 = vmatprep.subr.mxu0 0.0
        %977 = vmatpush1.msra.mxu0 %v668
        %978 = vmatprep.subr.mxu0 0.0
        %979 = vmatpush1.msra.mxu0 0.0
        %980 = vmatprep.subr.mxu0 0.0
        %981 = vmatpush1.msra.mxu0 0.0
        %982 = vmatprep.subr.mxu0 0.0
        %983 = vmatpush1.msra.mxu0 0.0
        %984 = vmatprep.subr.mxu0 0.0
        %985 = vmatpush1.msra.mxu0 0.0
        %986 = vmatprep.subr.mxu0 0.0
        %987 = vmatpush1.msra.mxu0 0.0
        %988 = vmatprep.subr.mxu0 0.0
        %989 = vmatpush1.msra.mxu0 0.0
        %990 = vmatprep.subr.mxu0 0.0
        %991 = vmatpush1.msra.mxu0 0.0
        %992 = vmatprep.subr.mxu0 0.0
        %993 = vmatpush1.msra.mxu0 0.0
        %994 = vmatprep.subr.mxu0 0.0
        %995 = vmatpush1.msra.mxu0 0.0
        %996 = vmatprep.subr.mxu0 0.0
        %997 = vmatpush1.msra.mxu0 0.0
        %998 = vmatprep.subr.mxu0 0.0
        %999 = vmatpush1.msra.mxu0 0.0
        %1000 = vmatprep.subr.mxu0 0.0
        %1001 = vmatpush1.msra.mxu0 0.0
        %1002 = vmatprep.subr.mxu0 0.0
        %1003 = vmatpush1.msra.mxu0 0.0
        %1004 = vmatprep.subr.mxu0 0.0
        %1005 = vmatpush1.msra.mxu0 0.0
        %1006 = vmatprep.subr.mxu0 0.0
        %1007 = vmatpush1.msra.mxu0 0.0
        %1008 = vmatprep.subr.mxu0 0.0
        %1009 = vmatpush1.msra.mxu0 0.0
        %1010 = vmatprep.subr.mxu0 0.0
        %1011 = vmatpush1.msra.mxu0 0.0
        %1012 = vmatprep.subr.mxu0 0.0
        %1013 = vmatpush1.msra.mxu0 0.0
        %1014 = vmatprep.subr.mxu0 0.0
        %1015 = vmatpush1.msra.mxu0 0.0
        %1016 = vmatprep.subr.mxu0 0.0
        %1017 = vmatpush1.msra.mxu0 0.0
        %1018 = vmatprep.subr.mxu0 0.0
        %1019 = vmatpush1.msra.mxu0 0.0
        %1020 = vmatprep.subr.mxu0 0.0
        %1021 = vmatpush1.msra.mxu0 0.0
        %1022 = vmatprep.subr.mxu0 0.0
        %1023 = vmatpush1.msra.mxu0 0.0
        %1024 = vmatprep.subr.mxu0 0.0
        %1025 = vmatpush1.msra.mxu0 0.0
        %1026 = vmatprep.subr.mxu0 0.0
        %1027 = vmatpush1.msra.mxu0 0.0
        %1028 = vmatprep.subr.mxu0 0.0
        %1029 = vmatpush1.msra.mxu0 0.0
        %1030 = vmatprep.subr.mxu0 0.0
        %1031 = vmatpush1.msra.mxu0 0.0
        %1032 = vmatprep.subr.mxu0 0.0
        %1033 = vmatpush1.msra.mxu0 0.0
        %1034 = vmatprep.mubr.f32.mxu0 0.0
        %1035 = vmatmul.mubr.f32.gmra.mrb[0].mxu0 %v947
        %v1036 = vpop.f32.mrb[0].mxu0
        %v1037 = vadd.f32 0.0, %v1036
        %v1038 = vpop.f32.mrb[0].mxu0
        %1039 = vmatprep.mubr.f32.mxu0 0.0
        %1040 = vmatmul.mubr.f32.gmra.mrb[0].mxu0 %v950
        %v1041 = vpop.f32.mrb[0].mxu0
        %v1042 = vadd.f32 0.0, %v1041
        %v1043 = vpop.f32.mrb[0].mxu0
        %1044 = vmatprep.mubr.f32.mxu0 0.0
        %1045 = vmatmul.mubr.f32.gmra.mrb[0].mxu0 %v953
        %v1046 = vpop.f32.mrb[0].mxu0
        %v1047 = vadd.f32 0.0, %v1046
        %v1048 = vpop.f32.mrb[0].mxu0
        %1049 = vmatprep.mubr.f32.mxu0 0.0
        %1050 = vmatmul.mubr.f32.gmra.mrb[0].mxu0 %v956
        %v1051 = vpop.f32.mrb[0].mxu0
        %v1052 = vadd.f32 0.0, %v1051
        %v1053 = vpop.f32.mrb[0].mxu0
        %1054 = vmatprep.mubr.f32.mxu0 0.0
        %1055 = vmatmul.mubr.f32.gmra.mrb[0].mxu0 %v959
        %v1056 = vpop.f32.mrb[0].mxu0
        %v1057 = vadd.f32 0.0, %v1056
        %v1058 = vpop.f32.mrb[0].mxu0
        %1059 = vmatprep.mubr.f32.mxu0 0.0
        %1060 = vmatmul.mubr.f32.gmra.mrb[0].mxu0 %v962
        %v1061 = vpop.f32.mrb[0].mxu0
        %v1062 = vadd.f32 0.0, %v1061
        %v1063 = vpop.f32.mrb[0].mxu0
        %1064 = vmatprep.mubr.f32.mxu0 0.0
        %1065 = vmatmul.mubr.f32.gmra.mrb[0].mxu0 %v965
        %v1066 = vpop.f32.mrb[0].mxu0
        %v1067 = vadd.f32 0.0, %v1066
        %v1068 = vpop.f32.mrb[0].mxu0
        %1069 = vmatprep.mubr.f32.mxu0 0.0
        %1070 = vmatmul.mubr.f32.gmra.mrb[0].mxu0 %v968
        %v1071 = vpop.f32.mrb[0].mxu0
        %v1072 = vadd.f32 0.0, %v1071
        %v1073 = vpop.f32.mrb[0].mxu0
        %1074 = vdwg.mxu0
        %v1075 = vmax.f32 %v1037, 0.0
        %v1076 = vmax.f32 %v1042, 0.0
        %v1077 = vmax.f32 %v1047, 0.0
        %v1078 = vmax.f32 %v1052, 0.0
        %v1079 = vmax.f32 %v1057, 0.0
        %v1080 = vmax.f32 %v1062, 0.0
        %v1081 = vmax.f32 %v1067, 0.0
        %v1082 = vmax.f32 %v1072, 0.0
        %v1083 = vmax.f32 %v929, %v1075
        %v1084 = vmax.f32 %v930, %v1076
        %v1085 = vmax.f32 %v931, %v1077
        %v1086 = vmax.f32 %v932, %v1078
        %v1087 = vmax.f32 %v933, %v1079
        %v1088 = vmax.f32 %v934, %v1080
        %v1089 = vmax.f32 %v935, %v1081
        %v1090 = vmax.f32 %v936, %v1082
        %s1091 = scalar_lea.vmem %s628, 192
        %v1092 = vld [vmem:[%s1091] sm:$0xff]
        %v1093 = vld [vmem:[%s1091 + $0x8] sm:$0xff]
        %v1094 = vld [vmem:[%s1091 + $0x10] sm:$0xff]
        %v1095 = vld [vmem:[%s1091 + $0x18] sm:$0xff]
        %v1096 = vld [vmem:[%s1091 + $0x20] sm:$0xff]
        %v1097 = vld [vmem:[%s1091 + $0x28] sm:$0xff]
        %v1098 = vld [vmem:[%s1091 + $0x30] sm:$0xff]
        %v1099 = vld [vmem:[%s1091 + $0x38] sm:$0xff]
        %v1101 = vsel %vm641, %v1092, 0
        %v1104 = vsel %vm641, %v1093, 0
        %v1107 = vsel %vm641, %v1094, 0
        %v1110 = vsel %vm641, %v1095, 0
        %v1113 = vsel %vm641, %v1096, 0
        %v1116 = vsel %vm641, %v1097, 0
        %v1119 = vsel %vm641, %v1098, 0
        %v1122 = vsel %vm641, %v1099, 0
        %1124 = vmatprep.subr.mxu0 0.0
        %1125 = vmatpush1.msra.mxu0 %v629
        %1126 = vmatprep.subr.mxu0 0.0
        %1127 = vmatpush1.msra.mxu0 %v630
        %1128 = vmatprep.subr.mxu0 0.0
        %1129 = vmatpush1.msra.mxu0 %v631
        %1130 = vmatprep.subr.mxu0 0.0
        %1131 = vmatpush1.msra.mxu0 %v668
        %1132 = vmatprep.subr.mxu0 0.0
        %1133 = vmatpush1.msra.mxu0 0.0
        %1134 = vmatprep.subr.mxu0 0.0
        %1135 = vmatpush1.msra.mxu0 0.0
        %1136 = vmatprep.subr.mxu0 0.0
        %1137 = vmatpush1.msra.mxu0 0.0
        %1138 = vmatprep.subr.mxu0 0.0
        %1139 = vmatpush1.msra.mxu0 0.0
        %1140 = vmatprep.subr.mxu0 0.0
        %1141 = vmatpush1.msra.mxu0 0.0
        %1142 = vmatprep.subr.mxu0 0.0
        %1143 = vmatpush1.msra.mxu0 0.0
        %1144 = vmatprep.subr.mxu0 0.0
        %1145 = vmatpush1.msra.mxu0 0.0
        %1146 = vmatprep.subr.mxu0 0.0
        %1147 = vmatpush1.msra.mxu0 0.0
        %1148 = vmatprep.subr.mxu0 0.0
        %1149 = vmatpush1.msra.mxu0 0.0
        %1150 = vmatprep.subr.mxu0 0.0
        %1151 = vmatpush1.msra.mxu0 0.0
        %1152 = vmatprep.subr.mxu0 0.0
        %1153 = vmatpush1.msra.mxu0 0.0
        %1154 = vmatprep.subr.mxu0 0.0
        %1155 = vmatpush1.msra.mxu0 0.0
        %1156 = vmatprep.subr.mxu0 0.0
        %1157 = vmatpush1.msra.mxu0 0.0
        %1158 = vmatprep.subr.mxu0 0.0
        %1159 = vmatpush1.msra.mxu0 0.0
        %1160 = vmatprep.subr.mxu0 0.0
        %1161 = vmatpush1.msra.mxu0 0.0
        %1162 = vmatprep.subr.mxu0 0.0
        %1163 = vmatpush1.msra.mxu0 0.0
        %1164 = vmatprep.subr.mxu0 0.0
        %1165 = vmatpush1.msra.mxu0 0.0
        %1166 = vmatprep.subr.mxu0 0.0
        %1167 = vmatpush1.msra.mxu0 0.0
        %1168 = vmatprep.subr.mxu0 0.0
        %1169 = vmatpush1.msra.mxu0 0.0
        %1170 = vmatprep.subr.mxu0 0.0
        %1171 = vmatpush1.msra.mxu0 0.0
        %1172 = vmatprep.subr.mxu0 0.0
        %1173 = vmatpush1.msra.mxu0 0.0
        %1174 = vmatprep.subr.mxu0 0.0
        %1175 = vmatpush1.msra.mxu0 0.0
        %1176 = vmatprep.subr.mxu0 0.0
        %1177 = vmatpush1.msra.mxu0 0.0
        %1178 = vmatprep.subr.mxu0 0.0
        %1179 = vmatpush1.msra.mxu0 0.0
        %1180 = vmatprep.subr.mxu0 0.0
        %1181 = vmatpush1.msra.mxu0 0.0
        %1182 = vmatprep.subr.mxu0 0.0
        %1183 = vmatpush1.msra.mxu0 0.0
        %1184 = vmatprep.subr.mxu0 0.0
        %1185 = vmatpush1.msra.mxu0 0.0
        %1186 = vmatprep.subr.mxu0 0.0
        %1187 = vmatpush1.msra.mxu0 0.0
        %1188 = vmatprep.mubr.f32.mxu0 0.0
        %1189 = vmatmul.mubr.f32.gmra.mrb[0].mxu0 %v1101
        %v1190 = vpop.f32.mrb[0].mxu0
        %v1191 = vadd.f32 0.0, %v1190
        %v1192 = vpop.f32.mrb[0].mxu0
        %1193 = vmatprep.mubr.f32.mxu0 0.0
        %1194 = vmatmul.mubr.f32.gmra.mrb[0].mxu0 %v1104
        %v1195 = vpop.f32.mrb[0].mxu0
        %v1196 = vadd.f32 0.0, %v1195
        %v1197 = vpop.f32.mrb[0].mxu0
        %1198 = vmatprep.mubr.f32.mxu0 0.0
        %1199 = vmatmul.mubr.f32.gmra.mrb[0].mxu0 %v1107
        %v1200 = vpop.f32.mrb[0].mxu0
        %v1201 = vadd.f32 0.0, %v1200
        %v1202 = vpop.f32.mrb[0].mxu0
        %1203 = vmatprep.mubr.f32.mxu0 0.0
        %1204 = vmatmul.mubr.f32.gmra.mrb[0].mxu0 %v1110
        %v1205 = vpop.f32.mrb[0].mxu0
        %v1206 = vadd.f32 0.0, %v1205
        %v1207 = vpop.f32.mrb[0].mxu0
        %1208 = vmatprep.mubr.f32.mxu0 0.0
        %1209 = vmatmul.mubr.f32.gmra.mrb[0].mxu0 %v1113
        %v1210 = vpop.f32.mrb[0].mxu0
        %v1211 = vadd.f32 0.0, %v1210
        %v1212 = vpop.f32.mrb[0].mxu0
        %1213 = vmatprep.mubr.f32.mxu0 0.0
        %1214 = vmatmul.mubr.f32.gmra.mrb[0].mxu0 %v1116
        %v1215 = vpop.f32.mrb[0].mxu0
        %v1216 = vadd.f32 0.0, %v1215
        %v1217 = vpop.f32.mrb[0].mxu0
        %1218 = vmatprep.mubr.f32.mxu0 0.0
        %1219 = vmatmul.mubr.f32.gmra.mrb[0].mxu0 %v1119
        %v1220 = vpop.f32.mrb[0].mxu0
        %v1221 = vadd.f32 0.0, %v1220
        %v1222 = vpop.f32.mrb[0].mxu0
        %1223 = vmatprep.mubr.f32.mxu0 0.0
        %1224 = vmatmul.mubr.f32.gmra.mrb[0].mxu0 %v1122
        %v1225 = vpop.f32.mrb[0].mxu0
        %v1226 = vadd.f32 0.0, %v1225
        %v1227 = vpop.f32.mrb[0].mxu0
        %1228 = vdwg.mxu0
        %v1229 = vmax.f32 %v1191, 0.0
        %v1230 = vmax.f32 %v1196, 0.0
        %v1231 = vmax.f32 %v1201, 0.0
        %v1232 = vmax.f32 %v1206, 0.0
        %v1233 = vmax.f32 %v1211, 0.0
        %v1234 = vmax.f32 %v1216, 0.0
        %v1235 = vmax.f32 %v1221, 0.0
        %v1236 = vmax.f32 %v1226, 0.0
        %v1237 = vmax.f32 %v1083, %v1229
        %v1238 = vmax.f32 %v1084, %v1230
        %v1239 = vmax.f32 %v1085, %v1231
        %v1240 = vmax.f32 %v1086, %v1232
        %v1241 = vmax.f32 %v1087, %v1233
        %v1242 = vmax.f32 %v1088, %v1234
        %v1243 = vmax.f32 %v1089, %v1235
        %v1244 = vmax.f32 %v1090, %v1236
        %s1245 = scalar_lea.vmem %s628, 256
        %v1246 = vld [vmem:[%s1245] sm:$0xff]
        %v1247 = vld [vmem:[%s1245 + $0x8] sm:$0xff]
        %v1248 = vld [vmem:[%s1245 + $0x10] sm:$0xff]
        %v1249 = vld [vmem:[%s1245 + $0x18] sm:$0xff]
        %v1250 = vld [vmem:[%s1245 + $0x20] sm:$0xff]
        %v1251 = vld [vmem:[%s1245 + $0x28] sm:$0xff]
        %v1252 = vld [vmem:[%s1245 + $0x30] sm:$0xff]
        %v1253 = vld [vmem:[%s1245 + $0x38] sm:$0xff]
        %v1255 = vsel %vm641, %v1246, 0
        %v1258 = vsel %vm641, %v1247, 0
        %v1261 = vsel %vm641, %v1248, 0
        %v1264 = vsel %vm641, %v1249, 0
        %v1267 = vsel %vm641, %v1250, 0
        %v1270 = vsel %vm641, %v1251, 0
        %v1273 = vsel %vm641, %v1252, 0
        %v1276 = vsel %vm641, %v1253, 0
        %1278 = vmatprep.subr.mxu0 0.0
        %1279 = vmatpush1.msra.mxu0 %v629
        %1280 = vmatprep.subr.mxu0 0.0
        %1281 = vmatpush1.msra.mxu0 %v630
        %1282 = vmatprep.subr.mxu0 0.0
        %1283 = vmatpush1.msra.mxu0 %v631
        %1284 = vmatprep.subr.mxu0 0.0
        %1285 = vmatpush1.msra.mxu0 %v668
        %1286 = vmatprep.subr.mxu0 0.0
        %1287 = vmatpush1.msra.mxu0 0.0
        %1288 = vmatprep.subr.mxu0 0.0
        %1289 = vmatpush1.msra.mxu0 0.0
        %1290 = vmatprep.subr.mxu0 0.0
        %1291 = vmatpush1.msra.mxu0 0.0
        %1292 = vmatprep.subr.mxu0 0.0
        %1293 = vmatpush1.msra.mxu0 0.0
        %1294 = vmatprep.subr.mxu0 0.0
        %1295 = vmatpush1.msra.mxu0 0.0
        %1296 = vmatprep.subr.mxu0 0.0
        %1297 = vmatpush1.msra.mxu0 0.0
        %1298 = vmatprep.subr.mxu0 0.0
        %1299 = vmatpush1.msra.mxu0 0.0
        %1300 = vmatprep.subr.mxu0 0.0
        %1301 = vmatpush1.msra.mxu0 0.0
        %1302 = vmatprep.subr.mxu0 0.0
        %1303 = vmatpush1.msra.mxu0 0.0
        %1304 = vmatprep.subr.mxu0 0.0
        %1305 = vmatpush1.msra.mxu0 0.0
        %1306 = vmatprep.subr.mxu0 0.0
        %1307 = vmatpush1.msra.mxu0 0.0
        %1308 = vmatprep.subr.mxu0 0.0
        %1309 = vmatpush1.msra.mxu0 0.0
        %1310 = vmatprep.subr.mxu0 0.0
        %1311 = vmatpush1.msra.mxu0 0.0
        %1312 = vmatprep.subr.mxu0 0.0
        %1313 = vmatpush1.msra.mxu0 0.0
        %1314 = vmatprep.subr.mxu0 0.0
        %1315 = vmatpush1.msra.mxu0 0.0
        %1316 = vmatprep.subr.mxu0 0.0
        %1317 = vmatpush1.msra.mxu0 0.0
        %1318 = vmatprep.subr.mxu0 0.0
        %1319 = vmatpush1.msra.mxu0 0.0
        %1320 = vmatprep.subr.mxu0 0.0
        %1321 = vmatpush1.msra.mxu0 0.0
        %1322 = vmatprep.subr.mxu0 0.0
        %1323 = vmatpush1.msra.mxu0 0.0
        %1324 = vmatprep.subr.mxu0 0.0
        %1325 = vmatpush1.msra.mxu0 0.0
        %1326 = vmatprep.subr.mxu0 0.0
        %1327 = vmatpush1.msra.mxu0 0.0
        %1328 = vmatprep.subr.mxu0 0.0
        %1329 = vmatpush1.msra.mxu0 0.0
        %1330 = vmatprep.subr.mxu0 0.0
        %1331 = vmatpush1.msra.mxu0 0.0
        %1332 = vmatprep.subr.mxu0 0.0
        %1333 = vmatpush1.msra.mxu0 0.0
        %1334 = vmatprep.subr.mxu0 0.0
        %1335 = vmatpush1.msra.mxu0 0.0
        %1336 = vmatprep.subr.mxu0 0.0
        %1337 = vmatpush1.msra.mxu0 0.0
        %1338 = vmatprep.subr.mxu0 0.0
        %1339 = vmatpush1.msra.mxu0 0.0
        %1340 = vmatprep.subr.mxu0 0.0
        %1341 = vmatpush1.msra.mxu0 0.0
        %1342 = vmatprep.mubr.f32.mxu0 0.0
        %1343 = vmatmul.mubr.f32.gmra.mrb[0].mxu0 %v1255
        %v1344 = vpop.f32.mrb[0].mxu0
        %v1345 = vadd.f32 0.0, %v1344
        %v1346 = vpop.f32.mrb[0].mxu0
        %1347 = vmatprep.mubr.f32.mxu0 0.0
        %1348 = vmatmul.mubr.f32.gmra.mrb[0].mxu0 %v1258
        %v1349 = vpop.f32.mrb[0].mxu0
        %v1350 = vadd.f32 0.0, %v1349
        %v1351 = vpop.f32.mrb[0].mxu0
        %1352 = vmatprep.mubr.f32.mxu0 0.0
        %1353 = vmatmul.mubr.f32.gmra.mrb[0].mxu0 %v1261
        %v1354 = vpop.f32.mrb[0].mxu0
        %v1355 = vadd.f32 0.0, %v1354
        %v1356 = vpop.f32.mrb[0].mxu0
        %1357 = vmatprep.mubr.f32.mxu0 0.0
        %1358 = vmatmul.mubr.f32.gmra.mrb[0].mxu0 %v1264
        %v1359 = vpop.f32.mrb[0].mxu0
        %v1360 = vadd.f32 0.0, %v1359
        %v1361 = vpop.f32.mrb[0].mxu0
        %1362 = vmatprep.mubr.f32.mxu0 0.0
        %1363 = vmatmul.mubr.f32.gmra.mrb[0].mxu0 %v1267
        %v1364 = vpop.f32.mrb[0].mxu0
        %v1365 = vadd.f32 0.0, %v1364
        %v1366 = vpop.f32.mrb[0].mxu0
        %1367 = vmatprep.mubr.f32.mxu0 0.0
        %1368 = vmatmul.mubr.f32.gmra.mrb[0].mxu0 %v1270
        %v1369 = vpop.f32.mrb[0].mxu0
        %v1370 = vadd.f32 0.0, %v1369
        %v1371 = vpop.f32.mrb[0].mxu0
        %1372 = vmatprep.mubr.f32.mxu0 0.0
        %1373 = vmatmul.mubr.f32.gmra.mrb[0].mxu0 %v1273
        %v1374 = vpop.f32.mrb[0].mxu0
        %v1375 = vadd.f32 0.0, %v1374
        %v1376 = vpop.f32.mrb[0].mxu0
        %1377 = vmatprep.mubr.f32.mxu0 0.0
        %1378 = vmatmul.mubr.f32.gmra.mrb[0].mxu0 %v1276
        %v1379 = vpop.f32.mrb[0].mxu0
        %v1380 = vadd.f32 0.0, %v1379
        %v1381 = vpop.f32.mrb[0].mxu0
        %1382 = vdwg.mxu0
        %v1383 = vmax.f32 %v1345, 0.0
        %v1384 = vmax.f32 %v1350, 0.0
        %v1385 = vmax.f32 %v1355, 0.0
        %v1386 = vmax.f32 %v1360, 0.0
        %v1387 = vmax.f32 %v1365, 0.0
        %v1388 = vmax.f32 %v1370, 0.0
        %v1389 = vmax.f32 %v1375, 0.0
        %v1390 = vmax.f32 %v1380, 0.0
        %v1391 = vmax.f32 %v1237, %v1383
        %v1392 = vmax.f32 %v1238, %v1384
        %v1393 = vmax.f32 %v1239, %v1385
        %v1394 = vmax.f32 %v1240, %v1386
        %v1395 = vmax.f32 %v1241, %v1387
        %v1396 = vmax.f32 %v1242, %v1388
        %v1397 = vmax.f32 %v1243, %v1389
        %v1398 = vmax.f32 %v1244, %v1390
        %s1399 = scalar_lea.vmem %s628, 320
        %v1400 = vld [vmem:[%s1399] sm:$0xff]
        %v1401 = vld [vmem:[%s1399 + $0x8] sm:$0xff]
        %v1402 = vld [vmem:[%s1399 + $0x10] sm:$0xff]
        %v1403 = vld [vmem:[%s1399 + $0x18] sm:$0xff]
        %v1404 = vld [vmem:[%s1399 + $0x20] sm:$0xff]
        %v1405 = vld [vmem:[%s1399 + $0x28] sm:$0xff]
        %v1406 = vld [vmem:[%s1399 + $0x30] sm:$0xff]
        %v1407 = vld [vmem:[%s1399 + $0x38] sm:$0xff]
        %v1409 = vsel %vm641, %v1400, 0
        %v1412 = vsel %vm641, %v1401, 0
        %v1415 = vsel %vm641, %v1402, 0
        %v1418 = vsel %vm641, %v1403, 0
        %v1421 = vsel %vm641, %v1404, 0
        %v1424 = vsel %vm641, %v1405, 0
        %v1427 = vsel %vm641, %v1406, 0
        %v1430 = vsel %vm641, %v1407, 0
        %1432 = vmatprep.subr.mxu0 0.0
        %1433 = vmatpush1.msra.mxu0 %v629
        %1434 = vmatprep.subr.mxu0 0.0
        %1435 = vmatpush1.msra.mxu0 %v630
        %1436 = vmatprep.subr.mxu0 0.0
        %1437 = vmatpush1.msra.mxu0 %v631
        %1438 = vmatprep.subr.mxu0 0.0
        %1439 = vmatpush1.msra.mxu0 %v668
        %1440 = vmatprep.subr.mxu0 0.0
        %1441 = vmatpush1.msra.mxu0 0.0
        %1442 = vmatprep.subr.mxu0 0.0
        %1443 = vmatpush1.msra.mxu0 0.0
        %1444 = vmatprep.subr.mxu0 0.0
        %1445 = vmatpush1.msra.mxu0 0.0
        %1446 = vmatprep.subr.mxu0 0.0
        %1447 = vmatpush1.msra.mxu0 0.0
        %1448 = vmatprep.subr.mxu0 0.0
        %1449 = vmatpush1.msra.mxu0 0.0
        %1450 = vmatprep.subr.mxu0 0.0
        %1451 = vmatpush1.msra.mxu0 0.0
        %1452 = vmatprep.subr.mxu0 0.0
        %1453 = vmatpush1.msra.mxu0 0.0
        %1454 = vmatprep.subr.mxu0 0.0
        %1455 = vmatpush1.msra.mxu0 0.0
        %1456 = vmatprep.subr.mxu0 0.0
        %1457 = vmatpush1.msra.mxu0 0.0
        %1458 = vmatprep.subr.mxu0 0.0
        %1459 = vmatpush1.msra.mxu0 0.0
        %1460 = vmatprep.subr.mxu0 0.0
        %1461 = vmatpush1.msra.mxu0 0.0
        %1462 = vmatprep.subr.mxu0 0.0
        %1463 = vmatpush1.msra.mxu0 0.0
        %1464 = vmatprep.subr.mxu0 0.0
        %1465 = vmatpush1.msra.mxu0 0.0
        %1466 = vmatprep.subr.mxu0 0.0
        %1467 = vmatpush1.msra.mxu0 0.0
        %1468 = vmatprep.subr.mxu0 0.0
        %1469 = vmatpush1.msra.mxu0 0.0
        %1470 = vmatprep.subr.mxu0 0.0
        %1471 = vmatpush1.msra.mxu0 0.0
        %1472 = vmatprep.subr.mxu0 0.0
        %1473 = vmatpush1.msra.mxu0 0.0
        %1474 = vmatprep.subr.mxu0 0.0
        %1475 = vmatpush1.msra.mxu0 0.0
        %1476 = vmatprep.subr.mxu0 0.0
        %1477 = vmatpush1.msra.mxu0 0.0
        %1478 = vmatprep.subr.mxu0 0.0
        %1479 = vmatpush1.msra.mxu0 0.0
        %1480 = vmatprep.subr.mxu0 0.0
        %1481 = vmatpush1.msra.mxu0 0.0
        %1482 = vmatprep.subr.mxu0 0.0
        %1483 = vmatpush1.msra.mxu0 0.0
        %1484 = vmatprep.subr.mxu0 0.0
        %1485 = vmatpush1.msra.mxu0 0.0
        %1486 = vmatprep.subr.mxu0 0.0
        %1487 = vmatpush1.msra.mxu0 0.0
        %1488 = vmatprep.subr.mxu0 0.0
        %1489 = vmatpush1.msra.mxu0 0.0
        %1490 = vmatprep.subr.mxu0 0.0
        %1491 = vmatpush1.msra.mxu0 0.0
        %1492 = vmatprep.subr.mxu0 0.0
        %1493 = vmatpush1.msra.mxu0 0.0
        %1494 = vmatprep.subr.mxu0 0.0
        %1495 = vmatpush1.msra.mxu0 0.0
        %1496 = vmatprep.mubr.f32.mxu0 0.0
        %1497 = vmatmul.mubr.f32.gmra.mrb[0].mxu0 %v1409
        %v1498 = vpop.f32.mrb[0].mxu0
        %v1499 = vadd.f32 0.0, %v1498
        %v1500 = vpop.f32.mrb[0].mxu0
        %1501 = vmatprep.mubr.f32.mxu0 0.0
        %1502 = vmatmul.mubr.f32.gmra.mrb[0].mxu0 %v1412
        %v1503 = vpop.f32.mrb[0].mxu0
        %v1504 = vadd.f32 0.0, %v1503
        %v1505 = vpop.f32.mrb[0].mxu0
        %1506 = vmatprep.mubr.f32.mxu0 0.0
        %1507 = vmatmul.mubr.f32.gmra.mrb[0].mxu0 %v1415
        %v1508 = vpop.f32.mrb[0].mxu0
        %v1509 = vadd.f32 0.0, %v1508
        %v1510 = vpop.f32.mrb[0].mxu0
        %1511 = vmatprep.mubr.f32.mxu0 0.0
        %1512 = vmatmul.mubr.f32.gmra.mrb[0].mxu0 %v1418
        %v1513 = vpop.f32.mrb[0].mxu0
        %v1514 = vadd.f32 0.0, %v1513
        %v1515 = vpop.f32.mrb[0].mxu0
        %1516 = vmatprep.mubr.f32.mxu0 0.0
        %1517 = vmatmul.mubr.f32.gmra.mrb[0].mxu0 %v1421
        %v1518 = vpop.f32.mrb[0].mxu0
        %v1519 = vadd.f32 0.0, %v1518
        %v1520 = vpop.f32.mrb[0].mxu0
        %1521 = vmatprep.mubr.f32.mxu0 0.0
        %1522 = vmatmul.mubr.f32.gmra.mrb[0].mxu0 %v1424
        %v1523 = vpop.f32.mrb[0].mxu0
        %v1524 = vadd.f32 0.0, %v1523
        %v1525 = vpop.f32.mrb[0].mxu0
        %1526 = vmatprep.mubr.f32.mxu0 0.0
        %1527 = vmatmul.mubr.f32.gmra.mrb[0].mxu0 %v1427
        %v1528 = vpop.f32.mrb[0].mxu0
        %v1529 = vadd.f32 0.0, %v1528
        %v1530 = vpop.f32.mrb[0].mxu0
        %1531 = vmatprep.mubr.f32.mxu0 0.0
        %1532 = vmatmul.mubr.f32.gmra.mrb[0].mxu0 %v1430
        %v1533 = vpop.f32.mrb[0].mxu0
        %v1534 = vadd.f32 0.0, %v1533
        %v1535 = vpop.f32.mrb[0].mxu0
        %1536 = vdwg.mxu0
        %v1537 = vmax.f32 %v1499, 0.0
        %v1538 = vmax.f32 %v1504, 0.0
        %v1539 = vmax.f32 %v1509, 0.0
        %v1540 = vmax.f32 %v1514, 0.0
        %v1541 = vmax.f32 %v1519, 0.0
        %v1542 = vmax.f32 %v1524, 0.0
        %v1543 = vmax.f32 %v1529, 0.0
        %v1544 = vmax.f32 %v1534, 0.0
        %v1545 = vmax.f32 %v1391, %v1537
        %v1546 = vmax.f32 %v1392, %v1538
        %v1547 = vmax.f32 %v1393, %v1539
        %v1548 = vmax.f32 %v1394, %v1540
        %v1549 = vmax.f32 %v1395, %v1541
        %v1550 = vmax.f32 %v1396, %v1542
        %v1551 = vmax.f32 %v1397, %v1543
        %v1552 = vmax.f32 %v1398, %v1544
        %s1553 = scalar_lea.vmem %s628, 384
        %v1554 = vld [vmem:[%s1553] sm:$0xff]
        %v1555 = vld [vmem:[%s1553 + $0x8] sm:$0xff]
        %v1556 = vld [vmem:[%s1553 + $0x10] sm:$0xff]
        %v1557 = vld [vmem:[%s1553 + $0x18] sm:$0xff]
        %v1558 = vld [vmem:[%s1553 + $0x20] sm:$0xff]
        %v1559 = vld [vmem:[%s1553 + $0x28] sm:$0xff]
        %v1560 = vld [vmem:[%s1553 + $0x30] sm:$0xff]
        %v1561 = vld [vmem:[%s1553 + $0x38] sm:$0xff]
        %v1563 = vsel %vm641, %v1554, 0
        %v1566 = vsel %vm641, %v1555, 0
        %v1569 = vsel %vm641, %v1556, 0
        %v1572 = vsel %vm641, %v1557, 0
        %v1575 = vsel %vm641, %v1558, 0
        %v1578 = vsel %vm641, %v1559, 0
        %v1581 = vsel %vm641, %v1560, 0
        %v1584 = vsel %vm641, %v1561, 0
        %1586 = vmatprep.subr.mxu0 0.0
        %1587 = vmatpush1.msra.mxu0 %v629
        %1588 = vmatprep.subr.mxu0 0.0
        %1589 = vmatpush1.msra.mxu0 %v630
        %1590 = vmatprep.subr.mxu0 0.0
        %1591 = vmatpush1.msra.mxu0 %v631
        %1592 = vmatprep.subr.mxu0 0.0
        %1593 = vmatpush1.msra.mxu0 %v668
        %1594 = vmatprep.subr.mxu0 0.0
        %1595 = vmatpush1.msra.mxu0 0.0
        %1596 = vmatprep.subr.mxu0 0.0
        %1597 = vmatpush1.msra.mxu0 0.0
        %1598 = vmatprep.subr.mxu0 0.0
        %1599 = vmatpush1.msra.mxu0 0.0
        %1600 = vmatprep.subr.mxu0 0.0
        %1601 = vmatpush1.msra.mxu0 0.0
        %1602 = vmatprep.subr.mxu0 0.0
        %1603 = vmatpush1.msra.mxu0 0.0
        %1604 = vmatprep.subr.mxu0 0.0
        %1605 = vmatpush1.msra.mxu0 0.0
        %1606 = vmatprep.subr.mxu0 0.0
        %1607 = vmatpush1.msra.mxu0 0.0
        %1608 = vmatprep.subr.mxu0 0.0
        %1609 = vmatpush1.msra.mxu0 0.0
        %1610 = vmatprep.subr.mxu0 0.0
        %1611 = vmatpush1.msra.mxu0 0.0
        %1612 = vmatprep.subr.mxu0 0.0
        %1613 = vmatpush1.msra.mxu0 0.0
        %1614 = vmatprep.subr.mxu0 0.0
        %1615 = vmatpush1.msra.mxu0 0.0
        %1616 = vmatprep.subr.mxu0 0.0
        %1617 = vmatpush1.msra.mxu0 0.0
        %1618 = vmatprep.subr.mxu0 0.0
        %1619 = vmatpush1.msra.mxu0 0.0
        %1620 = vmatprep.subr.mxu0 0.0
        %1621 = vmatpush1.msra.mxu0 0.0
        %1622 = vmatprep.subr.mxu0 0.0
        %1623 = vmatpush1.msra.mxu0 0.0
        %1624 = vmatprep.subr.mxu0 0.0
        %1625 = vmatpush1.msra.mxu0 0.0
        %1626 = vmatprep.subr.mxu0 0.0
        %1627 = vmatpush1.msra.mxu0 0.0
        %1628 = vmatprep.subr.mxu0 0.0
        %1629 = vmatpush1.msra.mxu0 0.0
        %1630 = vmatprep.subr.mxu0 0.0
        %1631 = vmatpush1.msra.mxu0 0.0
        %1632 = vmatprep.subr.mxu0 0.0
        %1633 = vmatpush1.msra.mxu0 0.0
        %1634 = vmatprep.subr.mxu0 0.0
        %1635 = vmatpush1.msra.mxu0 0.0
        %1636 = vmatprep.subr.mxu0 0.0
        %1637 = vmatpush1.msra.mxu0 0.0
        %1638 = vmatprep.subr.mxu0 0.0
        %1639 = vmatpush1.msra.mxu0 0.0
        %1640 = vmatprep.subr.mxu0 0.0
        %1641 = vmatpush1.msra.mxu0 0.0
        %1642 = vmatprep.subr.mxu0 0.0
        %1643 = vmatpush1.msra.mxu0 0.0
        %1644 = vmatprep.subr.mxu0 0.0
        %1645 = vmatpush1.msra.mxu0 0.0
        %1646 = vmatprep.subr.mxu0 0.0
        %1647 = vmatpush1.msra.mxu0 0.0
        %1648 = vmatprep.subr.mxu0 0.0
        %1649 = vmatpush1.msra.mxu0 0.0
        %1650 = vmatprep.mubr.f32.mxu0 0.0
        %1651 = vmatmul.mubr.f32.gmra.mrb[0].mxu0 %v1563
        %v1652 = vpop.f32.mrb[0].mxu0
        %v1653 = vadd.f32 0.0, %v1652
        %v1654 = vpop.f32.mrb[0].mxu0
        %1655 = vmatprep.mubr.f32.mxu0 0.0
        %1656 = vmatmul.mubr.f32.gmra.mrb[0].mxu0 %v1566
        %v1657 = vpop.f32.mrb[0].mxu0
        %v1658 = vadd.f32 0.0, %v1657
        %v1659 = vpop.f32.mrb[0].mxu0
        %1660 = vmatprep.mubr.f32.mxu0 0.0
        %1661 = vmatmul.mubr.f32.gmra.mrb[0].mxu0 %v1569
        %v1662 = vpop.f32.mrb[0].mxu0
        %v1663 = vadd.f32 0.0, %v1662
        %v1664 = vpop.f32.mrb[0].mxu0
        %1665 = vmatprep.mubr.f32.mxu0 0.0
        %1666 = vmatmul.mubr.f32.gmra.mrb[0].mxu0 %v1572
        %v1667 = vpop.f32.mrb[0].mxu0
        %v1668 = vadd.f32 0.0, %v1667
        %v1669 = vpop.f32.mrb[0].mxu0
        %1670 = vmatprep.mubr.f32.mxu0 0.0
        %1671 = vmatmul.mubr.f32.gmra.mrb[0].mxu0 %v1575
        %v1672 = vpop.f32.mrb[0].mxu0
        %v1673 = vadd.f32 0.0, %v1672
        %v1674 = vpop.f32.mrb[0].mxu0
        %1675 = vmatprep.mubr.f32.mxu0 0.0
        %1676 = vmatmul.mubr.f32.gmra.mrb[0].mxu0 %v1578
        %v1677 = vpop.f32.mrb[0].mxu0
        %v1678 = vadd.f32 0.0, %v1677
        %v1679 = vpop.f32.mrb[0].mxu0
        %1680 = vmatprep.mubr.f32.mxu0 0.0
        %1681 = vmatmul.mubr.f32.gmra.mrb[0].mxu0 %v1581
        %v1682 = vpop.f32.mrb[0].mxu0
        %v1683 = vadd.f32 0.0, %v1682
        %v1684 = vpop.f32.mrb[0].mxu0
        %1685 = vmatprep.mubr.f32.mxu0 0.0
        %1686 = vmatmul.mubr.f32.gmra.mrb[0].mxu0 %v1584
        %v1687 = vpop.f32.mrb[0].mxu0
        %v1688 = vadd.f32 0.0, %v1687
        %v1689 = vpop.f32.mrb[0].mxu0
        %1690 = vdwg.mxu0
        %v1691 = vmax.f32 %v1653, 0.0
        %v1692 = vmax.f32 %v1658, 0.0
        %v1693 = vmax.f32 %v1663, 0.0
        %v1694 = vmax.f32 %v1668, 0.0
        %v1695 = vmax.f32 %v1673, 0.0
        %v1696 = vmax.f32 %v1678, 0.0
        %v1697 = vmax.f32 %v1683, 0.0
        %v1698 = vmax.f32 %v1688, 0.0
        %v1699 = vmax.f32 %v1545, %v1691
        %v1700 = vmax.f32 %v1546, %v1692
        %v1701 = vmax.f32 %v1547, %v1693
        %v1702 = vmax.f32 %v1548, %v1694
        %v1703 = vmax.f32 %v1549, %v1695
        %v1704 = vmax.f32 %v1550, %v1696
        %v1705 = vmax.f32 %v1551, %v1697
        %v1706 = vmax.f32 %v1552, %v1698
        %s1707 = scalar_lea.vmem %s628, 448
        %v1708 = vld [vmem:[%s1707] sm:$0xff]
        %v1709 = vld [vmem:[%s1707 + $0x8] sm:$0xff]
        %v1710 = vld [vmem:[%s1707 + $0x10] sm:$0xff]
        %v1711 = vld [vmem:[%s1707 + $0x18] sm:$0xff]
        %v1712 = vld [vmem:[%s1707 + $0x20] sm:$0xff]
        %v1713 = vld [vmem:[%s1707 + $0x28] sm:$0xff]
        %v1714 = vld [vmem:[%s1707 + $0x30] sm:$0xff]
        %v1715 = vld [vmem:[%s1707 + $0x38] sm:$0xff]
        %v1717 = vsel %vm641, %v1708, 0
        %v1720 = vsel %vm641, %v1709, 0
        %v1723 = vsel %vm641, %v1710, 0
        %v1726 = vsel %vm641, %v1711, 0
        %v1729 = vsel %vm641, %v1712, 0
        %v1732 = vsel %vm641, %v1713, 0
        %v1735 = vsel %vm641, %v1714, 0
        %v1738 = vsel %vm641, %v1715, 0
        %1740 = vmatprep.subr.mxu0 0.0
        %1741 = vmatpush1.msra.mxu0 %v629
        %1742 = vmatprep.subr.mxu0 0.0
        %1743 = vmatpush1.msra.mxu0 %v630
        %1744 = vmatprep.subr.mxu0 0.0
        %1745 = vmatpush1.msra.mxu0 %v631
        %1746 = vmatprep.subr.mxu0 0.0
        %1747 = vmatpush1.msra.mxu0 %v668
        %1748 = vmatprep.subr.mxu0 0.0
        %1749 = vmatpush1.msra.mxu0 0.0
        %1750 = vmatprep.subr.mxu0 0.0
        %1751 = vmatpush1.msra.mxu0 0.0
        %1752 = vmatprep.subr.mxu0 0.0
        %1753 = vmatpush1.msra.mxu0 0.0
        %1754 = vmatprep.subr.mxu0 0.0
        %1755 = vmatpush1.msra.mxu0 0.0
        %1756 = vmatprep.subr.mxu0 0.0
        %1757 = vmatpush1.msra.mxu0 0.0
        %1758 = vmatprep.subr.mxu0 0.0
        %1759 = vmatpush1.msra.mxu0 0.0
        %1760 = vmatprep.subr.mxu0 0.0
        %1761 = vmatpush1.msra.mxu0 0.0
        %1762 = vmatprep.subr.mxu0 0.0
        %1763 = vmatpush1.msra.mxu0 0.0
        %1764 = vmatprep.subr.mxu0 0.0
        %1765 = vmatpush1.msra.mxu0 0.0
        %1766 = vmatprep.subr.mxu0 0.0
        %1767 = vmatpush1.msra.mxu0 0.0
        %1768 = vmatprep.subr.mxu0 0.0
        %1769 = vmatpush1.msra.mxu0 0.0
        %1770 = vmatprep.subr.mxu0 0.0
        %1771 = vmatpush1.msra.mxu0 0.0
        %1772 = vmatprep.subr.mxu0 0.0
        %1773 = vmatpush1.msra.mxu0 0.0
        %1774 = vmatprep.subr.mxu0 0.0
        %1775 = vmatpush1.msra.mxu0 0.0
        %1776 = vmatprep.subr.mxu0 0.0
        %1777 = vmatpush1.msra.mxu0 0.0
        %1778 = vmatprep.subr.mxu0 0.0
        %1779 = vmatpush1.msra.mxu0 0.0
        %1780 = vmatprep.subr.mxu0 0.0
        %1781 = vmatpush1.msra.mxu0 0.0
        %1782 = vmatprep.subr.mxu0 0.0
        %1783 = vmatpush1.msra.mxu0 0.0
        %1784 = vmatprep.subr.mxu0 0.0
        %1785 = vmatpush1.msra.mxu0 0.0
        %1786 = vmatprep.subr.mxu0 0.0
        %1787 = vmatpush1.msra.mxu0 0.0
        %1788 = vmatprep.subr.mxu0 0.0
        %1789 = vmatpush1.msra.mxu0 0.0
        %1790 = vmatprep.subr.mxu0 0.0
        %1791 = vmatpush1.msra.mxu0 0.0
        %1792 = vmatprep.subr.mxu0 0.0
        %1793 = vmatpush1.msra.mxu0 0.0
        %1794 = vmatprep.subr.mxu0 0.0
        %1795 = vmatpush1.msra.mxu0 0.0
        %1796 = vmatprep.subr.mxu0 0.0
        %1797 = vmatpush1.msra.mxu0 0.0
        %1798 = vmatprep.subr.mxu0 0.0
        %1799 = vmatpush1.msra.mxu0 0.0
        %1800 = vmatprep.subr.mxu0 0.0
        %1801 = vmatpush1.msra.mxu0 0.0
        %1802 = vmatprep.subr.mxu0 0.0
        %1803 = vmatpush1.msra.mxu0 0.0
        %1804 = vmatprep.mubr.f32.mxu0 0.0
        %1805 = vmatmul.mubr.f32.gmra.mrb[0].mxu0 %v1717
        %v1806 = vpop.f32.mrb[0].mxu0
        %v1807 = vadd.f32 0.0, %v1806
        %v1808 = vpop.f32.mrb[0].mxu0
        %1809 = vmatprep.mubr.f32.mxu0 0.0
        %1810 = vmatmul.mubr.f32.gmra.mrb[0].mxu0 %v1720
        %v1811 = vpop.f32.mrb[0].mxu0
        %v1812 = vadd.f32 0.0, %v1811
        %v1813 = vpop.f32.mrb[0].mxu0
        %1814 = vmatprep.mubr.f32.mxu0 0.0
        %1815 = vmatmul.mubr.f32.gmra.mrb[0].mxu0 %v1723
        %v1816 = vpop.f32.mrb[0].mxu0
        %v1817 = vadd.f32 0.0, %v1816
        %v1818 = vpop.f32.mrb[0].mxu0
        %1819 = vmatprep.mubr.f32.mxu0 0.0
        %1820 = vmatmul.mubr.f32.gmra.mrb[0].mxu0 %v1726
        %v1821 = vpop.f32.mrb[0].mxu0
        %v1822 = vadd.f32 0.0, %v1821
        %v1823 = vpop.f32.mrb[0].mxu0
        %1824 = vmatprep.mubr.f32.mxu0 0.0
        %1825 = vmatmul.mubr.f32.gmra.mrb[0].mxu0 %v1729
        %v1826 = vpop.f32.mrb[0].mxu0
        %v1827 = vadd.f32 0.0, %v1826
        %v1828 = vpop.f32.mrb[0].mxu0
        %1829 = vmatprep.mubr.f32.mxu0 0.0
        %1830 = vmatmul.mubr.f32.gmra.mrb[0].mxu0 %v1732
        %v1831 = vpop.f32.mrb[0].mxu0
        %v1832 = vadd.f32 0.0, %v1831
        %v1833 = vpop.f32.mrb[0].mxu0
        %1834 = vmatprep.mubr.f32.mxu0 0.0
        %1835 = vmatmul.mubr.f32.gmra.mrb[0].mxu0 %v1735
        %v1836 = vpop.f32.mrb[0].mxu0
        %v1837 = vadd.f32 0.0, %v1836
        %v1838 = vpop.f32.mrb[0].mxu0
        %1839 = vmatprep.mubr.f32.mxu0 0.0
        %1840 = vmatmul.mubr.f32.gmra.mrb[0].mxu0 %v1738
        %v1841 = vpop.f32.mrb[0].mxu0
        %v1842 = vadd.f32 0.0, %v1841
        %v1843 = vpop.f32.mrb[0].mxu0
        %1844 = vdwg.mxu0
        %v1845 = vmax.f32 %v1807, 0.0
        %v1846 = vmax.f32 %v1812, 0.0
        %v1847 = vmax.f32 %v1817, 0.0
        %v1848 = vmax.f32 %v1822, 0.0
        %v1849 = vmax.f32 %v1827, 0.0
        %v1850 = vmax.f32 %v1832, 0.0
        %v1851 = vmax.f32 %v1837, 0.0
        %v1852 = vmax.f32 %v1842, 0.0
        %v1853 = vmax.f32 %v1699, %v1845
        %v1854 = vmax.f32 %v1700, %v1846
        %v1855 = vmax.f32 %v1701, %v1847
        %v1856 = vmax.f32 %v1702, %v1848
        %v1857 = vmax.f32 %v1703, %v1849
        %v1858 = vmax.f32 %v1704, %v1850
        %v1859 = vmax.f32 %v1705, %v1851
        %v1860 = vmax.f32 %v1706, %v1852
        %s1861 = scalar_lea.vmem %s628, 512
        %v1862 = vld [vmem:[%s1861] sm:$0xff]
        %v1863 = vld [vmem:[%s1861 + $0x8] sm:$0xff]
        %v1864 = vld [vmem:[%s1861 + $0x10] sm:$0xff]
        %v1865 = vld [vmem:[%s1861 + $0x18] sm:$0xff]
        %v1866 = vld [vmem:[%s1861 + $0x20] sm:$0xff]
        %v1867 = vld [vmem:[%s1861 + $0x28] sm:$0xff]
        %v1868 = vld [vmem:[%s1861 + $0x30] sm:$0xff]
        %v1869 = vld [vmem:[%s1861 + $0x38] sm:$0xff]
        %v1871 = vsel %vm641, %v1862, 0
        %v1874 = vsel %vm641, %v1863, 0
        %v1877 = vsel %vm641, %v1864, 0
        %v1880 = vsel %vm641, %v1865, 0
        %v1883 = vsel %vm641, %v1866, 0
        %v1886 = vsel %vm641, %v1867, 0
        %v1889 = vsel %vm641, %v1868, 0
        %v1892 = vsel %vm641, %v1869, 0
        %1894 = vmatprep.subr.mxu0 0.0
        %1895 = vmatpush1.msra.mxu0 %v629
        %1896 = vmatprep.subr.mxu0 0.0
        %1897 = vmatpush1.msra.mxu0 %v630
        %1898 = vmatprep.subr.mxu0 0.0
        %1899 = vmatpush1.msra.mxu0 %v631
        %1900 = vmatprep.subr.mxu0 0.0
        %1901 = vmatpush1.msra.mxu0 %v668
        %1902 = vmatprep.subr.mxu0 0.0
        %1903 = vmatpush1.msra.mxu0 0.0
        %1904 = vmatprep.subr.mxu0 0.0
        %1905 = vmatpush1.msra.mxu0 0.0
        %1906 = vmatprep.subr.mxu0 0.0
        %1907 = vmatpush1.msra.mxu0 0.0
        %1908 = vmatprep.subr.mxu0 0.0
        %1909 = vmatpush1.msra.mxu0 0.0
        %1910 = vmatprep.subr.mxu0 0.0
        %1911 = vmatpush1.msra.mxu0 0.0
        %1912 = vmatprep.subr.mxu0 0.0
        %1913 = vmatpush1.msra.mxu0 0.0
        %1914 = vmatprep.subr.mxu0 0.0
        %1915 = vmatpush1.msra.mxu0 0.0
        %1916 = vmatprep.subr.mxu0 0.0
        %1917 = vmatpush1.msra.mxu0 0.0
        %1918 = vmatprep.subr.mxu0 0.0
        %1919 = vmatpush1.msra.mxu0 0.0
        %1920 = vmatprep.subr.mxu0 0.0
        %1921 = vmatpush1.msra.mxu0 0.0
        %1922 = vmatprep.subr.mxu0 0.0
        %1923 = vmatpush1.msra.mxu0 0.0
        %1924 = vmatprep.subr.mxu0 0.0
        %1925 = vmatpush1.msra.mxu0 0.0
        %1926 = vmatprep.subr.mxu0 0.0
        %1927 = vmatpush1.msra.mxu0 0.0
        %1928 = vmatprep.subr.mxu0 0.0
        %1929 = vmatpush1.msra.mxu0 0.0
        %1930 = vmatprep.subr.mxu0 0.0
        %1931 = vmatpush1.msra.mxu0 0.0
        %1932 = vmatprep.subr.mxu0 0.0
        %1933 = vmatpush1.msra.mxu0 0.0
        %1934 = vmatprep.subr.mxu0 0.0
        %1935 = vmatpush1.msra.mxu0 0.0
        %1936 = vmatprep.subr.mxu0 0.0
        %1937 = vmatpush1.msra.mxu0 0.0
        %1938 = vmatprep.subr.mxu0 0.0
        %1939 = vmatpush1.msra.mxu0 0.0
        %1940 = vmatprep.subr.mxu0 0.0
        %1941 = vmatpush1.msra.mxu0 0.0
        %1942 = vmatprep.subr.mxu0 0.0
        %1943 = vmatpush1.msra.mxu0 0.0
        %1944 = vmatprep.subr.mxu0 0.0
        %1945 = vmatpush1.msra.mxu0 0.0
        %1946 = vmatprep.subr.mxu0 0.0
        %1947 = vmatpush1.msra.mxu0 0.0
        %1948 = vmatprep.subr.mxu0 0.0
        %1949 = vmatpush1.msra.mxu0 0.0
        %1950 = vmatprep.subr.mxu0 0.0
        %1951 = vmatpush1.msra.mxu0 0.0
        %1952 = vmatprep.subr.mxu0 0.0
        %1953 = vmatpush1.msra.mxu0 0.0
        %1954 = vmatprep.subr.mxu0 0.0
        %1955 = vmatpush1.msra.mxu0 0.0
        %1956 = vmatprep.subr.mxu0 0.0
        %1957 = vmatpush1.msra.mxu0 0.0
        %1958 = vmatprep.mubr.f32.mxu0 0.0
        %1959 = vmatmul.mubr.f32.gmra.mrb[0].mxu0 %v1871
        %v1960 = vpop.f32.mrb[0].mxu0
        %v1961 = vadd.f32 0.0, %v1960
        %v1962 = vpop.f32.mrb[0].mxu0
        %1963 = vmatprep.mubr.f32.mxu0 0.0
        %1964 = vmatmul.mubr.f32.gmra.mrb[0].mxu0 %v1874
        %v1965 = vpop.f32.mrb[0].mxu0
        %v1966 = vadd.f32 0.0, %v1965
        %v1967 = vpop.f32.mrb[0].mxu0
        %1968 = vmatprep.mubr.f32.mxu0 0.0
        %1969 = vmatmul.mubr.f32.gmra.mrb[0].mxu0 %v1877
        %v1970 = vpop.f32.mrb[0].mxu0
        %v1971 = vadd.f32 0.0, %v1970
        %v1972 = vpop.f32.mrb[0].mxu0
        %1973 = vmatprep.mubr.f32.mxu0 0.0
        %1974 = vmatmul.mubr.f32.gmra.mrb[0].mxu0 %v1880
        %v1975 = vpop.f32.mrb[0].mxu0
        %v1976 = vadd.f32 0.0, %v1975
        %v1977 = vpop.f32.mrb[0].mxu0
        %1978 = vmatprep.mubr.f32.mxu0 0.0
        %1979 = vmatmul.mubr.f32.gmra.mrb[0].mxu0 %v1883
        %v1980 = vpop.f32.mrb[0].mxu0
        %v1981 = vadd.f32 0.0, %v1980
        %v1982 = vpop.f32.mrb[0].mxu0
        %1983 = vmatprep.mubr.f32.mxu0 0.0
        %1984 = vmatmul.mubr.f32.gmra.mrb[0].mxu0 %v1886
        %v1985 = vpop.f32.mrb[0].mxu0
        %v1986 = vadd.f32 0.0, %v1985
        %v1987 = vpop.f32.mrb[0].mxu0
        %1988 = vmatprep.mubr.f32.mxu0 0.0
        %1989 = vmatmul.mubr.f32.gmra.mrb[0].mxu0 %v1889
        %v1990 = vpop.f32.mrb[0].mxu0
        %v1991 = vadd.f32 0.0, %v1990
        %v1992 = vpop.f32.mrb[0].mxu0
        %1993 = vmatprep.mubr.f32.mxu0 0.0
        %1994 = vmatmul.mubr.f32.gmra.mrb[0].mxu0 %v1892
        %v1995 = vpop.f32.mrb[0].mxu0
        %v1996 = vadd.f32 0.0, %v1995
        %v1997 = vpop.f32.mrb[0].mxu0
        %1998 = vdwg.mxu0
        %v1999 = vmax.f32 %v1961, 0.0
        %v2000 = vmax.f32 %v1966, 0.0
        %v2001 = vmax.f32 %v1971, 0.0
        %v2002 = vmax.f32 %v1976, 0.0
        %v2003 = vmax.f32 %v1981, 0.0
        %v2004 = vmax.f32 %v1986, 0.0
        %v2005 = vmax.f32 %v1991, 0.0
        %v2006 = vmax.f32 %v1996, 0.0
        %v2007 = vmax.f32 %v1853, %v1999
        %v2008 = vmax.f32 %v1854, %v2000
        %v2009 = vmax.f32 %v1855, %v2001
        %v2010 = vmax.f32 %v1856, %v2002
        %v2011 = vmax.f32 %v1857, %v2003
        %v2012 = vmax.f32 %v1858, %v2004
        %v2013 = vmax.f32 %v1859, %v2005
        %v2014 = vmax.f32 %v1860, %v2006
        %v2015 = vld [vmem:[%s1] sm:$0xff]
        %v2016 = vld [vmem:[%s1 + $0x8] sm:$0xff]
        %v2017 = vld [vmem:[%s1 + $0x10] sm:$0xff]
        %v2018 = vld [vmem:[%s1 + $0x18] sm:$0xff]
        %v2019 = vld [vmem:[%s1 + $0x20] sm:$0xff]
        %v2020 = vld [vmem:[%s1 + $0x28] sm:$0xff]
        %v2021 = vld [vmem:[%s1 + $0x30] sm:$0xff]
        %v2022 = vld [vmem:[%s1 + $0x38] sm:$0xff]
        %v2023 = vadd.f32 %v2007, %v2015
        %v2024 = vadd.f32 %v2008, %v2016
        %v2025 = vadd.f32 %v2009, %v2017
        %v2026 = vadd.f32 %v2010, %v2018
        %v2027 = vadd.f32 %v2011, %v2019
        %v2028 = vadd.f32 %v2012, %v2020
        %v2029 = vadd.f32 %v2013, %v2021
        %v2030 = vadd.f32 %v2014, %v2022
        %v2031 = vld [vmem:[%s3] sm:$0x1]
        %v2032 = vld [vmem:[%s4] sm:$0x1]
        %2033 = vadd.xlane.f32.xlu0 %v2023
        %v2034 = vpop.xlane.xlu0 %2033
        %2035 = vadd.xlane.f32.xlu0 %v2024
        %v2036 = vpop.xlane.xlu0 %2035
        %2037 = vadd.xlane.f32.xlu0 %v2025
        %v2038 = vpop.xlane.xlu0 %2037
        %2039 = vadd.xlane.f32.xlu0 %v2026
        %v2040 = vpop.xlane.xlu0 %2039
        %2041 = vadd.xlane.f32.xlu0 %v2027
        %v2042 = vpop.xlane.xlu0 %2041
        %2043 = vadd.xlane.f32.xlu0 %v2028
        %v2044 = vpop.xlane.xlu0 %2043
        %2045 = vadd.xlane.f32.xlu0 %v2029
        %v2046 = vpop.xlane.xlu0 %2045
        %2047 = vadd.xlane.f32.xlu0 %v2030
        %v2048 = vpop.xlane.xlu0 %2047
        %v2049 = vrcp.pop 128.0
        %v2050 = vmul.f32 %v2034, %v2049
        %v2051 = vmul.f32 %v2036, %v2049
        %v2052 = vmul.f32 %v2038, %v2049
        %v2053 = vmul.f32 %v2040, %v2049
        %v2054 = vmul.f32 %v2042, %v2049
        %v2055 = vmul.f32 %v2044, %v2049
        %v2056 = vmul.f32 %v2046, %v2049
        %v2057 = vmul.f32 %v2048, %v2049
        %v2058 = vsub.f32 %v2023, %v2050
        %v2059 = vsub.f32 %v2024, %v2051
        %v2060 = vsub.f32 %v2025, %v2052
        %v2061 = vsub.f32 %v2026, %v2053
        %v2062 = vsub.f32 %v2027, %v2054
        %v2063 = vsub.f32 %v2028, %v2055
        %v2064 = vsub.f32 %v2029, %v2056
        %v2065 = vsub.f32 %v2030, %v2057
        %v2066 = vmul.f32 %v2058, %v2058
        %v2067 = vmul.f32 %v2059, %v2059
        %v2068 = vmul.f32 %v2060, %v2060
        %v2069 = vmul.f32 %v2061, %v2061
        %v2070 = vmul.f32 %v2062, %v2062
        %v2071 = vmul.f32 %v2063, %v2063
        %v2072 = vmul.f32 %v2064, %v2064
        %v2073 = vmul.f32 %v2065, %v2065
        %2074 = vadd.xlane.f32.xlu0 %v2066
        %v2075 = vpop.xlane.xlu0 %2074
        %2076 = vadd.xlane.f32.xlu0 %v2067
        %v2077 = vpop.xlane.xlu0 %2076
        %2078 = vadd.xlane.f32.xlu0 %v2068
        %v2079 = vpop.xlane.xlu0 %2078
        %2080 = vadd.xlane.f32.xlu0 %v2069
        %v2081 = vpop.xlane.xlu0 %2080
        %2082 = vadd.xlane.f32.xlu0 %v2070
        %v2083 = vpop.xlane.xlu0 %2082
        %2084 = vadd.xlane.f32.xlu0 %v2071
        %v2085 = vpop.xlane.xlu0 %2084
        %2086 = vadd.xlane.f32.xlu0 %v2072
        %v2087 = vpop.xlane.xlu0 %2086
        %2088 = vadd.xlane.f32.xlu0 %v2073
        %v2089 = vpop.xlane.xlu0 %2088
        %v2090 = vmul.f32 %v2075, %v2049
        %v2091 = vmul.f32 %v2077, %v2049
        %v2092 = vmul.f32 %v2079, %v2049
        %v2093 = vmul.f32 %v2081, %v2049
        %v2094 = vmul.f32 %v2083, %v2049
        %v2095 = vmul.f32 %v2085, %v2049
        %v2096 = vmul.f32 %v2087, %v2049
        %v2097 = vmul.f32 %v2089, %v2049
        %v2098 = vadd.f32 %v2090, 1e-05
        %v2099 = vadd.f32 %v2091, 1e-05
        %v2100 = vadd.f32 %v2092, 1e-05
        %v2101 = vadd.f32 %v2093, 1e-05
        %v2102 = vadd.f32 %v2094, 1e-05
        %v2103 = vadd.f32 %v2095, 1e-05
        %v2104 = vadd.f32 %v2096, 1e-05
        %v2105 = vadd.f32 %v2097, 1e-05
        %v2106 = vrsqrt.pop %v2098
        %v2107 = vrsqrt.pop %v2099
        %v2108 = vrsqrt.pop %v2100
        %v2109 = vrsqrt.pop %v2101
        %v2110 = vrsqrt.pop %v2102
        %v2111 = vrsqrt.pop %v2103
        %v2112 = vrsqrt.pop %v2104
        %v2113 = vrsqrt.pop %v2105
        %v2114 = vmul.f32 %v2058, %v2106
        %v2115 = vmul.f32 %v2059, %v2107
        %v2116 = vmul.f32 %v2060, %v2108
        %v2117 = vmul.f32 %v2061, %v2109
        %v2118 = vmul.f32 %v2062, %v2110
        %v2119 = vmul.f32 %v2063, %v2111
        %v2120 = vmul.f32 %v2064, %v2112
        %v2121 = vmul.f32 %v2065, %v2113
        %v2123 = vlaneseq
        %v2124 = vshrl.u32 %v2123, 7
        %v2125 = vsub.s32 0, %v2124
        %v2126 = vrot.slane %v2031, %v2125
        %v2128 = vmul.f32 %v2114, %v2126
        %v2129 = vmul.f32 %v2115, %v2126
        %v2130 = vmul.f32 %v2116, %v2126
        %v2131 = vmul.f32 %v2117, %v2126
        %v2132 = vmul.f32 %v2118, %v2126
        %v2133 = vmul.f32 %v2119, %v2126
        %v2134 = vmul.f32 %v2120, %v2126
        %v2135 = vmul.f32 %v2121, %v2126
        %v2137 = vlaneseq
        %v2138 = vshrl.u32 %v2137, 7
        %v2139 = vsub.s32 0, %v2138
        %v2140 = vrot.slane %v2032, %v2139
        %v2142 = vadd.f32 %v2128, %v2140
        %v2143 = vadd.f32 %v2129, %v2140
        %v2144 = vadd.f32 %v2130, %v2140
        %v2145 = vadd.f32 %v2131, %v2140
        %v2146 = vadd.f32 %v2132, %v2140
        %v2147 = vadd.f32 %v2133, %v2140
        %v2148 = vadd.f32 %v2134, %v2140
        %v2149 = vadd.f32 %v2135, %v2140
        %v2150 = vld [vmem:[%s5] sm:$0xff]
        %v2151 = vld [vmem:[%s5 + $0x8] sm:$0xff]
        %v2152 = vld [vmem:[%s5 + $0x10] sm:$0xff]
        %v2153 = vld [vmem:[%s5 + $0x18] sm:$0xff]
        %v2154 = vld [vmem:[%s5 + $0x20] sm:$0xff]
        %v2155 = vld [vmem:[%s5 + $0x28] sm:$0xff]
        %v2156 = vld [vmem:[%s5 + $0x30] sm:$0xff]
        %v2157 = vld [vmem:[%s5 + $0x38] sm:$0xff]
        %v2158 = vld [vmem:[%s5 + $0x40] sm:$0xff]
        %v2159 = vld [vmem:[%s5 + $0x48] sm:$0xff]
        %v2160 = vld [vmem:[%s5 + $0x50] sm:$0xff]
        %v2161 = vld [vmem:[%s5 + $0x58] sm:$0xff]
        %v2162 = vld [vmem:[%s5 + $0x60] sm:$0xff]
        %v2163 = vld [vmem:[%s5 + $0x68] sm:$0xff]
        %v2164 = vld [vmem:[%s5 + $0x70] sm:$0xff]
        %v2165 = vld [vmem:[%s5 + $0x78] sm:$0xff]
        %v2166 = vld [vmem:[%s5 + $0x80] sm:$0xff]
        %v2167 = vld [vmem:[%s5 + $0x88] sm:$0xff]
        %v2168 = vld [vmem:[%s5 + $0x90] sm:$0xff]
        %v2169 = vld [vmem:[%s5 + $0x98] sm:$0xff]
        %v2170 = vld [vmem:[%s5 + $0xa0] sm:$0xff]
        %v2171 = vld [vmem:[%s5 + $0xa8] sm:$0xff]
        %v2172 = vld [vmem:[%s5 + $0xb0] sm:$0xff]
        %v2173 = vld [vmem:[%s5 + $0xb8] sm:$0xff]
        %v2174 = vld [vmem:[%s5 + $0xc0] sm:$0xff]
        %v2175 = vld [vmem:[%s5 + $0xc8] sm:$0xff]
        %v2176 = vld [vmem:[%s5 + $0xd0] sm:$0xff]
        %v2177 = vld [vmem:[%s5 + $0xd8] sm:$0xff]
        %v2178 = vld [vmem:[%s5 + $0xe0] sm:$0xff]
        %v2179 = vld [vmem:[%s5 + $0xe8] sm:$0xff]
        %v2180 = vld [vmem:[%s5 + $0xf0] sm:$0xff]
        %v2181 = vld [vmem:[%s5 + $0xf8] sm:$0xff]
        %v2182 = vld [vmem:[%s5 + $0x100] sm:$0xff]
        %v2183 = vld [vmem:[%s5 + $0x108] sm:$0xff]
        %v2184 = vld [vmem:[%s5 + $0x110] sm:$0xff]
        %v2185 = vld [vmem:[%s5 + $0x118] sm:$0xff]
        %v2186 = vld [vmem:[%s5 + $0x120] sm:$0xff]
        %v2187 = vld [vmem:[%s5 + $0x128] sm:$0xff]
        %v2188 = vld [vmem:[%s5 + $0x130] sm:$0xff]
        %v2189 = vld [vmem:[%s5 + $0x138] sm:$0xff]
        %v2190 = vld [vmem:[%s5 + $0x140] sm:$0xff]
        %v2191 = vld [vmem:[%s5 + $0x148] sm:$0xff]
        %v2192 = vld [vmem:[%s5 + $0x150] sm:$0xff]
        %v2193 = vld [vmem:[%s5 + $0x158] sm:$0xff]
        %v2194 = vld [vmem:[%s5 + $0x160] sm:$0xff]
        %v2195 = vld [vmem:[%s5 + $0x168] sm:$0xff]
        %v2196 = vld [vmem:[%s5 + $0x170] sm:$0xff]
        %v2197 = vld [vmem:[%s5 + $0x178] sm:$0xff]
        %2198 = vmatprep.subr.mxu0 %v2151
        %2199 = vmatpush1.msra.mxu0 %v2150
        %2200 = vmatprep.subr.mxu0 %v2154
        %2201 = vmatpush1.msra.mxu0 %v2153
        %2202 = vmatprep.subr.mxu0 %v2157
        %2203 = vmatpush1.msra.mxu0 %v2156
        %2204 = vmatprep.subr.mxu0 %v2160
        %2205 = vmatpush1.msra.mxu0 %v2159
        %2206 = vmatprep.subr.mxu0 %v2163
        %2207 = vmatpush1.msra.mxu0 %v2162
        %2208 = vmatprep.subr.mxu0 %v2166
        %2209 = vmatpush1.msra.mxu0 %v2165
        %2210 = vmatprep.subr.mxu0 %v2169
        %2211 = vmatpush1.msra.mxu0 %v2168
        %2212 = vmatprep.subr.mxu0 %v2172
        %2213 = vmatpush1.msra.mxu0 %v2171
        %2214 = vmatprep.subr.mxu0 %v2175
        %2215 = vmatpush1.msra.mxu0 %v2174
        %2216 = vmatprep.subr.mxu0 %v2178
        %2217 = vmatpush1.msra.mxu0 %v2177
        %2218 = vmatprep.subr.mxu0 %v2181
        %2219 = vmatpush1.msra.mxu0 %v2180
        %2220 = vmatprep.subr.mxu0 %v2184
        %2221 = vmatpush1.msra.mxu0 %v2183
        %2222 = vmatprep.subr.mxu0 %v2187
        %2223 = vmatpush1.msra.mxu0 %v2186
        %2224 = vmatprep.subr.mxu0 %v2190
        %2225 = vmatpush1.msra.mxu0 %v2189
        %2226 = vmatprep.subr.mxu0 %v2193
        %2227 = vmatpush1.msra.mxu0 %v2192
        %2228 = vmatprep.subr.mxu0 %v2196
        %2229 = vmatpush1.msra.mxu0 %v2195
        %2230 = vmatprep.subr.mxu0 0.0
        %2231 = vmatpush1.msra.mxu0 0.0
        %2232 = vmatprep.subr.mxu0 0.0
        %2233 = vmatpush1.msra.mxu0 0.0
        %2234 = vmatprep.subr.mxu0 0.0
        %2235 = vmatpush1.msra.mxu0 0.0
        %2236 = vmatprep.subr.mxu0 0.0
        %2237 = vmatpush1.msra.mxu0 0.0
        %2238 = vmatprep.subr.mxu0 0.0
        %2239 = vmatpush1.msra.mxu0 0.0
        %2240 = vmatprep.subr.mxu0 0.0
        %2241 = vmatpush1.msra.mxu0 0.0
        %2242 = vmatprep.subr.mxu0 0.0
        %2243 = vmatpush1.msra.mxu0 0.0
        %2244 = vmatprep.subr.mxu0 0.0
        %2245 = vmatpush1.msra.mxu0 0.0
        %2246 = vmatprep.subr.mxu0 0.0
        %2247 = vmatpush1.msra.mxu0 0.0
        %2248 = vmatprep.subr.mxu0 0.0
        %2249 = vmatpush1.msra.mxu0 0.0
        %2250 = vmatprep.subr.mxu0 0.0
        %2251 = vmatpush1.msra.mxu0 0.0
        %2252 = vmatprep.subr.mxu0 0.0
        %2253 = vmatpush1.msra.mxu0 0.0
        %2254 = vmatprep.subr.mxu0 0.0
        %2255 = vmatpush1.msra.mxu0 0.0
        %2256 = vmatprep.subr.mxu0 0.0
        %2257 = vmatpush1.msra.mxu0 0.0
        %2258 = vmatprep.subr.mxu0 0.0
        %2259 = vmatpush1.msra.mxu0 0.0
        %2260 = vmatprep.subr.mxu0 0.0
        %2261 = vmatpush1.msra.mxu0 0.0
        %2262 = vmatprep.mubr.f32.mxu0 0.0
        %2263 = vmatmul.mubr.f32.gmra.mrb[0].mxu0 %v2142
        %v2264 = vpop.f32.mrb[0].mxu0
        %v2265 = vadd.f32 0.0, %v2264
        %v2266 = vpop.f32.mrb[0].mxu0
        %v2267 = vadd.f32 0.0, %v2266
        %2268 = vmatprep.mubr.f32.mxu0 0.0
        %2269 = vmatmul.mubr.f32.gmra.mrb[0].mxu0 %v2143
        %v2270 = vpop.f32.mrb[0].mxu0
        %v2271 = vadd.f32 0.0, %v2270
        %v2272 = vpop.f32.mrb[0].mxu0
        %v2273 = vadd.f32 0.0, %v2272
        %2274 = vmatprep.mubr.f32.mxu0 0.0
        %2275 = vmatmul.mubr.f32.gmra.mrb[0].mxu0 %v2144
        %v2276 = vpop.f32.mrb[0].mxu0
        %v2277 = vadd.f32 0.0, %v2276
        %v2278 = vpop.f32.mrb[0].mxu0
        %v2279 = vadd.f32 0.0, %v2278
        %2280 = vmatprep.mubr.f32.mxu0 0.0
        %2281 = vmatmul.mubr.f32.gmra.mrb[0].mxu0 %v2145
        %v2282 = vpop.f32.mrb[0].mxu0
        %v2283 = vadd.f32 0.0, %v2282
        %v2284 = vpop.f32.mrb[0].mxu0
        %v2285 = vadd.f32 0.0, %v2284
        %2286 = vmatprep.mubr.f32.mxu0 0.0
        %2287 = vmatmul.mubr.f32.gmra.mrb[0].mxu0 %v2146
        %v2288 = vpop.f32.mrb[0].mxu0
        %v2289 = vadd.f32 0.0, %v2288
        %v2290 = vpop.f32.mrb[0].mxu0
        %v2291 = vadd.f32 0.0, %v2290
        %2292 = vmatprep.mubr.f32.mxu0 0.0
        %2293 = vmatmul.mubr.f32.gmra.mrb[0].mxu0 %v2147
        %v2294 = vpop.f32.mrb[0].mxu0
        %v2295 = vadd.f32 0.0, %v2294
        %v2296 = vpop.f32.mrb[0].mxu0
        %v2297 = vadd.f32 0.0, %v2296
        %2298 = vmatprep.mubr.f32.mxu0 0.0
        %2299 = vmatmul.mubr.f32.gmra.mrb[0].mxu0 %v2148
        %v2300 = vpop.f32.mrb[0].mxu0
        %v2301 = vadd.f32 0.0, %v2300
        %v2302 = vpop.f32.mrb[0].mxu0
        %v2303 = vadd.f32 0.0, %v2302
        %2304 = vmatprep.mubr.f32.mxu0 0.0
        %2305 = vmatmul.mubr.f32.gmra.mrb[0].mxu0 %v2149
        %v2306 = vpop.f32.mrb[0].mxu0
        %v2307 = vadd.f32 0.0, %v2306
        %v2308 = vpop.f32.mrb[0].mxu0
        %v2309 = vadd.f32 0.0, %v2308
        %2310 = vdwg.mxu0
        %2311 = vmatprep.subr.mxu0 0.0
        %2312 = vmatpush1.msra.mxu0 %v2152
        %2313 = vmatprep.subr.mxu0 0.0
        %2314 = vmatpush1.msra.mxu0 %v2155
        %2315 = vmatprep.subr.mxu0 0.0
        %2316 = vmatpush1.msra.mxu0 %v2158
        %2317 = vmatprep.subr.mxu0 0.0
        %2318 = vmatpush1.msra.mxu0 %v2161
        %2319 = vmatprep.subr.mxu0 0.0
        %2320 = vmatpush1.msra.mxu0 %v2164
        %2321 = vmatprep.subr.mxu0 0.0
        %2322 = vmatpush1.msra.mxu0 %v2167
        %2323 = vmatprep.subr.mxu0 0.0
        %2324 = vmatpush1.msra.mxu0 %v2170
        %2325 = vmatprep.subr.mxu0 0.0
        %2326 = vmatpush1.msra.mxu0 %v2173
        %2327 = vmatprep.subr.mxu0 0.0
        %2328 = vmatpush1.msra.mxu0 %v2176
        %2329 = vmatprep.subr.mxu0 0.0
        %2330 = vmatpush1.msra.mxu0 %v2179
        %2331 = vmatprep.subr.mxu0 0.0
        %2332 = vmatpush1.msra.mxu0 %v2182
        %2333 = vmatprep.subr.mxu0 0.0
        %2334 = vmatpush1.msra.mxu0 %v2185
        %2335 = vmatprep.subr.mxu0 0.0
        %2336 = vmatpush1.msra.mxu0 %v2188
        %2337 = vmatprep.subr.mxu0 0.0
        %2338 = vmatpush1.msra.mxu0 %v2191
        %2339 = vmatprep.subr.mxu0 0.0
        %2340 = vmatpush1.msra.mxu0 %v2194
        %2341 = vmatprep.subr.mxu0 0.0
        %2342 = vmatpush1.msra.mxu0 %v2197
        %2343 = vmatprep.subr.mxu0 0.0
        %2344 = vmatpush1.msra.mxu0 0.0
        %2345 = vmatprep.subr.mxu0 0.0
        %2346 = vmatpush1.msra.mxu0 0.0
        %2347 = vmatprep.subr.mxu0 0.0
        %2348 = vmatpush1.msra.mxu0 0.0
        %2349 = vmatprep.subr.mxu0 0.0
        %2350 = vmatpush1.msra.mxu0 0.0
        %2351 = vmatprep.subr.mxu0 0.0
        %2352 = vmatpush1.msra.mxu0 0.0
        %2353 = vmatprep.subr.mxu0 0.0
        %2354 = vmatpush1.msra.mxu0 0.0
        %2355 = vmatprep.subr.mxu0 0.0
        %2356 = vmatpush1.msra.mxu0 0.0
        %2357 = vmatprep.subr.mxu0 0.0
        %2358 = vmatpush1.msra.mxu0 0.0
        %2359 = vmatprep.subr.mxu0 0.0
        %2360 = vmatpush1.msra.mxu0 0.0
        %2361 = vmatprep.subr.mxu0 0.0
        %2362 = vmatpush1.msra.mxu0 0.0
        %2363 = vmatprep.subr.mxu0 0.0
        %2364 = vmatpush1.msra.mxu0 0.0
        %2365 = vmatprep.subr.mxu0 0.0
        %2366 = vmatpush1.msra.mxu0 0.0
        %2367 = vmatprep.subr.mxu0 0.0
        %2368 = vmatpush1.msra.mxu0 0.0
        %2369 = vmatprep.subr.mxu0 0.0
        %2370 = vmatpush1.msra.mxu0 0.0
        %2371 = vmatprep.subr.mxu0 0.0
        %2372 = vmatpush1.msra.mxu0 0.0
        %2373 = vmatprep.subr.mxu0 0.0
        %2374 = vmatpush1.msra.mxu0 0.0
        %2375 = vmatprep.mubr.f32.mxu0 0.0
        %2376 = vmatmul.mubr.f32.gmra.mrb[0].mxu0 %v2142
        %v2377 = vpop.f32.mrb[0].mxu0
        %v2378 = vadd.f32 0.0, %v2377
        %v2379 = vpop.f32.mrb[0].mxu0
        %2380 = vmatprep.mubr.f32.mxu0 0.0
        %2381 = vmatmul.mubr.f32.gmra.mrb[0].mxu0 %v2143
        %v2382 = vpop.f32.mrb[0].mxu0
        %v2383 = vadd.f32 0.0, %v2382
        %v2384 = vpop.f32.mrb[0].mxu0
        %2385 = vmatprep.mubr.f32.mxu0 0.0
        %2386 = vmatmul.mubr.f32.gmra.mrb[0].mxu0 %v2144
        %v2387 = vpop.f32.mrb[0].mxu0
        %v2388 = vadd.f32 0.0, %v2387
        %v2389 = vpop.f32.mrb[0].mxu0
        %2390 = vmatprep.mubr.f32.mxu0 0.0
        %2391 = vmatmul.mubr.f32.gmra.mrb[0].mxu0 %v2145
        %v2392 = vpop.f32.mrb[0].mxu0
        %v2393 = vadd.f32 0.0, %v2392
        %v2394 = vpop.f32.mrb[0].mxu0
        %2395 = vmatprep.mubr.f32.mxu0 0.0
        %2396 = vmatmul.mubr.f32.gmra.mrb[0].mxu0 %v2146
        %v2397 = vpop.f32.mrb[0].mxu0
        %v2398 = vadd.f32 0.0, %v2397
        %v2399 = vpop.f32.mrb[0].mxu0
        %2400 = vmatprep.mubr.f32.mxu0 0.0
        %2401 = vmatmul.mubr.f32.gmra.mrb[0].mxu0 %v2147
        %v2402 = vpop.f32.mrb[0].mxu0
        %v2403 = vadd.f32 0.0, %v2402
        %v2404 = vpop.f32.mrb[0].mxu0
        %2405 = vmatprep.mubr.f32.mxu0 0.0
        %2406 = vmatmul.mubr.f32.gmra.mrb[0].mxu0 %v2148
        %v2407 = vpop.f32.mrb[0].mxu0
        %v2408 = vadd.f32 0.0, %v2407
        %v2409 = vpop.f32.mrb[0].mxu0
        %2410 = vmatprep.mubr.f32.mxu0 0.0
        %2411 = vmatmul.mubr.f32.gmra.mrb[0].mxu0 %v2149
        %v2412 = vpop.f32.mrb[0].mxu0
        %v2413 = vadd.f32 0.0, %v2412
        %v2414 = vpop.f32.mrb[0].mxu0
        %2415 = vdwg.mxu0
        %vm2416 = vcmask 523264
        %v2418 = vsel %vm2416, %v2265, 0
        %v2421 = vsel %vm2416, %v2271, 0
        %v2424 = vsel %vm2416, %v2277, 0
        %v2427 = vsel %vm2416, %v2283, 0
        %v2430 = vsel %vm2416, %v2289, 0
        %v2433 = vsel %vm2416, %v2295, 0
        %v2436 = vsel %vm2416, %v2301, 0
        %v2439 = vsel %vm2416, %v2307, 0
        %v2442 = vsel %vm2416, %v2267, 0
        %v2445 = vsel %vm2416, %v2273, 0
        %v2448 = vsel %vm2416, %v2279, 0
        %v2451 = vsel %vm2416, %v2285, 0
        %v2454 = vsel %vm2416, %v2291, 0
        %v2457 = vsel %vm2416, %v2297, 0
        %v2460 = vsel %vm2416, %v2303, 0
        %v2463 = vsel %vm2416, %v2309, 0
        %2465 = vmatprep.subr.mxu0 0.0
        %2466 = vmatpush1.xpose.msra.mxu0 %v2442
        %2467 = vmatprep.subr.mxu0 0.0
        %2468 = vmatpush1.xpose.msra.mxu0 %v2445
        %2469 = vmatprep.subr.mxu0 0.0
        %2470 = vmatpush1.xpose.msra.mxu0 %v2448
        %2471 = vmatprep.subr.mxu0 0.0
        %2472 = vmatpush1.xpose.msra.mxu0 %v2451
        %2473 = vmatprep.subr.mxu0 0.0
        %2474 = vmatpush1.xpose.msra.mxu0 %v2454
        %2475 = vmatprep.subr.mxu0 0.0
        %2476 = vmatpush1.xpose.msra.mxu0 %v2457
        %2477 = vmatprep.subr.mxu0 0.0
        %2478 = vmatpush1.xpose.msra.mxu0 %v2460
        %2479 = vmatprep.subr.mxu0 0.0
        %2480 = vmatpush1.xpose.msra.mxu0 %v2463
        %2481 = vmatprep.subr.mxu0 0.0
        %2482 = vmatpush1.xpose.msra.mxu0 0.0
        %2483 = vmatprep.subr.mxu0 0.0
        %2484 = vmatpush1.xpose.msra.mxu0 0.0
        %2485 = vmatprep.subr.mxu0 0.0
        %2486 = vmatpush1.xpose.msra.mxu0 0.0
        %2487 = vmatprep.subr.mxu0 0.0
        %2488 = vmatpush1.xpose.msra.mxu0 0.0
        %2489 = vmatprep.subr.mxu0 0.0
        %2490 = vmatpush1.xpose.msra.mxu0 0.0
        %2491 = vmatprep.subr.mxu0 0.0
        %2492 = vmatpush1.xpose.msra.mxu0 0.0
        %2493 = vmatprep.subr.mxu0 0.0
        %2494 = vmatpush1.xpose.msra.mxu0 0.0
        %2495 = vmatprep.subr.mxu0 0.0
        %2496 = vmatpush1.xpose.msra.mxu0 0.0
        %2497 = vmatprep.subr.mxu0 0.0
        %2498 = vmatpush1.xpose.msra.mxu0 0.0
        %2499 = vmatprep.subr.mxu0 0.0
        %2500 = vmatpush1.xpose.msra.mxu0 0.0
        %2501 = vmatprep.subr.mxu0 0.0
        %2502 = vmatpush1.xpose.msra.mxu0 0.0
        %2503 = vmatprep.subr.mxu0 0.0
        %2504 = vmatpush1.xpose.msra.mxu0 0.0
        %2505 = vmatprep.subr.mxu0 0.0
        %2506 = vmatpush1.xpose.msra.mxu0 0.0
        %2507 = vmatprep.subr.mxu0 0.0
        %2508 = vmatpush1.xpose.msra.mxu0 0.0
        %2509 = vmatprep.subr.mxu0 0.0
        %2510 = vmatpush1.xpose.msra.mxu0 0.0
        %2511 = vmatprep.subr.mxu0 0.0
        %2512 = vmatpush1.xpose.msra.mxu0 0.0
        %2513 = vmatprep.subr.mxu0 0.0
        %2514 = vmatpush1.xpose.msra.mxu0 0.0
        %2515 = vmatprep.subr.mxu0 0.0
        %2516 = vmatpush1.xpose.msra.mxu0 0.0
        %2517 = vmatprep.subr.mxu0 0.0
        %2518 = vmatpush1.xpose.msra.mxu0 0.0
        %2519 = vmatprep.subr.mxu0 0.0
        %2520 = vmatpush1.xpose.msra.mxu0 0.0
        %2521 = vmatprep.subr.mxu0 0.0
        %2522 = vmatpush1.xpose.msra.mxu0 0.0
        %2523 = vmatprep.subr.mxu0 0.0
        %2524 = vmatpush1.xpose.msra.mxu0 0.0
        %2525 = vmatprep.subr.mxu0 0.0
        %2526 = vmatpush1.xpose.msra.mxu0 0.0
        %2527 = vmatprep.subr.mxu0 0.0
        %2528 = vmatpush1.xpose.msra.mxu0 0.0
        %2529 = vmatprep.mubr.f32.mxu0 0.0
        %2530 = vmatmul.mubr.f32.gmra.mrb[0].mxu0 %v2418
        %v2531 = vpop.f32.mrb[0].mxu0
        %v2532 = vadd.f32 0.0, %v2531
        %v2533 = vpop.f32.mrb[0].mxu0
        %2534 = vmatprep.mubr.f32.mxu0 0.0
        %2535 = vmatmul.mubr.f32.gmra.mrb[0].mxu0 %v2421
        %v2536 = vpop.f32.mrb[0].mxu0
        %v2537 = vadd.f32 0.0, %v2536
        %v2538 = vpop.f32.mrb[0].mxu0
        %2539 = vmatprep.mubr.f32.mxu0 0.0
        %2540 = vmatmul.mubr.f32.gmra.mrb[0].mxu0 %v2424
        %v2541 = vpop.f32.mrb[0].mxu0
        %v2542 = vadd.f32 0.0, %v2541
        %v2543 = vpop.f32.mrb[0].mxu0
        %2544 = vmatprep.mubr.f32.mxu0 0.0
        %2545 = vmatmul.mubr.f32.gmra.mrb[0].mxu0 %v2427
        %v2546 = vpop.f32.mrb[0].mxu0
        %v2547 = vadd.f32 0.0, %v2546
        %v2548 = vpop.f32.mrb[0].mxu0
        %2549 = vmatprep.mubr.f32.mxu0 0.0
        %2550 = vmatmul.mubr.f32.gmra.mrb[0].mxu0 %v2430
        %v2551 = vpop.f32.mrb[0].mxu0
        %v2552 = vadd.f32 0.0, %v2551
        %v2553 = vpop.f32.mrb[0].mxu0
        %2554 = vmatprep.mubr.f32.mxu0 0.0
        %2555 = vmatmul.mubr.f32.gmra.mrb[0].mxu0 %v2433
        %v2556 = vpop.f32.mrb[0].mxu0
        %v2557 = vadd.f32 0.0, %v2556
        %v2558 = vpop.f32.mrb[0].mxu0
        %2559 = vmatprep.mubr.f32.mxu0 0.0
        %2560 = vmatmul.mubr.f32.gmra.mrb[0].mxu0 %v2436
        %v2561 = vpop.f32.mrb[0].mxu0
        %v2562 = vadd.f32 0.0, %v2561
        %v2563 = vpop.f32.mrb[0].mxu0
        %2564 = vmatprep.mubr.f32.mxu0 0.0
        %2565 = vmatmul.mubr.f32.gmra.mrb[0].mxu0 %v2439
        %v2566 = vpop.f32.mrb[0].mxu0
        %v2567 = vadd.f32 0.0, %v2566
        %v2568 = vpop.f32.mrb[0].mxu0
        %2569 = vdwg.mxu0
        %v2570 = vmul.f32 %v2532, 0.125
        %v2571 = vmul.f32 %v2537, 0.125
        %v2572 = vmul.f32 %v2542, 0.125
        %v2573 = vmul.f32 %v2547, 0.125
        %v2574 = vmul.f32 %v2552, 0.125
        %v2575 = vmul.f32 %v2557, 0.125
        %v2576 = vmul.f32 %v2562, 0.125
        %v2577 = vmul.f32 %v2567, 0.125
        %v2578 = vsel %vm2416, %v2570, -inf
        %2579 = vmax.xlane.f32.xlu0 %v2578
        %v2580 = vpop.xlane.xlu0 %2579
        %v2581 = vsel %vm2416, %v2571, -inf
        %2582 = vmax.xlane.f32.xlu0 %v2581
        %v2583 = vpop.xlane.xlu0 %2582
        %v2584 = vsel %vm2416, %v2572, -inf
        %2585 = vmax.xlane.f32.xlu0 %v2584
        %v2586 = vpop.xlane.xlu0 %2585
        %v2587 = vsel %vm2416, %v2573, -inf
        %2588 = vmax.xlane.f32.xlu0 %v2587
        %v2589 = vpop.xlane.xlu0 %2588
        %v2590 = vsel %vm2416, %v2574, -inf
        %2591 = vmax.xlane.f32.xlu0 %v2590
        %v2592 = vpop.xlane.xlu0 %2591
        %v2593 = vsel %vm2416, %v2575, -inf
        %2594 = vmax.xlane.f32.xlu0 %v2593
        %v2595 = vpop.xlane.xlu0 %2594
        %v2596 = vsel %vm2416, %v2576, -inf
        %2597 = vmax.xlane.f32.xlu0 %v2596
        %v2598 = vpop.xlane.xlu0 %2597
        %v2599 = vsel %vm2416, %v2577, -inf
        %2600 = vmax.xlane.f32.xlu0 %v2599
        %v2601 = vpop.xlane.xlu0 %2600
        %v2602 = vsub.f32 %v2570, %v2580
        %v2603 = vsub.f32 %v2571, %v2583
        %v2604 = vsub.f32 %v2572, %v2586
        %v2605 = vsub.f32 %v2573, %v2589
        %v2606 = vsub.f32 %v2574, %v2592
        %v2607 = vsub.f32 %v2575, %v2595
        %v2608 = vsub.f32 %v2576, %v2598
        %v2609 = vsub.f32 %v2577, %v2601
        %v2610 = vmul.f32 %v2602, 1.442695
        %v2611 = vpow.pop %v2610
        %v2612 = vmul.f32 %v2603, 1.442695
        %v2613 = vpow.pop %v2612
        %v2614 = vmul.f32 %v2604, 1.442695
        %v2615 = vpow.pop %v2614
        %v2616 = vmul.f32 %v2605, 1.442695
        %v2617 = vpow.pop %v2616
        %v2618 = vmul.f32 %v2606, 1.442695
        %v2619 = vpow.pop %v2618
        %v2620 = vmul.f32 %v2607, 1.442695
        %v2621 = vpow.pop %v2620
        %v2622 = vmul.f32 %v2608, 1.442695
        %v2623 = vpow.pop %v2622
        %v2624 = vmul.f32 %v2609, 1.442695
        %v2625 = vpow.pop %v2624
        %v2626 = vsel %vm2416, %v2611, 0.0
        %2627 = vadd.xlane.f32.xlu0 %v2626
        %v2628 = vpop.xlane.xlu0 %2627
        %v2629 = vsel %vm2416, %v2613, 0.0
        %2630 = vadd.xlane.f32.xlu0 %v2629
        %v2631 = vpop.xlane.xlu0 %2630
        %v2632 = vsel %vm2416, %v2615, 0.0
        %2633 = vadd.xlane.f32.xlu0 %v2632
        %v2634 = vpop.xlane.xlu0 %2633
        %v2635 = vsel %vm2416, %v2617, 0.0
        %2636 = vadd.xlane.f32.xlu0 %v2635
        %v2637 = vpop.xlane.xlu0 %2636
        %v2638 = vsel %vm2416, %v2619, 0.0
        %2639 = vadd.xlane.f32.xlu0 %v2638
        %v2640 = vpop.xlane.xlu0 %2639
        %v2641 = vsel %vm2416, %v2621, 0.0
        %2642 = vadd.xlane.f32.xlu0 %v2641
        %v2643 = vpop.xlane.xlu0 %2642
        %v2644 = vsel %vm2416, %v2623, 0.0
        %2645 = vadd.xlane.f32.xlu0 %v2644
        %v2646 = vpop.xlane.xlu0 %2645
        %v2647 = vsel %vm2416, %v2625, 0.0
        %2648 = vadd.xlane.f32.xlu0 %v2647
        %v2649 = vpop.xlane.xlu0 %2648
        %v2650 = vrcp.pop %v2628
        %v2651 = vrcp.pop %v2631
        %v2652 = vrcp.pop %v2634
        %v2653 = vrcp.pop %v2637
        %v2654 = vrcp.pop %v2640
        %v2655 = vrcp.pop %v2643
        %v2656 = vrcp.pop %v2646
        %v2657 = vrcp.pop %v2649
        %v2658 = vmul.f32 %v2611, %v2650
        %v2659 = vmul.f32 %v2613, %v2651
        %v2660 = vmul.f32 %v2615, %v2652
        %v2661 = vmul.f32 %v2617, %v2653
        %v2662 = vmul.f32 %v2619, %v2654
        %v2663 = vmul.f32 %v2621, %v2655
        %v2664 = vmul.f32 %v2623, %v2656
        %v2665 = vmul.f32 %v2625, %v2657
        %v2667 = vsel %vm2416, %v2658, 0
        %v2670 = vsel %vm2416, %v2659, 0
        %v2673 = vsel %vm2416, %v2660, 0
        %v2676 = vsel %vm2416, %v2661, 0
        %v2679 = vsel %vm2416, %v2662, 0
        %v2682 = vsel %vm2416, %v2663, 0
        %v2685 = vsel %vm2416, %v2664, 0
        %v2688 = vsel %vm2416, %v2665, 0
        %2690 = vmatprep.subr.mxu0 0.0
        %2691 = vmatpush1.msra.mxu0 %v2378
        %2692 = vmatprep.subr.mxu0 0.0
        %2693 = vmatpush1.msra.mxu0 %v2383
        %2694 = vmatprep.subr.mxu0 0.0
        %2695 = vmatpush1.msra.mxu0 %v2388
        %2696 = vmatprep.subr.mxu0 0.0
        %2697 = vmatpush1.msra.mxu0 %v2393
        %2698 = vmatprep.subr.mxu0 0.0
        %2699 = vmatpush1.msra.mxu0 %v2398
        %2700 = vmatprep.subr.mxu0 0.0
        %2701 = vmatpush1.msra.mxu0 %v2403
        %2702 = vmatprep.subr.mxu0 0.0
        %2703 = vmatpush1.msra.mxu0 %v2408
        %2704 = vmatprep.subr.mxu0 0.0
        %2705 = vmatpush1.msra.mxu0 %v2413
        %2706 = vmatprep.subr.mxu0 0.0
        %2707 = vmatpush1.msra.mxu0 0.0
        %2708 = vmatprep.subr.mxu0 0.0
        %2709 = vmatpush1.msra.mxu0 0.0
        %2710 = vmatprep.subr.mxu0 0.0
        %2711 = vmatpush1.msra.mxu0 0.0
        %2712 = vmatprep.subr.mxu0 0.0
        %2713 = vmatpush1.msra.mxu0 0.0
        %2714 = vmatprep.subr.mxu0 0.0
        %2715 = vmatpush1.msra.mxu0 0.0
        %2716 = vmatprep.subr.mxu0 0.0
        %2717 = vmatpush1.msra.mxu0 0.0
        %2718 = vmatprep.subr.mxu0 0.0
        %2719 = vmatpush1.msra.mxu0 0.0
        %2720 = vmatprep.subr.mxu0 0.0
        %2721 = vmatpush1.msra.mxu0 0.0
        %2722 = vmatprep.subr.mxu0 0.0
        %2723 = vmatpush1.msra.mxu0 0.0
        %2724 = vmatprep.subr.mxu0 0.0
        %2725 = vmatpush1.msra.mxu0 0.0
        %2726 = vmatprep.subr.mxu0 0.0
        %2727 = vmatpush1.msra.mxu0 0.0
        %2728 = vmatprep.subr.mxu0 0.0
        %2729 = vmatpush1.msra.mxu0 0.0
        %2730 = vmatprep.subr.mxu0 0.0
        %2731 = vmatpush1.msra.mxu0 0.0
        %2732 = vmatprep.subr.mxu0 0.0
        %2733 = vmatpush1.msra.mxu0 0.0
        %2734 = vmatprep.subr.mxu0 0.0
        %2735 = vmatpush1.msra.mxu0 0.0
        %2736 = vmatprep.subr.mxu0 0.0
        %2737 = vmatpush1.msra.mxu0 0.0
        %2738 = vmatprep.subr.mxu0 0.0
        %2739 = vmatpush1.msra.mxu0 0.0
        %2740 = vmatprep.subr.mxu0 0.0
        %2741 = vmatpush1.msra.mxu0 0.0
        %2742 = vmatprep.subr.mxu0 0.0
        %2743 = vmatpush1.msra.mxu0 0.0
        %2744 = vmatprep.subr.mxu0 0.0
        %2745 = vmatpush1.msra.mxu0 0.0
        %2746 = vmatprep.subr.mxu0 0.0
        %2747 = vmatpush1.msra.mxu0 0.0
        %2748 = vmatprep.subr.mxu0 0.0
        %2749 = vmatpush1.msra.mxu0 0.0
        %2750 = vmatprep.subr.mxu0 0.0
        %2751 = vmatpush1.msra.mxu0 0.0
        %2752 = vmatprep.subr.mxu0 0.0
        %2753 = vmatpush1.msra.mxu0 0.0
        %2754 = vmatprep.mubr.f32.mxu0 0.0
        %2755 = vmatmul.mubr.f32.gmra.mrb[0].mxu0 %v2667
        %v2756 = vpop.f32.mrb[0].mxu0
        %v2757 = vadd.f32 0.0, %v2756
        %v2758 = vpop.f32.mrb[0].mxu0
        %2759 = vmatprep.mubr.f32.mxu0 0.0
        %2760 = vmatmul.mubr.f32.gmra.mrb[0].mxu0 %v2670
        %v2761 = vpop.f32.mrb[0].mxu0
        %v2762 = vadd.f32 0.0, %v2761
        %v2763 = vpop.f32.mrb[0].mxu0
        %2764 = vmatprep.mubr.f32.mxu0 0.0
        %2765 = vmatmul.mubr.f32.gmra.mrb[0].mxu0 %v2673
        %v2766 = vpop.f32.mrb[0].mxu0
        %v2767 = vadd.f32 0.0, %v2766
        %v2768 = vpop.f32.mrb[0].mxu0
        %2769 = vmatprep.mubr.f32.mxu0 0.0
        %2770 = vmatmul.mubr.f32.gmra.mrb[0].mxu0 %v2676
        %v2771 = vpop.f32.mrb[0].mxu0
        %v2772 = vadd.f32 0.0, %v2771
        %v2773 = vpop.f32.mrb[0].mxu0
        %2774 = vmatprep.mubr.f32.mxu0 0.0
        %2775 = vmatmul.mubr.f32.gmra.mrb[0].mxu0 %v2679
        %v2776 = vpop.f32.mrb[0].mxu0
        %v2777 = vadd.f32 0.0, %v2776
        %v2778 = vpop.f32.mrb[0].mxu0
        %2779 = vmatprep.mubr.f32.mxu0 0.0
        %2780 = vmatmul.mubr.f32.gmra.mrb[0].mxu0 %v2682
        %v2781 = vpop.f32.mrb[0].mxu0
        %v2782 = vadd.f32 0.0, %v2781
        %v2783 = vpop.f32.mrb[0].mxu0
        %2784 = vmatprep.mubr.f32.mxu0 0.0
        %2785 = vmatmul.mubr.f32.gmra.mrb[0].mxu0 %v2685
        %v2786 = vpop.f32.mrb[0].mxu0
        %v2787 = vadd.f32 0.0, %v2786
        %v2788 = vpop.f32.mrb[0].mxu0
        %2789 = vmatprep.mubr.f32.mxu0 0.0
        %2790 = vmatmul.mubr.f32.gmra.mrb[0].mxu0 %v2688
        %v2791 = vpop.f32.mrb[0].mxu0
        %v2792 = vadd.f32 0.0, %v2791
        %v2793 = vpop.f32.mrb[0].mxu0
        %2794 = vdwg.mxu0
        %v2795 = vld [vmem:[%s6] sm:$0xff]
        %v2796 = vld [vmem:[%s6 + $0x8] sm:$0xff]
        %v2797 = vld [vmem:[%s6 + $0x10] sm:$0xff]
        %v2798 = vld [vmem:[%s6 + $0x18] sm:$0xff]
        %v2799 = vld [vmem:[%s6 + $0x20] sm:$0xff]
        %v2800 = vld [vmem:[%s6 + $0x28] sm:$0xff]
        %v2801 = vld [vmem:[%s6 + $0x30] sm:$0xff]
        %v2802 = vld [vmem:[%s6 + $0x38] sm:$0xff]
        %2803 = vrot.lane.b32.xlu0 %v2265, 64
        %v2804 = vpop.permute.xlu0 %2803
        %2805 = vrot.lane.b32.xlu0 %v2271, 64
        %v2806 = vpop.permute.xlu0 %2805
        %2807 = vrot.lane.b32.xlu0 %v2277, 64
        %v2808 = vpop.permute.xlu0 %2807
        %2809 = vrot.lane.b32.xlu0 %v2283, 64
        %v2810 = vpop.permute.xlu0 %2809
        %2811 = vrot.lane.b32.xlu0 %v2289, 64
        %v2812 = vpop.permute.xlu0 %2811
        %2813 = vrot.lane.b32.xlu0 %v2295, 64
        %v2814 = vpop.permute.xlu0 %2813
        %2815 = vrot.lane.b32.xlu0 %v2301, 64
        %v2816 = vpop.permute.xlu0 %2815
        %2817 = vrot.lane.b32.xlu0 %v2307, 64
        %v2818 = vpop.permute.xlu0 %2817
        %2819 = vrot.lane.b32.xlu0 %v2267, 64
        %v2820 = vpop.permute.xlu0 %2819
        %2821 = vrot.lane.b32.xlu0 %v2273, 64
        %v2822 = vpop.permute.xlu0 %2821
        %2823 = vrot.lane.b32.xlu0 %v2279, 64
        %v2824 = vpop.permute.xlu0 %2823
        %2825 = vrot.lane.b32.xlu0 %v2285, 64
        %v2826 = vpop.permute.xlu0 %2825
        %2827 = vrot.lane.b32.xlu0 %v2291, 64
        %v2828 = vpop.permute.xlu0 %2827
        %2829 = vrot.lane.b32.xlu0 %v2297, 64
        %v2830 = vpop.permute.xlu0 %2829
        %2831 = vrot.lane.b32.xlu0 %v2303, 64
        %v2832 = vpop.permute.xlu0 %2831
        %2833 = vrot.lane.b32.xlu0 %v2309, 64
        %v2834 = vpop.permute.xlu0 %2833
        %v2835 = vsel %vm2416, %v2804, 0
        %v2837 = vsel %vm2416, %v2806, 0
        %v2839 = vsel %vm2416, %v2808, 0
        %v2841 = vsel %vm2416, %v2810, 0
        %v2843 = vsel %vm2416, %v2812, 0
        %v2845 = vsel %vm2416, %v2814, 0
        %v2847 = vsel %vm2416, %v2816, 0
        %v2849 = vsel %vm2416, %v2818, 0
        %v2851 = vsel %vm2416, %v2820, 0
        %v2853 = vsel %vm2416, %v2822, 0
        %v2855 = vsel %vm2416, %v2824, 0
        %v2857 = vsel %vm2416, %v2826, 0
        %v2859 = vsel %vm2416, %v2828, 0
        %v2861 = vsel %vm2416, %v2830, 0
        %v2863 = vsel %vm2416, %v2832, 0
        %v2865 = vsel %vm2416, %v2834, 0
        %2867 = vmatprep.subr.mxu0 0.0
        %2868 = vmatpush1.xpose.msra.mxu0 %v2851
        %2869 = vmatprep.subr.mxu0 0.0
        %2870 = vmatpush1.xpose.msra.mxu0 %v2853
        %2871 = vmatprep.subr.mxu0 0.0
        %2872 = vmatpush1.xpose.msra.mxu0 %v2855
        %2873 = vmatprep.subr.mxu0 0.0
        %2874 = vmatpush1.xpose.msra.mxu0 %v2857
        %2875 = vmatprep.subr.mxu0 0.0
        %2876 = vmatpush1.xpose.msra.mxu0 %v2859
        %2877 = vmatprep.subr.mxu0 0.0
        %2878 = vmatpush1.xpose.msra.mxu0 %v2861
        %2879 = vmatprep.subr.mxu0 0.0
        %2880 = vmatpush1.xpose.msra.mxu0 %v2863
        %2881 = vmatprep.subr.mxu0 0.0
        %2882 = vmatpush1.xpose.msra.mxu0 %v2865
        %2883 = vmatprep.subr.mxu0 0.0
        %2884 = vmatpush1.xpose.msra.mxu0 0.0
        %2885 = vmatprep.subr.mxu0 0.0
        %2886 = vmatpush1.xpose.msra.mxu0 0.0
        %2887 = vmatprep.subr.mxu0 0.0
        %2888 = vmatpush1.xpose.msra.mxu0 0.0
        %2889 = vmatprep.subr.mxu0 0.0
        %2890 = vmatpush1.xpose.msra.mxu0 0.0
        %2891 = vmatprep.subr.mxu0 0.0
        %2892 = vmatpush1.xpose.msra.mxu0 0.0
        %2893 = vmatprep.subr.mxu0 0.0
        %2894 = vmatpush1.xpose.msra.mxu0 0.0
        %2895 = vmatprep.subr.mxu0 0.0
        %2896 = vmatpush1.xpose.msra.mxu0 0.0
        %2897 = vmatprep.subr.mxu0 0.0
        %2898 = vmatpush1.xpose.msra.mxu0 0.0
        %2899 = vmatprep.subr.mxu0 0.0
        %2900 = vmatpush1.xpose.msra.mxu0 0.0
        %2901 = vmatprep.subr.mxu0 0.0
        %2902 = vmatpush1.xpose.msra.mxu0 0.0
        %2903 = vmatprep.subr.mxu0 0.0
        %2904 = vmatpush1.xpose.msra.mxu0 0.0
        %2905 = vmatprep.subr.mxu0 0.0
        %2906 = vmatpush1.xpose.msra.mxu0 0.0
        %2907 = vmatprep.subr.mxu0 0.0
        %2908 = vmatpush1.xpose.msra.mxu0 0.0
        %2909 = vmatprep.subr.mxu0 0.0
        %2910 = vmatpush1.xpose.msra.mxu0 0.0
        %2911 = vmatprep.subr.mxu0 0.0
        %2912 = vmatpush1.xpose.msra.mxu0 0.0
        %2913 = vmatprep.subr.mxu0 0.0
        %2914 = vmatpush1.xpose.msra.mxu0 0.0
        %2915 = vmatprep.subr.mxu0 0.0
        %2916 = vmatpush1.xpose.msra.mxu0 0.0
        %2917 = vmatprep.subr.mxu0 0.0
        %2918 = vmatpush1.xpose.msra.mxu0 0.0
        %2919 = vmatprep.subr.mxu0 0.0
        %2920 = vmatpush1.xpose.msra.mxu0 0.0
        %2921 = vmatprep.subr.mxu0 0.0
        %2922 = vmatpush1.xpose.msra.mxu0 0.0
        %2923 = vmatprep.subr.mxu0 0.0
        %2924 = vmatpush1.xpose.msra.mxu0 0.0
        %2925 = vmatprep.subr.mxu0 0.0
        %2926 = vmatpush1.xpose.msra.mxu0 0.0
        %2927 = vmatprep.subr.mxu0 0.0
        %2928 = vmatpush1.xpose.msra.mxu0 0.0
        %2929 = vmatprep.subr.mxu0 0.0
        %2930 = vmatpush1.xpose.msra.mxu0 0.0
        %2931 = vmatprep.mubr.f32.mxu0 0.0
        %2932 = vmatmul.mubr.f32.gmra.mrb[0].mxu0 %v2835
        %v2933 = vpop.f32.mrb[0].mxu0
        %v2934 = vadd.f32 0.0, %v2933
        %v2935 = vpop.f32.mrb[0].mxu0
        %2936 = vmatprep.mubr.f32.mxu0 0.0
        %2937 = vmatmul.mubr.f32.gmra.mrb[0].mxu0 %v2837
        %v2938 = vpop.f32.mrb[0].mxu0
        %v2939 = vadd.f32 0.0, %v2938
        %v2940 = vpop.f32.mrb[0].mxu0
        %2941 = vmatprep.mubr.f32.mxu0 0.0
        %2942 = vmatmul.mubr.f32.gmra.mrb[0].mxu0 %v2839
        %v2943 = vpop.f32.mrb[0].mxu0
        %v2944 = vadd.f32 0.0, %v2943
        %v2945 = vpop.f32.mrb[0].mxu0
        %2946 = vmatprep.mubr.f32.mxu0 0.0
        %2947 = vmatmul.mubr.f32.gmra.mrb[0].mxu0 %v2841
        %v2948 = vpop.f32.mrb[0].mxu0
        %v2949 = vadd.f32 0.0, %v2948
        %v2950 = vpop.f32.mrb[0].mxu0
        %2951 = vmatprep.mubr.f32.mxu0 0.0
        %2952 = vmatmul.mubr.f32.gmra.mrb[0].mxu0 %v2843
        %v2953 = vpop.f32.mrb[0].mxu0
        %v2954 = vadd.f32 0.0, %v2953
        %v2955 = vpop.f32.mrb[0].mxu0
        %2956 = vmatprep.mubr.f32.mxu0 0.0
        %2957 = vmatmul.mubr.f32.gmra.mrb[0].mxu0 %v2845
        %v2958 = vpop.f32.mrb[0].mxu0
        %v2959 = vadd.f32 0.0, %v2958
        %v2960 = vpop.f32.mrb[0].mxu0
        %2961 = vmatprep.mubr.f32.mxu0 0.0
        %2962 = vmatmul.mubr.f32.gmra.mrb[0].mxu0 %v2847
        %v2963 = vpop.f32.mrb[0].mxu0
        %v2964 = vadd.f32 0.0, %v2963
        %v2965 = vpop.f32.mrb[0].mxu0
        %2966 = vmatprep.mubr.f32.mxu0 0.0
        %2967 = vmatmul.mubr.f32.gmra.mrb[0].mxu0 %v2849
        %v2968 = vpop.f32.mrb[0].mxu0
        %v2969 = vadd.f32 0.0, %v2968
        %v2970 = vpop.f32.mrb[0].mxu0
        %2971 = vdwg.mxu0
        %v2972 = vmul.f32 %v2934, 0.125
        %v2973 = vmul.f32 %v2939, 0.125
        %v2974 = vmul.f32 %v2944, 0.125
        %v2975 = vmul.f32 %v2949, 0.125
        %v2976 = vmul.f32 %v2954, 0.125
        %v2977 = vmul.f32 %v2959, 0.125
        %v2978 = vmul.f32 %v2964, 0.125
        %v2979 = vmul.f32 %v2969, 0.125
        %v2980 = vsel %vm2416, %v2972, -inf
        %2981 = vmax.xlane.f32.xlu0 %v2980
        %v2982 = vpop.xlane.xlu0 %2981
        %v2983 = vsel %vm2416, %v2973, -inf
        %2984 = vmax.xlane.f32.xlu0 %v2983
        %v2985 = vpop.xlane.xlu0 %2984
        %v2986 = vsel %vm2416, %v2974, -inf
        %2987 = vmax.xlane.f32.xlu0 %v2986
        %v2988 = vpop.xlane.xlu0 %2987
        %v2989 = vsel %vm2416, %v2975, -inf
        %2990 = vmax.xlane.f32.xlu0 %v2989
        %v2991 = vpop.xlane.xlu0 %2990
        %v2992 = vsel %vm2416, %v2976, -inf
        %2993 = vmax.xlane.f32.xlu0 %v2992
        %v2994 = vpop.xlane.xlu0 %2993
        %v2995 = vsel %vm2416, %v2977, -inf
        %2996 = vmax.xlane.f32.xlu0 %v2995
        %v2997 = vpop.xlane.xlu0 %2996
        %v2998 = vsel %vm2416, %v2978, -inf
        %2999 = vmax.xlane.f32.xlu0 %v2998
        %v3000 = vpop.xlane.xlu0 %2999
        %v3001 = vsel %vm2416, %v2979, -inf
        %3002 = vmax.xlane.f32.xlu0 %v3001
        %v3003 = vpop.xlane.xlu0 %3002
        %v3004 = vsub.f32 %v2972, %v2982
        %v3005 = vsub.f32 %v2973, %v2985
        %v3006 = vsub.f32 %v2974, %v2988
        %v3007 = vsub.f32 %v2975, %v2991
        %v3008 = vsub.f32 %v2976, %v2994
        %v3009 = vsub.f32 %v2977, %v2997
        %v3010 = vsub.f32 %v2978, %v3000
        %v3011 = vsub.f32 %v2979, %v3003
        %v3012 = vmul.f32 %v3004, 1.442695
        %v3013 = vpow.pop %v3012
        %v3014 = vmul.f32 %v3005, 1.442695
        %v3015 = vpow.pop %v3014
        %v3016 = vmul.f32 %v3006, 1.442695
        %v3017 = vpow.pop %v3016
        %v3018 = vmul.f32 %v3007, 1.442695
        %v3019 = vpow.pop %v3018
        %v3020 = vmul.f32 %v3008, 1.442695
        %v3021 = vpow.pop %v3020
        %v3022 = vmul.f32 %v3009, 1.442695
        %v3023 = vpow.pop %v3022
        %v3024 = vmul.f32 %v3010, 1.442695
        %v3025 = vpow.pop %v3024
        %v3026 = vmul.f32 %v3011, 1.442695
        %v3027 = vpow.pop %v3026
        %v3028 = vsel %vm2416, %v3013, 0.0
        %3029 = vadd.xlane.f32.xlu0 %v3028
        %v3030 = vpop.xlane.xlu0 %3029
        %v3031 = vsel %vm2416, %v3015, 0.0
        %3032 = vadd.xlane.f32.xlu0 %v3031
        %v3033 = vpop.xlane.xlu0 %3032
        %v3034 = vsel %vm2416, %v3017, 0.0
        %3035 = vadd.xlane.f32.xlu0 %v3034
        %v3036 = vpop.xlane.xlu0 %3035
        %v3037 = vsel %vm2416, %v3019, 0.0
        %3038 = vadd.xlane.f32.xlu0 %v3037
        %v3039 = vpop.xlane.xlu0 %3038
        %v3040 = vsel %vm2416, %v3021, 0.0
        %3041 = vadd.xlane.f32.xlu0 %v3040
        %v3042 = vpop.xlane.xlu0 %3041
        %v3043 = vsel %vm2416, %v3023, 0.0
        %3044 = vadd.xlane.f32.xlu0 %v3043
        %v3045 = vpop.xlane.xlu0 %3044
        %v3046 = vsel %vm2416, %v3025, 0.0
        %3047 = vadd.xlane.f32.xlu0 %v3046
        %v3048 = vpop.xlane.xlu0 %3047
        %v3049 = vsel %vm2416, %v3027, 0.0
        %3050 = vadd.xlane.f32.xlu0 %v3049
        %v3051 = vpop.xlane.xlu0 %3050
        %v3052 = vrcp.pop %v3030
        %v3053 = vrcp.pop %v3033
        %v3054 = vrcp.pop %v3036
        %v3055 = vrcp.pop %v3039
        %v3056 = vrcp.pop %v3042
        %v3057 = vrcp.pop %v3045
        %v3058 = vrcp.pop %v3048
        %v3059 = vrcp.pop %v3051
        %v3060 = vmul.f32 %v3013, %v3052
        %v3061 = vmul.f32 %v3015, %v3053
        %v3062 = vmul.f32 %v3017, %v3054
        %v3063 = vmul.f32 %v3019, %v3055
        %v3064 = vmul.f32 %v3021, %v3056
        %v3065 = vmul.f32 %v3023, %v3057
        %v3066 = vmul.f32 %v3025, %v3058
        %v3067 = vmul.f32 %v3027, %v3059
        %3076 = vrot.lane.b32.xlu0 %v2378, 64
        %v3077 = vpop.permute.xlu0 %3076
        %3078 = vrot.lane.b32.xlu0 %v2383, 64
        %v3079 = vpop.permute.xlu0 %3078
        %3080 = vrot.lane.b32.xlu0 %v2388, 64
        %v3081 = vpop.permute.xlu0 %3080
        %3082 = vrot.lane.b32.xlu0 %v2393, 64
        %v3083 = vpop.permute.xlu0 %3082
        %3084 = vrot.lane.b32.xlu0 %v2398, 64
        %v3085 = vpop.permute.xlu0 %3084
        %3086 = vrot.lane.b32.xlu0 %v2403, 64
        %v3087 = vpop.permute.xlu0 %3086
        %3088 = vrot.lane.b32.xlu0 %v2408, 64
        %v3089 = vpop.permute.xlu0 %3088
        %3090 = vrot.lane.b32.xlu0 %v2413, 64
        %v3091 = vpop.permute.xlu0 %3090
        %v3101 = vsel %vm2416, %v3060, 0
        %v3104 = vsel %vm2416, %v3061, 0
        %v3107 = vsel %vm2416, %v3062, 0
        %v3110 = vsel %vm2416, %v3063, 0
        %v3113 = vsel %vm2416, %v3064, 0
        %v3116 = vsel %vm2416, %v3065, 0
        %v3119 = vsel %vm2416, %v3066, 0
        %v3122 = vsel %vm2416, %v3067, 0
        %3124 = vmatprep.subr.mxu0 0.0
        %3125 = vmatpush1.msra.mxu0 %v3077
        %3126 = vmatprep.subr.mxu0 0.0
        %3127 = vmatpush1.msra.mxu0 %v3079
        %3128 = vmatprep.subr.mxu0 0.0
        %3129 = vmatpush1.msra.mxu0 %v3081
        %3130 = vmatprep.subr.mxu0 0.0
        %3131 = vmatpush1.msra.mxu0 %v3083
        %3132 = vmatprep.subr.mxu0 0.0
        %3133 = vmatpush1.msra.mxu0 %v3085
        %3134 = vmatprep.subr.mxu0 0.0
        %3135 = vmatpush1.msra.mxu0 %v3087
        %3136 = vmatprep.subr.mxu0 0.0
        %3137 = vmatpush1.msra.mxu0 %v3089
        %3138 = vmatprep.subr.mxu0 0.0
        %3139 = vmatpush1.msra.mxu0 %v3091
        %3140 = vmatprep.subr.mxu0 0.0
        %3141 = vmatpush1.msra.mxu0 0.0
        %3142 = vmatprep.subr.mxu0 0.0
        %3143 = vmatpush1.msra.mxu0 0.0
        %3144 = vmatprep.subr.mxu0 0.0
        %3145 = vmatpush1.msra.mxu0 0.0
        %3146 = vmatprep.subr.mxu0 0.0
        %3147 = vmatpush1.msra.mxu0 0.0
        %3148 = vmatprep.subr.mxu0 0.0
        %3149 = vmatpush1.msra.mxu0 0.0
        %3150 = vmatprep.subr.mxu0 0.0
        %3151 = vmatpush1.msra.mxu0 0.0
        %3152 = vmatprep.subr.mxu0 0.0
        %3153 = vmatpush1.msra.mxu0 0.0
        %3154 = vmatprep.subr.mxu0 0.0
        %3155 = vmatpush1.msra.mxu0 0.0
        %3156 = vmatprep.subr.mxu0 0.0
        %3157 = vmatpush1.msra.mxu0 0.0
        %3158 = vmatprep.subr.mxu0 0.0
        %3159 = vmatpush1.msra.mxu0 0.0
        %3160 = vmatprep.subr.mxu0 0.0
        %3161 = vmatpush1.msra.mxu0 0.0
        %3162 = vmatprep.subr.mxu0 0.0
        %3163 = vmatpush1.msra.mxu0 0.0
        %3164 = vmatprep.subr.mxu0 0.0
        %3165 = vmatpush1.msra.mxu0 0.0
        %3166 = vmatprep.subr.mxu0 0.0
        %3167 = vmatpush1.msra.mxu0 0.0
        %3168 = vmatprep.subr.mxu0 0.0
        %3169 = vmatpush1.msra.mxu0 0.0
        %3170 = vmatprep.subr.mxu0 0.0
        %3171 = vmatpush1.msra.mxu0 0.0
        %3172 = vmatprep.subr.mxu0 0.0
        %3173 = vmatpush1.msra.mxu0 0.0
        %3174 = vmatprep.subr.mxu0 0.0
        %3175 = vmatpush1.msra.mxu0 0.0
        %3176 = vmatprep.subr.mxu0 0.0
        %3177 = vmatpush1.msra.mxu0 0.0
        %3178 = vmatprep.subr.mxu0 0.0
        %3179 = vmatpush1.msra.mxu0 0.0
        %3180 = vmatprep.subr.mxu0 0.0
        %3181 = vmatpush1.msra.mxu0 0.0
        %3182 = vmatprep.subr.mxu0 0.0
        %3183 = vmatpush1.msra.mxu0 0.0
        %3184 = vmatprep.subr.mxu0 0.0
        %3185 = vmatpush1.msra.mxu0 0.0
        %3186 = vmatprep.subr.mxu0 0.0
        %3187 = vmatpush1.msra.mxu0 0.0
        %3188 = vmatprep.mubr.f32.mxu0 0.0
        %3189 = vmatmul.mubr.f32.gmra.mrb[0].mxu0 %v3101
        %v3190 = vpop.f32.mrb[0].mxu0
        %v3191 = vadd.f32 0.0, %v3190
        %v3192 = vpop.f32.mrb[0].mxu0
        %3193 = vmatprep.mubr.f32.mxu0 0.0
        %3194 = vmatmul.mubr.f32.gmra.mrb[0].mxu0 %v3104
        %v3195 = vpop.f32.mrb[0].mxu0
        %v3196 = vadd.f32 0.0, %v3195
        %v3197 = vpop.f32.mrb[0].mxu0
        %3198 = vmatprep.mubr.f32.mxu0 0.0
        %3199 = vmatmul.mubr.f32.gmra.mrb[0].mxu0 %v3107
        %v3200 = vpop.f32.mrb[0].mxu0
        %v3201 = vadd.f32 0.0, %v3200
        %v3202 = vpop.f32.mrb[0].mxu0
        %3203 = vmatprep.mubr.f32.mxu0 0.0
        %3204 = vmatmul.mubr.f32.gmra.mrb[0].mxu0 %v3110
        %v3205 = vpop.f32.mrb[0].mxu0
        %v3206 = vadd.f32 0.0, %v3205
        %v3207 = vpop.f32.mrb[0].mxu0
        %3208 = vmatprep.mubr.f32.mxu0 0.0
        %3209 = vmatmul.mubr.f32.gmra.mrb[0].mxu0 %v3113
        %v3210 = vpop.f32.mrb[0].mxu0
        %v3211 = vadd.f32 0.0, %v3210
        %v3212 = vpop.f32.mrb[0].mxu0
        %3213 = vmatprep.mubr.f32.mxu0 0.0
        %3214 = vmatmul.mubr.f32.gmra.mrb[0].mxu0 %v3116
        %v3215 = vpop.f32.mrb[0].mxu0
        %v3216 = vadd.f32 0.0, %v3215
        %v3217 = vpop.f32.mrb[0].mxu0
        %3218 = vmatprep.mubr.f32.mxu0 0.0
        %3219 = vmatmul.mubr.f32.gmra.mrb[0].mxu0 %v3119
        %v3220 = vpop.f32.mrb[0].mxu0
        %v3221 = vadd.f32 0.0, %v3220
        %v3222 = vpop.f32.mrb[0].mxu0
        %3223 = vmatprep.mubr.f32.mxu0 0.0
        %3224 = vmatmul.mubr.f32.gmra.mrb[0].mxu0 %v3122
        %v3225 = vpop.f32.mrb[0].mxu0
        %v3226 = vadd.f32 0.0, %v3225
        %v3227 = vpop.f32.mrb[0].mxu0
        %3228 = vdwg.mxu0
        %v3229 = vld [vmem:[%s6 + $0x40] sm:$0xff]
        %v3230 = vld [vmem:[%s6 + $0x48] sm:$0xff]
        %v3231 = vld [vmem:[%s6 + $0x50] sm:$0xff]
        %v3232 = vld [vmem:[%s6 + $0x58] sm:$0xff]
        %v3233 = vld [vmem:[%s6 + $0x60] sm:$0xff]
        %v3234 = vld [vmem:[%s6 + $0x68] sm:$0xff]
        %v3235 = vld [vmem:[%s6 + $0x70] sm:$0xff]
        %v3236 = vld [vmem:[%s6 + $0x78] sm:$0xff]
        %v3238 = vsel %vm2416, %v3191, 0
        %v3241 = vsel %vm2416, %v3196, 0
        %v3244 = vsel %vm2416, %v3201, 0
        %v3247 = vsel %vm2416, %v3206, 0
        %v3250 = vsel %vm2416, %v3211, 0
        %v3253 = vsel %vm2416, %v3216, 0
        %v3256 = vsel %vm2416, %v3221, 0
        %v3259 = vsel %vm2416, %v3226, 0
        %3261 = vmatprep.subr.mxu0 0.0
        %3262 = vmatpush1.msra.mxu0 %v3229
        %3263 = vmatprep.subr.mxu0 0.0
        %3264 = vmatpush1.msra.mxu0 %v3230
        %3265 = vmatprep.subr.mxu0 0.0
        %3266 = vmatpush1.msra.mxu0 %v3231
        %3267 = vmatprep.subr.mxu0 0.0
        %3268 = vmatpush1.msra.mxu0 %v3232
        %3269 = vmatprep.subr.mxu0 0.0
        %3270 = vmatpush1.msra.mxu0 %v3233
        %3271 = vmatprep.subr.mxu0 0.0
        %3272 = vmatpush1.msra.mxu0 %v3234
        %3273 = vmatprep.subr.mxu0 0.0
        %3274 = vmatpush1.msra.mxu0 %v3235
        %3275 = vmatprep.subr.mxu0 0.0
        %3276 = vmatpush1.msra.mxu0 %v3236
        %3277 = vmatprep.subr.mxu0 0.0
        %3278 = vmatpush1.msra.mxu0 0.0
        %3279 = vmatprep.subr.mxu0 0.0
        %3280 = vmatpush1.msra.mxu0 0.0
        %3281 = vmatprep.subr.mxu0 0.0
        %3282 = vmatpush1.msra.mxu0 0.0
        %3283 = vmatprep.subr.mxu0 0.0
        %3284 = vmatpush1.msra.mxu0 0.0
        %3285 = vmatprep.subr.mxu0 0.0
        %3286 = vmatpush1.msra.mxu0 0.0
        %3287 = vmatprep.subr.mxu0 0.0
        %3288 = vmatpush1.msra.mxu0 0.0
        %3289 = vmatprep.subr.mxu0 0.0
        %3290 = vmatpush1.msra.mxu0 0.0
        %3291 = vmatprep.subr.mxu0 0.0
        %3292 = vmatpush1.msra.mxu0 0.0
        %3293 = vmatprep.subr.mxu0 0.0
        %3294 = vmatpush1.msra.mxu0 0.0
        %3295 = vmatprep.subr.mxu0 0.0
        %3296 = vmatpush1.msra.mxu0 0.0
        %3297 = vmatprep.subr.mxu0 0.0
        %3298 = vmatpush1.msra.mxu0 0.0
        %3299 = vmatprep.subr.mxu0 0.0
        %3300 = vmatpush1.msra.mxu0 0.0
        %3301 = vmatprep.subr.mxu0 0.0
        %3302 = vmatpush1.msra.mxu0 0.0
        %3303 = vmatprep.subr.mxu0 0.0
        %3304 = vmatpush1.msra.mxu0 0.0
        %3305 = vmatprep.subr.mxu0 0.0
        %3306 = vmatpush1.msra.mxu0 0.0
        %3307 = vmatprep.subr.mxu0 0.0
        %3308 = vmatpush1.msra.mxu0 0.0
        %3309 = vmatprep.subr.mxu0 0.0
        %3310 = vmatpush1.msra.mxu0 0.0
        %3311 = vmatprep.subr.mxu0 0.0
        %3312 = vmatpush1.msra.mxu0 0.0
        %3313 = vmatprep.subr.mxu0 0.0
        %3314 = vmatpush1.msra.mxu0 0.0
        %3315 = vmatprep.subr.mxu0 0.0
        %3316 = vmatpush1.msra.mxu0 0.0
        %3317 = vmatprep.subr.mxu0 0.0
        %3318 = vmatpush1.msra.mxu0 0.0
        %3319 = vmatprep.subr.mxu0 0.0
        %3320 = vmatpush1.msra.mxu0 0.0
        %3321 = vmatprep.subr.mxu0 0.0
        %3322 = vmatpush1.msra.mxu0 0.0
        %3323 = vmatprep.subr.mxu0 0.0
        %3324 = vmatpush1.msra.mxu0 0.0
        %3325 = vmatprep.mubr.f32.mxu0 0.0
        %3326 = vmatmul.mubr.f32.gmra.mrb[0].mxu0 %v3238
        %v3327 = vpop.f32.mrb[0].mxu0
        %v3328 = vadd.f32 0.0, %v3327
        %v3329 = vpop.f32.mrb[0].mxu0
        %3330 = vmatprep.mubr.f32.mxu0 0.0
        %3331 = vmatmul.mubr.f32.gmra.mrb[0].mxu0 %v3241
        %v3332 = vpop.f32.mrb[0].mxu0
        %v3333 = vadd.f32 0.0, %v3332
        %v3334 = vpop.f32.mrb[0].mxu0
        %3335 = vmatprep.mubr.f32.mxu0 0.0
        %3336 = vmatmul.mubr.f32.gmra.mrb[0].mxu0 %v3244
        %v3337 = vpop.f32.mrb[0].mxu0
        %v3338 = vadd.f32 0.0, %v3337
        %v3339 = vpop.f32.mrb[0].mxu0
        %3340 = vmatprep.mubr.f32.mxu0 0.0
        %3341 = vmatmul.mubr.f32.gmra.mrb[0].mxu0 %v3247
        %v3342 = vpop.f32.mrb[0].mxu0
        %v3343 = vadd.f32 0.0, %v3342
        %v3344 = vpop.f32.mrb[0].mxu0
        %3345 = vmatprep.mubr.f32.mxu0 0.0
        %3346 = vmatmul.mubr.f32.gmra.mrb[0].mxu0 %v3250
        %v3347 = vpop.f32.mrb[0].mxu0
        %v3348 = vadd.f32 0.0, %v3347
        %v3349 = vpop.f32.mrb[0].mxu0
        %3350 = vmatprep.mubr.f32.mxu0 0.0
        %3351 = vmatmul.mubr.f32.gmra.mrb[0].mxu0 %v3253
        %v3352 = vpop.f32.mrb[0].mxu0
        %v3353 = vadd.f32 0.0, %v3352
        %v3354 = vpop.f32.mrb[0].mxu0
        %3355 = vmatprep.mubr.f32.mxu0 0.0
        %3356 = vmatmul.mubr.f32.gmra.mrb[0].mxu0 %v3256
        %v3357 = vpop.f32.mrb[0].mxu0
        %v3358 = vadd.f32 0.0, %v3357
        %v3359 = vpop.f32.mrb[0].mxu0
        %3360 = vmatprep.mubr.f32.mxu0 0.0
        %3361 = vmatmul.mubr.f32.gmra.mrb[0].mxu0 %v3259
        %v3362 = vpop.f32.mrb[0].mxu0
        %v3363 = vadd.f32 0.0, %v3362
        %v3364 = vpop.f32.mrb[0].mxu0
        %3365 = vdwg.mxu0
        %v3367 = vsel %vm2416, %v2757, 0
        %v3370 = vsel %vm2416, %v2762, 0
        %v3373 = vsel %vm2416, %v2767, 0
        %v3376 = vsel %vm2416, %v2772, 0
        %v3379 = vsel %vm2416, %v2777, 0
        %v3382 = vsel %vm2416, %v2782, 0
        %v3385 = vsel %vm2416, %v2787, 0
        %v3388 = vsel %vm2416, %v2792, 0
        %3390 = vmatprep.subr.mxu0 0.0
        %3391 = vmatpush1.msra.mxu0 %v2795
        %3392 = vmatprep.subr.mxu0 0.0
        %3393 = vmatpush1.msra.mxu0 %v2796
        %3394 = vmatprep.subr.mxu0 0.0
        %3395 = vmatpush1.msra.mxu0 %v2797
        %3396 = vmatprep.subr.mxu0 0.0
        %3397 = vmatpush1.msra.mxu0 %v2798
        %3398 = vmatprep.subr.mxu0 0.0
        %3399 = vmatpush1.msra.mxu0 %v2799
        %3400 = vmatprep.subr.mxu0 0.0
        %3401 = vmatpush1.msra.mxu0 %v2800
        %3402 = vmatprep.subr.mxu0 0.0
        %3403 = vmatpush1.msra.mxu0 %v2801
        %3404 = vmatprep.subr.mxu0 0.0
        %3405 = vmatpush1.msra.mxu0 %v2802
        %3406 = vmatprep.subr.mxu0 0.0
        %3407 = vmatpush1.msra.mxu0 0.0
        %3408 = vmatprep.subr.mxu0 0.0
        %3409 = vmatpush1.msra.mxu0 0.0
        %3410 = vmatprep.subr.mxu0 0.0
        %3411 = vmatpush1.msra.mxu0 0.0
        %3412 = vmatprep.subr.mxu0 0.0
        %3413 = vmatpush1.msra.mxu0 0.0
        %3414 = vmatprep.subr.mxu0 0.0
        %3415 = vmatpush1.msra.mxu0 0.0
        %3416 = vmatprep.subr.mxu0 0.0
        %3417 = vmatpush1.msra.mxu0 0.0
        %3418 = vmatprep.subr.mxu0 0.0
        %3419 = vmatpush1.msra.mxu0 0.0
        %3420 = vmatprep.subr.mxu0 0.0
        %3421 = vmatpush1.msra.mxu0 0.0
        %3422 = vmatprep.subr.mxu0 0.0
        %3423 = vmatpush1.msra.mxu0 0.0
        %3424 = vmatprep.subr.mxu0 0.0
        %3425 = vmatpush1.msra.mxu0 0.0
        %3426 = vmatprep.subr.mxu0 0.0
        %3427 = vmatpush1.msra.mxu0 0.0
        %3428 = vmatprep.subr.mxu0 0.0
        %3429 = vmatpush1.msra.mxu0 0.0
        %3430 = vmatprep.subr.mxu0 0.0
        %3431 = vmatpush1.msra.mxu0 0.0
        %3432 = vmatprep.subr.mxu0 0.0
        %3433 = vmatpush1.msra.mxu0 0.0
        %3434 = vmatprep.subr.mxu0 0.0
        %3435 = vmatpush1.msra.mxu0 0.0
        %3436 = vmatprep.subr.mxu0 0.0
        %3437 = vmatpush1.msra.mxu0 0.0
        %3438 = vmatprep.subr.mxu0 0.0
        %3439 = vmatpush1.msra.mxu0 0.0
        %3440 = vmatprep.subr.mxu0 0.0
        %3441 = vmatpush1.msra.mxu0 0.0
        %3442 = vmatprep.subr.mxu0 0.0
        %3443 = vmatpush1.msra.mxu0 0.0
        %3444 = vmatprep.subr.mxu0 0.0
        %3445 = vmatpush1.msra.mxu0 0.0
        %3446 = vmatprep.subr.mxu0 0.0
        %3447 = vmatpush1.msra.mxu0 0.0
        %3448 = vmatprep.subr.mxu0 0.0
        %3449 = vmatpush1.msra.mxu0 0.0
        %3450 = vmatprep.subr.mxu0 0.0
        %3451 = vmatpush1.msra.mxu0 0.0
        %3452 = vmatprep.subr.mxu0 0.0
        %3453 = vmatpush1.msra.mxu0 0.0
        %3454 = vmatprep.mubr.f32.mxu0 0.0
        %3455 = vmatmul.mubr.f32.gmra.mrb[0].mxu0 %v3367
        %v3456 = vpop.f32.mrb[0].mxu0
        %v3457 = vadd.f32 %v3328, %v3456
        %v3458 = vpop.f32.mrb[0].mxu0
        %3459 = vmatprep.mubr.f32.mxu0 0.0
        %3460 = vmatmul.mubr.f32.gmra.mrb[0].mxu0 %v3370
        %v3461 = vpop.f32.mrb[0].mxu0
        %v3462 = vadd.f32 %v3333, %v3461
        %v3463 = vpop.f32.mrb[0].mxu0
        %3464 = vmatprep.mubr.f32.mxu0 0.0
        %3465 = vmatmul.mubr.f32.gmra.mrb[0].mxu0 %v3373
        %v3466 = vpop.f32.mrb[0].mxu0
        %v3467 = vadd.f32 %v3338, %v3466
        %v3468 = vpop.f32.mrb[0].mxu0
        %3469 = vmatprep.mubr.f32.mxu0 0.0
        %3470 = vmatmul.mubr.f32.gmra.mrb[0].mxu0 %v3376
        %v3471 = vpop.f32.mrb[0].mxu0
        %v3472 = vadd.f32 %v3343, %v3471
        %v3473 = vpop.f32.mrb[0].mxu0
        %3474 = vmatprep.mubr.f32.mxu0 0.0
        %3475 = vmatmul.mubr.f32.gmra.mrb[0].mxu0 %v3379
        %v3476 = vpop.f32.mrb[0].mxu0
        %v3477 = vadd.f32 %v3348, %v3476
        %v3478 = vpop.f32.mrb[0].mxu0
        %3479 = vmatprep.mubr.f32.mxu0 0.0
        %3480 = vmatmul.mubr.f32.gmra.mrb[0].mxu0 %v3382
        %v3481 = vpop.f32.mrb[0].mxu0
        %v3482 = vadd.f32 %v3353, %v3481
        %v3483 = vpop.f32.mrb[0].mxu0
        %3484 = vmatprep.mubr.f32.mxu0 0.0
        %3485 = vmatmul.mubr.f32.gmra.mrb[0].mxu0 %v3385
        %v3486 = vpop.f32.mrb[0].mxu0
        %v3487 = vadd.f32 %v3358, %v3486
        %v3488 = vpop.f32.mrb[0].mxu0
        %3489 = vmatprep.mubr.f32.mxu0 0.0
        %3490 = vmatmul.mubr.f32.gmra.mrb[0].mxu0 %v3388
        %v3491 = vpop.f32.mrb[0].mxu0
        %v3492 = vadd.f32 %v3363, %v3491
        %v3493 = vpop.f32.mrb[0].mxu0
        %3494 = vdwg.mxu0
        %v3495 = vadd.f32 %v2023, %v3457
        %v3496 = vadd.f32 %v2024, %v3462
        %v3497 = vadd.f32 %v2025, %v3467
        %v3498 = vadd.f32 %v2026, %v3472
        %v3499 = vadd.f32 %v2027, %v3477
        %v3500 = vadd.f32 %v2028, %v3482
        %v3501 = vadd.f32 %v2029, %v3487
        %v3502 = vadd.f32 %v2030, %v3492
        %v3503 = vld [vmem:[%s7] sm:$0x1]
        %v3505 = vlaneseq
        %v3506 = vshrl.u32 %v3505, 7
        %v3507 = vsub.s32 0, %v3506
        %v3508 = vrot.slane %v3503, %v3507
        %v3510 = vadd.f32 %v3495, %v3508
        %v3511 = vadd.f32 %v3496, %v3508
        %v3512 = vadd.f32 %v3497, %v3508
        %v3513 = vadd.f32 %v3498, %v3508
        %v3514 = vadd.f32 %v3499, %v3508
        %v3515 = vadd.f32 %v3500, %v3508
        %v3516 = vadd.f32 %v3501, %v3508
        %v3517 = vadd.f32 %v3502, %v3508
        %v3518 = vld [vmem:[%s8] sm:$0x1]
        %v3519 = vld [vmem:[%s9] sm:$0x1]
        %3520 = vadd.xlane.f32.xlu0 %v3510
        %v3521 = vpop.xlane.xlu0 %3520
        %3522 = vadd.xlane.f32.xlu0 %v3511
        %v3523 = vpop.xlane.xlu0 %3522
        %3524 = vadd.xlane.f32.xlu0 %v3512
        %v3525 = vpop.xlane.xlu0 %3524
        %3526 = vadd.xlane.f32.xlu0 %v3513
        %v3527 = vpop.xlane.xlu0 %3526
        %3528 = vadd.xlane.f32.xlu0 %v3514
        %v3529 = vpop.xlane.xlu0 %3528
        %3530 = vadd.xlane.f32.xlu0 %v3515
        %v3531 = vpop.xlane.xlu0 %3530
        %3532 = vadd.xlane.f32.xlu0 %v3516
        %v3533 = vpop.xlane.xlu0 %3532
        %3534 = vadd.xlane.f32.xlu0 %v3517
        %v3535 = vpop.xlane.xlu0 %3534
        %v3536 = vmul.f32 %v3521, %v2049
        %v3537 = vmul.f32 %v3523, %v2049
        %v3538 = vmul.f32 %v3525, %v2049
        %v3539 = vmul.f32 %v3527, %v2049
        %v3540 = vmul.f32 %v3529, %v2049
        %v3541 = vmul.f32 %v3531, %v2049
        %v3542 = vmul.f32 %v3533, %v2049
        %v3543 = vmul.f32 %v3535, %v2049
        %v3544 = vsub.f32 %v3510, %v3536
        %v3545 = vsub.f32 %v3511, %v3537
        %v3546 = vsub.f32 %v3512, %v3538
        %v3547 = vsub.f32 %v3513, %v3539
        %v3548 = vsub.f32 %v3514, %v3540
        %v3549 = vsub.f32 %v3515, %v3541
        %v3550 = vsub.f32 %v3516, %v3542
        %v3551 = vsub.f32 %v3517, %v3543
        %v3552 = vmul.f32 %v3544, %v3544
        %v3553 = vmul.f32 %v3545, %v3545
        %v3554 = vmul.f32 %v3546, %v3546
        %v3555 = vmul.f32 %v3547, %v3547
        %v3556 = vmul.f32 %v3548, %v3548
        %v3557 = vmul.f32 %v3549, %v3549
        %v3558 = vmul.f32 %v3550, %v3550
        %v3559 = vmul.f32 %v3551, %v3551
        %3560 = vadd.xlane.f32.xlu0 %v3552
        %v3561 = vpop.xlane.xlu0 %3560
        %3562 = vadd.xlane.f32.xlu0 %v3553
        %v3563 = vpop.xlane.xlu0 %3562
        %3564 = vadd.xlane.f32.xlu0 %v3554
        %v3565 = vpop.xlane.xlu0 %3564
        %3566 = vadd.xlane.f32.xlu0 %v3555
        %v3567 = vpop.xlane.xlu0 %3566
        %3568 = vadd.xlane.f32.xlu0 %v3556
        %v3569 = vpop.xlane.xlu0 %3568
        %3570 = vadd.xlane.f32.xlu0 %v3557
        %v3571 = vpop.xlane.xlu0 %3570
        %3572 = vadd.xlane.f32.xlu0 %v3558
        %v3573 = vpop.xlane.xlu0 %3572
        %3574 = vadd.xlane.f32.xlu0 %v3559
        %v3575 = vpop.xlane.xlu0 %3574
        %v3576 = vmul.f32 %v3561, %v2049
        %v3577 = vmul.f32 %v3563, %v2049
        %v3578 = vmul.f32 %v3565, %v2049
        %v3579 = vmul.f32 %v3567, %v2049
        %v3580 = vmul.f32 %v3569, %v2049
        %v3581 = vmul.f32 %v3571, %v2049
        %v3582 = vmul.f32 %v3573, %v2049
        %v3583 = vmul.f32 %v3575, %v2049
        %v3584 = vadd.f32 %v3576, 1e-05
        %v3585 = vadd.f32 %v3577, 1e-05
        %v3586 = vadd.f32 %v3578, 1e-05
        %v3587 = vadd.f32 %v3579, 1e-05
        %v3588 = vadd.f32 %v3580, 1e-05
        %v3589 = vadd.f32 %v3581, 1e-05
        %v3590 = vadd.f32 %v3582, 1e-05
        %v3591 = vadd.f32 %v3583, 1e-05
        %v3592 = vrsqrt.pop %v3584
        %v3593 = vrsqrt.pop %v3585
        %v3594 = vrsqrt.pop %v3586
        %v3595 = vrsqrt.pop %v3587
        %v3596 = vrsqrt.pop %v3588
        %v3597 = vrsqrt.pop %v3589
        %v3598 = vrsqrt.pop %v3590
        %v3599 = vrsqrt.pop %v3591
        %v3600 = vmul.f32 %v3544, %v3592
        %v3601 = vmul.f32 %v3545, %v3593
        %v3602 = vmul.f32 %v3546, %v3594
        %v3603 = vmul.f32 %v3547, %v3595
        %v3604 = vmul.f32 %v3548, %v3596
        %v3605 = vmul.f32 %v3549, %v3597
        %v3606 = vmul.f32 %v3550, %v3598
        %v3607 = vmul.f32 %v3551, %v3599
        %v3609 = vlaneseq
        %v3610 = vshrl.u32 %v3609, 7
        %v3611 = vsub.s32 0, %v3610
        %v3612 = vrot.slane %v3518, %v3611
        %v3614 = vmul.f32 %v3600, %v3612
        %v3615 = vmul.f32 %v3601, %v3612
        %v3616 = vmul.f32 %v3602, %v3612
        %v3617 = vmul.f32 %v3603, %v3612
        %v3618 = vmul.f32 %v3604, %v3612
        %v3619 = vmul.f32 %v3605, %v3612
        %v3620 = vmul.f32 %v3606, %v3612
        %v3621 = vmul.f32 %v3607, %v3612
        %v3623 = vlaneseq
        %v3624 = vshrl.u32 %v3623, 7
        %v3625 = vsub.s32 0, %v3624
        %v3626 = vrot.slane %v3519, %v3625
        %v3628 = vadd.f32 %v3614, %v3626
        %v3629 = vadd.f32 %v3615, %v3626
        %v3630 = vadd.f32 %v3616, %v3626
        %v3631 = vadd.f32 %v3617, %v3626
        %v3632 = vadd.f32 %v3618, %v3626
        %v3633 = vadd.f32 %v3619, %v3626
        %v3634 = vadd.f32 %v3620, %v3626
        %v3635 = vadd.f32 %v3621, %v3626
        %v3636 = vld [vmem:[%s10] sm:$0xff]
        %v3637 = vld [vmem:[%s10 + $0x8] sm:$0xff]
        %v3638 = vld [vmem:[%s10 + $0x10] sm:$0xff]
        %v3639 = vld [vmem:[%s10 + $0x18] sm:$0xff]
        %v3640 = vld [vmem:[%s10 + $0x20] sm:$0xff]
        %v3641 = vld [vmem:[%s10 + $0x28] sm:$0xff]
        %v3642 = vld [vmem:[%s10 + $0x30] sm:$0xff]
        %v3643 = vld [vmem:[%s10 + $0x38] sm:$0xff]
        %v3644 = vld [vmem:[%s10 + $0x40] sm:$0xff]
        %v3645 = vld [vmem:[%s10 + $0x48] sm:$0xff]
        %v3646 = vld [vmem:[%s10 + $0x50] sm:$0xff]
        %v3647 = vld [vmem:[%s10 + $0x58] sm:$0xff]
        %v3648 = vld [vmem:[%s10 + $0x60] sm:$0xff]
        %v3649 = vld [vmem:[%s10 + $0x68] sm:$0xff]
        %v3650 = vld [vmem:[%s10 + $0x70] sm:$0xff]
        %v3651 = vld [vmem:[%s10 + $0x78] sm:$0xff]
        %v3652 = vld [vmem:[%s11] sm:$0x1]
        %v3654 = vlaneseq
        %v3655 = vshrl.u32 %v3654, 7
        %v3656 = vsub.s32 0, %v3655
        %v3657 = vrot.slane %v3652, %v3656
        %3659 = vmatprep.subr.mxu0 0.0
        %3660 = vmatpush1.msra.mxu0 %v3636
        %3661 = vmatprep.subr.mxu0 0.0
        %3662 = vmatpush1.msra.mxu0 %v3637
        %3663 = vmatprep.subr.mxu0 0.0
        %3664 = vmatpush1.msra.mxu0 %v3638
        %3665 = vmatprep.subr.mxu0 0.0
        %3666 = vmatpush1.msra.mxu0 %v3639
        %3667 = vmatprep.subr.mxu0 0.0
        %3668 = vmatpush1.msra.mxu0 %v3640
        %3669 = vmatprep.subr.mxu0 0.0
        %3670 = vmatpush1.msra.mxu0 %v3641
        %3671 = vmatprep.subr.mxu0 0.0
        %3672 = vmatpush1.msra.mxu0 %v3642
        %3673 = vmatprep.subr.mxu0 0.0
        %3674 = vmatpush1.msra.mxu0 %v3643
        %3675 = vmatprep.subr.mxu0 0.0
        %3676 = vmatpush1.msra.mxu0 %v3644
        %3677 = vmatprep.subr.mxu0 0.0
        %3678 = vmatpush1.msra.mxu0 %v3645
        %3679 = vmatprep.subr.mxu0 0.0
        %3680 = vmatpush1.msra.mxu0 %v3646
        %3681 = vmatprep.subr.mxu0 0.0
        %3682 = vmatpush1.msra.mxu0 %v3647
        %3683 = vmatprep.subr.mxu0 0.0
        %3684 = vmatpush1.msra.mxu0 %v3648
        %3685 = vmatprep.subr.mxu0 0.0
        %3686 = vmatpush1.msra.mxu0 %v3649
        %3687 = vmatprep.subr.mxu0 0.0
        %3688 = vmatpush1.msra.mxu0 %v3650
        %3689 = vmatprep.subr.mxu0 0.0
        %3690 = vmatpush1.msra.mxu0 %v3651
        %3691 = vmatprep.subr.mxu0 0.0
        %3692 = vmatpush1.msra.mxu0 0.0
        %3693 = vmatprep.subr.mxu0 0.0
        %3694 = vmatpush1.msra.mxu0 0.0
        %3695 = vmatprep.subr.mxu0 0.0
        %3696 = vmatpush1.msra.mxu0 0.0
        %3697 = vmatprep.subr.mxu0 0.0
        %3698 = vmatpush1.msra.mxu0 0.0
        %3699 = vmatprep.subr.mxu0 0.0
        %3700 = vmatpush1.msra.mxu0 0.0
        %3701 = vmatprep.subr.mxu0 0.0
        %3702 = vmatpush1.msra.mxu0 0.0
        %3703 = vmatprep.subr.mxu0 0.0
        %3704 = vmatpush1.msra.mxu0 0.0
        %3705 = vmatprep.subr.mxu0 0.0
        %3706 = vmatpush1.msra.mxu0 0.0
        %3707 = vmatprep.subr.mxu0 0.0
        %3708 = vmatpush1.msra.mxu0 0.0
        %3709 = vmatprep.subr.mxu0 0.0
        %3710 = vmatpush1.msra.mxu0 0.0
        %3711 = vmatprep.subr.mxu0 0.0
        %3712 = vmatpush1.msra.mxu0 0.0
        %3713 = vmatprep.subr.mxu0 0.0
        %3714 = vmatpush1.msra.mxu0 0.0
        %3715 = vmatprep.subr.mxu0 0.0
        %3716 = vmatpush1.msra.mxu0 0.0
        %3717 = vmatprep.subr.mxu0 0.0
        %3718 = vmatpush1.msra.mxu0 0.0
        %3719 = vmatprep.subr.mxu0 0.0
        %3720 = vmatpush1.msra.mxu0 0.0
        %3721 = vmatprep.subr.mxu0 0.0
        %3722 = vmatpush1.msra.mxu0 0.0
        %3723 = vmatprep.mubr.f32.mxu0 0.0
        %3724 = vmatmul.mubr.f32.gmra.mrb[0].mxu0 %v3628
        %v3725 = vpop.f32.mrb[0].mxu0
        %v3726 = vadd.f32 %v3657, %v3725
        %v3727 = vpop.f32.mrb[0].mxu0
        %3728 = vmatprep.mubr.f32.mxu0 0.0
        %3729 = vmatmul.mubr.f32.gmra.mrb[0].mxu0 %v3629
        %v3730 = vpop.f32.mrb[0].mxu0
        %v3731 = vadd.f32 %v3657, %v3730
        %v3732 = vpop.f32.mrb[0].mxu0
        %3733 = vmatprep.mubr.f32.mxu0 0.0
        %3734 = vmatmul.mubr.f32.gmra.mrb[0].mxu0 %v3630
        %v3735 = vpop.f32.mrb[0].mxu0
        %v3736 = vadd.f32 %v3657, %v3735
        %v3737 = vpop.f32.mrb[0].mxu0
        %3738 = vmatprep.mubr.f32.mxu0 0.0
        %3739 = vmatmul.mubr.f32.gmra.mrb[0].mxu0 %v3631
        %v3740 = vpop.f32.mrb[0].mxu0
        %v3741 = vadd.f32 %v3657, %v3740
        %v3742 = vpop.f32.mrb[0].mxu0
        %3743 = vmatprep.mubr.f32.mxu0 0.0
        %3744 = vmatmul.mubr.f32.gmra.mrb[0].mxu0 %v3632
        %v3745 = vpop.f32.mrb[0].mxu0
        %v3746 = vadd.f32 %v3657, %v3745
        %v3747 = vpop.f32.mrb[0].mxu0
        %3748 = vmatprep.mubr.f32.mxu0 0.0
        %3749 = vmatmul.mubr.f32.gmra.mrb[0].mxu0 %v3633
        %v3750 = vpop.f32.mrb[0].mxu0
        %v3751 = vadd.f32 %v3657, %v3750
        %v3752 = vpop.f32.mrb[0].mxu0
        %3753 = vmatprep.mubr.f32.mxu0 0.0
        %3754 = vmatmul.mubr.f32.gmra.mrb[0].mxu0 %v3634
        %v3755 = vpop.f32.mrb[0].mxu0
        %v3756 = vadd.f32 %v3657, %v3755
        %v3757 = vpop.f32.mrb[0].mxu0
        %3758 = vmatprep.mubr.f32.mxu0 0.0
        %3759 = vmatmul.mubr.f32.gmra.mrb[0].mxu0 %v3635
        %v3760 = vpop.f32.mrb[0].mxu0
        %v3761 = vadd.f32 %v3657, %v3760
        %v3762 = vpop.f32.mrb[0].mxu0
        %3763 = vdwg.mxu0
        %v3764 = vmul.f32 %v3726, 0.5
        %v3765 = vmul.f32 %v3731, 0.5
        %v3766 = vmul.f32 %v3736, 0.5
        %v3767 = vmul.f32 %v3741, 0.5
        %v3768 = vmul.f32 %v3746, 0.5
        %v3769 = vmul.f32 %v3751, 0.5
        %v3770 = vmul.f32 %v3756, 0.5
        %v3771 = vmul.f32 %v3761, 0.5
        %v3772 = vmul.f32 %v3726, 0.70710677
        %v3773 = vmul.f32 %v3731, 0.70710677
        %v3774 = vmul.f32 %v3736, 0.70710677
        %v3775 = vmul.f32 %v3741, 0.70710677
        %v3776 = vmul.f32 %v3746, 0.70710677
        %v3777 = vmul.f32 %v3751, 0.70710677
        %v3778 = vmul.f32 %v3756, 0.70710677
        %v3779 = vmul.f32 %v3761, 0.70710677
        %v3780 = verf.f32.pop %v3772
        %v3781 = verf.f32.pop %v3773
        %v3782 = verf.f32.pop %v3774
        %v3783 = verf.f32.pop %v3775
        %v3784 = verf.f32.pop %v3776
        %v3785 = verf.f32.pop %v3777
        %v3786 = verf.f32.pop %v3778
        %v3787 = verf.f32.pop %v3779
        %v3788 = vadd.f32 %v3780, 1.0
        %v3789 = vadd.f32 %v3781, 1.0
        %v3790 = vadd.f32 %v3782, 1.0
        %v3791 = vadd.f32 %v3783, 1.0
        %v3792 = vadd.f32 %v3784, 1.0
        %v3793 = vadd.f32 %v3785, 1.0
        %v3794 = vadd.f32 %v3786, 1.0
        %v3795 = vadd.f32 %v3787, 1.0
        %v3796 = vmul.f32 %v3764, %v3788
        %v3797 = vmul.f32 %v3765, %v3789
        %v3798 = vmul.f32 %v3766, %v3790
        %v3799 = vmul.f32 %v3767, %v3791
        %v3800 = vmul.f32 %v3768, %v3792
        %v3801 = vmul.f32 %v3769, %v3793
        %v3802 = vmul.f32 %v3770, %v3794
        %v3803 = vmul.f32 %v3771, %v3795
        %v3804 = vld [vmem:[%s12] sm:$0xff]
        %v3805 = vld [vmem:[%s12 + $0x8] sm:$0xff]
        %v3806 = vld [vmem:[%s12 + $0x10] sm:$0xff]
        %v3807 = vld [vmem:[%s12 + $0x18] sm:$0xff]
        %v3808 = vld [vmem:[%s12 + $0x20] sm:$0xff]
        %v3809 = vld [vmem:[%s12 + $0x28] sm:$0xff]
        %v3810 = vld [vmem:[%s12 + $0x30] sm:$0xff]
        %v3811 = vld [vmem:[%s12 + $0x38] sm:$0xff]
        %v3812 = vld [vmem:[%s12 + $0x40] sm:$0xff]
        %v3813 = vld [vmem:[%s12 + $0x48] sm:$0xff]
        %v3814 = vld [vmem:[%s12 + $0x50] sm:$0xff]
        %v3815 = vld [vmem:[%s12 + $0x58] sm:$0xff]
        %v3816 = vld [vmem:[%s12 + $0x60] sm:$0xff]
        %v3817 = vld [vmem:[%s12 + $0x68] sm:$0xff]
        %v3818 = vld [vmem:[%s12 + $0x70] sm:$0xff]
        %v3819 = vld [vmem:[%s12 + $0x78] sm:$0xff]
        %v3820 = vld [vmem:[%s13] sm:$0x1]
        %v3822 = vlaneseq
        %v3823 = vshrl.u32 %v3822, 7
        %v3824 = vsub.s32 0, %v3823
        %v3825 = vrot.slane %v3820, %v3824
        %3827 = vmatprep.subr.mxu0 0.0
        %3828 = vmatpush1.msra.mxu0 %v3804
        %3829 = vmatprep.subr.mxu0 0.0
        %3830 = vmatpush1.msra.mxu0 %v3805
        %3831 = vmatprep.subr.mxu0 0.0
        %3832 = vmatpush1.msra.mxu0 %v3806
        %3833 = vmatprep.subr.mxu0 0.0
        %3834 = vmatpush1.msra.mxu0 %v3807
        %3835 = vmatprep.subr.mxu0 0.0
        %3836 = vmatpush1.msra.mxu0 %v3808
        %3837 = vmatprep.subr.mxu0 0.0
        %3838 = vmatpush1.msra.mxu0 %v3809
        %3839 = vmatprep.subr.mxu0 0.0
        %3840 = vmatpush1.msra.mxu0 %v3810
        %3841 = vmatprep.subr.mxu0 0.0
        %3842 = vmatpush1.msra.mxu0 %v3811
        %3843 = vmatprep.subr.mxu0 0.0
        %3844 = vmatpush1.msra.mxu0 %v3812
        %3845 = vmatprep.subr.mxu0 0.0
        %3846 = vmatpush1.msra.mxu0 %v3813
        %3847 = vmatprep.subr.mxu0 0.0
        %3848 = vmatpush1.msra.mxu0 %v3814
        %3849 = vmatprep.subr.mxu0 0.0
        %3850 = vmatpush1.msra.mxu0 %v3815
        %3851 = vmatprep.subr.mxu0 0.0
        %3852 = vmatpush1.msra.mxu0 %v3816
        %3853 = vmatprep.subr.mxu0 0.0
        %3854 = vmatpush1.msra.mxu0 %v3817
        %3855 = vmatprep.subr.mxu0 0.0
        %3856 = vmatpush1.msra.mxu0 %v3818
        %3857 = vmatprep.subr.mxu0 0.0
        %3858 = vmatpush1.msra.mxu0 %v3819
        %3859 = vmatprep.subr.mxu0 0.0
        %3860 = vmatpush1.msra.mxu0 0.0
        %3861 = vmatprep.subr.mxu0 0.0
        %3862 = vmatpush1.msra.mxu0 0.0
        %3863 = vmatprep.subr.mxu0 0.0
        %3864 = vmatpush1.msra.mxu0 0.0
        %3865 = vmatprep.subr.mxu0 0.0
        %3866 = vmatpush1.msra.mxu0 0.0
        %3867 = vmatprep.subr.mxu0 0.0
        %3868 = vmatpush1.msra.mxu0 0.0
        %3869 = vmatprep.subr.mxu0 0.0
        %3870 = vmatpush1.msra.mxu0 0.0
        %3871 = vmatprep.subr.mxu0 0.0
        %3872 = vmatpush1.msra.mxu0 0.0
        %3873 = vmatprep.subr.mxu0 0.0
        %3874 = vmatpush1.msra.mxu0 0.0
        %3875 = vmatprep.subr.mxu0 0.0
        %3876 = vmatpush1.msra.mxu0 0.0
        %3877 = vmatprep.subr.mxu0 0.0
        %3878 = vmatpush1.msra.mxu0 0.0
        %3879 = vmatprep.subr.mxu0 0.0
        %3880 = vmatpush1.msra.mxu0 0.0
        %3881 = vmatprep.subr.mxu0 0.0
        %3882 = vmatpush1.msra.mxu0 0.0
        %3883 = vmatprep.subr.mxu0 0.0
        %3884 = vmatpush1.msra.mxu0 0.0
        %3885 = vmatprep.subr.mxu0 0.0
        %3886 = vmatpush1.msra.mxu0 0.0
        %3887 = vmatprep.subr.mxu0 0.0
        %3888 = vmatpush1.msra.mxu0 0.0
        %3889 = vmatprep.subr.mxu0 0.0
        %3890 = vmatpush1.msra.mxu0 0.0
        %3891 = vmatprep.mubr.f32.mxu0 0.0
        %3892 = vmatmul.mubr.f32.gmra.mrb[0].mxu0 %v3796
        %v3893 = vpop.f32.mrb[0].mxu0
        %v3894 = vadd.f32 %v3825, %v3893
        %v3895 = vpop.f32.mrb[0].mxu0
        %3896 = vmatprep.mubr.f32.mxu0 0.0
        %3897 = vmatmul.mubr.f32.gmra.mrb[0].mxu0 %v3797
        %v3898 = vpop.f32.mrb[0].mxu0
        %v3899 = vadd.f32 %v3825, %v3898
        %v3900 = vpop.f32.mrb[0].mxu0
        %3901 = vmatprep.mubr.f32.mxu0 0.0
        %3902 = vmatmul.mubr.f32.gmra.mrb[0].mxu0 %v3798
        %v3903 = vpop.f32.mrb[0].mxu0
        %v3904 = vadd.f32 %v3825, %v3903
        %v3905 = vpop.f32.mrb[0].mxu0
        %3906 = vmatprep.mubr.f32.mxu0 0.0
        %3907 = vmatmul.mubr.f32.gmra.mrb[0].mxu0 %v3799
        %v3908 = vpop.f32.mrb[0].mxu0
        %v3909 = vadd.f32 %v3825, %v3908
        %v3910 = vpop.f32.mrb[0].mxu0
        %3911 = vmatprep.mubr.f32.mxu0 0.0
        %3912 = vmatmul.mubr.f32.gmra.mrb[0].mxu0 %v3800
        %v3913 = vpop.f32.mrb[0].mxu0
        %v3914 = vadd.f32 %v3825, %v3913
        %v3915 = vpop.f32.mrb[0].mxu0
        %3916 = vmatprep.mubr.f32.mxu0 0.0
        %3917 = vmatmul.mubr.f32.gmra.mrb[0].mxu0 %v3801
        %v3918 = vpop.f32.mrb[0].mxu0
        %v3919 = vadd.f32 %v3825, %v3918
        %v3920 = vpop.f32.mrb[0].mxu0
        %3921 = vmatprep.mubr.f32.mxu0 0.0
        %3922 = vmatmul.mubr.f32.gmra.mrb[0].mxu0 %v3802
        %v3923 = vpop.f32.mrb[0].mxu0
        %v3924 = vadd.f32 %v3825, %v3923
        %v3925 = vpop.f32.mrb[0].mxu0
        %3926 = vmatprep.mubr.f32.mxu0 0.0
        %3927 = vmatmul.mubr.f32.gmra.mrb[0].mxu0 %v3803
        %v3928 = vpop.f32.mrb[0].mxu0
        %v3929 = vadd.f32 %v3825, %v3928
        %v3930 = vpop.f32.mrb[0].mxu0
        %3931 = vdwg.mxu0
        %v3932 = vadd.f32 %v3628, %v3894
        %v3933 = vadd.f32 %v3629, %v3899
        %v3934 = vadd.f32 %v3630, %v3904
        %v3935 = vadd.f32 %v3631, %v3909
        %v3936 = vadd.f32 %v3632, %v3914
        %v3937 = vadd.f32 %v3633, %v3919
        %v3938 = vadd.f32 %v3634, %v3924
        %v3939 = vadd.f32 %v3635, %v3929
        %s3940 = scalar_lea.vmem %s3, 1
        %v3941 = vld [vmem:[%s3940] sm:$0x1]
        %s3942 = scalar_lea.vmem %s4, 1
        %v3943 = vld [vmem:[%s3942] sm:$0x1]
        %3944 = vadd.xlane.f32.xlu0 %v3932
        %v3945 = vpop.xlane.xlu0 %3944
        %3946 = vadd.xlane.f32.xlu0 %v3933
        %v3947 = vpop.xlane.xlu0 %3946
        %3948 = vadd.xlane.f32.xlu0 %v3934
        %v3949 = vpop.xlane.xlu0 %3948
        %3950 = vadd.xlane.f32.xlu0 %v3935
        %v3951 = vpop.xlane.xlu0 %3950
        %3952 = vadd.xlane.f32.xlu0 %v3936
        %v3953 = vpop.xlane.xlu0 %3952
        %3954 = vadd.xlane.f32.xlu0 %v3937
        %v3955 = vpop.xlane.xlu0 %3954
        %3956 = vadd.xlane.f32.xlu0 %v3938
        %v3957 = vpop.xlane.xlu0 %3956
        %3958 = vadd.xlane.f32.xlu0 %v3939
        %v3959 = vpop.xlane.xlu0 %3958
        %v3960 = vmul.f32 %v3945, %v2049
        %v3961 = vmul.f32 %v3947, %v2049
        %v3962 = vmul.f32 %v3949, %v2049
        %v3963 = vmul.f32 %v3951, %v2049
        %v3964 = vmul.f32 %v3953, %v2049
        %v3965 = vmul.f32 %v3955, %v2049
        %v3966 = vmul.f32 %v3957, %v2049
        %v3967 = vmul.f32 %v3959, %v2049
        %v3968 = vsub.f32 %v3932, %v3960
        %v3969 = vsub.f32 %v3933, %v3961
        %v3970 = vsub.f32 %v3934, %v3962
        %v3971 = vsub.f32 %v3935, %v3963
        %v3972 = vsub.f32 %v3936, %v3964
        %v3973 = vsub.f32 %v3937, %v3965
        %v3974 = vsub.f32 %v3938, %v3966
        %v3975 = vsub.f32 %v3939, %v3967
        %v3976 = vmul.f32 %v3968, %v3968
        %v3977 = vmul.f32 %v3969, %v3969
        %v3978 = vmul.f32 %v3970, %v3970
        %v3979 = vmul.f32 %v3971, %v3971
        %v3980 = vmul.f32 %v3972, %v3972
        %v3981 = vmul.f32 %v3973, %v3973
        %v3982 = vmul.f32 %v3974, %v3974
        %v3983 = vmul.f32 %v3975, %v3975
        %3984 = vadd.xlane.f32.xlu0 %v3976
        %v3985 = vpop.xlane.xlu0 %3984
        %3986 = vadd.xlane.f32.xlu0 %v3977
        %v3987 = vpop.xlane.xlu0 %3986
        %3988 = vadd.xlane.f32.xlu0 %v3978
        %v3989 = vpop.xlane.xlu0 %3988
        %3990 = vadd.xlane.f32.xlu0 %v3979
        %v3991 = vpop.xlane.xlu0 %3990
        %3992 = vadd.xlane.f32.xlu0 %v3980
        %v3993 = vpop.xlane.xlu0 %3992
        %3994 = vadd.xlane.f32.xlu0 %v3981
        %v3995 = vpop.xlane.xlu0 %3994
        %3996 = vadd.xlane.f32.xlu0 %v3982
        %v3997 = vpop.xlane.xlu0 %3996
        %3998 = vadd.xlane.f32.xlu0 %v3983
        %v3999 = vpop.xlane.xlu0 %3998
        %v4000 = vmul.f32 %v3985, %v2049
        %v4001 = vmul.f32 %v3987, %v2049
        %v4002 = vmul.f32 %v3989, %v2049
        %v4003 = vmul.f32 %v3991, %v2049
        %v4004 = vmul.f32 %v3993, %v2049
        %v4005 = vmul.f32 %v3995, %v2049
        %v4006 = vmul.f32 %v3997, %v2049
        %v4007 = vmul.f32 %v3999, %v2049
        %v4008 = vadd.f32 %v4000, 1e-05
        %v4009 = vadd.f32 %v4001, 1e-05
        %v4010 = vadd.f32 %v4002, 1e-05
        %v4011 = vadd.f32 %v4003, 1e-05
        %v4012 = vadd.f32 %v4004, 1e-05
        %v4013 = vadd.f32 %v4005, 1e-05
        %v4014 = vadd.f32 %v4006, 1e-05
        %v4015 = vadd.f32 %v4007, 1e-05
        %v4016 = vrsqrt.pop %v4008
        %v4017 = vrsqrt.pop %v4009
        %v4018 = vrsqrt.pop %v4010
        %v4019 = vrsqrt.pop %v4011
        %v4020 = vrsqrt.pop %v4012
        %v4021 = vrsqrt.pop %v4013
        %v4022 = vrsqrt.pop %v4014
        %v4023 = vrsqrt.pop %v4015
        %v4024 = vmul.f32 %v3968, %v4016
        %v4025 = vmul.f32 %v3969, %v4017
        %v4026 = vmul.f32 %v3970, %v4018
        %v4027 = vmul.f32 %v3971, %v4019
        %v4028 = vmul.f32 %v3972, %v4020
        %v4029 = vmul.f32 %v3973, %v4021
        %v4030 = vmul.f32 %v3974, %v4022
        %v4031 = vmul.f32 %v3975, %v4023
        %v4033 = vlaneseq
        %v4034 = vshrl.u32 %v4033, 7
        %v4035 = vsub.s32 0, %v4034
        %v4036 = vrot.slane %v3941, %v4035
        %v4038 = vmul.f32 %v4024, %v4036
        %v4039 = vmul.f32 %v4025, %v4036
        %v4040 = vmul.f32 %v4026, %v4036
        %v4041 = vmul.f32 %v4027, %v4036
        %v4042 = vmul.f32 %v4028, %v4036
        %v4043 = vmul.f32 %v4029, %v4036
        %v4044 = vmul.f32 %v4030, %v4036
        %v4045 = vmul.f32 %v4031, %v4036
        %v4047 = vlaneseq
        %v4048 = vshrl.u32 %v4047, 7
        %v4049 = vsub.s32 0, %v4048
        %v4050 = vrot.slane %v3943, %v4049
        %v4052 = vadd.f32 %v4038, %v4050
        %v4053 = vadd.f32 %v4039, %v4050
        %v4054 = vadd.f32 %v4040, %v4050
        %v4055 = vadd.f32 %v4041, %v4050
        %v4056 = vadd.f32 %v4042, %v4050
        %v4057 = vadd.f32 %v4043, %v4050
        %v4058 = vadd.f32 %v4044, %v4050
        %v4059 = vadd.f32 %v4045, %v4050
        %s4060 = scalar_lea.vmem %s5, 384
        %v4061 = vld [vmem:[%s4060] sm:$0xff]
        %v4062 = vld [vmem:[%s4060 + $0x8] sm:$0xff]
        %v4063 = vld [vmem:[%s4060 + $0x10] sm:$0xff]
        %v4064 = vld [vmem:[%s4060 + $0x18] sm:$0xff]
        %v4065 = vld [vmem:[%s4060 + $0x20] sm:$0xff]
        %v4066 = vld [vmem:[%s4060 + $0x28] sm:$0xff]
        %v4067 = vld [vmem:[%s4060 + $0x30] sm:$0xff]
        %v4068 = vld [vmem:[%s4060 + $0x38] sm:$0xff]
        %v4069 = vld [vmem:[%s4060 + $0x40] sm:$0xff]
        %v4070 = vld [vmem:[%s4060 + $0x48] sm:$0xff]
        %v4071 = vld [vmem:[%s4060 + $0x50] sm:$0xff]
        %v4072 = vld [vmem:[%s4060 + $0x58] sm:$0xff]
        %v4073 = vld [vmem:[%s4060 + $0x60] sm:$0xff]
        %v4074 = vld [vmem:[%s4060 + $0x68] sm:$0xff]
        %v4075 = vld [vmem:[%s4060 + $0x70] sm:$0xff]
        %v4076 = vld [vmem:[%s4060 + $0x78] sm:$0xff]
        %v4077 = vld [vmem:[%s4060 + $0x80] sm:$0xff]
        %v4078 = vld [vmem:[%s4060 + $0x88] sm:$0xff]
        %v4079 = vld [vmem:[%s4060 + $0x90] sm:$0xff]
        %v4080 = vld [vmem:[%s4060 + $0x98] sm:$0xff]
        %v4081 = vld [vmem:[%s4060 + $0xa0] sm:$0xff]
        %v4082 = vld [vmem:[%s4060 + $0xa8] sm:$0xff]
        %v4083 = vld [vmem:[%s4060 + $0xb0] sm:$0xff]
        %v4084 = vld [vmem:[%s4060 + $0xb8] sm:$0xff]
        %v4085 = vld [vmem:[%s4060 + $0xc0] sm:$0xff]
        %v4086 = vld [vmem:[%s4060 + $0xc8] sm:$0xff]
        %v4087 = vld [vmem:[%s4060 + $0xd0] sm:$0xff]
        %v4088 = vld [vmem:[%s4060 + $0xd8] sm:$0xff]
        %v4089 = vld [vmem:[%s4060 + $0xe0] sm:$0xff]
        %v4090 = vld [vmem:[%s4060 + $0xe8] sm:$0xff]
        %v4091 = vld [vmem:[%s4060 + $0xf0] sm:$0xff]
        %v4092 = vld [vmem:[%s4060 + $0xf8] sm:$0xff]
        %v4093 = vld [vmem:[%s4060 + $0x100] sm:$0xff]
        %v4094 = vld [vmem:[%s4060 + $0x108] sm:$0xff]
        %v4095 = vld [vmem:[%s4060 + $0x110] sm:$0xff]
        %v4096 = vld [vmem:[%s4060 + $0x118] sm:$0xff]
        %v4097 = vld [vmem:[%s4060 + $0x120] sm:$0xff]
        %v4098 = vld [vmem:[%s4060 + $0x128] sm:$0xff]
        %v4099 = vld [vmem:[%s4060 + $0x130] sm:$0xff]
        %v4100 = vld [vmem:[%s4060 + $0x138] sm:$0xff]
        %v4101 = vld [vmem:[%s4060 + $0x140] sm:$0xff]
        %v4102 = vld [vmem:[%s4060 + $0x148] sm:$0xff]
        %v4103 = vld [vmem:[%s4060 + $0x150] sm:$0xff]
        %v4104 = vld [vmem:[%s4060 + $0x158] sm:$0xff]
        %v4105 = vld [vmem:[%s4060 + $0x160] sm:$0xff]
        %v4106 = vld [vmem:[%s4060 + $0x168] sm:$0xff]
        %v4107 = vld [vmem:[%s4060 + $0x170] sm:$0xff]
        %v4108 = vld [vmem:[%s4060 + $0x178] sm:$0xff]
        %4109 = vmatprep.subr.mxu0 %v4062
        %4110 = vmatpush1.msra.mxu0 %v4061
        %4111 = vmatprep.subr.mxu0 %v4065
        %4112 = vmatpush1.msra.mxu0 %v4064
        %4113 = vmatprep.subr.mxu0 %v4068
        %4114 = vmatpush1.msra.mxu0 %v4067
        %4115 = vmatprep.subr.mxu0 %v4071
        %4116 = vmatpush1.msra.mxu0 %v4070
        %4117 = vmatprep.subr.mxu0 %v4074
        %4118 = vmatpush1.msra.mxu0 %v4073
        %4119 = vmatprep.subr.mxu0 %v4077
        %4120 = vmatpush1.msra.mxu0 %v4076
        %4121 = vmatprep.subr.mxu0 %v4080
        %4122 = vmatpush1.msra.mxu0 %v4079
        %4123 = vmatprep.subr.mxu0 %v4083
        %4124 = vmatpush1.msra.mxu0 %v4082
        %4125 = vmatprep.subr.mxu0 %v4086
        %4126 = vmatpush1.msra.mxu0 %v4085
        %4127 = vmatprep.subr.mxu0 %v4089
        %4128 = vmatpush1.msra.mxu0 %v4088
        %4129 = vmatprep.subr.mxu0 %v4092
        %4130 = vmatpush1.msra.mxu0 %v4091
        %4131 = vmatprep.subr.mxu0 %v4095
        %4132 = vmatpush1.msra.mxu0 %v4094
        %4133 = vmatprep.subr.mxu0 %v4098
        %4134 = vmatpush1.msra.mxu0 %v4097
        %4135 = vmatprep.subr.mxu0 %v4101
        %4136 = vmatpush1.msra.mxu0 %v4100
        %4137 = vmatprep.subr.mxu0 %v4104
        %4138 = vmatpush1.msra.mxu0 %v4103
        %4139 = vmatprep.subr.mxu0 %v4107
        %4140 = vmatpush1.msra.mxu0 %v4106
        %4141 = vmatprep.subr.mxu0 0.0
        %4142 = vmatpush1.msra.mxu0 0.0
        %4143 = vmatprep.subr.mxu0 0.0
        %4144 = vmatpush1.msra.mxu0 0.0
        %4145 = vmatprep.subr.mxu0 0.0
        %4146 = vmatpush1.msra.mxu0 0.0
        %4147 = vmatprep.subr.mxu0 0.0
        %4148 = vmatpush1.msra.mxu0 0.0
        %4149 = vmatprep.subr.mxu0 0.0
        %4150 = vmatpush1.msra.mxu0 0.0
        %4151 = vmatprep.subr.mxu0 0.0
        %4152 = vmatpush1.msra.mxu0 0.0
        %4153 = vmatprep.subr.mxu0 0.0
        %4154 = vmatpush1.msra.mxu0 0.0
        %4155 = vmatprep.subr.mxu0 0.0
        %4156 = vmatpush1.msra.mxu0 0.0
        %4157 = vmatprep.subr.mxu0 0.0
        %4158 = vmatpush1.msra.mxu0 0.0
        %4159 = vmatprep.subr.mxu0 0.0
        %4160 = vmatpush1.msra.mxu0 0.0
        %4161 = vmatprep.subr.mxu0 0.0
        %4162 = vmatpush1.msra.mxu0 0.0
        %4163 = vmatprep.subr.mxu0 0.0
        %4164 = vmatpush1.msra.mxu0 0.0
        %4165 = vmatprep.subr.mxu0 0.0
        %4166 = vmatpush1.msra.mxu0 0.0
        %4167 = vmatprep.subr.mxu0 0.0
        %4168 = vmatpush1.msra.mxu0 0.0
        %4169 = vmatprep.subr.mxu0 0.0
        %4170 = vmatpush1.msra.mxu0 0.0
        %4171 = vmatprep.subr.mxu0 0.0
        %4172 = vmatpush1.msra.mxu0 0.0
        %4173 = vmatprep.mubr.f32.mxu0 0.0
        %4174 = vmatmul.mubr.f32.gmra.mrb[0].mxu0 %v4052
        %v4175 = vpop.f32.mrb[0].mxu0
        %v4176 = vadd.f32 0.0, %v4175
        %v4177 = vpop.f32.mrb[0].mxu0
        %v4178 = vadd.f32 0.0, %v4177
        %4179 = vmatprep.mubr.f32.mxu0 0.0
        %4180 = vmatmul.mubr.f32.gmra.mrb[0].mxu0 %v4053
        %v4181 = vpop.f32.mrb[0].mxu0
        %v4182 = vadd.f32 0.0, %v4181
        %v4183 = vpop.f32.mrb[0].mxu0
        %v4184 = vadd.f32 0.0, %v4183
        %4185 = vmatprep.mubr.f32.mxu0 0.0
        %4186 = vmatmul.mubr.f32.gmra.mrb[0].mxu0 %v4054
        %v4187 = vpop.f32.mrb[0].mxu0
        %v4188 = vadd.f32 0.0, %v4187
        %v4189 = vpop.f32.mrb[0].mxu0
        %v4190 = vadd.f32 0.0, %v4189
        %4191 = vmatprep.mubr.f32.mxu0 0.0
        %4192 = vmatmul.mubr.f32.gmra.mrb[0].mxu0 %v4055
        %v4193 = vpop.f32.mrb[0].mxu0
        %v4194 = vadd.f32 0.0, %v4193
        %v4195 = vpop.f32.mrb[0].mxu0
        %v4196 = vadd.f32 0.0, %v4195
        %4197 = vmatprep.mubr.f32.mxu0 0.0
        %4198 = vmatmul.mubr.f32.gmra.mrb[0].mxu0 %v4056
        %v4199 = vpop.f32.mrb[0].mxu0
        %v4200 = vadd.f32 0.0, %v4199
        %v4201 = vpop.f32.mrb[0].mxu0
        %v4202 = vadd.f32 0.0, %v4201
        %4203 = vmatprep.mubr.f32.mxu0 0.0
        %4204 = vmatmul.mubr.f32.gmra.mrb[0].mxu0 %v4057
        %v4205 = vpop.f32.mrb[0].mxu0
        %v4206 = vadd.f32 0.0, %v4205
        %v4207 = vpop.f32.mrb[0].mxu0
        %v4208 = vadd.f32 0.0, %v4207
        %4209 = vmatprep.mubr.f32.mxu0 0.0
        %4210 = vmatmul.mubr.f32.gmra.mrb[0].mxu0 %v4058
        %v4211 = vpop.f32.mrb[0].mxu0
        %v4212 = vadd.f32 0.0, %v4211
        %v4213 = vpop.f32.mrb[0].mxu0
        %v4214 = vadd.f32 0.0, %v4213
        %4215 = vmatprep.mubr.f32.mxu0 0.0
        %4216 = vmatmul.mubr.f32.gmra.mrb[0].mxu0 %v4059
        %v4217 = vpop.f32.mrb[0].mxu0
        %v4218 = vadd.f32 0.0, %v4217
        %v4219 = vpop.f32.mrb[0].mxu0
        %v4220 = vadd.f32 0.0, %v4219
        %4221 = vdwg.mxu0
        %4222 = vmatprep.subr.mxu0 0.0
        %4223 = vmatpush1.msra.mxu0 %v4063
        %4224 = vmatprep.subr.mxu0 0.0
        %4225 = vmatpush1.msra.mxu0 %v4066
        %4226 = vmatprep.subr.mxu0 0.0
        %4227 = vmatpush1.msra.mxu0 %v4069
        %4228 = vmatprep.subr.mxu0 0.0
        %4229 = vmatpush1.msra.mxu0 %v4072
        %4230 = vmatprep.subr.mxu0 0.0
        %4231 = vmatpush1.msra.mxu0 %v4075
        %4232 = vmatprep.subr.mxu0 0.0
        %4233 = vmatpush1.msra.mxu0 %v4078
        %4234 = vmatprep.subr.mxu0 0.0
        %4235 = vmatpush1.msra.mxu0 %v4081
        %4236 = vmatprep.subr.mxu0 0.0
        %4237 = vmatpush1.msra.mxu0 %v4084
        %4238 = vmatprep.subr.mxu0 0.0
        %4239 = vmatpush1.msra.mxu0 %v4087
        %4240 = vmatprep.subr.mxu0 0.0
        %4241 = vmatpush1.msra.mxu0 %v4090
        %4242 = vmatprep.subr.mxu0 0.0
        %4243 = vmatpush1.msra.mxu0 %v4093
        %4244 = vmatprep.subr.mxu0 0.0
        %4245 = vmatpush1.msra.mxu0 %v4096
        %4246 = vmatprep.subr.mxu0 0.0
        %4247 = vmatpush1.msra.mxu0 %v4099
        %4248 = vmatprep.subr.mxu0 0.0
        %4249 = vmatpush1.msra.mxu0 %v4102
        %4250 = vmatprep.subr.mxu0 0.0
        %4251 = vmatpush1.msra.mxu0 %v4105
        %4252 = vmatprep.subr.mxu0 0.0
        %4253 = vmatpush1.msra.mxu0 %v4108
        %4254 = vmatprep.subr.mxu0 0.0
        %4255 = vmatpush1.msra.mxu0 0.0
        %4256 = vmatprep.subr.mxu0 0.0
        %4257 = vmatpush1.msra.mxu0 0.0
        %4258 = vmatprep.subr.mxu0 0.0
        %4259 = vmatpush1.msra.mxu0 0.0
        %4260 = vmatprep.subr.mxu0 0.0
        %4261 = vmatpush1.msra.mxu0 0.0
        %4262 = vmatprep.subr.mxu0 0.0
        %4263 = vmatpush1.msra.mxu0 0.0
        %4264 = vmatprep.subr.mxu0 0.0
        %4265 = vmatpush1.msra.mxu0 0.0
        %4266 = vmatprep.subr.mxu0 0.0
        %4267 = vmatpush1.msra.mxu0 0.0
        %4268 = vmatprep.subr.mxu0 0.0
        %4269 = vmatpush1.msra.mxu0 0.0
        %4270 = vmatprep.subr.mxu0 0.0
        %4271 = vmatpush1.msra.mxu0 0.0
        %4272 = vmatprep.subr.mxu0 0.0
        %4273 = vmatpush1.msra.mxu0 0.0
        %4274 = vmatprep.subr.mxu0 0.0
        %4275 = vmatpush1.msra.mxu0 0.0
        %4276 = vmatprep.subr.mxu0 0.0
        %4277 = vmatpush1.msra.mxu0 0.0
        %4278 = vmatprep.subr.mxu0 0.0
        %4279 = vmatpush1.msra.mxu0 0.0
        %4280 = vmatprep.subr.mxu0 0.0
        %4281 = vmatpush1.msra.mxu0 0.0
        %4282 = vmatprep.subr.mxu0 0.0
        %4283 = vmatpush1.msra.mxu0 0.0
        %4284 = vmatprep.subr.mxu0 0.0
        %4285 = vmatpush1.msra.mxu0 0.0
        %4286 = vmatprep.mubr.f32.mxu0 0.0
        %4287 = vmatmul.mubr.f32.gmra.mrb[0].mxu0 %v4052
        %v4288 = vpop.f32.mrb[0].mxu0
        %v4289 = vadd.f32 0.0, %v4288
        %v4290 = vpop.f32.mrb[0].mxu0
        %4291 = vmatprep.mubr.f32.mxu0 0.0
        %4292 = vmatmul.mubr.f32.gmra.mrb[0].mxu0 %v4053
        %v4293 = vpop.f32.mrb[0].mxu0
        %v4294 = vadd.f32 0.0, %v4293
        %v4295 = vpop.f32.mrb[0].mxu0
        %4296 = vmatprep.mubr.f32.mxu0 0.0
        %4297 = vmatmul.mubr.f32.gmra.mrb[0].mxu0 %v4054
        %v4298 = vpop.f32.mrb[0].mxu0
        %v4299 = vadd.f32 0.0, %v4298
        %v4300 = vpop.f32.mrb[0].mxu0
        %4301 = vmatprep.mubr.f32.mxu0 0.0
        %4302 = vmatmul.mubr.f32.gmra.mrb[0].mxu0 %v4055
        %v4303 = vpop.f32.mrb[0].mxu0
        %v4304 = vadd.f32 0.0, %v4303
        %v4305 = vpop.f32.mrb[0].mxu0
        %4306 = vmatprep.mubr.f32.mxu0 0.0
        %4307 = vmatmul.mubr.f32.gmra.mrb[0].mxu0 %v4056
        %v4308 = vpop.f32.mrb[0].mxu0
        %v4309 = vadd.f32 0.0, %v4308
        %v4310 = vpop.f32.mrb[0].mxu0
        %4311 = vmatprep.mubr.f32.mxu0 0.0
        %4312 = vmatmul.mubr.f32.gmra.mrb[0].mxu0 %v4057
        %v4313 = vpop.f32.mrb[0].mxu0
        %v4314 = vadd.f32 0.0, %v4313
        %v4315 = vpop.f32.mrb[0].mxu0
        %4316 = vmatprep.mubr.f32.mxu0 0.0
        %4317 = vmatmul.mubr.f32.gmra.mrb[0].mxu0 %v4058
        %v4318 = vpop.f32.mrb[0].mxu0
        %v4319 = vadd.f32 0.0, %v4318
        %v4320 = vpop.f32.mrb[0].mxu0
        %4321 = vmatprep.mubr.f32.mxu0 0.0
        %4322 = vmatmul.mubr.f32.gmra.mrb[0].mxu0 %v4059
        %v4323 = vpop.f32.mrb[0].mxu0
        %v4324 = vadd.f32 0.0, %v4323
        %v4325 = vpop.f32.mrb[0].mxu0
        %4326 = vdwg.mxu0
        %v4328 = vsel %vm2416, %v4176, 0
        %v4331 = vsel %vm2416, %v4182, 0
        %v4334 = vsel %vm2416, %v4188, 0
        %v4337 = vsel %vm2416, %v4194, 0
        %v4340 = vsel %vm2416, %v4200, 0
        %v4343 = vsel %vm2416, %v4206, 0
        %v4346 = vsel %vm2416, %v4212, 0
        %v4349 = vsel %vm2416, %v4218, 0
        %v4352 = vsel %vm2416, %v4178, 0
        %v4355 = vsel %vm2416, %v4184, 0
        %v4358 = vsel %vm2416, %v4190, 0
        %v4361 = vsel %vm2416, %v4196, 0
        %v4364 = vsel %vm2416, %v4202, 0
        %v4367 = vsel %vm2416, %v4208, 0
        %v4370 = vsel %vm2416, %v4214, 0
        %v4373 = vsel %vm2416, %v4220, 0
        %4375 = vmatprep.subr.mxu0 0.0
        %4376 = vmatpush1.xpose.msra.mxu0 %v4352
        %4377 = vmatprep.subr.mxu0 0.0
        %4378 = vmatpush1.xpose.msra.mxu0 %v4355
        %4379 = vmatprep.subr.mxu0 0.0
        %4380 = vmatpush1.xpose.msra.mxu0 %v4358
        %4381 = vmatprep.subr.mxu0 0.0
        %4382 = vmatpush1.xpose.msra.mxu0 %v4361
        %4383 = vmatprep.subr.mxu0 0.0
        %4384 = vmatpush1.xpose.msra.mxu0 %v4364
        %4385 = vmatprep.subr.mxu0 0.0
        %4386 = vmatpush1.xpose.msra.mxu0 %v4367
        %4387 = vmatprep.subr.mxu0 0.0
        %4388 = vmatpush1.xpose.msra.mxu0 %v4370
        %4389 = vmatprep.subr.mxu0 0.0
        %4390 = vmatpush1.xpose.msra.mxu0 %v4373
        %4391 = vmatprep.subr.mxu0 0.0
        %4392 = vmatpush1.xpose.msra.mxu0 0.0
        %4393 = vmatprep.subr.mxu0 0.0
        %4394 = vmatpush1.xpose.msra.mxu0 0.0
        %4395 = vmatprep.subr.mxu0 0.0
        %4396 = vmatpush1.xpose.msra.mxu0 0.0
        %4397 = vmatprep.subr.mxu0 0.0
        %4398 = vmatpush1.xpose.msra.mxu0 0.0
        %4399 = vmatprep.subr.mxu0 0.0
        %4400 = vmatpush1.xpose.msra.mxu0 0.0
        %4401 = vmatprep.subr.mxu0 0.0
        %4402 = vmatpush1.xpose.msra.mxu0 0.0
        %4403 = vmatprep.subr.mxu0 0.0
        %4404 = vmatpush1.xpose.msra.mxu0 0.0
        %4405 = vmatprep.subr.mxu0 0.0
        %4406 = vmatpush1.xpose.msra.mxu0 0.0
        %4407 = vmatprep.subr.mxu0 0.0
        %4408 = vmatpush1.xpose.msra.mxu0 0.0
        %4409 = vmatprep.subr.mxu0 0.0
        %4410 = vmatpush1.xpose.msra.mxu0 0.0
        %4411 = vmatprep.subr.mxu0 0.0
        %4412 = vmatpush1.xpose.msra.mxu0 0.0
        %4413 = vmatprep.subr.mxu0 0.0
        %4414 = vmatpush1.xpose.msra.mxu0 0.0
        %4415 = vmatprep.subr.mxu0 0.0
        %4416 = vmatpush1.xpose.msra.mxu0 0.0
        %4417 = vmatprep.subr.mxu0 0.0
        %4418 = vmatpush1.xpose.msra.mxu0 0.0
        %4419 = vmatprep.subr.mxu0 0.0
        %4420 = vmatpush1.xpose.msra.mxu0 0.0
        %4421 = vmatprep.subr.mxu0 0.0
        %4422 = vmatpush1.xpose.msra.mxu0 0.0
        %4423 = vmatprep.subr.mxu0 0.0
        %4424 = vmatpush1.xpose.msra.mxu0 0.0
        %4425 = vmatprep.subr.mxu0 0.0
        %4426 = vmatpush1.xpose.msra.mxu0 0.0
        %4427 = vmatprep.subr.mxu0 0.0
        %4428 = vmatpush1.xpose.msra.mxu0 0.0
        %4429 = vmatprep.subr.mxu0 0.0
        %4430 = vmatpush1.xpose.msra.mxu0 0.0
        %4431 = vmatprep.subr.mxu0 0.0
        %4432 = vmatpush1.xpose.msra.mxu0 0.0
        %4433 = vmatprep.subr.mxu0 0.0
        %4434 = vmatpush1.xpose.msra.mxu0 0.0
        %4435 = vmatprep.subr.mxu0 0.0
        %4436 = vmatpush1.xpose.msra.mxu0 0.0
        %4437 = vmatprep.subr.mxu0 0.0
        %4438 = vmatpush1.xpose.msra.mxu0 0.0
        %4439 = vmatprep.mubr.f32.mxu0 0.0
        %4440 = vmatmul.mubr.f32.gmra.mrb[0].mxu0 %v4328
        %v4441 = vpop.f32.mrb[0].mxu0
        %v4442 = vadd.f32 0.0, %v4441
        %v4443 = vpop.f32.mrb[0].mxu0
        %4444 = vmatprep.mubr.f32.mxu0 0.0
        %4445 = vmatmul.mubr.f32.gmra.mrb[0].mxu0 %v4331
        %v4446 = vpop.f32.mrb[0].mxu0
        %v4447 = vadd.f32 0.0, %v4446
        %v4448 = vpop.f32.mrb[0].mxu0
        %4449 = vmatprep.mubr.f32.mxu0 0.0
        %4450 = vmatmul.mubr.f32.gmra.mrb[0].mxu0 %v4334
        %v4451 = vpop.f32.mrb[0].mxu0
        %v4452 = vadd.f32 0.0, %v4451
        %v4453 = vpop.f32.mrb[0].mxu0
        %4454 = vmatprep.mubr.f32.mxu0 0.0
        %4455 = vmatmul.mubr.f32.gmra.mrb[0].mxu0 %v4337
        %v4456 = vpop.f32.mrb[0].mxu0
        %v4457 = vadd.f32 0.0, %v4456
        %v4458 = vpop.f32.mrb[0].mxu0
        %4459 = vmatprep.mubr.f32.mxu0 0.0
        %4460 = vmatmul.mubr.f32.gmra.mrb[0].mxu0 %v4340
        %v4461 = vpop.f32.mrb[0].mxu0
        %v4462 = vadd.f32 0.0, %v4461
        %v4463 = vpop.f32.mrb[0].mxu0
        %4464 = vmatprep.mubr.f32.mxu0 0.0
        %4465 = vmatmul.mubr.f32.gmra.mrb[0].mxu0 %v4343
        %v4466 = vpop.f32.mrb[0].mxu0
        %v4467 = vadd.f32 0.0, %v4466
        %v4468 = vpop.f32.mrb[0].mxu0
        %4469 = vmatprep.mubr.f32.mxu0 0.0
        %4470 = vmatmul.mubr.f32.gmra.mrb[0].mxu0 %v4346
        %v4471 = vpop.f32.mrb[0].mxu0
        %v4472 = vadd.f32 0.0, %v4471
        %v4473 = vpop.f32.mrb[0].mxu0
        %4474 = vmatprep.mubr.f32.mxu0 0.0
        %4475 = vmatmul.mubr.f32.gmra.mrb[0].mxu0 %v4349
        %v4476 = vpop.f32.mrb[0].mxu0
        %v4477 = vadd.f32 0.0, %v4476
        %v4478 = vpop.f32.mrb[0].mxu0
        %4479 = vdwg.mxu0
        %v4480 = vmul.f32 %v4442, 0.125
        %v4481 = vmul.f32 %v4447, 0.125
        %v4482 = vmul.f32 %v4452, 0.125
        %v4483 = vmul.f32 %v4457, 0.125
        %v4484 = vmul.f32 %v4462, 0.125
        %v4485 = vmul.f32 %v4467, 0.125
        %v4486 = vmul.f32 %v4472, 0.125
        %v4487 = vmul.f32 %v4477, 0.125
        %v4488 = vsel %vm2416, %v4480, -inf
        %4489 = vmax.xlane.f32.xlu0 %v4488
        %v4490 = vpop.xlane.xlu0 %4489
        %v4491 = vsel %vm2416, %v4481, -inf
        %4492 = vmax.xlane.f32.xlu0 %v4491
        %v4493 = vpop.xlane.xlu0 %4492
        %v4494 = vsel %vm2416, %v4482, -inf
        %4495 = vmax.xlane.f32.xlu0 %v4494
        %v4496 = vpop.xlane.xlu0 %4495
        %v4497 = vsel %vm2416, %v4483, -inf
        %4498 = vmax.xlane.f32.xlu0 %v4497
        %v4499 = vpop.xlane.xlu0 %4498
        %v4500 = vsel %vm2416, %v4484, -inf
        %4501 = vmax.xlane.f32.xlu0 %v4500
        %v4502 = vpop.xlane.xlu0 %4501
        %v4503 = vsel %vm2416, %v4485, -inf
        %4504 = vmax.xlane.f32.xlu0 %v4503
        %v4505 = vpop.xlane.xlu0 %4504
        %v4506 = vsel %vm2416, %v4486, -inf
        %4507 = vmax.xlane.f32.xlu0 %v4506
        %v4508 = vpop.xlane.xlu0 %4507
        %v4509 = vsel %vm2416, %v4487, -inf
        %4510 = vmax.xlane.f32.xlu0 %v4509
        %v4511 = vpop.xlane.xlu0 %4510
        %v4512 = vsub.f32 %v4480, %v4490
        %v4513 = vsub.f32 %v4481, %v4493
        %v4514 = vsub.f32 %v4482, %v4496
        %v4515 = vsub.f32 %v4483, %v4499
        %v4516 = vsub.f32 %v4484, %v4502
        %v4517 = vsub.f32 %v4485, %v4505
        %v4518 = vsub.f32 %v4486, %v4508
        %v4519 = vsub.f32 %v4487, %v4511
        %v4520 = vmul.f32 %v4512, 1.442695
        %v4521 = vpow.pop %v4520
        %v4522 = vmul.f32 %v4513, 1.442695
        %v4523 = vpow.pop %v4522
        %v4524 = vmul.f32 %v4514, 1.442695
        %v4525 = vpow.pop %v4524
        %v4526 = vmul.f32 %v4515, 1.442695
        %v4527 = vpow.pop %v4526
        %v4528 = vmul.f32 %v4516, 1.442695
        %v4529 = vpow.pop %v4528
        %v4530 = vmul.f32 %v4517, 1.442695
        %v4531 = vpow.pop %v4530
        %v4532 = vmul.f32 %v4518, 1.442695
        %v4533 = vpow.pop %v4532
        %v4534 = vmul.f32 %v4519, 1.442695
        %v4535 = vpow.pop %v4534
        %v4536 = vsel %vm2416, %v4521, 0.0
        %4537 = vadd.xlane.f32.xlu0 %v4536
        %v4538 = vpop.xlane.xlu0 %4537
        %v4539 = vsel %vm2416, %v4523, 0.0
        %4540 = vadd.xlane.f32.xlu0 %v4539
        %v4541 = vpop.xlane.xlu0 %4540
        %v4542 = vsel %vm2416, %v4525, 0.0
        %4543 = vadd.xlane.f32.xlu0 %v4542
        %v4544 = vpop.xlane.xlu0 %4543
        %v4545 = vsel %vm2416, %v4527, 0.0
        %4546 = vadd.xlane.f32.xlu0 %v4545
        %v4547 = vpop.xlane.xlu0 %4546
        %v4548 = vsel %vm2416, %v4529, 0.0
        %4549 = vadd.xlane.f32.xlu0 %v4548
        %v4550 = vpop.xlane.xlu0 %4549
        %v4551 = vsel %vm2416, %v4531, 0.0
        %4552 = vadd.xlane.f32.xlu0 %v4551
        %v4553 = vpop.xlane.xlu0 %4552
        %v4554 = vsel %vm2416, %v4533, 0.0
        %4555 = vadd.xlane.f32.xlu0 %v4554
        %v4556 = vpop.xlane.xlu0 %4555
        %v4557 = vsel %vm2416, %v4535, 0.0
        %4558 = vadd.xlane.f32.xlu0 %v4557
        %v4559 = vpop.xlane.xlu0 %4558
        %v4560 = vrcp.pop %v4538
        %v4561 = vrcp.pop %v4541
        %v4562 = vrcp.pop %v4544
        %v4563 = vrcp.pop %v4547
        %v4564 = vrcp.pop %v4550
        %v4565 = vrcp.pop %v4553
        %v4566 = vrcp.pop %v4556
        %v4567 = vrcp.pop %v4559
        %v4568 = vmul.f32 %v4521, %v4560
        %v4569 = vmul.f32 %v4523, %v4561
        %v4570 = vmul.f32 %v4525, %v4562
        %v4571 = vmul.f32 %v4527, %v4563
        %v4572 = vmul.f32 %v4529, %v4564
        %v4573 = vmul.f32 %v4531, %v4565
        %v4574 = vmul.f32 %v4533, %v4566
        %v4575 = vmul.f32 %v4535, %v4567
        %v4577 = vsel %vm2416, %v4568, 0
        %v4580 = vsel %vm2416, %v4569, 0
        %v4583 = vsel %vm2416, %v4570, 0
        %v4586 = vsel %vm2416, %v4571, 0
        %v4589 = vsel %vm2416, %v4572, 0
        %v4592 = vsel %vm2416, %v4573, 0
        %v4595 = vsel %vm2416, %v4574, 0
        %v4598 = vsel %vm2416, %v4575, 0
        %4600 = vmatprep.subr.mxu0 0.0
        %4601 = vmatpush1.msra.mxu0 %v4289
        %4602 = vmatprep.subr.mxu0 0.0
        %4603 = vmatpush1.msra.mxu0 %v4294
        %4604 = vmatprep.subr.mxu0 0.0
        %4605 = vmatpush1.msra.mxu0 %v4299
        %4606 = vmatprep.subr.mxu0 0.0
        %4607 = vmatpush1.msra.mxu0 %v4304
        %4608 = vmatprep.subr.mxu0 0.0
        %4609 = vmatpush1.msra.mxu0 %v4309
        %4610 = vmatprep.subr.mxu0 0.0
        %4611 = vmatpush1.msra.mxu0 %v4314
        %4612 = vmatprep.subr.mxu0 0.0
        %4613 = vmatpush1.msra.mxu0 %v4319
        %4614 = vmatprep.subr.mxu0 0.0
        %4615 = vmatpush1.msra.mxu0 %v4324
        %4616 = vmatprep.subr.mxu0 0.0
        %4617 = vmatpush1.msra.mxu0 0.0
        %4618 = vmatprep.subr.mxu0 0.0
        %4619 = vmatpush1.msra.mxu0 0.0
        %4620 = vmatprep.subr.mxu0 0.0
        %4621 = vmatpush1.msra.mxu0 0.0
        %4622 = vmatprep.subr.mxu0 0.0
        %4623 = vmatpush1.msra.mxu0 0.0
        %4624 = vmatprep.subr.mxu0 0.0
        %4625 = vmatpush1.msra.mxu0 0.0
        %4626 = vmatprep.subr.mxu0 0.0
        %4627 = vmatpush1.msra.mxu0 0.0
        %4628 = vmatprep.subr.mxu0 0.0
        %4629 = vmatpush1.msra.mxu0 0.0
        %4630 = vmatprep.subr.mxu0 0.0
        %4631 = vmatpush1.msra.mxu0 0.0
        %4632 = vmatprep.subr.mxu0 0.0
        %4633 = vmatpush1.msra.mxu0 0.0
        %4634 = vmatprep.subr.mxu0 0.0
        %4635 = vmatpush1.msra.mxu0 0.0
        %4636 = vmatprep.subr.mxu0 0.0
        %4637 = vmatpush1.msra.mxu0 0.0
        %4638 = vmatprep.subr.mxu0 0.0
        %4639 = vmatpush1.msra.mxu0 0.0
        %4640 = vmatprep.subr.mxu0 0.0
        %4641 = vmatpush1.msra.mxu0 0.0
        %4642 = vmatprep.subr.mxu0 0.0
        %4643 = vmatpush1.msra.mxu0 0.0
        %4644 = vmatprep.subr.mxu0 0.0
        %4645 = vmatpush1.msra.mxu0 0.0
        %4646 = vmatprep.subr.mxu0 0.0
        %4647 = vmatpush1.msra.mxu0 0.0
        %4648 = vmatprep.subr.mxu0 0.0
        %4649 = vmatpush1.msra.mxu0 0.0
        %4650 = vmatprep.subr.mxu0 0.0
        %4651 = vmatpush1.msra.mxu0 0.0
        %4652 = vmatprep.subr.mxu0 0.0
        %4653 = vmatpush1.msra.mxu0 0.0
        %4654 = vmatprep.subr.mxu0 0.0
        %4655 = vmatpush1.msra.mxu0 0.0
        %4656 = vmatprep.subr.mxu0 0.0
        %4657 = vmatpush1.msra.mxu0 0.0
        %4658 = vmatprep.subr.mxu0 0.0
        %4659 = vmatpush1.msra.mxu0 0.0
        %4660 = vmatprep.subr.mxu0 0.0
        %4661 = vmatpush1.msra.mxu0 0.0
        %4662 = vmatprep.subr.mxu0 0.0
        %4663 = vmatpush1.msra.mxu0 0.0
        %4664 = vmatprep.mubr.f32.mxu0 0.0
        %4665 = vmatmul.mubr.f32.gmra.mrb[0].mxu0 %v4577
        %v4666 = vpop.f32.mrb[0].mxu0
        %v4667 = vadd.f32 0.0, %v4666
        %v4668 = vpop.f32.mrb[0].mxu0
        %4669 = vmatprep.mubr.f32.mxu0 0.0
        %4670 = vmatmul.mubr.f32.gmra.mrb[0].mxu0 %v4580
        %v4671 = vpop.f32.mrb[0].mxu0
        %v4672 = vadd.f32 0.0, %v4671
        %v4673 = vpop.f32.mrb[0].mxu0
        %4674 = vmatprep.mubr.f32.mxu0 0.0
        %4675 = vmatmul.mubr.f32.gmra.mrb[0].mxu0 %v4583
        %v4676 = vpop.f32.mrb[0].mxu0
        %v4677 = vadd.f32 0.0, %v4676
        %v4678 = vpop.f32.mrb[0].mxu0
        %4679 = vmatprep.mubr.f32.mxu0 0.0
        %4680 = vmatmul.mubr.f32.gmra.mrb[0].mxu0 %v4586
        %v4681 = vpop.f32.mrb[0].mxu0
        %v4682 = vadd.f32 0.0, %v4681
        %v4683 = vpop.f32.mrb[0].mxu0
        %4684 = vmatprep.mubr.f32.mxu0 0.0
        %4685 = vmatmul.mubr.f32.gmra.mrb[0].mxu0 %v4589
        %v4686 = vpop.f32.mrb[0].mxu0
        %v4687 = vadd.f32 0.0, %v4686
        %v4688 = vpop.f32.mrb[0].mxu0
        %4689 = vmatprep.mubr.f32.mxu0 0.0
        %4690 = vmatmul.mubr.f32.gmra.mrb[0].mxu0 %v4592
        %v4691 = vpop.f32.mrb[0].mxu0
        %v4692 = vadd.f32 0.0, %v4691
        %v4693 = vpop.f32.mrb[0].mxu0
        %4694 = vmatprep.mubr.f32.mxu0 0.0
        %4695 = vmatmul.mubr.f32.gmra.mrb[0].mxu0 %v4595
        %v4696 = vpop.f32.mrb[0].mxu0
        %v4697 = vadd.f32 0.0, %v4696
        %v4698 = vpop.f32.mrb[0].mxu0
        %4699 = vmatprep.mubr.f32.mxu0 0.0
        %4700 = vmatmul.mubr.f32.gmra.mrb[0].mxu0 %v4598
        %v4701 = vpop.f32.mrb[0].mxu0
        %v4702 = vadd.f32 0.0, %v4701
        %v4703 = vpop.f32.mrb[0].mxu0
        %4704 = vdwg.mxu0
        %s4705 = scalar_lea.vmem %s6, 128
        %v4706 = vld [vmem:[%s4705] sm:$0xff]
        %v4707 = vld [vmem:[%s4705 + $0x8] sm:$0xff]
        %v4708 = vld [vmem:[%s4705 + $0x10] sm:$0xff]
        %v4709 = vld [vmem:[%s4705 + $0x18] sm:$0xff]
        %v4710 = vld [vmem:[%s4705 + $0x20] sm:$0xff]
        %v4711 = vld [vmem:[%s4705 + $0x28] sm:$0xff]
        %v4712 = vld [vmem:[%s4705 + $0x30] sm:$0xff]
        %v4713 = vld [vmem:[%s4705 + $0x38] sm:$0xff]
        %4714 = vrot.lane.b32.xlu0 %v4176, 64
        %v4715 = vpop.permute.xlu0 %4714
        %4716 = vrot.lane.b32.xlu0 %v4182, 64
        %v4717 = vpop.permute.xlu0 %4716
        %4718 = vrot.lane.b32.xlu0 %v4188, 64
        %v4719 = vpop.permute.xlu0 %4718
        %4720 = vrot.lane.b32.xlu0 %v4194, 64
        %v4721 = vpop.permute.xlu0 %4720
        %4722 = vrot.lane.b32.xlu0 %v4200, 64
        %v4723 = vpop.permute.xlu0 %4722
        %4724 = vrot.lane.b32.xlu0 %v4206, 64
        %v4725 = vpop.permute.xlu0 %4724
        %4726 = vrot.lane.b32.xlu0 %v4212, 64
        %v4727 = vpop.permute.xlu0 %4726
        %4728 = vrot.lane.b32.xlu0 %v4218, 64
        %v4729 = vpop.permute.xlu0 %4728
        %4730 = vrot.lane.b32.xlu0 %v4178, 64
        %v4731 = vpop.permute.xlu0 %4730
        %4732 = vrot.lane.b32.xlu0 %v4184, 64
        %v4733 = vpop.permute.xlu0 %4732
        %4734 = vrot.lane.b32.xlu0 %v4190, 64
        %v4735 = vpop.permute.xlu0 %4734
        %4736 = vrot.lane.b32.xlu0 %v4196, 64
        %v4737 = vpop.permute.xlu0 %4736
        %4738 = vrot.lane.b32.xlu0 %v4202, 64
        %v4739 = vpop.permute.xlu0 %4738
        %4740 = vrot.lane.b32.xlu0 %v4208, 64
        %v4741 = vpop.permute.xlu0 %4740
        %4742 = vrot.lane.b32.xlu0 %v4214, 64
        %v4743 = vpop.permute.xlu0 %4742
        %4744 = vrot.lane.b32.xlu0 %v4220, 64
        %v4745 = vpop.permute.xlu0 %4744
        %v4746 = vsel %vm2416, %v4715, 0
        %v4748 = vsel %vm2416, %v4717, 0
        %v4750 = vsel %vm2416, %v4719, 0
        %v4752 = vsel %vm2416, %v4721, 0
        %v4754 = vsel %vm2416, %v4723, 0
        %v4756 = vsel %vm2416, %v4725, 0
        %v4758 = vsel %vm2416, %v4727, 0
        %v4760 = vsel %vm2416, %v4729, 0
        %v4762 = vsel %vm2416, %v4731, 0
        %v4764 = vsel %vm2416, %v4733, 0
        %v4766 = vsel %vm2416, %v4735, 0
        %v4768 = vsel %vm2416, %v4737, 0
        %v4770 = vsel %vm2416, %v4739, 0
        %v4772 = vsel %vm2416, %v4741, 0
        %v4774 = vsel %vm2416, %v4743, 0
        %v4776 = vsel %vm2416, %v4745, 0
        %4778 = vmatprep.subr.mxu0 0.0
        %4779 = vmatpush1.xpose.msra.mxu0 %v4762
        %4780 = vmatprep.subr.mxu0 0.0
        %4781 = vmatpush1.xpose.msra.mxu0 %v4764
        %4782 = vmatprep.subr.mxu0 0.0
        %4783 = vmatpush1.xpose.msra.mxu0 %v4766
        %4784 = vmatprep.subr.mxu0 0.0
        %4785 = vmatpush1.xpose.msra.mxu0 %v4768
        %4786 = vmatprep.subr.mxu0 0.0
        %4787 = vmatpush1.xpose.msra.mxu0 %v4770
        %4788 = vmatprep.subr.mxu0 0.0
        %4789 = vmatpush1.xpose.msra.mxu0 %v4772
        %4790 = vmatprep.subr.mxu0 0.0
        %4791 = vmatpush1.xpose.msra.mxu0 %v4774
        %4792 = vmatprep.subr.mxu0 0.0
        %4793 = vmatpush1.xpose.msra.mxu0 %v4776
        %4794 = vmatprep.subr.mxu0 0.0
        %4795 = vmatpush1.xpose.msra.mxu0 0.0
        %4796 = vmatprep.subr.mxu0 0.0
        %4797 = vmatpush1.xpose.msra.mxu0 0.0
        %4798 = vmatprep.subr.mxu0 0.0
        %4799 = vmatpush1.xpose.msra.mxu0 0.0
        %4800 = vmatprep.subr.mxu0 0.0
        %4801 = vmatpush1.xpose.msra.mxu0 0.0
        %4802 = vmatprep.subr.mxu0 0.0
        %4803 = vmatpush1.xpose.msra.mxu0 0.0
        %4804 = vmatprep.subr.mxu0 0.0
        %4805 = vmatpush1.xpose.msra.mxu0 0.0
        %4806 = vmatprep.subr.mxu0 0.0
        %4807 = vmatpush1.xpose.msra.mxu0 0.0
        %4808 = vmatprep.subr.mxu0 0.0
        %4809 = vmatpush1.xpose.msra.mxu0 0.0
        %4810 = vmatprep.subr.mxu0 0.0
        %4811 = vmatpush1.xpose.msra.mxu0 0.0
        %4812 = vmatprep.subr.mxu0 0.0
        %4813 = vmatpush1.xpose.msra.mxu0 0.0
        %4814 = vmatprep.subr.mxu0 0.0
        %4815 = vmatpush1.xpose.msra.mxu0 0.0
        %4816 = vmatprep.subr.mxu0 0.0
        %4817 = vmatpush1.xpose.msra.mxu0 0.0
        %4818 = vmatprep.subr.mxu0 0.0
        %4819 = vmatpush1.xpose.msra.mxu0 0.0
        %4820 = vmatprep.subr.mxu0 0.0
        %4821 = vmatpush1.xpose.msra.mxu0 0.0
        %4822 = vmatprep.subr.mxu0 0.0
        %4823 = vmatpush1.xpose.msra.mxu0 0.0
        %4824 = vmatprep.subr.mxu0 0.0
        %4825 = vmatpush1.xpose.msra.mxu0 0.0
        %4826 = vmatprep.subr.mxu0 0.0
        %4827 = vmatpush1.xpose.msra.mxu0 0.0
        %4828 = vmatprep.subr.mxu0 0.0
        %4829 = vmatpush1.xpose.msra.mxu0 0.0
        %4830 = vmatprep.subr.mxu0 0.0
        %4831 = vmatpush1.xpose.msra.mxu0 0.0
        %4832 = vmatprep.subr.mxu0 0.0
        %4833 = vmatpush1.xpose.msra.mxu0 0.0
        %4834 = vmatprep.subr.mxu0 0.0
        %4835 = vmatpush1.xpose.msra.mxu0 0.0
        %4836 = vmatprep.subr.mxu0 0.0
        %4837 = vmatpush1.xpose.msra.mxu0 0.0
        %4838 = vmatprep.subr.mxu0 0.0
        %4839 = vmatpush1.xpose.msra.mxu0 0.0
        %4840 = vmatprep.subr.mxu0 0.0
        %4841 = vmatpush1.xpose.msra.mxu0 0.0
        %4842 = vmatprep.mubr.f32.mxu0 0.0
        %4843 = vmatmul.mubr.f32.gmra.mrb[0].mxu0 %v4746
        %v4844 = vpop.f32.mrb[0].mxu0
        %v4845 = vadd.f32 0.0, %v4844
        %v4846 = vpop.f32.mrb[0].mxu0
        %4847 = vmatprep.mubr.f32.mxu0 0.0
        %4848 = vmatmul.mubr.f32.gmra.mrb[0].mxu0 %v4748
        %v4849 = vpop.f32.mrb[0].mxu0
        %v4850 = vadd.f32 0.0, %v4849
        %v4851 = vpop.f32.mrb[0].mxu0
        %4852 = vmatprep.mubr.f32.mxu0 0.0
        %4853 = vmatmul.mubr.f32.gmra.mrb[0].mxu0 %v4750
        %v4854 = vpop.f32.mrb[0].mxu0
        %v4855 = vadd.f32 0.0, %v4854
        %v4856 = vpop.f32.mrb[0].mxu0
        %4857 = vmatprep.mubr.f32.mxu0 0.0
        %4858 = vmatmul.mubr.f32.gmra.mrb[0].mxu0 %v4752
        %v4859 = vpop.f32.mrb[0].mxu0
        %v4860 = vadd.f32 0.0, %v4859
        %v4861 = vpop.f32.mrb[0].mxu0
        %4862 = vmatprep.mubr.f32.mxu0 0.0
        %4863 = vmatmul.mubr.f32.gmra.mrb[0].mxu0 %v4754
        %v4864 = vpop.f32.mrb[0].mxu0
        %v4865 = vadd.f32 0.0, %v4864
        %v4866 = vpop.f32.mrb[0].mxu0
        %4867 = vmatprep.mubr.f32.mxu0 0.0
        %4868 = vmatmul.mubr.f32.gmra.mrb[0].mxu0 %v4756
        %v4869 = vpop.f32.mrb[0].mxu0
        %v4870 = vadd.f32 0.0, %v4869
        %v4871 = vpop.f32.mrb[0].mxu0
        %4872 = vmatprep.mubr.f32.mxu0 0.0
        %4873 = vmatmul.mubr.f32.gmra.mrb[0].mxu0 %v4758
        %v4874 = vpop.f32.mrb[0].mxu0
        %v4875 = vadd.f32 0.0, %v4874
        %v4876 = vpop.f32.mrb[0].mxu0
        %4877 = vmatprep.mubr.f32.mxu0 0.0
        %4878 = vmatmul.mubr.f32.gmra.mrb[0].mxu0 %v4760
        %v4879 = vpop.f32.mrb[0].mxu0
        %v4880 = vadd.f32 0.0, %v4879
        %v4881 = vpop.f32.mrb[0].mxu0
        %4882 = vdwg.mxu0
        %v4883 = vmul.f32 %v4845, 0.125
        %v4884 = vmul.f32 %v4850, 0.125
        %v4885 = vmul.f32 %v4855, 0.125
        %v4886 = vmul.f32 %v4860, 0.125
        %v4887 = vmul.f32 %v4865, 0.125
        %v4888 = vmul.f32 %v4870, 0.125
        %v4889 = vmul.f32 %v4875, 0.125
        %v4890 = vmul.f32 %v4880, 0.125
        %v4891 = vsel %vm2416, %v4883, -inf
        %4892 = vmax.xlane.f32.xlu0 %v4891
        %v4893 = vpop.xlane.xlu0 %4892
        %v4894 = vsel %vm2416, %v4884, -inf
        %4895 = vmax.xlane.f32.xlu0 %v4894
        %v4896 = vpop.xlane.xlu0 %4895
        %v4897 = vsel %vm2416, %v4885, -inf
        %4898 = vmax.xlane.f32.xlu0 %v4897
        %v4899 = vpop.xlane.xlu0 %4898
        %v4900 = vsel %vm2416, %v4886, -inf
        %4901 = vmax.xlane.f32.xlu0 %v4900
        %v4902 = vpop.xlane.xlu0 %4901
        %v4903 = vsel %vm2416, %v4887, -inf
        %4904 = vmax.xlane.f32.xlu0 %v4903
        %v4905 = vpop.xlane.xlu0 %4904
        %v4906 = vsel %vm2416, %v4888, -inf
        %4907 = vmax.xlane.f32.xlu0 %v4906
        %v4908 = vpop.xlane.xlu0 %4907
        %v4909 = vsel %vm2416, %v4889, -inf
        %4910 = vmax.xlane.f32.xlu0 %v4909
        %v4911 = vpop.xlane.xlu0 %4910
        %v4912 = vsel %vm2416, %v4890, -inf
        %4913 = vmax.xlane.f32.xlu0 %v4912
        %v4914 = vpop.xlane.xlu0 %4913
        %v4915 = vsub.f32 %v4883, %v4893
        %v4916 = vsub.f32 %v4884, %v4896
        %v4917 = vsub.f32 %v4885, %v4899
        %v4918 = vsub.f32 %v4886, %v4902
        %v4919 = vsub.f32 %v4887, %v4905
        %v4920 = vsub.f32 %v4888, %v4908
        %v4921 = vsub.f32 %v4889, %v4911
        %v4922 = vsub.f32 %v4890, %v4914
        %v4923 = vmul.f32 %v4915, 1.442695
        %v4924 = vpow.pop %v4923
        %v4925 = vmul.f32 %v4916, 1.442695
        %v4926 = vpow.pop %v4925
        %v4927 = vmul.f32 %v4917, 1.442695
        %v4928 = vpow.pop %v4927
        %v4929 = vmul.f32 %v4918, 1.442695
        %v4930 = vpow.pop %v4929
        %v4931 = vmul.f32 %v4919, 1.442695
        %v4932 = vpow.pop %v4931
        %v4933 = vmul.f32 %v4920, 1.442695
        %v4934 = vpow.pop %v4933
        %v4935 = vmul.f32 %v4921, 1.442695
        %v4936 = vpow.pop %v4935
        %v4937 = vmul.f32 %v4922, 1.442695
        %v4938 = vpow.pop %v4937
        %v4939 = vsel %vm2416, %v4924, 0.0
        %4940 = vadd.xlane.f32.xlu0 %v4939
        %v4941 = vpop.xlane.xlu0 %4940
        %v4942 = vsel %vm2416, %v4926, 0.0
        %4943 = vadd.xlane.f32.xlu0 %v4942
        %v4944 = vpop.xlane.xlu0 %4943
        %v4945 = vsel %vm2416, %v4928, 0.0
        %4946 = vadd.xlane.f32.xlu0 %v4945
        %v4947 = vpop.xlane.xlu0 %4946
        %v4948 = vsel %vm2416, %v4930, 0.0
        %4949 = vadd.xlane.f32.xlu0 %v4948
        %v4950 = vpop.xlane.xlu0 %4949
        %v4951 = vsel %vm2416, %v4932, 0.0
        %4952 = vadd.xlane.f32.xlu0 %v4951
        %v4953 = vpop.xlane.xlu0 %4952
        %v4954 = vsel %vm2416, %v4934, 0.0
        %4955 = vadd.xlane.f32.xlu0 %v4954
        %v4956 = vpop.xlane.xlu0 %4955
        %v4957 = vsel %vm2416, %v4936, 0.0
        %4958 = vadd.xlane.f32.xlu0 %v4957
        %v4959 = vpop.xlane.xlu0 %4958
        %v4960 = vsel %vm2416, %v4938, 0.0
        %4961 = vadd.xlane.f32.xlu0 %v4960
        %v4962 = vpop.xlane.xlu0 %4961
        %v4963 = vrcp.pop %v4941
        %v4964 = vrcp.pop %v4944
        %v4965 = vrcp.pop %v4947
        %v4966 = vrcp.pop %v4950
        %v4967 = vrcp.pop %v4953
        %v4968 = vrcp.pop %v4956
        %v4969 = vrcp.pop %v4959
        %v4970 = vrcp.pop %v4962
        %v4971 = vmul.f32 %v4924, %v4963
        %v4972 = vmul.f32 %v4926, %v4964
        %v4973 = vmul.f32 %v4928, %v4965
        %v4974 = vmul.f32 %v4930, %v4966
        %v4975 = vmul.f32 %v4932, %v4967
        %v4976 = vmul.f32 %v4934, %v4968
        %v4977 = vmul.f32 %v4936, %v4969
        %v4978 = vmul.f32 %v4938, %v4970
        %4987 = vrot.lane.b32.xlu0 %v4289, 64
        %v4988 = vpop.permute.xlu0 %4987
        %4989 = vrot.lane.b32.xlu0 %v4294, 64
        %v4990 = vpop.permute.xlu0 %4989
        %4991 = vrot.lane.b32.xlu0 %v4299, 64
        %v4992 = vpop.permute.xlu0 %4991
        %4993 = vrot.lane.b32.xlu0 %v4304, 64
        %v4994 = vpop.permute.xlu0 %4993
        %4995 = vrot.lane.b32.xlu0 %v4309, 64
        %v4996 = vpop.permute.xlu0 %4995
        %4997 = vrot.lane.b32.xlu0 %v4314, 64
        %v4998 = vpop.permute.xlu0 %4997
        %4999 = vrot.lane.b32.xlu0 %v4319, 64
        %v5000 = vpop.permute.xlu0 %4999
        %5001 = vrot.lane.b32.xlu0 %v4324, 64
        %v5002 = vpop.permute.xlu0 %5001
        %v5012 = vsel %vm2416, %v4971, 0
        %v5015 = vsel %vm2416, %v4972, 0
        %v5018 = vsel %vm2416, %v4973, 0
        %v5021 = vsel %vm2416, %v4974, 0
        %v5024 = vsel %vm2416, %v4975, 0
        %v5027 = vsel %vm2416, %v4976, 0
        %v5030 = vsel %vm2416, %v4977, 0
        %v5033 = vsel %vm2416, %v4978, 0
        %5035 = vmatprep.subr.mxu0 0.0
        %5036 = vmatpush1.msra.mxu0 %v4988
        %5037 = vmatprep.subr.mxu0 0.0
        %5038 = vmatpush1.msra.mxu0 %v4990
        %5039 = vmatprep.subr.mxu0 0.0
        %5040 = vmatpush1.msra.mxu0 %v4992
        %5041 = vmatprep.subr.mxu0 0.0
        %5042 = vmatpush1.msra.mxu0 %v4994
        %5043 = vmatprep.subr.mxu0 0.0
        %5044 = vmatpush1.msra.mxu0 %v4996
        %5045 = vmatprep.subr.mxu0 0.0
        %5046 = vmatpush1.msra.mxu0 %v4998
        %5047 = vmatprep.subr.mxu0 0.0
        %5048 = vmatpush1.msra.mxu0 %v5000
        %5049 = vmatprep.subr.mxu0 0.0
        %5050 = vmatpush1.msra.mxu0 %v5002
        %5051 = vmatprep.subr.mxu0 0.0
        %5052 = vmatpush1.msra.mxu0 0.0
        %5053 = vmatprep.subr.mxu0 0.0
        %5054 = vmatpush1.msra.mxu0 0.0
        %5055 = vmatprep.subr.mxu0 0.0
        %5056 = vmatpush1.msra.mxu0 0.0
        %5057 = vmatprep.subr.mxu0 0.0
        %5058 = vmatpush1.msra.mxu0 0.0
        %5059 = vmatprep.subr.mxu0 0.0
        %5060 = vmatpush1.msra.mxu0 0.0
        %5061 = vmatprep.subr.mxu0 0.0
        %5062 = vmatpush1.msra.mxu0 0.0
        %5063 = vmatprep.subr.mxu0 0.0
        %5064 = vmatpush1.msra.mxu0 0.0
        %5065 = vmatprep.subr.mxu0 0.0
        %5066 = vmatpush1.msra.mxu0 0.0
        %5067 = vmatprep.subr.mxu0 0.0
        %5068 = vmatpush1.msra.mxu0 0.0
        %5069 = vmatprep.subr.mxu0 0.0
        %5070 = vmatpush1.msra.mxu0 0.0
        %5071 = vmatprep.subr.mxu0 0.0
        %5072 = vmatpush1.msra.mxu0 0.0
        %5073 = vmatprep.subr.mxu0 0.0
        %5074 = vmatpush1.msra.mxu0 0.0
        %5075 = vmatprep.subr.mxu0 0.0
        %5076 = vmatpush1.msra.mxu0 0.0
        %5077 = vmatprep.subr.mxu0 0.0
        %5078 = vmatpush1.msra.mxu0 0.0
        %5079 = vmatprep.subr.mxu0 0.0
        %5080 = vmatpush1.msra.mxu0 0.0
        %5081 = vmatprep.subr.mxu0 0.0
        %5082 = vmatpush1.msra.mxu0 0.0
        %5083 = vmatprep.subr.mxu0 0.0
        %5084 = vmatpush1.msra.mxu0 0.0
        %5085 = vmatprep.subr.mxu0 0.0
        %5086 = vmatpush1.msra.mxu0 0.0
        %5087 = vmatprep.subr.mxu0 0.0
        %5088 = vmatpush1.msra.mxu0 0.0
        %5089 = vmatprep.subr.mxu0 0.0
        %5090 = vmatpush1.msra.mxu0 0.0
        %5091 = vmatprep.subr.mxu0 0.0
        %5092 = vmatpush1.msra.mxu0 0.0
        %5093 = vmatprep.subr.mxu0 0.0
        %5094 = vmatpush1.msra.mxu0 0.0
        %5095 = vmatprep.subr.mxu0 0.0
        %5096 = vmatpush1.msra.mxu0 0.0
        %5097 = vmatprep.subr.mxu0 0.0
        %5098 = vmatpush1.msra.mxu0 0.0
        %5099 = vmatprep.mubr.f32.mxu0 0.0
        %5100 = vmatmul.mubr.f32.gmra.mrb[0].mxu0 %v5012
        %v5101 = vpop.f32.mrb[0].mxu0
        %v5102 = vadd.f32 0.0, %v5101
        %v5103 = vpop.f32.mrb[0].mxu0
        %5104 = vmatprep.mubr.f32.mxu0 0.0
        %5105 = vmatmul.mubr.f32.gmra.mrb[0].mxu0 %v5015
        %v5106 = vpop.f32.mrb[0].mxu0
        %v5107 = vadd.f32 0.0, %v5106
        %v5108 = vpop.f32.mrb[0].mxu0
        %5109 = vmatprep.mubr.f32.mxu0 0.0
        %5110 = vmatmul.mubr.f32.gmra.mrb[0].mxu0 %v5018
        %v5111 = vpop.f32.mrb[0].mxu0
        %v5112 = vadd.f32 0.0, %v5111
        %v5113 = vpop.f32.mrb[0].mxu0
        %5114 = vmatprep.mubr.f32.mxu0 0.0
        %5115 = vmatmul.mubr.f32.gmra.mrb[0].mxu0 %v5021
        %v5116 = vpop.f32.mrb[0].mxu0
        %v5117 = vadd.f32 0.0, %v5116
        %v5118 = vpop.f32.mrb[0].mxu0
        %5119 = vmatprep.mubr.f32.mxu0 0.0
        %5120 = vmatmul.mubr.f32.gmra.mrb[0].mxu0 %v5024
        %v5121 = vpop.f32.mrb[0].mxu0
        %v5122 = vadd.f32 0.0, %v5121
        %v5123 = vpop.f32.mrb[0].mxu0
        %5124 = vmatprep.mubr.f32.mxu0 0.0
        %5125 = vmatmul.mubr.f32.gmra.mrb[0].mxu0 %v5027
        %v5126 = vpop.f32.mrb[0].mxu0
        %v5127 = vadd.f32 0.0, %v5126
        %v5128 = vpop.f32.mrb[0].mxu0
        %5129 = vmatprep.mubr.f32.mxu0 0.0
        %5130 = vmatmul.mubr.f32.gmra.mrb[0].mxu0 %v5030
        %v5131 = vpop.f32.mrb[0].mxu0
        %v5132 = vadd.f32 0.0, %v5131
        %v5133 = vpop.f32.mrb[0].mxu0
        %5134 = vmatprep.mubr.f32.mxu0 0.0
        %5135 = vmatmul.mubr.f32.gmra.mrb[0].mxu0 %v5033
        %v5136 = vpop.f32.mrb[0].mxu0
        %v5137 = vadd.f32 0.0, %v5136
        %v5138 = vpop.f32.mrb[0].mxu0
        %5139 = vdwg.mxu0
        %v5140 = vld [vmem:[%s4705 + $0x40] sm:$0xff]
        %v5141 = vld [vmem:[%s4705 + $0x48] sm:$0xff]
        %v5142 = vld [vmem:[%s4705 + $0x50] sm:$0xff]
        %v5143 = vld [vmem:[%s4705 + $0x58] sm:$0xff]
        %v5144 = vld [vmem:[%s4705 + $0x60] sm:$0xff]
        %v5145 = vld [vmem:[%s4705 + $0x68] sm:$0xff]
        %v5146 = vld [vmem:[%s4705 + $0x70] sm:$0xff]
        %v5147 = vld [vmem:[%s4705 + $0x78] sm:$0xff]
        %v5149 = vsel %vm2416, %v5102, 0
        %v5152 = vsel %vm2416, %v5107, 0
        %v5155 = vsel %vm2416, %v5112, 0
        %v5158 = vsel %vm2416, %v5117, 0
        %v5161 = vsel %vm2416, %v5122, 0
        %v5164 = vsel %vm2416, %v5127, 0
        %v5167 = vsel %vm2416, %v5132, 0
        %v5170 = vsel %vm2416, %v5137, 0
        %5172 = vmatprep.subr.mxu0 0.0
        %5173 = vmatpush1.msra.mxu0 %v5140
        %5174 = vmatprep.subr.mxu0 0.0
        %5175 = vmatpush1.msra.mxu0 %v5141
        %5176 = vmatprep.subr.mxu0 0.0
        %5177 = vmatpush1.msra.mxu0 %v5142
        %5178 = vmatprep.subr.mxu0 0.0
        %5179 = vmatpush1.msra.mxu0 %v5143
        %5180 = vmatprep.subr.mxu0 0.0
        %5181 = vmatpush1.msra.mxu0 %v5144
        %5182 = vmatprep.subr.mxu0 0.0
        %5183 = vmatpush1.msra.mxu0 %v5145
        %5184 = vmatprep.subr.mxu0 0.0
        %5185 = vmatpush1.msra.mxu0 %v5146
        %5186 = vmatprep.subr.mxu0 0.0
        %5187 = vmatpush1.msra.mxu0 %v5147
        %5188 = vmatprep.subr.mxu0 0.0
        %5189 = vmatpush1.msra.mxu0 0.0
        %5190 = vmatprep.subr.mxu0 0.0
        %5191 = vmatpush1.msra.mxu0 0.0
        %5192 = vmatprep.subr.mxu0 0.0
        %5193 = vmatpush1.msra.mxu0 0.0
        %5194 = vmatprep.subr.mxu0 0.0
        %5195 = vmatpush1.msra.mxu0 0.0
        %5196 = vmatprep.subr.mxu0 0.0
        %5197 = vmatpush1.msra.mxu0 0.0
        %5198 = vmatprep.subr.mxu0 0.0
        %5199 = vmatpush1.msra.mxu0 0.0
        %5200 = vmatprep.subr.mxu0 0.0
        %5201 = vmatpush1.msra.mxu0 0.0
        %5202 = vmatprep.subr.mxu0 0.0
        %5203 = vmatpush1.msra.mxu0 0.0
        %5204 = vmatprep.subr.mxu0 0.0
        %5205 = vmatpush1.msra.mxu0 0.0
        %5206 = vmatprep.subr.mxu0 0.0
        %5207 = vmatpush1.msra.mxu0 0.0
        %5208 = vmatprep.subr.mxu0 0.0
        %5209 = vmatpush1.msra.mxu0 0.0
        %5210 = vmatprep.subr.mxu0 0.0
        %5211 = vmatpush1.msra.mxu0 0.0
        %5212 = vmatprep.subr.mxu0 0.0
        %5213 = vmatpush1.msra.mxu0 0.0
        %5214 = vmatprep.subr.mxu0 0.0
        %5215 = vmatpush1.msra.mxu0 0.0
        %5216 = vmatprep.subr.mxu0 0.0
        %5217 = vmatpush1.msra.mxu0 0.0
        %5218 = vmatprep.subr.mxu0 0.0
        %5219 = vmatpush1.msra.mxu0 0.0
        %5220 = vmatprep.subr.mxu0 0.0
        %5221 = vmatpush1.msra.mxu0 0.0
        %5222 = vmatprep.subr.mxu0 0.0
        %5223 = vmatpush1.msra.mxu0 0.0
        %5224 = vmatprep.subr.mxu0 0.0
        %5225 = vmatpush1.msra.mxu0 0.0
        %5226 = vmatprep.subr.mxu0 0.0
        %5227 = vmatpush1.msra.mxu0 0.0
        %5228 = vmatprep.subr.mxu0 0.0
        %5229 = vmatpush1.msra.mxu0 0.0
        %5230 = vmatprep.subr.mxu0 0.0
        %5231 = vmatpush1.msra.mxu0 0.0
        %5232 = vmatprep.subr.mxu0 0.0
        %5233 = vmatpush1.msra.mxu0 0.0
        %5234 = vmatprep.subr.mxu0 0.0
        %5235 = vmatpush1.msra.mxu0 0.0
        %5236 = vmatprep.mubr.f32.mxu0 0.0
        %5237 = vmatmul.mubr.f32.gmra.mrb[0].mxu0 %v5149
        %v5238 = vpop.f32.mrb[0].mxu0
        %v5239 = vadd.f32 0.0, %v5238
        %v5240 = vpop.f32.mrb[0].mxu0
        %5241 = vmatprep.mubr.f32.mxu0 0.0
        %5242 = vmatmul.mubr.f32.gmra.mrb[0].mxu0 %v5152
        %v5243 = vpop.f32.mrb[0].mxu0
        %v5244 = vadd.f32 0.0, %v5243
        %v5245 = vpop.f32.mrb[0].mxu0
        %5246 = vmatprep.mubr.f32.mxu0 0.0
        %5247 = vmatmul.mubr.f32.gmra.mrb[0].mxu0 %v5155
        %v5248 = vpop.f32.mrb[0].mxu0
        %v5249 = vadd.f32 0.0, %v5248
        %v5250 = vpop.f32.mrb[0].mxu0
        %5251 = vmatprep.mubr.f32.mxu0 0.0
        %5252 = vmatmul.mubr.f32.gmra.mrb[0].mxu0 %v5158
        %v5253 = vpop.f32.mrb[0].mxu0
        %v5254 = vadd.f32 0.0, %v5253
        %v5255 = vpop.f32.mrb[0].mxu0
        %5256 = vmatprep.mubr.f32.mxu0 0.0
        %5257 = vmatmul.mubr.f32.gmra.mrb[0].mxu0 %v5161
        %v5258 = vpop.f32.mrb[0].mxu0
        %v5259 = vadd.f32 0.0, %v5258
        %v5260 = vpop.f32.mrb[0].mxu0
        %5261 = vmatprep.mubr.f32.mxu0 0.0
        %5262 = vmatmul.mubr.f32.gmra.mrb[0].mxu0 %v5164
        %v5263 = vpop.f32.mrb[0].mxu0
        %v5264 = vadd.f32 0.0, %v5263
        %v5265 = vpop.f32.mrb[0].mxu0
        %5266 = vmatprep.mubr.f32.mxu0 0.0
        %5267 = vmatmul.mubr.f32.gmra.mrb[0].mxu0 %v5167
        %v5268 = vpop.f32.mrb[0].mxu0
        %v5269 = vadd.f32 0.0, %v5268
        %v5270 = vpop.f32.mrb[0].mxu0
        %5271 = vmatprep.mubr.f32.mxu0 0.0
        %5272 = vmatmul.mubr.f32.gmra.mrb[0].mxu0 %v5170
        %v5273 = vpop.f32.mrb[0].mxu0
        %v5274 = vadd.f32 0.0, %v5273
        %v5275 = vpop.f32.mrb[0].mxu0
        %5276 = vdwg.mxu0
        %v5278 = vsel %vm2416, %v4667, 0
        %v5281 = vsel %vm2416, %v4672, 0
        %v5284 = vsel %vm2416, %v4677, 0
        %v5287 = vsel %vm2416, %v4682, 0
        %v5290 = vsel %vm2416, %v4687, 0
        %v5293 = vsel %vm2416, %v4692, 0
        %v5296 = vsel %vm2416, %v4697, 0
        %v5299 = vsel %vm2416, %v4702, 0
        %5301 = vmatprep.subr.mxu0 0.0
        %5302 = vmatpush1.msra.mxu0 %v4706
        %5303 = vmatprep.subr.mxu0 0.0
        %5304 = vmatpush1.msra.mxu0 %v4707
        %5305 = vmatprep.subr.mxu0 0.0
        %5306 = vmatpush1.msra.mxu0 %v4708
        %5307 = vmatprep.subr.mxu0 0.0
        %5308 = vmatpush1.msra.mxu0 %v4709
        %5309 = vmatprep.subr.mxu0 0.0
        %5310 = vmatpush1.msra.mxu0 %v4710
        %5311 = vmatprep.subr.mxu0 0.0
        %5312 = vmatpush1.msra.mxu0 %v4711
        %5313 = vmatprep.subr.mxu0 0.0
        %5314 = vmatpush1.msra.mxu0 %v4712
        %5315 = vmatprep.subr.mxu0 0.0
        %5316 = vmatpush1.msra.mxu0 %v4713
        %5317 = vmatprep.subr.mxu0 0.0
        %5318 = vmatpush1.msra.mxu0 0.0
        %5319 = vmatprep.subr.mxu0 0.0
        %5320 = vmatpush1.msra.mxu0 0.0
        %5321 = vmatprep.subr.mxu0 0.0
        %5322 = vmatpush1.msra.mxu0 0.0
        %5323 = vmatprep.subr.mxu0 0.0
        %5324 = vmatpush1.msra.mxu0 0.0
        %5325 = vmatprep.subr.mxu0 0.0
        %5326 = vmatpush1.msra.mxu0 0.0
        %5327 = vmatprep.subr.mxu0 0.0
        %5328 = vmatpush1.msra.mxu0 0.0
        %5329 = vmatprep.subr.mxu0 0.0
        %5330 = vmatpush1.msra.mxu0 0.0
        %5331 = vmatprep.subr.mxu0 0.0
        %5332 = vmatpush1.msra.mxu0 0.0
        %5333 = vmatprep.subr.mxu0 0.0
        %5334 = vmatpush1.msra.mxu0 0.0
        %5335 = vmatprep.subr.mxu0 0.0
        %5336 = vmatpush1.msra.mxu0 0.0
        %5337 = vmatprep.subr.mxu0 0.0
        %5338 = vmatpush1.msra.mxu0 0.0
        %5339 = vmatprep.subr.mxu0 0.0
        %5340 = vmatpush1.msra.mxu0 0.0
        %5341 = vmatprep.subr.mxu0 0.0
        %5342 = vmatpush1.msra.mxu0 0.0
        %5343 = vmatprep.subr.mxu0 0.0
        %5344 = vmatpush1.msra.mxu0 0.0
        %5345 = vmatprep.subr.mxu0 0.0
        %5346 = vmatpush1.msra.mxu0 0.0
        %5347 = vmatprep.subr.mxu0 0.0
        %5348 = vmatpush1.msra.mxu0 0.0
        %5349 = vmatprep.subr.mxu0 0.0
        %5350 = vmatpush1.msra.mxu0 0.0
        %5351 = vmatprep.subr.mxu0 0.0
        %5352 = vmatpush1.msra.mxu0 0.0
        %5353 = vmatprep.subr.mxu0 0.0
        %5354 = vmatpush1.msra.mxu0 0.0
        %5355 = vmatprep.subr.mxu0 0.0
        %5356 = vmatpush1.msra.mxu0 0.0
        %5357 = vmatprep.subr.mxu0 0.0
        %5358 = vmatpush1.msra.mxu0 0.0
        %5359 = vmatprep.subr.mxu0 0.0
        %5360 = vmatpush1.msra.mxu0 0.0
        %5361 = vmatprep.subr.mxu0 0.0
        %5362 = vmatpush1.msra.mxu0 0.0
        %5363 = vmatprep.subr.mxu0 0.0
        %5364 = vmatpush1.msra.mxu0 0.0
        %5365 = vmatprep.mubr.f32.mxu0 0.0
        %5366 = vmatmul.mubr.f32.gmra.mrb[0].mxu0 %v5278
        %v5367 = vpop.f32.mrb[0].mxu0
        %v5368 = vadd.f32 %v5239, %v5367
        %v5369 = vpop.f32.mrb[0].mxu0
        %5370 = vmatprep.mubr.f32.mxu0 0.0
        %5371 = vmatmul.mubr.f32.gmra.mrb[0].mxu0 %v5281
        %v5372 = vpop.f32.mrb[0].mxu0
        %v5373 = vadd.f32 %v5244, %v5372
        %v5374 = vpop.f32.mrb[0].mxu0
        %5375 = vmatprep.mubr.f32.mxu0 0.0
        %5376 = vmatmul.mubr.f32.gmra.mrb[0].mxu0 %v5284
        %v5377 = vpop.f32.mrb[0].mxu0
        %v5378 = vadd.f32 %v5249, %v5377
        %v5379 = vpop.f32.mrb[0].mxu0
        %5380 = vmatprep.mubr.f32.mxu0 0.0
        %5381 = vmatmul.mubr.f32.gmra.mrb[0].mxu0 %v5287
        %v5382 = vpop.f32.mrb[0].mxu0
        %v5383 = vadd.f32 %v5254, %v5382
        %v5384 = vpop.f32.mrb[0].mxu0
        %5385 = vmatprep.mubr.f32.mxu0 0.0
        %5386 = vmatmul.mubr.f32.gmra.mrb[0].mxu0 %v5290
        %v5387 = vpop.f32.mrb[0].mxu0
        %v5388 = vadd.f32 %v5259, %v5387
        %v5389 = vpop.f32.mrb[0].mxu0
        %5390 = vmatprep.mubr.f32.mxu0 0.0
        %5391 = vmatmul.mubr.f32.gmra.mrb[0].mxu0 %v5293
        %v5392 = vpop.f32.mrb[0].mxu0
        %v5393 = vadd.f32 %v5264, %v5392
        %v5394 = vpop.f32.mrb[0].mxu0
        %5395 = vmatprep.mubr.f32.mxu0 0.0
        %5396 = vmatmul.mubr.f32.gmra.mrb[0].mxu0 %v5296
        %v5397 = vpop.f32.mrb[0].mxu0
        %v5398 = vadd.f32 %v5269, %v5397
        %v5399 = vpop.f32.mrb[0].mxu0
        %5400 = vmatprep.mubr.f32.mxu0 0.0
        %5401 = vmatmul.mubr.f32.gmra.mrb[0].mxu0 %v5299
        %v5402 = vpop.f32.mrb[0].mxu0
        %v5403 = vadd.f32 %v5274, %v5402
        %v5404 = vpop.f32.mrb[0].mxu0
        %5405 = vdwg.mxu0
        %v5406 = vadd.f32 %v3932, %v5368
        %v5407 = vadd.f32 %v3933, %v5373
        %v5408 = vadd.f32 %v3934, %v5378
        %v5409 = vadd.f32 %v3935, %v5383
        %v5410 = vadd.f32 %v3936, %v5388
        %v5411 = vadd.f32 %v3937, %v5393
        %v5412 = vadd.f32 %v3938, %v5398
        %v5413 = vadd.f32 %v3939, %v5403
        %s5414 = scalar_lea.vmem %s7, 1
        %v5415 = vld [vmem:[%s5414] sm:$0x1]
        %v5417 = vlaneseq
        %v5418 = vshrl.u32 %v5417, 7
        %v5419 = vsub.s32 0, %v5418
        %v5420 = vrot.slane %v5415, %v5419
        %v5422 = vadd.f32 %v5406, %v5420
        %v5423 = vadd.f32 %v5407, %v5420
        %v5424 = vadd.f32 %v5408, %v5420
        %v5425 = vadd.f32 %v5409, %v5420
        %v5426 = vadd.f32 %v5410, %v5420
        %v5427 = vadd.f32 %v5411, %v5420
        %v5428 = vadd.f32 %v5412, %v5420
        %v5429 = vadd.f32 %v5413, %v5420
        %s5430 = scalar_lea.vmem %s8, 1
        %v5431 = vld [vmem:[%s5430] sm:$0x1]
        %s5432 = scalar_lea.vmem %s9, 1
        %v5433 = vld [vmem:[%s5432] sm:$0x1]
        %5434 = vadd.xlane.f32.xlu0 %v5422
        %v5435 = vpop.xlane.xlu0 %5434
        %5436 = vadd.xlane.f32.xlu0 %v5423
        %v5437 = vpop.xlane.xlu0 %5436
        %5438 = vadd.xlane.f32.xlu0 %v5424
        %v5439 = vpop.xlane.xlu0 %5438
        %5440 = vadd.xlane.f32.xlu0 %v5425
        %v5441 = vpop.xlane.xlu0 %5440
        %5442 = vadd.xlane.f32.xlu0 %v5426
        %v5443 = vpop.xlane.xlu0 %5442
        %5444 = vadd.xlane.f32.xlu0 %v5427
        %v5445 = vpop.xlane.xlu0 %5444
        %5446 = vadd.xlane.f32.xlu0 %v5428
        %v5447 = vpop.xlane.xlu0 %5446
        %5448 = vadd.xlane.f32.xlu0 %v5429
        %v5449 = vpop.xlane.xlu0 %5448
        %v5450 = vmul.f32 %v5435, %v2049
        %v5451 = vmul.f32 %v5437, %v2049
        %v5452 = vmul.f32 %v5439, %v2049
        %v5453 = vmul.f32 %v5441, %v2049
        %v5454 = vmul.f32 %v5443, %v2049
        %v5455 = vmul.f32 %v5445, %v2049
        %v5456 = vmul.f32 %v5447, %v2049
        %v5457 = vmul.f32 %v5449, %v2049
        %v5458 = vsub.f32 %v5422, %v5450
        %v5459 = vsub.f32 %v5423, %v5451
        %v5460 = vsub.f32 %v5424, %v5452
        %v5461 = vsub.f32 %v5425, %v5453
        %v5462 = vsub.f32 %v5426, %v5454
        %v5463 = vsub.f32 %v5427, %v5455
        %v5464 = vsub.f32 %v5428, %v5456
        %v5465 = vsub.f32 %v5429, %v5457
        %v5466 = vmul.f32 %v5458, %v5458
        %v5467 = vmul.f32 %v5459, %v5459
        %v5468 = vmul.f32 %v5460, %v5460
        %v5469 = vmul.f32 %v5461, %v5461
        %v5470 = vmul.f32 %v5462, %v5462
        %v5471 = vmul.f32 %v5463, %v5463
        %v5472 = vmul.f32 %v5464, %v5464
        %v5473 = vmul.f32 %v5465, %v5465
        %5474 = vadd.xlane.f32.xlu0 %v5466
        %v5475 = vpop.xlane.xlu0 %5474
        %5476 = vadd.xlane.f32.xlu0 %v5467
        %v5477 = vpop.xlane.xlu0 %5476
        %5478 = vadd.xlane.f32.xlu0 %v5468
        %v5479 = vpop.xlane.xlu0 %5478
        %5480 = vadd.xlane.f32.xlu0 %v5469
        %v5481 = vpop.xlane.xlu0 %5480
        %5482 = vadd.xlane.f32.xlu0 %v5470
        %v5483 = vpop.xlane.xlu0 %5482
        %5484 = vadd.xlane.f32.xlu0 %v5471
        %v5485 = vpop.xlane.xlu0 %5484
        %5486 = vadd.xlane.f32.xlu0 %v5472
        %v5487 = vpop.xlane.xlu0 %5486
        %5488 = vadd.xlane.f32.xlu0 %v5473
        %v5489 = vpop.xlane.xlu0 %5488
        %v5490 = vmul.f32 %v5475, %v2049
        %v5491 = vmul.f32 %v5477, %v2049
        %v5492 = vmul.f32 %v5479, %v2049
        %v5493 = vmul.f32 %v5481, %v2049
        %v5494 = vmul.f32 %v5483, %v2049
        %v5495 = vmul.f32 %v5485, %v2049
        %v5496 = vmul.f32 %v5487, %v2049
        %v5497 = vmul.f32 %v5489, %v2049
        %v5498 = vadd.f32 %v5490, 1e-05
        %v5499 = vadd.f32 %v5491, 1e-05
        %v5500 = vadd.f32 %v5492, 1e-05
        %v5501 = vadd.f32 %v5493, 1e-05
        %v5502 = vadd.f32 %v5494, 1e-05
        %v5503 = vadd.f32 %v5495, 1e-05
        %v5504 = vadd.f32 %v5496, 1e-05
        %v5505 = vadd.f32 %v5497, 1e-05
        %v5506 = vrsqrt.pop %v5498
        %v5507 = vrsqrt.pop %v5499
        %v5508 = vrsqrt.pop %v5500
        %v5509 = vrsqrt.pop %v5501
        %v5510 = vrsqrt.pop %v5502
        %v5511 = vrsqrt.pop %v5503
        %v5512 = vrsqrt.pop %v5504
        %v5513 = vrsqrt.pop %v5505
        %v5514 = vmul.f32 %v5458, %v5506
        %v5515 = vmul.f32 %v5459, %v5507
        %v5516 = vmul.f32 %v5460, %v5508
        %v5517 = vmul.f32 %v5461, %v5509
        %v5518 = vmul.f32 %v5462, %v5510
        %v5519 = vmul.f32 %v5463, %v5511
        %v5520 = vmul.f32 %v5464, %v5512
        %v5521 = vmul.f32 %v5465, %v5513
        %v5523 = vlaneseq
        %v5524 = vshrl.u32 %v5523, 7
        %v5525 = vsub.s32 0, %v5524
        %v5526 = vrot.slane %v5431, %v5525
        %v5528 = vmul.f32 %v5514, %v5526
        %v5529 = vmul.f32 %v5515, %v5526
        %v5530 = vmul.f32 %v5516, %v5526
        %v5531 = vmul.f32 %v5517, %v5526
        %v5532 = vmul.f32 %v5518, %v5526
        %v5533 = vmul.f32 %v5519, %v5526
        %v5534 = vmul.f32 %v5520, %v5526
        %v5535 = vmul.f32 %v5521, %v5526
        %v5537 = vlaneseq
        %v5538 = vshrl.u32 %v5537, 7
        %v5539 = vsub.s32 0, %v5538
        %v5540 = vrot.slane %v5433, %v5539
        %v5542 = vadd.f32 %v5528, %v5540
        %v5543 = vadd.f32 %v5529, %v5540
        %v5544 = vadd.f32 %v5530, %v5540
        %v5545 = vadd.f32 %v5531, %v5540
        %v5546 = vadd.f32 %v5532, %v5540
        %v5547 = vadd.f32 %v5533, %v5540
        %v5548 = vadd.f32 %v5534, %v5540
        %v5549 = vadd.f32 %v5535, %v5540
        %s5550 = scalar_lea.vmem %s10, 128
        %v5551 = vld [vmem:[%s5550] sm:$0xff]
        %v5552 = vld [vmem:[%s5550 + $0x8] sm:$0xff]
        %v5553 = vld [vmem:[%s5550 + $0x10] sm:$0xff]
        %v5554 = vld [vmem:[%s5550 + $0x18] sm:$0xff]
        %v5555 = vld [vmem:[%s5550 + $0x20] sm:$0xff]
        %v5556 = vld [vmem:[%s5550 + $0x28] sm:$0xff]
        %v5557 = vld [vmem:[%s5550 + $0x30] sm:$0xff]
        %v5558 = vld [vmem:[%s5550 + $0x38] sm:$0xff]
        %v5559 = vld [vmem:[%s5550 + $0x40] sm:$0xff]
        %v5560 = vld [vmem:[%s5550 + $0x48] sm:$0xff]
        %v5561 = vld [vmem:[%s5550 + $0x50] sm:$0xff]
        %v5562 = vld [vmem:[%s5550 + $0x58] sm:$0xff]
        %v5563 = vld [vmem:[%s5550 + $0x60] sm:$0xff]
        %v5564 = vld [vmem:[%s5550 + $0x68] sm:$0xff]
        %v5565 = vld [vmem:[%s5550 + $0x70] sm:$0xff]
        %v5566 = vld [vmem:[%s5550 + $0x78] sm:$0xff]
        %s5567 = scalar_lea.vmem %s11, 1
        %v5568 = vld [vmem:[%s5567] sm:$0x1]
        %v5570 = vlaneseq
        %v5571 = vshrl.u32 %v5570, 7
        %v5572 = vsub.s32 0, %v5571
        %v5573 = vrot.slane %v5568, %v5572
        %5575 = vmatprep.subr.mxu0 0.0
        %5576 = vmatpush1.msra.mxu0 %v5551
        %5577 = vmatprep.subr.mxu0 0.0
        %5578 = vmatpush1.msra.mxu0 %v5552
        %5579 = vmatprep.subr.mxu0 0.0
        %5580 = vmatpush1.msra.mxu0 %v5553
        %5581 = vmatprep.subr.mxu0 0.0
        %5582 = vmatpush1.msra.mxu0 %v5554
        %5583 = vmatprep.subr.mxu0 0.0
        %5584 = vmatpush1.msra.mxu0 %v5555
        %5585 = vmatprep.subr.mxu0 0.0
        %5586 = vmatpush1.msra.mxu0 %v5556
        %5587 = vmatprep.subr.mxu0 0.0
        %5588 = vmatpush1.msra.mxu0 %v5557
        %5589 = vmatprep.subr.mxu0 0.0
        %5590 = vmatpush1.msra.mxu0 %v5558
        %5591 = vmatprep.subr.mxu0 0.0
        %5592 = vmatpush1.msra.mxu0 %v5559
        %5593 = vmatprep.subr.mxu0 0.0
        %5594 = vmatpush1.msra.mxu0 %v5560
        %5595 = vmatprep.subr.mxu0 0.0
        %5596 = vmatpush1.msra.mxu0 %v5561
        %5597 = vmatprep.subr.mxu0 0.0
        %5598 = vmatpush1.msra.mxu0 %v5562
        %5599 = vmatprep.subr.mxu0 0.0
        %5600 = vmatpush1.msra.mxu0 %v5563
        %5601 = vmatprep.subr.mxu0 0.0
        %5602 = vmatpush1.msra.mxu0 %v5564
        %5603 = vmatprep.subr.mxu0 0.0
        %5604 = vmatpush1.msra.mxu0 %v5565
        %5605 = vmatprep.subr.mxu0 0.0
        %5606 = vmatpush1.msra.mxu0 %v5566
        %5607 = vmatprep.subr.mxu0 0.0
        %5608 = vmatpush1.msra.mxu0 0.0
        %5609 = vmatprep.subr.mxu0 0.0
        %5610 = vmatpush1.msra.mxu0 0.0
        %5611 = vmatprep.subr.mxu0 0.0
        %5612 = vmatpush1.msra.mxu0 0.0
        %5613 = vmatprep.subr.mxu0 0.0
        %5614 = vmatpush1.msra.mxu0 0.0
        %5615 = vmatprep.subr.mxu0 0.0
        %5616 = vmatpush1.msra.mxu0 0.0
        %5617 = vmatprep.subr.mxu0 0.0
        %5618 = vmatpush1.msra.mxu0 0.0
        %5619 = vmatprep.subr.mxu0 0.0
        %5620 = vmatpush1.msra.mxu0 0.0
        %5621 = vmatprep.subr.mxu0 0.0
        %5622 = vmatpush1.msra.mxu0 0.0
        %5623 = vmatprep.subr.mxu0 0.0
        %5624 = vmatpush1.msra.mxu0 0.0
        %5625 = vmatprep.subr.mxu0 0.0
        %5626 = vmatpush1.msra.mxu0 0.0
        %5627 = vmatprep.subr.mxu0 0.0
        %5628 = vmatpush1.msra.mxu0 0.0
        %5629 = vmatprep.subr.mxu0 0.0
        %5630 = vmatpush1.msra.mxu0 0.0
        %5631 = vmatprep.subr.mxu0 0.0
        %5632 = vmatpush1.msra.mxu0 0.0
        %5633 = vmatprep.subr.mxu0 0.0
        %5634 = vmatpush1.msra.mxu0 0.0
        %5635 = vmatprep.subr.mxu0 0.0
        %5636 = vmatpush1.msra.mxu0 0.0
        %5637 = vmatprep.subr.mxu0 0.0
        %5638 = vmatpush1.msra.mxu0 0.0
        %5639 = vmatprep.mubr.f32.mxu0 0.0
        %5640 = vmatmul.mubr.f32.gmra.mrb[0].mxu0 %v5542
        %v5641 = vpop.f32.mrb[0].mxu0
        %v5642 = vadd.f32 %v5573, %v5641
        %v5643 = vpop.f32.mrb[0].mxu0
        %5644 = vmatprep.mubr.f32.mxu0 0.0
        %5645 = vmatmul.mubr.f32.gmra.mrb[0].mxu0 %v5543
        %v5646 = vpop.f32.mrb[0].mxu0
        %v5647 = vadd.f32 %v5573, %v5646
        %v5648 = vpop.f32.mrb[0].mxu0
        %5649 = vmatprep.mubr.f32.mxu0 0.0
        %5650 = vmatmul.mubr.f32.gmra.mrb[0].mxu0 %v5544
        %v5651 = vpop.f32.mrb[0].mxu0
        %v5652 = vadd.f32 %v5573, %v5651
        %v5653 = vpop.f32.mrb[0].mxu0
        %5654 = vmatprep.mubr.f32.mxu0 0.0
        %5655 = vmatmul.mubr.f32.gmra.mrb[0].mxu0 %v5545
        %v5656 = vpop.f32.mrb[0].mxu0
        %v5657 = vadd.f32 %v5573, %v5656
        %v5658 = vpop.f32.mrb[0].mxu0
        %5659 = vmatprep.mubr.f32.mxu0 0.0
        %5660 = vmatmul.mubr.f32.gmra.mrb[0].mxu0 %v5546
        %v5661 = vpop.f32.mrb[0].mxu0
        %v5662 = vadd.f32 %v5573, %v5661
        %v5663 = vpop.f32.mrb[0].mxu0
        %5664 = vmatprep.mubr.f32.mxu0 0.0
        %5665 = vmatmul.mubr.f32.gmra.mrb[0].mxu0 %v5547
        %v5666 = vpop.f32.mrb[0].mxu0
        %v5667 = vadd.f32 %v5573, %v5666
        %v5668 = vpop.f32.mrb[0].mxu0
        %5669 = vmatprep.mubr.f32.mxu0 0.0
        %5670 = vmatmul.mubr.f32.gmra.mrb[0].mxu0 %v5548
        %v5671 = vpop.f32.mrb[0].mxu0
        %v5672 = vadd.f32 %v5573, %v5671
        %v5673 = vpop.f32.mrb[0].mxu0
        %5674 = vmatprep.mubr.f32.mxu0 0.0
        %5675 = vmatmul.mubr.f32.gmra.mrb[0].mxu0 %v5549
        %v5676 = vpop.f32.mrb[0].mxu0
        %v5677 = vadd.f32 %v5573, %v5676
        %v5678 = vpop.f32.mrb[0].mxu0
        %5679 = vdwg.mxu0
        %v5680 = vmul.f32 %v5642, 0.5
        %v5681 = vmul.f32 %v5647, 0.5
        %v5682 = vmul.f32 %v5652, 0.5
        %v5683 = vmul.f32 %v5657, 0.5
        %v5684 = vmul.f32 %v5662, 0.5
        %v5685 = vmul.f32 %v5667, 0.5
        %v5686 = vmul.f32 %v5672, 0.5
        %v5687 = vmul.f32 %v5677, 0.5
        %v5688 = vmul.f32 %v5642, 0.70710677
        %v5689 = vmul.f32 %v5647, 0.70710677
        %v5690 = vmul.f32 %v5652, 0.70710677
        %v5691 = vmul.f32 %v5657, 0.70710677
        %v5692 = vmul.f32 %v5662, 0.70710677
        %v5693 = vmul.f32 %v5667, 0.70710677
        %v5694 = vmul.f32 %v5672, 0.70710677
        %v5695 = vmul.f32 %v5677, 0.70710677
        %v5696 = verf.f32.pop %v5688
        %v5697 = verf.f32.pop %v5689
        %v5698 = verf.f32.pop %v5690
        %v5699 = verf.f32.pop %v5691
        %v5700 = verf.f32.pop %v5692
        %v5701 = verf.f32.pop %v5693
        %v5702 = verf.f32.pop %v5694
        %v5703 = verf.f32.pop %v5695
        %v5704 = vadd.f32 %v5696, 1.0
        %v5705 = vadd.f32 %v5697, 1.0
        %v5706 = vadd.f32 %v5698, 1.0
        %v5707 = vadd.f32 %v5699, 1.0
        %v5708 = vadd.f32 %v5700, 1.0
        %v5709 = vadd.f32 %v5701, 1.0
        %v5710 = vadd.f32 %v5702, 1.0
        %v5711 = vadd.f32 %v5703, 1.0
        %v5712 = vmul.f32 %v5680, %v5704
        %v5713 = vmul.f32 %v5681, %v5705
        %v5714 = vmul.f32 %v5682, %v5706
        %v5715 = vmul.f32 %v5683, %v5707
        %v5716 = vmul.f32 %v5684, %v5708
        %v5717 = vmul.f32 %v5685, %v5709
        %v5718 = vmul.f32 %v5686, %v5710
        %v5719 = vmul.f32 %v5687, %v5711
        %s5720 = scalar_lea.vmem %s12, 128
        %v5721 = vld [vmem:[%s5720] sm:$0xff]
        %v5722 = vld [vmem:[%s5720 + $0x8] sm:$0xff]
        %v5723 = vld [vmem:[%s5720 + $0x10] sm:$0xff]
        %v5724 = vld [vmem:[%s5720 + $0x18] sm:$0xff]
        %v5725 = vld [vmem:[%s5720 + $0x20] sm:$0xff]
        %v5726 = vld [vmem:[%s5720 + $0x28] sm:$0xff]
        %v5727 = vld [vmem:[%s5720 + $0x30] sm:$0xff]
        %v5728 = vld [vmem:[%s5720 + $0x38] sm:$0xff]
        %v5729 = vld [vmem:[%s5720 + $0x40] sm:$0xff]
        %v5730 = vld [vmem:[%s5720 + $0x48] sm:$0xff]
        %v5731 = vld [vmem:[%s5720 + $0x50] sm:$0xff]
        %v5732 = vld [vmem:[%s5720 + $0x58] sm:$0xff]
        %v5733 = vld [vmem:[%s5720 + $0x60] sm:$0xff]
        %v5734 = vld [vmem:[%s5720 + $0x68] sm:$0xff]
        %v5735 = vld [vmem:[%s5720 + $0x70] sm:$0xff]
        %v5736 = vld [vmem:[%s5720 + $0x78] sm:$0xff]
        %s5737 = scalar_lea.vmem %s13, 1
        %v5738 = vld [vmem:[%s5737] sm:$0x1]
        %v5740 = vlaneseq
        %v5741 = vshrl.u32 %v5740, 7
        %v5742 = vsub.s32 0, %v5741
        %v5743 = vrot.slane %v5738, %v5742
        %5745 = vmatprep.subr.mxu0 0.0
        %5746 = vmatpush1.msra.mxu0 %v5721
        %5747 = vmatprep.subr.mxu0 0.0
        %5748 = vmatpush1.msra.mxu0 %v5722
        %5749 = vmatprep.subr.mxu0 0.0
        %5750 = vmatpush1.msra.mxu0 %v5723
        %5751 = vmatprep.subr.mxu0 0.0
        %5752 = vmatpush1.msra.mxu0 %v5724
        %5753 = vmatprep.subr.mxu0 0.0
        %5754 = vmatpush1.msra.mxu0 %v5725
        %5755 = vmatprep.subr.mxu0 0.0
        %5756 = vmatpush1.msra.mxu0 %v5726
        %5757 = vmatprep.subr.mxu0 0.0
        %5758 = vmatpush1.msra.mxu0 %v5727
        %5759 = vmatprep.subr.mxu0 0.0
        %5760 = vmatpush1.msra.mxu0 %v5728
        %5761 = vmatprep.subr.mxu0 0.0
        %5762 = vmatpush1.msra.mxu0 %v5729
        %5763 = vmatprep.subr.mxu0 0.0
        %5764 = vmatpush1.msra.mxu0 %v5730
        %5765 = vmatprep.subr.mxu0 0.0
        %5766 = vmatpush1.msra.mxu0 %v5731
        %5767 = vmatprep.subr.mxu0 0.0
        %5768 = vmatpush1.msra.mxu0 %v5732
        %5769 = vmatprep.subr.mxu0 0.0
        %5770 = vmatpush1.msra.mxu0 %v5733
        %5771 = vmatprep.subr.mxu0 0.0
        %5772 = vmatpush1.msra.mxu0 %v5734
        %5773 = vmatprep.subr.mxu0 0.0
        %5774 = vmatpush1.msra.mxu0 %v5735
        %5775 = vmatprep.subr.mxu0 0.0
        %5776 = vmatpush1.msra.mxu0 %v5736
        %5777 = vmatprep.subr.mxu0 0.0
        %5778 = vmatpush1.msra.mxu0 0.0
        %5779 = vmatprep.subr.mxu0 0.0
        %5780 = vmatpush1.msra.mxu0 0.0
        %5781 = vmatprep.subr.mxu0 0.0
        %5782 = vmatpush1.msra.mxu0 0.0
        %5783 = vmatprep.subr.mxu0 0.0
        %5784 = vmatpush1.msra.mxu0 0.0
        %5785 = vmatprep.subr.mxu0 0.0
        %5786 = vmatpush1.msra.mxu0 0.0
        %5787 = vmatprep.subr.mxu0 0.0
        %5788 = vmatpush1.msra.mxu0 0.0
        %5789 = vmatprep.subr.mxu0 0.0
        %5790 = vmatpush1.msra.mxu0 0.0
        %5791 = vmatprep.subr.mxu0 0.0
        %5792 = vmatpush1.msra.mxu0 0.0
        %5793 = vmatprep.subr.mxu0 0.0
        %5794 = vmatpush1.msra.mxu0 0.0
        %5795 = vmatprep.subr.mxu0 0.0
        %5796 = vmatpush1.msra.mxu0 0.0
        %5797 = vmatprep.subr.mxu0 0.0
        %5798 = vmatpush1.msra.mxu0 0.0
        %5799 = vmatprep.subr.mxu0 0.0
        %5800 = vmatpush1.msra.mxu0 0.0
        %5801 = vmatprep.subr.mxu0 0.0
        %5802 = vmatpush1.msra.mxu0 0.0
        %5803 = vmatprep.subr.mxu0 0.0
        %5804 = vmatpush1.msra.mxu0 0.0
        %5805 = vmatprep.subr.mxu0 0.0
        %5806 = vmatpush1.msra.mxu0 0.0
        %5807 = vmatprep.subr.mxu0 0.0
        %5808 = vmatpush1.msra.mxu0 0.0
        %5809 = vmatprep.mubr.f32.mxu0 0.0
        %5810 = vmatmul.mubr.f32.gmra.mrb[0].mxu0 %v5712
        %v5811 = vpop.f32.mrb[0].mxu0
        %v5812 = vadd.f32 %v5743, %v5811
        %v5813 = vpop.f32.mrb[0].mxu0
        %5814 = vmatprep.mubr.f32.mxu0 0.0
        %5815 = vmatmul.mubr.f32.gmra.mrb[0].mxu0 %v5713
        %v5816 = vpop.f32.mrb[0].mxu0
        %v5817 = vadd.f32 %v5743, %v5816
        %v5818 = vpop.f32.mrb[0].mxu0
        %5819 = vmatprep.mubr.f32.mxu0 0.0
        %5820 = vmatmul.mubr.f32.gmra.mrb[0].mxu0 %v5714
        %v5821 = vpop.f32.mrb[0].mxu0
        %v5822 = vadd.f32 %v5743, %v5821
        %v5823 = vpop.f32.mrb[0].mxu0
        %5824 = vmatprep.mubr.f32.mxu0 0.0
        %5825 = vmatmul.mubr.f32.gmra.mrb[0].mxu0 %v5715
        %v5826 = vpop.f32.mrb[0].mxu0
        %v5827 = vadd.f32 %v5743, %v5826
        %v5828 = vpop.f32.mrb[0].mxu0
        %5829 = vmatprep.mubr.f32.mxu0 0.0
        %5830 = vmatmul.mubr.f32.gmra.mrb[0].mxu0 %v5716
        %v5831 = vpop.f32.mrb[0].mxu0
        %v5832 = vadd.f32 %v5743, %v5831
        %v5833 = vpop.f32.mrb[0].mxu0
        %5834 = vmatprep.mubr.f32.mxu0 0.0
        %5835 = vmatmul.mubr.f32.gmra.mrb[0].mxu0 %v5717
        %v5836 = vpop.f32.mrb[0].mxu0
        %v5837 = vadd.f32 %v5743, %v5836
        %v5838 = vpop.f32.mrb[0].mxu0
        %5839 = vmatprep.mubr.f32.mxu0 0.0
        %5840 = vmatmul.mubr.f32.gmra.mrb[0].mxu0 %v5718
        %v5841 = vpop.f32.mrb[0].mxu0
        %v5842 = vadd.f32 %v5743, %v5841
        %v5843 = vpop.f32.mrb[0].mxu0
        %5844 = vmatprep.mubr.f32.mxu0 0.0
        %5845 = vmatmul.mubr.f32.gmra.mrb[0].mxu0 %v5719
        %v5846 = vpop.f32.mrb[0].mxu0
        %v5847 = vadd.f32 %v5743, %v5846
        %v5848 = vpop.f32.mrb[0].mxu0
        %5849 = vdwg.mxu0
        %v5850 = vadd.f32 %v5542, %v5812
        %v5851 = vadd.f32 %v5543, %v5817
        %v5852 = vadd.f32 %v5544, %v5822
        %v5853 = vadd.f32 %v5545, %v5827
        %v5854 = vadd.f32 %v5546, %v5832
        %v5855 = vadd.f32 %v5547, %v5837
        %v5856 = vadd.f32 %v5548, %v5842
        %v5857 = vadd.f32 %v5549, %v5847
        %v5858 = vld [vmem:[%s14] sm:$0x1]
        %v5859 = vld [vmem:[%s15] sm:$0x1]
        %5860 = vadd.xlane.f32.xlu0 %v5850
        %v5861 = vpop.xlane.xlu0 %5860
        %5862 = vadd.xlane.f32.xlu0 %v5851
        %v5863 = vpop.xlane.xlu0 %5862
        %5864 = vadd.xlane.f32.xlu0 %v5852
        %v5865 = vpop.xlane.xlu0 %5864
        %5866 = vadd.xlane.f32.xlu0 %v5853
        %v5867 = vpop.xlane.xlu0 %5866
        %5868 = vadd.xlane.f32.xlu0 %v5854
        %v5869 = vpop.xlane.xlu0 %5868
        %5870 = vadd.xlane.f32.xlu0 %v5855
        %v5871 = vpop.xlane.xlu0 %5870
        %5872 = vadd.xlane.f32.xlu0 %v5856
        %v5873 = vpop.xlane.xlu0 %5872
        %5874 = vadd.xlane.f32.xlu0 %v5857
        %v5875 = vpop.xlane.xlu0 %5874
        %v5876 = vmul.f32 %v5861, %v2049
        %v5877 = vmul.f32 %v5863, %v2049
        %v5878 = vmul.f32 %v5865, %v2049
        %v5879 = vmul.f32 %v5867, %v2049
        %v5880 = vmul.f32 %v5869, %v2049
        %v5881 = vmul.f32 %v5871, %v2049
        %v5882 = vmul.f32 %v5873, %v2049
        %v5883 = vmul.f32 %v5875, %v2049
        %v5884 = vsub.f32 %v5850, %v5876
        %v5885 = vsub.f32 %v5851, %v5877
        %v5886 = vsub.f32 %v5852, %v5878
        %v5887 = vsub.f32 %v5853, %v5879
        %v5888 = vsub.f32 %v5854, %v5880
        %v5889 = vsub.f32 %v5855, %v5881
        %v5890 = vsub.f32 %v5856, %v5882
        %v5891 = vsub.f32 %v5857, %v5883
        %v5892 = vmul.f32 %v5884, %v5884
        %v5893 = vmul.f32 %v5885, %v5885
        %v5894 = vmul.f32 %v5886, %v5886
        %v5895 = vmul.f32 %v5887, %v5887
        %v5896 = vmul.f32 %v5888, %v5888
        %v5897 = vmul.f32 %v5889, %v5889
        %v5898 = vmul.f32 %v5890, %v5890
        %v5899 = vmul.f32 %v5891, %v5891
        %5900 = vadd.xlane.f32.xlu0 %v5892
        %v5901 = vpop.xlane.xlu0 %5900
        %5902 = vadd.xlane.f32.xlu0 %v5893
        %v5903 = vpop.xlane.xlu0 %5902
        %5904 = vadd.xlane.f32.xlu0 %v5894
        %v5905 = vpop.xlane.xlu0 %5904
        %5906 = vadd.xlane.f32.xlu0 %v5895
        %v5907 = vpop.xlane.xlu0 %5906
        %5908 = vadd.xlane.f32.xlu0 %v5896
        %v5909 = vpop.xlane.xlu0 %5908
        %5910 = vadd.xlane.f32.xlu0 %v5897
        %v5911 = vpop.xlane.xlu0 %5910
        %5912 = vadd.xlane.f32.xlu0 %v5898
        %v5913 = vpop.xlane.xlu0 %5912
        %5914 = vadd.xlane.f32.xlu0 %v5899
        %v5915 = vpop.xlane.xlu0 %5914
        %v5916 = vmul.f32 %v5901, %v2049
        %v5917 = vmul.f32 %v5903, %v2049
        %v5918 = vmul.f32 %v5905, %v2049
        %v5919 = vmul.f32 %v5907, %v2049
        %v5920 = vmul.f32 %v5909, %v2049
        %v5921 = vmul.f32 %v5911, %v2049
        %v5922 = vmul.f32 %v5913, %v2049
        %v5923 = vmul.f32 %v5915, %v2049
        %v5924 = vadd.f32 %v5916, 1e-05
        %v5925 = vadd.f32 %v5917, 1e-05
        %v5926 = vadd.f32 %v5918, 1e-05
        %v5927 = vadd.f32 %v5919, 1e-05
        %v5928 = vadd.f32 %v5920, 1e-05
        %v5929 = vadd.f32 %v5921, 1e-05
        %v5930 = vadd.f32 %v5922, 1e-05
        %v5931 = vadd.f32 %v5923, 1e-05
        %v5932 = vrsqrt.pop %v5924
        %v5933 = vrsqrt.pop %v5925
        %v5934 = vrsqrt.pop %v5926
        %v5935 = vrsqrt.pop %v5927
        %v5936 = vrsqrt.pop %v5928
        %v5937 = vrsqrt.pop %v5929
        %v5938 = vrsqrt.pop %v5930
        %v5939 = vrsqrt.pop %v5931
        %v5940 = vmul.f32 %v5884, %v5932
        %v5941 = vmul.f32 %v5885, %v5933
        %v5942 = vmul.f32 %v5886, %v5934
        %v5943 = vmul.f32 %v5887, %v5935
        %v5944 = vmul.f32 %v5888, %v5936
        %v5945 = vmul.f32 %v5889, %v5937
        %v5946 = vmul.f32 %v5890, %v5938
        %v5947 = vmul.f32 %v5891, %v5939
        %v5949 = vlaneseq
        %v5950 = vshrl.u32 %v5949, 7
        %v5951 = vsub.s32 0, %v5950
        %v5952 = vrot.slane %v5858, %v5951
        %v5954 = vmul.f32 %v5940, %v5952
        %v5955 = vmul.f32 %v5941, %v5952
        %v5956 = vmul.f32 %v5942, %v5952
        %v5957 = vmul.f32 %v5943, %v5952
        %v5958 = vmul.f32 %v5944, %v5952
        %v5959 = vmul.f32 %v5945, %v5952
        %v5960 = vmul.f32 %v5946, %v5952
        %v5961 = vmul.f32 %v5947, %v5952
        %v5963 = vlaneseq
        %v5964 = vshrl.u32 %v5963, 7
        %v5965 = vsub.s32 0, %v5964
        %v5966 = vrot.slane %v5859, %v5965
        %v5968 = vadd.f32 %v5954, %v5966
        %v5969 = vadd.f32 %v5955, %v5966
        %v5970 = vadd.f32 %v5956, %v5966
        %v5971 = vadd.f32 %v5957, %v5966
        %v5972 = vadd.f32 %v5958, %v5966
        %v5973 = vadd.f32 %v5959, %v5966
        %v5974 = vadd.f32 %v5960, %v5966
        %v5975 = vadd.f32 %v5961, %v5966
        %v5976 = vld [vmem:[%s16] sm:$0xff]
        %v5977 = vld [vmem:[%s16 + $0x8] sm:$0xff]
        %v5978 = vld [vmem:[%s16 + $0x10] sm:$0xff]
        %v5979 = vld [vmem:[%s16 + $0x18] sm:$0xff]
        %v5980 = vld [vmem:[%s16 + $0x20] sm:$0xff]
        %v5981 = vld [vmem:[%s16 + $0x28] sm:$0xff]
        %v5982 = vld [vmem:[%s16 + $0x30] sm:$0xff]
        %v5983 = vld [vmem:[%s16 + $0x38] sm:$0xff]
        %v5984 = vld [vmem:[%s16 + $0x40] sm:$0xff]
        %v5985 = vld [vmem:[%s16 + $0x48] sm:$0xff]
        %v5986 = vld [vmem:[%s16 + $0x50] sm:$0xff]
        %v5987 = vld [vmem:[%s16 + $0x58] sm:$0xff]
        %v5988 = vld [vmem:[%s16 + $0x60] sm:$0xff]
        %v5989 = vld [vmem:[%s16 + $0x68] sm:$0xff]
        %v5990 = vld [vmem:[%s16 + $0x70] sm:$0xff]
        %v5991 = vld [vmem:[%s16 + $0x78] sm:$0xff]
        %v5992 = vld [vmem:[#allocation2] sm:$0x1]
        %v5994 = vlaneseq
        %v5995 = vshrl.u32 %v5994, 7
        %v5996 = vsub.s32 0, %v5995
        %v5997 = vrot.slane %v5992, %v5996
        %5999 = vmatprep.subr.mxu0 0.0
        %6000 = vmatpush1.msra.mxu0 %v5976
        %6001 = vmatprep.subr.mxu0 0.0
        %6002 = vmatpush1.msra.mxu0 %v5977
        %6003 = vmatprep.subr.mxu0 0.0
        %6004 = vmatpush1.msra.mxu0 %v5978
        %6005 = vmatprep.subr.mxu0 0.0
        %6006 = vmatpush1.msra.mxu0 %v5979
        %6007 = vmatprep.subr.mxu0 0.0
        %6008 = vmatpush1.msra.mxu0 %v5980
        %6009 = vmatprep.subr.mxu0 0.0
        %6010 = vmatpush1.msra.mxu0 %v5981
        %6011 = vmatprep.subr.mxu0 0.0
        %6012 = vmatpush1.msra.mxu0 %v5982
        %6013 = vmatprep.subr.mxu0 0.0
        %6014 = vmatpush1.msra.mxu0 %v5983
        %6015 = vmatprep.subr.mxu0 0.0
        %6016 = vmatpush1.msra.mxu0 %v5984
        %6017 = vmatprep.subr.mxu0 0.0
        %6018 = vmatpush1.msra.mxu0 %v5985
        %6019 = vmatprep.subr.mxu0 0.0
        %6020 = vmatpush1.msra.mxu0 %v5986
        %6021 = vmatprep.subr.mxu0 0.0
        %6022 = vmatpush1.msra.mxu0 %v5987
        %6023 = vmatprep.subr.mxu0 0.0
        %6024 = vmatpush1.msra.mxu0 %v5988
        %6025 = vmatprep.subr.mxu0 0.0
        %6026 = vmatpush1.msra.mxu0 %v5989
        %6027 = vmatprep.subr.mxu0 0.0
        %6028 = vmatpush1.msra.mxu0 %v5990
        %6029 = vmatprep.subr.mxu0 0.0
        %6030 = vmatpush1.msra.mxu0 %v5991
        %6031 = vmatprep.subr.mxu0 0.0
        %6032 = vmatpush1.msra.mxu0 0.0
        %6033 = vmatprep.subr.mxu0 0.0
        %6034 = vmatpush1.msra.mxu0 0.0
        %6035 = vmatprep.subr.mxu0 0.0
        %6036 = vmatpush1.msra.mxu0 0.0
        %6037 = vmatprep.subr.mxu0 0.0
        %6038 = vmatpush1.msra.mxu0 0.0
        %6039 = vmatprep.subr.mxu0 0.0
        %6040 = vmatpush1.msra.mxu0 0.0
        %6041 = vmatprep.subr.mxu0 0.0
        %6042 = vmatpush1.msra.mxu0 0.0
        %6043 = vmatprep.subr.mxu0 0.0
        %6044 = vmatpush1.msra.mxu0 0.0
        %6045 = vmatprep.subr.mxu0 0.0
        %6046 = vmatpush1.msra.mxu0 0.0
        %6047 = vmatprep.subr.mxu0 0.0
        %6048 = vmatpush1.msra.mxu0 0.0
        %6049 = vmatprep.subr.mxu0 0.0
        %6050 = vmatpush1.msra.mxu0 0.0
        %6051 = vmatprep.subr.mxu0 0.0
        %6052 = vmatpush1.msra.mxu0 0.0
        %6053 = vmatprep.subr.mxu0 0.0
        %6054 = vmatpush1.msra.mxu0 0.0
        %6055 = vmatprep.subr.mxu0 0.0
        %6056 = vmatpush1.msra.mxu0 0.0
        %6057 = vmatprep.subr.mxu0 0.0
        %6058 = vmatpush1.msra.mxu0 0.0
        %6059 = vmatprep.subr.mxu0 0.0
        %6060 = vmatpush1.msra.mxu0 0.0
        %6061 = vmatprep.subr.mxu0 0.0
        %6062 = vmatpush1.msra.mxu0 0.0
        %6063 = vmatprep.mubr.f32.mxu0 0.0
        %6064 = vmatmul.mubr.f32.gmra.mrb[0].mxu0 %v5968
        %v6065 = vpop.f32.mrb[0].mxu0
        %v6066 = vadd.f32 %v5997, %v6065
        %v6067 = vpop.f32.mrb[0].mxu0
        %6068 = vmatprep.mubr.f32.mxu0 0.0
        %6069 = vmatmul.mubr.f32.gmra.mrb[0].mxu0 %v5969
        %v6070 = vpop.f32.mrb[0].mxu0
        %v6071 = vadd.f32 %v5997, %v6070
        %v6072 = vpop.f32.mrb[0].mxu0
        %6073 = vmatprep.mubr.f32.mxu0 0.0
        %6074 = vmatmul.mubr.f32.gmra.mrb[0].mxu0 %v5970
        %v6075 = vpop.f32.mrb[0].mxu0
        %v6076 = vadd.f32 %v5997, %v6075
        %v6077 = vpop.f32.mrb[0].mxu0
        %6078 = vmatprep.mubr.f32.mxu0 0.0
        %6079 = vmatmul.mubr.f32.gmra.mrb[0].mxu0 %v5971
        %v6080 = vpop.f32.mrb[0].mxu0
        %v6081 = vadd.f32 %v5997, %v6080
        %v6082 = vpop.f32.mrb[0].mxu0
        %6083 = vmatprep.mubr.f32.mxu0 0.0
        %6084 = vmatmul.mubr.f32.gmra.mrb[0].mxu0 %v5972
        %v6085 = vpop.f32.mrb[0].mxu0
        %v6086 = vadd.f32 %v5997, %v6085
        %v6087 = vpop.f32.mrb[0].mxu0
        %6088 = vmatprep.mubr.f32.mxu0 0.0
        %6089 = vmatmul.mubr.f32.gmra.mrb[0].mxu0 %v5973
        %v6090 = vpop.f32.mrb[0].mxu0
        %v6091 = vadd.f32 %v5997, %v6090
        %v6092 = vpop.f32.mrb[0].mxu0
        %6093 = vmatprep.mubr.f32.mxu0 0.0
        %6094 = vmatmul.mubr.f32.gmra.mrb[0].mxu0 %v5974
        %v6095 = vpop.f32.mrb[0].mxu0
        %v6096 = vadd.f32 %v5997, %v6095
        %v6097 = vpop.f32.mrb[0].mxu0
        %6098 = vmatprep.mubr.f32.mxu0 0.0
        %6099 = vmatmul.mubr.f32.gmra.mrb[0].mxu0 %v5975
        %v6100 = vpop.f32.mrb[0].mxu0
        %v6101 = vadd.f32 %v5997, %v6100
        %v6102 = vpop.f32.mrb[0].mxu0
        %6103 = vdwg.mxu0
        %vm6104 = vcmask 7168
        %v6105 = vsel %vm6104, %v6066, -inf
        %v6106 = vsel %vm6104, %v6071, -inf
        %v6107 = vsel %vm6104, %v6076, -inf
        %v6108 = vsel %vm6104, %v6081, -inf
        %v6109 = vsel %vm6104, %v6086, -inf
        %v6110 = vmax.f32 %v6105, %v6109
        %v6111 = vsel %vm6104, %v6091, -inf
        %v6112 = vmax.f32 %v6106, %v6111
        %v6113 = vsel %vm6104, %v6096, -inf
        %v6114 = vmax.f32 %v6107, %v6113
        %v6115 = vsel %vm6104, %v6101, -inf
        %v6116 = vmax.f32 %v6108, %v6115
        %v6117 = vmax.f32 %v6110, %v6112
        %v6118 = vmax.f32 %v6114, %v6116
        %v6119 = vmax.f32 %v6117, %v6118
        %v6120 = vrot.slane %v6119, 4
        %v6121 = vmax.f32 %v6119, %v6120
        %v6122 = vrot.slane %v6121, 2
        %v6123 = vmax.f32 %v6121, %v6122
        %v6124 = vrot.slane %v6123, 1
        %v6125 = vmax.f32 %v6123, %v6124
        %v6126 = vsub.f32 %v6066, %v6125
        %v6127 = vsub.f32 %v6071, %v6125
        %v6128 = vsub.f32 %v6076, %v6125
        %v6129 = vsub.f32 %v6081, %v6125
        %v6130 = vsub.f32 %v6086, %v6125
        %v6131 = vsub.f32 %v6091, %v6125
        %v6132 = vsub.f32 %v6096, %v6125
        %v6133 = vsub.f32 %v6101, %v6125
        %v6134 = vmul.f32 %v6126, 1.442695
        %v6135 = vpow.pop %v6134
        %v6136 = vmul.f32 %v6127, 1.442695
        %v6137 = vpow.pop %v6136
        %v6138 = vmul.f32 %v6128, 1.442695
        %v6139 = vpow.pop %v6138
        %v6140 = vmul.f32 %v6129, 1.442695
        %v6141 = vpow.pop %v6140
        %v6142 = vmul.f32 %v6130, 1.442695
        %v6143 = vpow.pop %v6142
        %v6144 = vmul.f32 %v6131, 1.442695
        %v6145 = vpow.pop %v6144
        %v6146 = vmul.f32 %v6132, 1.442695
        %v6147 = vpow.pop %v6146
        %v6148 = vmul.f32 %v6133, 1.442695
        %v6149 = vpow.pop %v6148
        %v6150 = vsel %vm6104, %v6135, 0.0
        %v6151 = vsel %vm6104, %v6137, 0.0
        %v6152 = vadd.f32 %v6150, %v6151
        %v6153 = vsel %vm6104, %v6139, 0.0
        %v6154 = vadd.f32 %v6152, %v6153
        %v6155 = vsel %vm6104, %v6141, 0.0
        %v6156 = vadd.f32 %v6154, %v6155
        %v6157 = vsel %vm6104, %v6143, 0.0
        %v6158 = vadd.f32 %v6156, %v6157
        %v6159 = vsel %vm6104, %v6145, 0.0
        %v6160 = vadd.f32 %v6158, %v6159
        %v6161 = vsel %vm6104, %v6147, 0.0
        %v6162 = vadd.f32 %v6160, %v6161
        %v6163 = vsel %vm6104, %v6149, 0.0
        %v6164 = vadd.f32 %v6162, %v6163
        %v6165 = vrot.slane %v6164, 4
        %v6166 = vadd.f32 %v6164, %v6165
        %v6167 = vrot.slane %v6166, 2
        %v6168 = vadd.f32 %v6166, %v6167
        %v6169 = vrot.slane %v6168, 1
        %v6170 = vadd.f32 %v6168, %v6169
        %v6171 = vrcp.pop %v6170
        %v6172 = vmul.f32 %v6135, %v6171
        %v6173 = vmul.f32 %v6137, %v6171
        %v6174 = vmul.f32 %v6139, %v6171
        %v6175 = vmul.f32 %v6141, %v6171
        %v6176 = vmul.f32 %v6143, %v6171
        %v6177 = vmul.f32 %v6145, %v6171
        %v6178 = vmul.f32 %v6147, %v6171
        %v6179 = vmul.f32 %v6149, %v6171
        %6181 = vset.pattern.permute.xlu0 0
        %6182 = vperm.xlu0 %6181, %v6172
        %v6183 = vpop.permute.xlu0 %6182
        %6186 = vset.pattern.permute.xlu0 0
        %6187 = vperm.xlu0 %6186, %v6173
        %v6188 = vpop.permute.xlu0 %6187
        %6191 = vset.pattern.permute.xlu0 0
        %6192 = vperm.xlu0 %6191, %v6174
        %v6193 = vpop.permute.xlu0 %6192
        %6196 = vset.pattern.permute.xlu0 0
        %6197 = vperm.xlu0 %6196, %v6175
        %v6198 = vpop.permute.xlu0 %6197
        %6201 = vset.pattern.permute.xlu0 0
        %6202 = vperm.xlu0 %6201, %v6176
        %v6203 = vpop.permute.xlu0 %6202
        %6206 = vset.pattern.permute.xlu0 0
        %6207 = vperm.xlu0 %6206, %v6177
        %v6208 = vpop.permute.xlu0 %6207
        %6211 = vset.pattern.permute.xlu0 0
        %6212 = vperm.xlu0 %6211, %v6178
        %v6213 = vpop.permute.xlu0 %6212
        %6216 = vset.pattern.permute.xlu0 0
        %6217 = vperm.xlu0 %6216, %v6179
        %v6218 = vpop.permute.xlu0 %6217
        %v6220 = vmul.f32 %v6183, %v5968
        %v6221 = vmul.f32 %v6188, %v5969
        %v6222 = vmul.f32 %v6193, %v5970
        %v6223 = vmul.f32 %v6198, %v5971
        %v6224 = vmul.f32 %v6203, %v5972
        %v6225 = vmul.f32 %v6208, %v5973
        %v6226 = vmul.f32 %v6213, %v5974
        %v6227 = vmul.f32 %v6218, %v5975
        %v6228 = vadd.f32 %v6220, %v6221
        %v6229 = vadd.f32 %v6228, %v6222
        %v6230 = vadd.f32 %v6229, %v6223
        %v6231 = vadd.f32 %v6230, %v6224
        %v6232 = vadd.f32 %v6231, %v6225
        %v6233 = vadd.f32 %v6232, %v6226
        %v6234 = vadd.f32 %v6233, %v6227
        %v6235 = vrot.slane %v6234, 4
        %v6236 = vadd.f32 %v6234, %v6235
        %v6237 = vrot.slane %v6236, 2
        %v6238 = vadd.f32 %v6236, %v6237
        %v6239 = vrot.slane %v6238, 1
        %v6240 = vadd.f32 %v6238, %v6239
        %v6241 = vld [vmem:[%s18] sm:$0xff]
        %v6242 = vld [vmem:[%s18 + $0x8] sm:$0xff]
        %v6243 = vld [vmem:[%s18 + $0x10] sm:$0xff]
        %v6244 = vld [vmem:[%s18 + $0x18] sm:$0xff]
        %v6245 = vld [vmem:[%s18 + $0x20] sm:$0xff]
        %v6246 = vld [vmem:[%s18 + $0x28] sm:$0xff]
        %v6247 = vld [vmem:[%s18 + $0x30] sm:$0xff]
        %v6248 = vld [vmem:[%s18 + $0x38] sm:$0xff]
        %v6249 = vld [vmem:[%s18 + $0x40] sm:$0xff]
        %v6250 = vld [vmem:[%s18 + $0x48] sm:$0xff]
        %v6251 = vld [vmem:[%s18 + $0x50] sm:$0xff]
        %v6252 = vld [vmem:[%s18 + $0x58] sm:$0xff]
        %v6253 = vld [vmem:[%s18 + $0x60] sm:$0xff]
        %v6254 = vld [vmem:[%s18 + $0x68] sm:$0xff]
        %v6255 = vld [vmem:[%s18 + $0x70] sm:$0xff]
        %v6256 = vld [vmem:[%s18 + $0x78] sm:$0xff]
        %v6257 = vld [vmem:[%s19] sm:$0x1]
        %6258 = vmatprep.subr.mxu0 0.0
        %6259 = vmatpush1.msra.mxu0 %v6241
        %6260 = vmatprep.subr.mxu0 0.0
        %6261 = vmatpush1.msra.mxu0 %v6242
        %6262 = vmatprep.subr.mxu0 0.0
        %6263 = vmatpush1.msra.mxu0 %v6243
        %6264 = vmatprep.subr.mxu0 0.0
        %6265 = vmatpush1.msra.mxu0 %v6244
        %6266 = vmatprep.subr.mxu0 0.0
        %6267 = vmatpush1.msra.mxu0 %v6245
        %6268 = vmatprep.subr.mxu0 0.0
        %6269 = vmatpush1.msra.mxu0 %v6246
        %6270 = vmatprep.subr.mxu0 0.0
        %6271 = vmatpush1.msra.mxu0 %v6247
        %6272 = vmatprep.subr.mxu0 0.0
        %6273 = vmatpush1.msra.mxu0 %v6248
        %6274 = vmatprep.subr.mxu0 0.0
        %6275 = vmatpush1.msra.mxu0 %v6249
        %6276 = vmatprep.subr.mxu0 0.0
        %6277 = vmatpush1.msra.mxu0 %v6250
        %6278 = vmatprep.subr.mxu0 0.0
        %6279 = vmatpush1.msra.mxu0 %v6251
        %6280 = vmatprep.subr.mxu0 0.0
        %6281 = vmatpush1.msra.mxu0 %v6252
        %6282 = vmatprep.subr.mxu0 0.0
        %6283 = vmatpush1.msra.mxu0 %v6253
        %6284 = vmatprep.subr.mxu0 0.0
        %6285 = vmatpush1.msra.mxu0 %v6254
        %6286 = vmatprep.subr.mxu0 0.0
        %6287 = vmatpush1.msra.mxu0 %v6255
        %6288 = vmatprep.subr.mxu0 0.0
        %6289 = vmatpush1.msra.mxu0 %v6256
        %6290 = vmatprep.subr.mxu0 0.0
        %6291 = vmatpush1.msra.mxu0 0.0
        %6292 = vmatprep.subr.mxu0 0.0
        %6293 = vmatpush1.msra.mxu0 0.0
        %6294 = vmatprep.subr.mxu0 0.0
        %6295 = vmatpush1.msra.mxu0 0.0
        %6296 = vmatprep.subr.mxu0 0.0
        %6297 = vmatpush1.msra.mxu0 0.0
        %6298 = vmatprep.subr.mxu0 0.0
        %6299 = vmatpush1.msra.mxu0 0.0
        %6300 = vmatprep.subr.mxu0 0.0
        %6301 = vmatpush1.msra.mxu0 0.0
        %6302 = vmatprep.subr.mxu0 0.0
        %6303 = vmatpush1.msra.mxu0 0.0
        %6304 = vmatprep.subr.mxu0 0.0
        %6305 = vmatpush1.msra.mxu0 0.0
        %6306 = vmatprep.subr.mxu0 0.0
        %6307 = vmatpush1.msra.mxu0 0.0
        %6308 = vmatprep.subr.mxu0 0.0
        %6309 = vmatpush1.msra.mxu0 0.0
        %6310 = vmatprep.subr.mxu0 0.0
        %6311 = vmatpush1.msra.mxu0 0.0
        %6312 = vmatprep.subr.mxu0 0.0
        %6313 = vmatpush1.msra.mxu0 0.0
        %6314 = vmatprep.subr.mxu0 0.0
        %6315 = vmatpush1.msra.mxu0 0.0
        %6316 = vmatprep.subr.mxu0 0.0
        %6317 = vmatpush1.msra.mxu0 0.0
        %6318 = vmatprep.subr.mxu0 0.0
        %6319 = vmatpush1.msra.mxu0 0.0
        %6320 = vmatprep.subr.mxu0 0.0
        %6321 = vmatpush1.msra.mxu0 0.0
        %6322 = vmatprep.mubr.f32.mxu0 0.0
        %6323 = vmatmul.mubr.f32.gmra.mrb[0].mxu0 %v6240
        %v6324 = vpop.f32.mrb[0].mxu0
        %v6325 = vadd.f32 %v6257, %v6324
        %v6326 = vpop.f32.mrb[0].mxu0
        %6327 = vdwg.mxu0
        %vm6328 = vcmask 73728
        %6329 = vst.msk [vmem:[%s623] sm:$0x1] %vm6328, %v6325
        %s6330 = sand.u32 %s469, 1
        %s6331 = scalar_lea.sflag [#allocation4], %s6330
        %s6332 = sand.u32 %s469, 1
        %s6333 = scalar_lea.vmem [#allocation3], %s6332
        // Predicated region
        $region101: #{cct_forward.1} parent=99 // pred_check
          %p6334 = pneg %p479
        $region102: #{cct_forward.1} parent=99 // pred_check_branch
          %6336 = sbr.rel (%p6334) target = $region104
        $region103: #{cct_forward.1} parent=99 // pred_region
          %s6338 = ssub.s32 16, 16
          %6339 = vsyncadd %s6331, %s6338
          %s6340 = smul.addr %s36, 16
          %s6341 = scalar_lea.hbm %s20, %s6340
          %s6343 = sshll.u32 %s6333, 4
          %s6344 = int_to_ptr.vmem [resolvable:$true] %s6343
          %6346 = dma.vmem_to_hbm [thread:$0]  %s6344, 16, %s6341, %s6331
        $region104: #{cct_forward.1} parent=99 // pred_fallthru
          _
      $region100: #{cct_forward.1} parent=5 // pred_fallthru
        _
      %p6347 = scmp.le.s32.totalorder 2, %s31
      // Predicated region
      $region105: #{cct_forward.1} parent=5 // pred_check
        %p6348 = pneg %p6347
      $region106: #{cct_forward.1} parent=5 // pred_check_branch
        %6350 = sbr.rel (%p6348) target = $region108
      $region107: #{cct_forward.1} parent=5 // pred_region
        %s6351 = ssub.s32 %s31, 2
        // Predicated region
        $region109: #{cct_forward.1} parent=107 // pred_check
          %p6352 = pneg %p485
        $region110: #{cct_forward.1} parent=107 // pred_check_branch
          %6354 = sbr.rel (%p6352) target = $region112
        $region111: #{cct_forward.1} parent=107 // pred_region
          %s6355 = sand.u32 %s470, 1
          %s6356 = scalar_lea.sflag [#allocation4], %s6355
          %s6357 = sand.u32 %s470, 1
          %s6358 = scalar_lea.vmem [#allocation3], %s6357
          %6359 = dma.done %s6356, 16
        $region112: #{cct_forward.1} parent=107 // pred_fallthru
          _
      $region108: #{cct_forward.1} parent=5 // pred_fallthru
        _
    $region6: #{cct_forward.1} parent=1 // loop_footer
      %s35 = sadd.s32 1, %s31
    $region7: #{cct_forward.1} parent=1 // loop_footer_branch
      %30 = sbr.rel target = $region3
    $region8: #{cct_forward.1} parent=1 // loop_exit
      _
    %6360 = vsyncpa [#allocation4], 1
    %s6361 = scalar_lea.sflag [#allocation4], 1
    %6362 = vsyncpa %s6361, 1

</llo_original>
